<compile_context>
chip_gen: v7x
topology: tpu7x:2x2x1
jax: 0.10.0
libtpu: 0.0.40
codegen_flags: <defaults>
</compile_context>

<pallas_src>
import functools

import jax
import jax.numpy as jnp
import numpy as np
from jax.experimental import pallas as pl
from jax.experimental.pallas import tpu as pltpu


@functools.lru_cache(maxsize=None)
def _interp_matrix_np(out_size: int, in_size: int) -> np.ndarray:
    """align_corners=True 1-D linear interpolation weights, shape (out, in)."""
    scale = (in_size - 1) / (out_size - 1) if out_size > 1 else 0.0
    src = np.arange(out_size, dtype=np.float64) * scale
    i0 = np.clip(np.floor(src).astype(np.int64), 0, in_size - 1)
    i1 = np.clip(i0 + 1, 0, in_size - 1)
    w1 = src - i0.astype(np.float64)
    w0 = 1.0 - w1
    m = np.zeros((out_size, in_size), dtype=np.float64)
    rows = np.arange(out_size)
    m[rows, i0] += w0
    m[rows, i1] += w1
    return m.astype(np.float32)


def _interp_matrix(out_size: int, in_size: int) -> jnp.ndarray:
    return jnp.asarray(_interp_matrix_np(out_size, in_size))


def _final_up_kernel_1p(rh_ref, rwt_ref, x_ref, o_ref):
    # rh_ref : (tile_h, H_in)   row-interp weights for this output-row tile
    # rwt_ref: (W_in,  W_out)   transposed column-interp weights
    # x_ref  : (H_in,  W_in)    one input plane (leading plane dim squeezed)
    # o_ref  : (tile_h, W_out)
    xw = jnp.dot(x_ref[...], rwt_ref[...], preferred_element_type=jnp.float32)
    o_ref[...] = jnp.dot(
        rh_ref[...], xw, preferred_element_type=jnp.float32
    ).astype(o_ref.dtype)


def _final_up_kernel_np(rh_ref, rwt_ref, x_ref, o_ref):
    # Multi-plane variant (v6e/v7x): x_ref (P, H_in, W_in), o_ref (P, tile_h, W_out).
    rh = rh_ref[...]
    rwt = rwt_ref[...]
    for p in range(x_ref.shape[0]):            # P is tiny (2); static unroll
        xw = jnp.dot(x_ref[p], rwt, preferred_element_type=jnp.float32)
        o_ref[p] = jnp.dot(rh, xw, preferred_element_type=jnp.float32).astype(o_ref.dtype)


def final_up(x: jnp.ndarray, out_hw=(1200, 1200), *, tile_h: int | None = None,
             planes_per_step: int = 1, out_dtype=None) -> jnp.ndarray:
    """Bilinear (align_corners=True) upsample of NCHW `x` to spatial `out_hw`."""
    N, C, H_in, W_in = x.shape
    H_out, W_out = out_hw
    out_dtype = out_dtype or x.dtype
    B = N * C

    if tile_h is None:
        # Full-plane tiles; if there is only one plane, split H so a v7x
        # megacore still gets >= 2 parallel grid steps.
        tile_h = H_out if B >= 2 else (400 if H_out % 400 == 0 else H_out)
    assert H_out % tile_h == 0
    # Multiple of 16 keeps the block legal for bf16 (16, 128) sublane tiling too.
    assert tile_h % 16 == 0
    assert B % planes_per_step == 0

    rh = _interp_matrix(H_out, H_in)            # (H_out, H_in)  f32
    rwt = _interp_matrix(W_out, W_in).T         # (W_in,  W_out) f32
    xf = x.reshape(B, H_in, W_in).astype(jnp.float32)

    grid = (B // planes_per_step, H_out // tile_h)

    in_specs = [
        # rh tile: index independent of the plane axis -> stays resident.
        pl.BlockSpec((tile_h, H_in), lambda b, h: (h, 0)),
        # rwt: whole (tiny) matrix, resident for the entire grid.
        pl.BlockSpec((W_in, W_out), lambda b, h: (0, 0)),
    ]
    if planes_per_step == 1:
        kernel = _final_up_kernel_1p
        in_specs.append(
            pl.BlockSpec((pl.Squeezed(), H_in, W_in), lambda b, h: (b, 0, 0)))
        out_spec = pl.BlockSpec((pl.Squeezed(), tile_h, W_out),
                                lambda b, h: (b, h, 0))
    else:
        kernel = _final_up_kernel_np
        in_specs.append(
            pl.BlockSpec((planes_per_step, H_in, W_in), lambda b, h: (b, 0, 0)))
        out_spec = pl.BlockSpec((planes_per_step, tile_h, W_out),
                                lambda b, h: (b, h, 0))

    out_itemsize = jnp.dtype(out_dtype).itemsize
    cost = pl.CostEstimate(
        flops=int(2 * B * H_in * W_in * W_out          # column interp (fused)
                  + 2 * B * H_out * H_in * W_out),     # row interp
        transcendentals=0,
        bytes_accessed=int(B * H_out * W_out * out_itemsize   # output writes
                           + B * H_in * W_in * 4              # x reads
                           + H_out * H_in * 4                 # rh
                           + W_in * W_out * 4),               # rwt
    )

    # VMEM working set is dominated by the double-buffered output blocks.
    out_block_bytes = planes_per_step * tile_h * W_out * out_itemsize
    vmem_limit = min(max(32 << 20, 2 * out_block_bytes + (24 << 20)), 100 << 20)

    out = pl.pallas_call(
        kernel,
        out_shape=jax.ShapeDtypeStruct((B, H_out, W_out), out_dtype),
        grid_spec=pltpu.PrefetchScalarGridSpec(
            num_scalar_prefetch=0,
            grid=grid,
            in_specs=in_specs,
            out_specs=out_spec,
        ),
        compiler_params=pltpu.CompilerParams(
            dimension_semantics=("parallel", "parallel"),
            vmem_limit_bytes=vmem_limit,
        ),
        cost_estimate=cost,
    )(rh, rwt, xf)

    return out.reshape(N, C, H_out, W_out)


if __name__ == "__main__":
    key = jax.random.PRNGKey(0)
    # Small NCHW input, consistent with Final_Up.forward (any spatial size in).
    x = jax.random.normal(key, (2, 4, 16, 16), dtype=jnp.float32)

    # Host-side float64 reference using the same separable formulation.
    rh64 = _interp_matrix_np(1200, 16).astype(np.float64)    # (1200, 16)
    rw64 = _interp_matrix_np(1200, 16).astype(np.float64)    # (1200, 16)
    x64 = np.asarray(x, dtype=np.float64)                    # (2, 4, 16, 16)
    xw64 = x64 @ rw64.T                                      # (2, 4, 16, 1200)
    y_ref = np.matmul(rh64, xw64)                            # (2, 4, 1200, 1200)

    # Default path: one full output plane per grid step, squeezed 2-D refs.
    y = jax.block_until_ready(final_up(x, out_hw=(1200, 1200)))
    assert y.shape == (2, 4, 1200, 1200)
    assert np.allclose(np.asarray(y, dtype=np.float64), y_ref, atol=5e-3, rtol=5e-3)

    # Multi-plane tuning path (v6e/v7x knob): 2 planes per grid step.
    y2 = jax.block_until_ready(final_up(x, out_hw=(1200, 1200), planes_per_step=2))
    assert np.allclose(np.asarray(y2, dtype=np.float64), y_ref, atol=5e-3, rtol=5e-3)

    print("KERNEL_OK")
</pallas_src>

<mosaic_0001>
module attributes {stable_mosaic.version = 11 : i64} {
  func.func @_final_up_kernel_1p(%arg0: i32, %arg1: i32, %arg2: memref<1200x16xf32, #tpu.memory_space<vmem>>, %arg3: memref<16x1200xf32, #tpu.memory_space<vmem>>, %arg4: memref<1x16x16xf32, #tpu.memory_space<vmem>>, %arg5: memref<1x1200x1200xf32, #tpu.memory_space<vmem>>) attributes {dimension_semantics = [#tpu.dimension_semantics<parallel>, #tpu.dimension_semantics<parallel>], iteration_bounds = array<i64: 8, 1>, scalar_prefetch = 0 : i64, scratch_operands = 0 : i64, tpu.core_type = #tpu.core_type<tc>, window_params = [{transform_indices = @transform_0, window_bounds = array<i64: 1200, 16>}, {pipeline_mode = #tpu.pipeline_mode<synchronous>, transform_indices = @transform_1, window_bounds = array<i64: 16, 1200>}, {transform_indices = @transform_2, window_bounds = array<i64: 1, 16, 16>}, {transform_indices = @transform_3, window_bounds = array<i64: 1, 1200, 1200>}]} {
    %c0 = arith.constant 0 : index
    %c0_0 = arith.constant 0 : index
    %c0_1 = arith.constant 0 : index
    %0 = vector.load %arg4[%c0, %c0_0, %c0_1] : memref<1x16x16xf32, #tpu.memory_space<vmem>>, vector<1x16x16xf32>
    %1 = vector.shape_cast %0 : vector<1x16x16xf32> to vector<16x16xf32>
    %c0_2 = arith.constant 0 : index
    %c0_3 = arith.constant 0 : index
    %2 = vector.load %arg3[%c0_2, %c0_3] : memref<16x1200xf32, #tpu.memory_space<vmem>>, vector<16x1200xf32>
    %cst = arith.constant dense<0.000000e+00> : vector<16x1200xf32>
    %3 = tpu.matmul %1, %2, %cst {dimension_numbers = #tpu.dot_dimension_numbers<[1], [0], [0], [1], [0, 0, 1, 1], [], []>} : vector<16x16xf32>, vector<16x1200xf32>, vector<16x1200xf32> -> vector<16x1200xf32>
    %c0_4 = arith.constant 0 : index
    %c0_5 = arith.constant 0 : index
    %4 = vector.load %arg2[%c0_4, %c0_5] : memref<1200x16xf32, #tpu.memory_space<vmem>>, vector<1200x16xf32>
    %cst_6 = arith.constant dense<0.000000e+00> : vector<1200x1200xf32>
    %5 = tpu.matmul %4, %3, %cst_6 {dimension_numbers = #tpu.dot_dimension_numbers<[1], [0], [0], [1], [0, 0, 1, 1], [], []>} : vector<1200x16xf32>, vector<16x1200xf32>, vector<1200x1200xf32> -> vector<1200x1200xf32>
    %c0_7 = arith.constant 0 : index
    %c0_8 = arith.constant 0 : index
    %c0_9 = arith.constant 0 : index
    %6 = vector.load %arg5[%c0_7, %c0_8, %c0_9] : memref<1x1200x1200xf32, #tpu.memory_space<vmem>>, vector<1x1200x1200xf32>
    %7 = vector.shape_cast %6 : vector<1x1200x1200xf32> to vector<1200x1200xf32>
    %8 = vector.shape_cast %5 : vector<1200x1200xf32> to vector<1x1200x1200xf32>
    tpu.vector_store %arg5[%c0_7, %c0_8, %c0_9], %8 {strides = array<i32>} : memref<1x1200x1200xf32, #tpu.memory_space<vmem>>, vector<1x1200x1200xf32>,
    return
  }
  func.func @transform_0(%arg0: i32, %arg1: i32) -> (i32, i32) {
    %c0_i32 = arith.constant 0 : i32
    %c0_i32_0 = arith.constant 0 : i32
    return %arg1, %c0_i32 : i32, i32
  }
  func.func @transform_1(%arg0: i32, %arg1: i32) -> (i32, i32) {
    %c0_i32 = arith.constant 0 : i32
    %c0_i32_0 = arith.constant 0 : i32
    %c0_i32_1 = arith.constant 0 : i32
    return %c0_i32, %c0_i32_0 : i32, i32
  }
  func.func @transform_2(%arg0: i32, %arg1: i32) -> (i32, i32, i32) {
    %c0_i32 = arith.constant 0 : i32
    %c0_i32_0 = arith.constant 0 : i32
    %c0_i32_1 = arith.constant 0 : i32
    return %arg0, %c0_i32, %c0_i32_0 : i32, i32, i32
  }
  func.func @transform_3(%arg0: i32, %arg1: i32) -> (i32, i32, i32) {
    %c0_i32 = arith.constant 0 : i32
    %c0_i32_0 = arith.constant 0 : i32
    return %arg0, %arg1, %c0_i32 : i32, i32, i32
  }
}

</mosaic_0001>

<llo_original>
// kernel: tpu_custom_call.1
$region0: #{tpu_custom_call.1}
  #allocation0 [shape = 'u32[]', space=smem, size = 0x4, offset = 0x4, fixed_abs, tag = 'smem constant byte address 0x4 - core index']
  #allocation1 [shape = 'u32[144,128]{1,0:T(1,128)}', space=vmem, size = 0x12000, scoped, tag = 'internal scratch']
  %s0 = inlined_call_operand.vmem [shape: f32[1200,16], index: 0, kind: input, shape index: {}]
  %s1 = inlined_call_operand.hbm [shape: f32[16,1200], index: 1, kind: input, shape index: {}]
  %s2 = inlined_call_operand.hbm [shape: f32[8,16,16], index: 2, kind: input, shape index: {}]
  %s3 = inlined_call_operand.hbm [shape: f32[8,1200,1200], index: 3, kind: output, shape index: {}]
  %s4 = sld [smem:[#allocation0]]
  $region53: #{tpu_custom_call.1} parent=0
    _
  %s6 = ssub.s32 1, %s4
  %s7 = scalar_select 0, %s6, %s4
  $region1: #{tpu_custom_call.1} parent=0
    #allocation2 [shape = 'u8[81920]{0}', space=vmem, size = 0x14000, scoped, tag = 'input window, operand 1, single buffered']
    #allocation3 [shape = 's32[2]{0}', space=sflag, size = 0x8, scoped, tag = 'scoped memory for tpu_custom_call.1']
    #allocation4 [shape = 's32[2]{0}', space=sflag, size = 0x8, scoped, tag = 'scoped memory for tpu_custom_call.1']
    #allocation5 [shape = 'u8[16384]{0}', space=vmem, size = 0x4000, scoped, tag = 'input window, operand 2']
    #allocation6 [shape = 's32[2]{0}', space=sflag, size = 0x8, scoped, tag = 'scoped memory for tpu_custom_call.1']
    #allocation7 [shape = 'u8[12288000]{0}', space=vmem, size = 0xbb8000, scoped, tag = 'output window, operand 0']
    %8 = vsyncpa [#allocation3], 0
    %9 = vsyncpa [#allocation6], 0
    %s10 = scalar_lea.sflag [#allocation6], 1
    %11 = vsyncpa %s10, 0
    %12 = vsyncpa [#allocation4], 0
    %s13 = scalar_lea.sflag [#allocation4], 1
    %14 = vsyncpa %s13, 0
    loop: start=0, step=1, limit=10
    $region2: #{tpu_custom_call.1} parent=1 // loop_pre_header
      _
    $region3: #{tpu_custom_call.1} parent=1 // loop_header
      %s16 = sphi 0, %s20
      %p17 = scmp.ge.s32.totalorder %s16, 10
      %s23 = sphi 0, %s35
      %s24 = sphi 0, %s31
      %s25 = sphi 0, %s23
      %s26 = sphi 0, %s24
      %s27 = sphi 0, %s25
      %s28 = sphi 0, %s26
      %s38 = sphi 0, %s40
      %s41 = sphi 0, %s38
      %s42 = sphi 0, %s41
      %s58 = sphi 0, %s42
      %s62 = sphi 0, %s62
      %s64 = sphi 0, %s62
      %s65 = sphi 0, %s64
      %s79 = sphi 0, %s65
      %s85 = sphi 0, %s87
      %s88 = sphi 0, %s85
      %s89 = sphi 0, %s88
      %s105 = sphi 0, %s89
      %s113 = sphi 0, %s115
      %s116 = sphi 0, %s113
      %s117 = sphi 0, %s116
      %s133 = sphi 0, %s117
    $region4: #{tpu_custom_call.1} parent=1 // loop_header_branch
      %19 = sbr.rel (%p17) target = $region8
    $region5: #{tpu_custom_call.1} parent=1 // loop_body
      %s21 = ssub.s32 %s16, 1
      %s22 = ssub.s32 %s16, 2
      %s29 = sadd.s32 1, %s24
      %p30 = scmp.ge.s32.totalorder %s29, 1
      %s31 = scalar_select %p30, 0, %s29
      %s32 = sadd.s32 1, %s23
      %s33 = scalar_select %p30, %s32, %s23
      %p34 = scmp.ge.s32.totalorder %s33, 8
      %s35 = scalar_select %p34, 0, %s33
      %s36 = ssub.s32 %s24, %s31
      %p37 = scmp.eq.s32.totalorder %s36, 0
      %s39 = sadd.s32 %s38, 1
      %s40 = scalar_select %p37, %s38, %s39
      %p43 = pneg %p37
      %p44 = scmp.eq.s32.totalorder %s16, 7
      %p45 = por %p43, %p44
      %p46 = scmp.ne.s32.totalorder %s38, %s41
      %p47 = scmp.eq.s32.totalorder %s16, 0
      %p48 = por %p46, %p47
      %p49 = scmp.ne.s32.totalorder %s38, %s41
      %p50 = scmp.eq.s32.totalorder %s21, 7
      %p51 = por %p49, %p50
      %p52 = scmp.ne.s32.totalorder %s41, %s42
      %p53 = scmp.eq.s32.totalorder %s21, 0
      %p54 = por %p52, %p53
      %p55 = scmp.ne.s32.totalorder %s41, %s42
      %p56 = scmp.eq.s32.totalorder %s22, 7
      %p57 = por %p55, %p56
      %p59 = scmp.ne.s32.totalorder %s42, %s58
      %p60 = scmp.eq.s32.totalorder %s22, 0
      %p61 = por %p59, %p60
      %s63 = sadd.s32 %s62, 1
      %p66 = scmp.eq.s32.totalorder %s16, 7
      %p67 = scmp.ne.s32.totalorder %s62, %s64
      %p68 = scmp.eq.s32.totalorder %s16, 0
      %p69 = por %p67, %p68
      %p70 = scmp.ne.s32.totalorder %s62, %s64
      %p71 = scmp.eq.s32.totalorder %s21, 7
      %p72 = por %p70, %p71
      %p73 = scmp.ne.s32.totalorder %s64, %s65
      %p74 = scmp.eq.s32.totalorder %s21, 0
      %p75 = por %p73, %p74
      %p76 = scmp.ne.s32.totalorder %s64, %s65
      %p77 = scmp.eq.s32.totalorder %s22, 7
      %p78 = por %p76, %p77
      %p80 = scmp.ne.s32.totalorder %s65, %s79
      %p81 = scmp.eq.s32.totalorder %s22, 0
      %p82 = por %p80, %p81
      %s83 = ssub.s32 %s23, %s35
      %p84 = scmp.eq.s32.totalorder %s83, 0
      %s86 = sadd.s32 %s85, 1
      %s87 = scalar_select %p84, %s85, %s86
      %p90 = pneg %p84
      %p91 = scmp.eq.s32.totalorder %s16, 7
      %p92 = por %p90, %p91
      %p93 = scmp.ne.s32.totalorder %s85, %s88
      %p94 = scmp.eq.s32.totalorder %s16, 0
      %p95 = por %p93, %p94
      %p96 = scmp.ne.s32.totalorder %s85, %s88
      %p97 = scmp.eq.s32.totalorder %s21, 7
      %p98 = por %p96, %p97
      %p99 = scmp.ne.s32.totalorder %s88, %s89
      %p100 = scmp.eq.s32.totalorder %s21, 0
      %p101 = por %p99, %p100
      %p102 = scmp.ne.s32.totalorder %s88, %s89
      %p103 = scmp.eq.s32.totalorder %s22, 7
      %p104 = por %p102, %p103
      %p106 = scmp.ne.s32.totalorder %s89, %s105
      %p107 = scmp.eq.s32.totalorder %s22, 0
      %p108 = por %p106, %p107
      %s109 = ssub.s32 %s23, %s35
      %s110 = ssub.s32 %s24, %s31
      %s111 = sor.u32 %s109, %s110
      %p112 = scmp.eq.s32.totalorder %s111, 0
      %s114 = sadd.s32 %s113, 1
      %s115 = scalar_select %p112, %s113, %s114
      %p118 = pneg %p112
      %p119 = scmp.eq.s32.totalorder %s16, 7
      %p120 = por %p118, %p119
      %p121 = scmp.ne.s32.totalorder %s113, %s116
      %p122 = scmp.eq.s32.totalorder %s16, 0
      %p123 = por %p121, %p122
      %p124 = scmp.ne.s32.totalorder %s113, %s116
      %p125 = scmp.eq.s32.totalorder %s21, 7
      %p126 = por %p124, %p125
      %p127 = scmp.ne.s32.totalorder %s116, %s117
      %p128 = scmp.eq.s32.totalorder %s21, 0
      %p129 = por %p127, %p128
      %p130 = scmp.ne.s32.totalorder %s116, %s117
      %p131 = scmp.eq.s32.totalorder %s22, 7
      %p132 = por %p130, %p131
      %p134 = scmp.ne.s32.totalorder %s117, %s133
      %p135 = scmp.eq.s32.totalorder %s22, 0
      %p136 = por %p134, %p135
      %p137 = scmp.le.s32.totalorder 1, %s16
      %p138 = scmp.lt.s32.totalorder %s16, 9
      %p139 = pnand %p137, %p138
      %p140 = pneg %p139
      // Predicated region
      $region9: #{tpu_custom_call.1} parent=5 // pred_check
        _
      $region10: #{tpu_custom_call.1} parent=5 // pred_check_branch
        %142 = sbr.rel (%p139) target = $region12
      $region11: #{tpu_custom_call.1} parent=5 // pred_region
        %s143 = ssub.s32 %s16, 1
        // Predicated region
        $region13: #{tpu_custom_call.1} parent=11 // pred_check
          %p144 = pneg %p54
        $region14: #{tpu_custom_call.1} parent=11 // pred_check_branch
          %146 = sbr.rel (%p144) target = $region16
        $region15: #{tpu_custom_call.1} parent=11 // pred_region
          %s147 = smul.u32 150, %s26
          %p148 = scmp.lt.s32.totalorder %s147, 149
          %s149 = scalar_select %p148, %s147, 149
          %s150 = smul.addr %s149, 8
          %s151 = scalar_lea.vmem %s0, %s150
          %s152 = smul.u32 150, %s26
        $region16: #{tpu_custom_call.1} parent=11 // pred_fallthru
          _
        // Predicated region
        $region17: #{tpu_custom_call.1} parent=11 // pred_check
          %p153 = pneg %p75
        $region18: #{tpu_custom_call.1} parent=11 // pred_check_branch
          %155 = sbr.rel (%p153) target = $region20
        $region19: #{tpu_custom_call.1} parent=11 // pred_region
          %s157 = ssub.s32 2560, 2560
          %158 = vsyncadd [#allocation3], %s157
          %s159 = sshll.u32 [#allocation2], 4
          %s160 = int_to_ptr.vmem [resolvable:$true] %s159
          %165 = dma.hbm_to_vmem [thread:$0]  %s1, 2560, %s160, [#allocation3], 1280, 1280, 80
        $region20: #{tpu_custom_call.1} parent=11 // pred_fallthru
          _
      $region12: #{tpu_custom_call.1} parent=5 // pred_fallthru
        _
      %p166 = scmp.lt.s32.totalorder %s16, 8
      // Predicated region
      $region21: #{tpu_custom_call.1} parent=5 // pred_check
        %p167 = pneg %p166
      $region22: #{tpu_custom_call.1} parent=5 // pred_check_branch
        %169 = sbr.rel (%p167) target = $region24
      $region23: #{tpu_custom_call.1} parent=5 // pred_region
        // Predicated region
        $region25: #{tpu_custom_call.1} parent=23 // pred_check
          %p170 = pneg %p95
        $region26: #{tpu_custom_call.1} parent=23 // pred_check_branch
          %172 = sbr.rel (%p170) target = $region28
        $region27: #{tpu_custom_call.1} parent=23 // pred_region
          %s173 = sand.u32 %s85, 1
          %s174 = scalar_lea.sflag [#allocation6], %s173
          %s175 = sand.u32 %s85, 1
          %s176 = smul.addr %s175, 16
          %s177 = scalar_lea.vmem [#allocation5], %s176
          %s179 = ssub.s32 256, 256
          %180 = vsyncadd %s174, %s179
          %s181 = smul.addr %s23, 2
          %s182 = smul.addr %s181, 128
          %s183 = scalar_lea.hbm %s2, %s182
          %s184 = sshll.u32 %s177, 4
          %s185 = int_to_ptr.vmem [resolvable:$true] %s184
          %190 = dma.hbm_to_vmem [thread:$0]  %s183, 256, %s185, %s174, 128, 128, 8
        $region28: #{tpu_custom_call.1} parent=23 // pred_fallthru
          _
      $region24: #{tpu_custom_call.1} parent=5 // pred_fallthru
        _
      %p191 = scmp.le.s32.totalorder 1, %s16
      %p192 = scmp.lt.s32.totalorder %s16, 9
      %p193 = pnand %p191, %p192
      %p194 = pneg %p193
      // Predicated region
      $region29: #{tpu_custom_call.1} parent=5 // pred_check
        _
      $region30: #{tpu_custom_call.1} parent=5 // pred_check_branch
        %196 = sbr.rel (%p193) target = $region32
      $region31: #{tpu_custom_call.1} parent=5 // pred_region
        %s197 = ssub.s32 %s16, 1
        // Predicated region
        $region33: #{tpu_custom_call.1} parent=31 // pred_check
          %p198 = pneg %p75
        $region34: #{tpu_custom_call.1} parent=31 // pred_check_branch
          %200 = sbr.rel (%p198) target = $region36
        $region35: #{tpu_custom_call.1} parent=31 // pred_region
          %201 = dma.done [#allocation3], 2560
        $region36: #{tpu_custom_call.1} parent=31 // pred_fallthru
          _
        %s202 = sand.u32 %s88, 1
        %s203 = scalar_lea.sflag [#allocation6], %s202
        %s204 = sand.u32 %s88, 1
        %s205 = smul.addr %s204, 16
        %s206 = scalar_lea.vmem [#allocation5], %s205
        // Predicated region
        $region37: #{tpu_custom_call.1} parent=31 // pred_check
          %p207 = pneg %p101
        $region38: #{tpu_custom_call.1} parent=31 // pred_check_branch
          %209 = sbr.rel (%p207) target = $region40
        $region39: #{tpu_custom_call.1} parent=31 // pred_region
          %210 = dma.done %s203, 256
        $region40: #{tpu_custom_call.1} parent=31 // pred_fallthru
          _
        %s211 = smul.u32 150, %s26
        %p212 = scmp.lt.s32.totalorder %s211, 149
        %s213 = scalar_select %p212, %s211, 149
        %s214 = smul.addr %s213, 8
        %s215 = scalar_lea.vmem %s0, %s214
        %p216 = pneg %p54
        %p217 = pneg %p51
        %p218 = pneg %p75
        %p219 = pneg %p72
        %s220 = sand.u32 %s88, 1
        %s221 = scalar_lea.sflag [#allocation6], %s220
        %s222 = sand.u32 %s88, 1
        %s223 = smul.addr %s222, 16
        %s224 = scalar_lea.vmem [#allocation5], %s223
        %p225 = pneg %p101
        %p226 = pneg %p98
        %p227 = pneg %p129
        %p228 = pneg %p126
        %s229 = sand.u32 %s116, 1
        %s230 = scalar_lea.sflag [#allocation4], %s229
        %s231 = sand.u32 %s116, 1
        %s232 = smul.addr %s231, 12000
        %s233 = scalar_lea.vmem [#allocation7], %s232
        %s234 = smul.u32 150, %s26
        %p235 = scmp.lt.s32.totalorder %s234, 149
        %s236 = scalar_select %p235, %s234, 149
        %s237 = smul.addr %s236, 8
        %s238 = scalar_lea.vmem %s0, %s237
        %s239 = smul.u32 150, %s26
        %s240 = smul.u32 150, %s26
        %v241 = vld [vmem:[%s206] sm:$0xff]
        %v242 = vld [vmem:[%s206 + $0x8] sm:$0xff]
        %v243 = vld [vmem:[#allocation2] sm:$0xff]
        %v244 = vld [vmem:[#allocation2 + $0x8] sm:$0xff]
        %v245 = vld [vmem:[#allocation2 + $0x10] sm:$0xff]
        %v246 = vld [vmem:[#allocation2 + $0x18] sm:$0xff]
        %v247 = vld [vmem:[#allocation2 + $0x20] sm:$0xff]
        %v248 = vld [vmem:[#allocation2 + $0x28] sm:$0xff]
        %v249 = vld [vmem:[#allocation2 + $0x30] sm:$0xff]
        %v250 = vld [vmem:[#allocation2 + $0x38] sm:$0xff]
        %v251 = vld [vmem:[#allocation2 + $0x40] sm:$0xff]
        %v252 = vld [vmem:[#allocation2 + $0x48] sm:$0xff]
        %v253 = vld [vmem:[#allocation2 + $0x50] sm:$0xff]
        %v254 = vld [vmem:[#allocation2 + $0x58] sm:$0xff]
        %v255 = vld [vmem:[#allocation2 + $0x60] sm:$0xff]
        %v256 = vld [vmem:[#allocation2 + $0x68] sm:$0xff]
        %v257 = vld [vmem:[#allocation2 + $0x70] sm:$0xff]
        %v258 = vld [vmem:[#allocation2 + $0x78] sm:$0xff]
        %v259 = vld [vmem:[#allocation2 + $0x80] sm:$0xff]
        %v260 = vld [vmem:[#allocation2 + $0x88] sm:$0xff]
        %v261 = vld [vmem:[#allocation2 + $0x90] sm:$0xff]
        %v262 = vld [vmem:[#allocation2 + $0x98] sm:$0xff]
        %vm263 = vcmask 130048
        %v265 = vsel %vm263, %v241, 0
        %v268 = vsel %vm263, %v242, 0
        %270 = vmatprep.subr.mxu0 %v244
        %271 = vmatpush1.msra.mxu0 %v243
        %272 = vmatprep.subr.mxu0 %v254
        %273 = vmatpush1.msra.mxu0 %v253
        %274 = vmatprep.subr.mxu0 0.0
        %275 = vmatpush1.msra.mxu0 0.0
        %276 = vmatprep.subr.mxu0 0.0
        %277 = vmatpush1.msra.mxu0 0.0
        %278 = vmatprep.subr.mxu0 0.0
        %279 = vmatpush1.msra.mxu0 0.0
        %280 = vmatprep.subr.mxu0 0.0
        %281 = vmatpush1.msra.mxu0 0.0
        %282 = vmatprep.subr.mxu0 0.0
        %283 = vmatpush1.msra.mxu0 0.0
        %284 = vmatprep.subr.mxu0 0.0
        %285 = vmatpush1.msra.mxu0 0.0
        %286 = vmatprep.subr.mxu0 0.0
        %287 = vmatpush1.msra.mxu0 0.0
        %288 = vmatprep.subr.mxu0 0.0
        %289 = vmatpush1.msra.mxu0 0.0
        %290 = vmatprep.subr.mxu0 0.0
        %291 = vmatpush1.msra.mxu0 0.0
        %292 = vmatprep.subr.mxu0 0.0
        %293 = vmatpush1.msra.mxu0 0.0
        %294 = vmatprep.subr.mxu0 0.0
        %295 = vmatpush1.msra.mxu0 0.0
        %296 = vmatprep.subr.mxu0 0.0
        %297 = vmatpush1.msra.mxu0 0.0
        %298 = vmatprep.subr.mxu0 0.0
        %299 = vmatpush1.msra.mxu0 0.0
        %300 = vmatprep.subr.mxu0 0.0
        %301 = vmatpush1.msra.mxu0 0.0
        %302 = vmatprep.subr.mxu0 0.0
        %303 = vmatpush1.msra.mxu0 0.0
        %304 = vmatprep.subr.mxu0 0.0
        %305 = vmatpush1.msra.mxu0 0.0
        %306 = vmatprep.subr.mxu0 0.0
        %307 = vmatpush1.msra.mxu0 0.0
        %308 = vmatprep.subr.mxu0 0.0
        %309 = vmatpush1.msra.mxu0 0.0
        %310 = vmatprep.subr.mxu0 0.0
        %311 = vmatpush1.msra.mxu0 0.0
        %312 = vmatprep.subr.mxu0 0.0
        %313 = vmatpush1.msra.mxu0 0.0
        %314 = vmatprep.subr.mxu0 0.0
        %315 = vmatpush1.msra.mxu0 0.0
        %316 = vmatprep.subr.mxu0 0.0
        %317 = vmatpush1.msra.mxu0 0.0
        %318 = vmatprep.subr.mxu0 0.0
        %319 = vmatpush1.msra.mxu0 0.0
        %320 = vmatprep.subr.mxu0 0.0
        %321 = vmatpush1.msra.mxu0 0.0
        %322 = vmatprep.subr.mxu0 0.0
        %323 = vmatpush1.msra.mxu0 0.0
        %324 = vmatprep.subr.mxu0 0.0
        %325 = vmatpush1.msra.mxu0 0.0
        %326 = vmatprep.subr.mxu0 0.0
        %327 = vmatpush1.msra.mxu0 0.0
        %328 = vmatprep.subr.mxu0 0.0
        %329 = vmatpush1.msra.mxu0 0.0
        %330 = vmatprep.subr.mxu0 0.0
        %331 = vmatpush1.msra.mxu0 0.0
        %332 = vmatprep.subr.mxu0 0.0
        %333 = vmatpush1.msra.mxu0 0.0
        %334 = vmatprep.mubr.f32.mxu0 0.0
        %335 = vmatmul.mubr.f32.gmra.mrb[0].mxu0 %v265
        %v336 = vpop.f32.mrb[0].mxu0
        %v337 = vadd.f32 0.0, %v336
        %v338 = vpop.f32.mrb[0].mxu0
        %v339 = vadd.f32 0.0, %v338
        %340 = vmatprep.mubr.f32.mxu0 0.0
        %341 = vmatmul.mubr.f32.gmra.mrb[0].mxu0 %v268
        %v342 = vpop.f32.mrb[0].mxu0
        %v343 = vadd.f32 0.0, %v342
        %v344 = vpop.f32.mrb[0].mxu0
        %v345 = vadd.f32 0.0, %v344
        %346 = vdwg.mxu0
        %347 = vmatprep.subr.mxu0 %v246
        %348 = vmatpush1.msra.mxu0 %v245
        %349 = vmatprep.subr.mxu0 %v256
        %350 = vmatpush1.msra.mxu0 %v255
        %351 = vmatprep.subr.mxu0 0.0
        %352 = vmatpush1.msra.mxu0 0.0
        %353 = vmatprep.subr.mxu0 0.0
        %354 = vmatpush1.msra.mxu0 0.0
        %355 = vmatprep.subr.mxu0 0.0
        %356 = vmatpush1.msra.mxu0 0.0
        %357 = vmatprep.subr.mxu0 0.0
        %358 = vmatpush1.msra.mxu0 0.0
        %359 = vmatprep.subr.mxu0 0.0
        %360 = vmatpush1.msra.mxu0 0.0
        %361 = vmatprep.subr.mxu0 0.0
        %362 = vmatpush1.msra.mxu0 0.0
        %363 = vmatprep.subr.mxu0 0.0
        %364 = vmatpush1.msra.mxu0 0.0
        %365 = vmatprep.subr.mxu0 0.0
        %366 = vmatpush1.msra.mxu0 0.0
        %367 = vmatprep.subr.mxu0 0.0
        %368 = vmatpush1.msra.mxu0 0.0
        %369 = vmatprep.subr.mxu0 0.0
        %370 = vmatpush1.msra.mxu0 0.0
        %371 = vmatprep.subr.mxu0 0.0
        %372 = vmatpush1.msra.mxu0 0.0
        %373 = vmatprep.subr.mxu0 0.0
        %374 = vmatpush1.msra.mxu0 0.0
        %375 = vmatprep.subr.mxu0 0.0
        %376 = vmatpush1.msra.mxu0 0.0
        %377 = vmatprep.subr.mxu0 0.0
        %378 = vmatpush1.msra.mxu0 0.0
        %379 = vmatprep.subr.mxu0 0.0
        %380 = vmatpush1.msra.mxu0 0.0
        %381 = vmatprep.subr.mxu0 0.0
        %382 = vmatpush1.msra.mxu0 0.0
        %383 = vmatprep.subr.mxu0 0.0
        %384 = vmatpush1.msra.mxu0 0.0
        %385 = vmatprep.subr.mxu0 0.0
        %386 = vmatpush1.msra.mxu0 0.0
        %387 = vmatprep.subr.mxu0 0.0
        %388 = vmatpush1.msra.mxu0 0.0
        %389 = vmatprep.subr.mxu0 0.0
        %390 = vmatpush1.msra.mxu0 0.0
        %391 = vmatprep.subr.mxu0 0.0
        %392 = vmatpush1.msra.mxu0 0.0
        %393 = vmatprep.subr.mxu0 0.0
        %394 = vmatpush1.msra.mxu0 0.0
        %395 = vmatprep.subr.mxu0 0.0
        %396 = vmatpush1.msra.mxu0 0.0
        %397 = vmatprep.subr.mxu0 0.0
        %398 = vmatpush1.msra.mxu0 0.0
        %399 = vmatprep.subr.mxu0 0.0
        %400 = vmatpush1.msra.mxu0 0.0
        %401 = vmatprep.subr.mxu0 0.0
        %402 = vmatpush1.msra.mxu0 0.0
        %403 = vmatprep.subr.mxu0 0.0
        %404 = vmatpush1.msra.mxu0 0.0
        %405 = vmatprep.subr.mxu0 0.0
        %406 = vmatpush1.msra.mxu0 0.0
        %407 = vmatprep.subr.mxu0 0.0
        %408 = vmatpush1.msra.mxu0 0.0
        %409 = vmatprep.subr.mxu0 0.0
        %410 = vmatpush1.msra.mxu0 0.0
        %411 = vmatprep.mubr.f32.mxu0 0.0
        %412 = vmatmul.mubr.f32.gmra.mrb[0].mxu0 %v265
        %v413 = vpop.f32.mrb[0].mxu0
        %v414 = vadd.f32 0.0, %v413
        %v415 = vpop.f32.mrb[0].mxu0
        %v416 = vadd.f32 0.0, %v415
        %417 = vmatprep.mubr.f32.mxu0 0.0
        %418 = vmatmul.mubr.f32.gmra.mrb[0].mxu0 %v268
        %v419 = vpop.f32.mrb[0].mxu0
        %v420 = vadd.f32 0.0, %v419
        %v421 = vpop.f32.mrb[0].mxu0
        %v422 = vadd.f32 0.0, %v421
        %423 = vdwg.mxu0
        %424 = vmatprep.subr.mxu0 %v248
        %425 = vmatpush1.msra.mxu0 %v247
        %426 = vmatprep.subr.mxu0 %v258
        %427 = vmatpush1.msra.mxu0 %v257
        %428 = vmatprep.subr.mxu0 0.0
        %429 = vmatpush1.msra.mxu0 0.0
        %430 = vmatprep.subr.mxu0 0.0
        %431 = vmatpush1.msra.mxu0 0.0
        %432 = vmatprep.subr.mxu0 0.0
        %433 = vmatpush1.msra.mxu0 0.0
        %434 = vmatprep.subr.mxu0 0.0
        %435 = vmatpush1.msra.mxu0 0.0
        %436 = vmatprep.subr.mxu0 0.0
        %437 = vmatpush1.msra.mxu0 0.0
        %438 = vmatprep.subr.mxu0 0.0
        %439 = vmatpush1.msra.mxu0 0.0
        %440 = vmatprep.subr.mxu0 0.0
        %441 = vmatpush1.msra.mxu0 0.0
        %442 = vmatprep.subr.mxu0 0.0
        %443 = vmatpush1.msra.mxu0 0.0
        %444 = vmatprep.subr.mxu0 0.0
        %445 = vmatpush1.msra.mxu0 0.0
        %446 = vmatprep.subr.mxu0 0.0
        %447 = vmatpush1.msra.mxu0 0.0
        %448 = vmatprep.subr.mxu0 0.0
        %449 = vmatpush1.msra.mxu0 0.0
        %450 = vmatprep.subr.mxu0 0.0
        %451 = vmatpush1.msra.mxu0 0.0
        %452 = vmatprep.subr.mxu0 0.0
        %453 = vmatpush1.msra.mxu0 0.0
        %454 = vmatprep.subr.mxu0 0.0
        %455 = vmatpush1.msra.mxu0 0.0
        %456 = vmatprep.subr.mxu0 0.0
        %457 = vmatpush1.msra.mxu0 0.0
        %458 = vmatprep.subr.mxu0 0.0
        %459 = vmatpush1.msra.mxu0 0.0
        %460 = vmatprep.subr.mxu0 0.0
        %461 = vmatpush1.msra.mxu0 0.0
        %462 = vmatprep.subr.mxu0 0.0
        %463 = vmatpush1.msra.mxu0 0.0
        %464 = vmatprep.subr.mxu0 0.0
        %465 = vmatpush1.msra.mxu0 0.0
        %466 = vmatprep.subr.mxu0 0.0
        %467 = vmatpush1.msra.mxu0 0.0
        %468 = vmatprep.subr.mxu0 0.0
        %469 = vmatpush1.msra.mxu0 0.0
        %470 = vmatprep.subr.mxu0 0.0
        %471 = vmatpush1.msra.mxu0 0.0
        %472 = vmatprep.subr.mxu0 0.0
        %473 = vmatpush1.msra.mxu0 0.0
        %474 = vmatprep.subr.mxu0 0.0
        %475 = vmatpush1.msra.mxu0 0.0
        %476 = vmatprep.subr.mxu0 0.0
        %477 = vmatpush1.msra.mxu0 0.0
        %478 = vmatprep.subr.mxu0 0.0
        %479 = vmatpush1.msra.mxu0 0.0
        %480 = vmatprep.subr.mxu0 0.0
        %481 = vmatpush1.msra.mxu0 0.0
        %482 = vmatprep.subr.mxu0 0.0
        %483 = vmatpush1.msra.mxu0 0.0
        %484 = vmatprep.subr.mxu0 0.0
        %485 = vmatpush1.msra.mxu0 0.0
        %486 = vmatprep.subr.mxu0 0.0
        %487 = vmatpush1.msra.mxu0 0.0
        %488 = vmatprep.mubr.f32.mxu0 0.0
        %489 = vmatmul.mubr.f32.gmra.mrb[0].mxu0 %v265
        %v490 = vpop.f32.mrb[0].mxu0
        %v491 = vadd.f32 0.0, %v490
        %v492 = vpop.f32.mrb[0].mxu0
        %v493 = vadd.f32 0.0, %v492
        %494 = vmatprep.mubr.f32.mxu0 0.0
        %495 = vmatmul.mubr.f32.gmra.mrb[0].mxu0 %v268
        %v496 = vpop.f32.mrb[0].mxu0
        %v497 = vadd.f32 0.0, %v496
        %v498 = vpop.f32.mrb[0].mxu0
        %v499 = vadd.f32 0.0, %v498
        %500 = vdwg.mxu0
        %501 = vmatprep.subr.mxu0 %v250
        %502 = vmatpush1.msra.mxu0 %v249
        %503 = vmatprep.subr.mxu0 %v260
        %504 = vmatpush1.msra.mxu0 %v259
        %505 = vmatprep.subr.mxu0 0.0
        %506 = vmatpush1.msra.mxu0 0.0
        %507 = vmatprep.subr.mxu0 0.0
        %508 = vmatpush1.msra.mxu0 0.0
        %509 = vmatprep.subr.mxu0 0.0
        %510 = vmatpush1.msra.mxu0 0.0
        %511 = vmatprep.subr.mxu0 0.0
        %512 = vmatpush1.msra.mxu0 0.0
        %513 = vmatprep.subr.mxu0 0.0
        %514 = vmatpush1.msra.mxu0 0.0
        %515 = vmatprep.subr.mxu0 0.0
        %516 = vmatpush1.msra.mxu0 0.0
        %517 = vmatprep.subr.mxu0 0.0
        %518 = vmatpush1.msra.mxu0 0.0
        %519 = vmatprep.subr.mxu0 0.0
        %520 = vmatpush1.msra.mxu0 0.0
        %521 = vmatprep.subr.mxu0 0.0
        %522 = vmatpush1.msra.mxu0 0.0
        %523 = vmatprep.subr.mxu0 0.0
        %524 = vmatpush1.msra.mxu0 0.0
        %525 = vmatprep.subr.mxu0 0.0
        %526 = vmatpush1.msra.mxu0 0.0
        %527 = vmatprep.subr.mxu0 0.0
        %528 = vmatpush1.msra.mxu0 0.0
        %529 = vmatprep.subr.mxu0 0.0
        %530 = vmatpush1.msra.mxu0 0.0
        %531 = vmatprep.subr.mxu0 0.0
        %532 = vmatpush1.msra.mxu0 0.0
        %533 = vmatprep.subr.mxu0 0.0
        %534 = vmatpush1.msra.mxu0 0.0
        %535 = vmatprep.subr.mxu0 0.0
        %536 = vmatpush1.msra.mxu0 0.0
        %537 = vmatprep.subr.mxu0 0.0
        %538 = vmatpush1.msra.mxu0 0.0
        %539 = vmatprep.subr.mxu0 0.0
        %540 = vmatpush1.msra.mxu0 0.0
        %541 = vmatprep.subr.mxu0 0.0
        %542 = vmatpush1.msra.mxu0 0.0
        %543 = vmatprep.subr.mxu0 0.0
        %544 = vmatpush1.msra.mxu0 0.0
        %545 = vmatprep.subr.mxu0 0.0
        %546 = vmatpush1.msra.mxu0 0.0
        %547 = vmatprep.subr.mxu0 0.0
        %548 = vmatpush1.msra.mxu0 0.0
        %549 = vmatprep.subr.mxu0 0.0
        %550 = vmatpush1.msra.mxu0 0.0
        %551 = vmatprep.subr.mxu0 0.0
        %552 = vmatpush1.msra.mxu0 0.0
        %553 = vmatprep.subr.mxu0 0.0
        %554 = vmatpush1.msra.mxu0 0.0
        %555 = vmatprep.subr.mxu0 0.0
        %556 = vmatpush1.msra.mxu0 0.0
        %557 = vmatprep.subr.mxu0 0.0
        %558 = vmatpush1.msra.mxu0 0.0
        %559 = vmatprep.subr.mxu0 0.0
        %560 = vmatpush1.msra.mxu0 0.0
        %561 = vmatprep.subr.mxu0 0.0
        %562 = vmatpush1.msra.mxu0 0.0
        %563 = vmatprep.subr.mxu0 0.0
        %564 = vmatpush1.msra.mxu0 0.0
        %565 = vmatprep.mubr.f32.mxu0 0.0
        %566 = vmatmul.mubr.f32.gmra.mrb[0].mxu0 %v265
        %v567 = vpop.f32.mrb[0].mxu0
        %v568 = vadd.f32 0.0, %v567
        %v569 = vpop.f32.mrb[0].mxu0
        %v570 = vadd.f32 0.0, %v569
        %571 = vmatprep.mubr.f32.mxu0 0.0
        %572 = vmatmul.mubr.f32.gmra.mrb[0].mxu0 %v268
        %v573 = vpop.f32.mrb[0].mxu0
        %v574 = vadd.f32 0.0, %v573
        %v575 = vpop.f32.mrb[0].mxu0
        %v576 = vadd.f32 0.0, %v575
        %577 = vdwg.mxu0
        %578 = vmatprep.subr.mxu0 %v252
        %579 = vmatpush1.msra.mxu0 %v251
        %580 = vmatprep.subr.mxu0 %v262
        %581 = vmatpush1.msra.mxu0 %v261
        %582 = vmatprep.subr.mxu0 0.0
        %583 = vmatpush1.msra.mxu0 0.0
        %584 = vmatprep.subr.mxu0 0.0
        %585 = vmatpush1.msra.mxu0 0.0
        %586 = vmatprep.subr.mxu0 0.0
        %587 = vmatpush1.msra.mxu0 0.0
        %588 = vmatprep.subr.mxu0 0.0
        %589 = vmatpush1.msra.mxu0 0.0
        %590 = vmatprep.subr.mxu0 0.0
        %591 = vmatpush1.msra.mxu0 0.0
        %592 = vmatprep.subr.mxu0 0.0
        %593 = vmatpush1.msra.mxu0 0.0
        %594 = vmatprep.subr.mxu0 0.0
        %595 = vmatpush1.msra.mxu0 0.0
        %596 = vmatprep.subr.mxu0 0.0
        %597 = vmatpush1.msra.mxu0 0.0
        %598 = vmatprep.subr.mxu0 0.0
        %599 = vmatpush1.msra.mxu0 0.0
        %600 = vmatprep.subr.mxu0 0.0
        %601 = vmatpush1.msra.mxu0 0.0
        %602 = vmatprep.subr.mxu0 0.0
        %603 = vmatpush1.msra.mxu0 0.0
        %604 = vmatprep.subr.mxu0 0.0
        %605 = vmatpush1.msra.mxu0 0.0
        %606 = vmatprep.subr.mxu0 0.0
        %607 = vmatpush1.msra.mxu0 0.0
        %608 = vmatprep.subr.mxu0 0.0
        %609 = vmatpush1.msra.mxu0 0.0
        %610 = vmatprep.subr.mxu0 0.0
        %611 = vmatpush1.msra.mxu0 0.0
        %612 = vmatprep.subr.mxu0 0.0
        %613 = vmatpush1.msra.mxu0 0.0
        %614 = vmatprep.subr.mxu0 0.0
        %615 = vmatpush1.msra.mxu0 0.0
        %616 = vmatprep.subr.mxu0 0.0
        %617 = vmatpush1.msra.mxu0 0.0
        %618 = vmatprep.subr.mxu0 0.0
        %619 = vmatpush1.msra.mxu0 0.0
        %620 = vmatprep.subr.mxu0 0.0
        %621 = vmatpush1.msra.mxu0 0.0
        %622 = vmatprep.subr.mxu0 0.0
        %623 = vmatpush1.msra.mxu0 0.0
        %624 = vmatprep.subr.mxu0 0.0
        %625 = vmatpush1.msra.mxu0 0.0
        %626 = vmatprep.subr.mxu0 0.0
        %627 = vmatpush1.msra.mxu0 0.0
        %628 = vmatprep.subr.mxu0 0.0
        %629 = vmatpush1.msra.mxu0 0.0
        %630 = vmatprep.subr.mxu0 0.0
        %631 = vmatpush1.msra.mxu0 0.0
        %632 = vmatprep.subr.mxu0 0.0
        %633 = vmatpush1.msra.mxu0 0.0
        %634 = vmatprep.subr.mxu0 0.0
        %635 = vmatpush1.msra.mxu0 0.0
        %636 = vmatprep.subr.mxu0 0.0
        %637 = vmatpush1.msra.mxu0 0.0
        %638 = vmatprep.subr.mxu0 0.0
        %639 = vmatpush1.msra.mxu0 0.0
        %640 = vmatprep.subr.mxu0 0.0
        %641 = vmatpush1.msra.mxu0 0.0
        %642 = vmatprep.mubr.f32.mxu0 0.0
        %643 = vmatmul.mubr.f32.gmra.mrb[0].mxu0 %v265
        %v644 = vpop.f32.mrb[0].mxu0
        %v645 = vadd.f32 0.0, %v644
        %v646 = vpop.f32.mrb[0].mxu0
        %v647 = vadd.f32 0.0, %v646
        %648 = vmatprep.mubr.f32.mxu0 0.0
        %649 = vmatmul.mubr.f32.gmra.mrb[0].mxu0 %v268
        %v650 = vpop.f32.mrb[0].mxu0
        %v651 = vadd.f32 0.0, %v650
        %v652 = vpop.f32.mrb[0].mxu0
        %v653 = vadd.f32 0.0, %v652
        %654 = vdwg.mxu0
        %v655 = vld [vmem:[%s238] sm:$0xff]
        %v656 = vld [vmem:[%s238 + $0x8] sm:$0xff]
        %v657 = vld [vmem:[%s238 + $0x10] sm:$0xff]
        %v658 = vld [vmem:[%s238 + $0x18] sm:$0xff]
        %v659 = vld [vmem:[%s238 + $0x20] sm:$0xff]
        %v660 = vld [vmem:[%s238 + $0x28] sm:$0xff]
        %v661 = vld [vmem:[%s238 + $0x30] sm:$0xff]
        %v662 = vld [vmem:[%s238 + $0x38] sm:$0xff]
        %v663 = vld [vmem:[%s238 + $0x40] sm:$0xff]
        %v664 = vld [vmem:[%s238 + $0x48] sm:$0xff]
        %v665 = vld [vmem:[%s238 + $0x50] sm:$0xff]
        %v666 = vld [vmem:[%s238 + $0x58] sm:$0xff]
        %v667 = vld [vmem:[%s238 + $0x60] sm:$0xff]
        %v668 = vld [vmem:[%s238 + $0x68] sm:$0xff]
        %v669 = vld [vmem:[%s238 + $0x70] sm:$0xff]
        %v670 = vld [vmem:[%s238 + $0x78] sm:$0xff]
        %v671 = vld [vmem:[%s238 + $0x80] sm:$0xff]
        %v672 = vld [vmem:[%s238 + $0x88] sm:$0xff]
        %v673 = vld [vmem:[%s238 + $0x90] sm:$0xff]
        %v674 = vld [vmem:[%s238 + $0x98] sm:$0xff]
        %v675 = vld [vmem:[%s238 + $0xa0] sm:$0xff]
        %v676 = vld [vmem:[%s238 + $0xa8] sm:$0xff]
        %v677 = vld [vmem:[%s238 + $0xb0] sm:$0xff]
        %v678 = vld [vmem:[%s238 + $0xb8] sm:$0xff]
        %v679 = vld [vmem:[%s238 + $0xc0] sm:$0xff]
        %v680 = vld [vmem:[%s238 + $0xc8] sm:$0xff]
        %v681 = vld [vmem:[%s238 + $0xd0] sm:$0xff]
        %v682 = vld [vmem:[%s238 + $0xd8] sm:$0xff]
        %v683 = vld [vmem:[%s238 + $0xe0] sm:$0xff]
        %v684 = vld [vmem:[%s238 + $0xe8] sm:$0xff]
        %v685 = vld [vmem:[%s238 + $0xf0] sm:$0xff]
        %v686 = vld [vmem:[%s238 + $0xf8] sm:$0xff]
        %v687 = vld [vmem:[%s238 + $0x100] sm:$0xff]
        %v688 = vld [vmem:[%s238 + $0x108] sm:$0xff]
        %v689 = vld [vmem:[%s238 + $0x110] sm:$0xff]
        %v690 = vld [vmem:[%s238 + $0x118] sm:$0xff]
        %v691 = vld [vmem:[%s238 + $0x120] sm:$0xff]
        %v692 = vld [vmem:[%s238 + $0x128] sm:$0xff]
        %v693 = vld [vmem:[%s238 + $0x130] sm:$0xff]
        %v694 = vld [vmem:[%s238 + $0x138] sm:$0xff]
        %v695 = vld [vmem:[%s238 + $0x140] sm:$0xff]
        %v696 = vld [vmem:[%s238 + $0x148] sm:$0xff]
        %v697 = vld [vmem:[%s238 + $0x150] sm:$0xff]
        %v698 = vld [vmem:[%s238 + $0x158] sm:$0xff]
        %v699 = vld [vmem:[%s238 + $0x160] sm:$0xff]
        %v700 = vld [vmem:[%s238 + $0x168] sm:$0xff]
        %v701 = vld [vmem:[%s238 + $0x170] sm:$0xff]
        %v702 = vld [vmem:[%s238 + $0x178] sm:$0xff]
        %v703 = vld [vmem:[%s238 + $0x180] sm:$0xff]
        %v704 = vld [vmem:[%s238 + $0x188] sm:$0xff]
        %v705 = vld [vmem:[%s238 + $0x190] sm:$0xff]
        %v706 = vld [vmem:[%s238 + $0x198] sm:$0xff]
        %v707 = vld [vmem:[%s238 + $0x1a0] sm:$0xff]
        %v708 = vld [vmem:[%s238 + $0x1a8] sm:$0xff]
        %v709 = vld [vmem:[%s238 + $0x1b0] sm:$0xff]
        %v710 = vld [vmem:[%s238 + $0x1b8] sm:$0xff]
        %v711 = vld [vmem:[%s238 + $0x1c0] sm:$0xff]
        %v712 = vld [vmem:[%s238 + $0x1c8] sm:$0xff]
        %v713 = vld [vmem:[%s238 + $0x1d0] sm:$0xff]
        %v714 = vld [vmem:[%s238 + $0x1d8] sm:$0xff]
        %v715 = vld [vmem:[%s238 + $0x1e0] sm:$0xff]
        %v716 = vld [vmem:[%s238 + $0x1e8] sm:$0xff]
        %v717 = vld [vmem:[%s238 + $0x1f0] sm:$0xff]
        %v718 = vld [vmem:[%s238 + $0x1f8] sm:$0xff]
        %v719 = vld [vmem:[%s238 + $0x200] sm:$0xff]
        %v720 = vld [vmem:[%s238 + $0x208] sm:$0xff]
        %v721 = vld [vmem:[%s238 + $0x210] sm:$0xff]
        %v722 = vld [vmem:[%s238 + $0x218] sm:$0xff]
        %v723 = vld [vmem:[%s238 + $0x220] sm:$0xff]
        %v724 = vld [vmem:[%s238 + $0x228] sm:$0xff]
        %v725 = vld [vmem:[%s238 + $0x230] sm:$0xff]
        %v726 = vld [vmem:[%s238 + $0x238] sm:$0xff]
        %v727 = vld [vmem:[%s238 + $0x240] sm:$0xff]
        %v728 = vld [vmem:[%s238 + $0x248] sm:$0xff]
        %v729 = vld [vmem:[%s238 + $0x250] sm:$0xff]
        %v730 = vld [vmem:[%s238 + $0x258] sm:$0xff]
        %v731 = vld [vmem:[%s238 + $0x260] sm:$0xff]
        %v732 = vld [vmem:[%s238 + $0x268] sm:$0xff]
        %v733 = vld [vmem:[%s238 + $0x270] sm:$0xff]
        %v734 = vld [vmem:[%s238 + $0x278] sm:$0xff]
        %v735 = vld [vmem:[%s238 + $0x280] sm:$0xff]
        %v736 = vld [vmem:[%s238 + $0x288] sm:$0xff]
        %v737 = vld [vmem:[%s238 + $0x290] sm:$0xff]
        %v738 = vld [vmem:[%s238 + $0x298] sm:$0xff]
        %v739 = vld [vmem:[%s238 + $0x2a0] sm:$0xff]
        %v740 = vld [vmem:[%s238 + $0x2a8] sm:$0xff]
        %v741 = vld [vmem:[%s238 + $0x2b0] sm:$0xff]
        %v742 = vld [vmem:[%s238 + $0x2b8] sm:$0xff]
        %v743 = vld [vmem:[%s238 + $0x2c0] sm:$0xff]
        %v744 = vld [vmem:[%s238 + $0x2c8] sm:$0xff]
        %v745 = vld [vmem:[%s238 + $0x2d0] sm:$0xff]
        %v746 = vld [vmem:[%s238 + $0x2d8] sm:$0xff]
        %v747 = vld [vmem:[%s238 + $0x2e0] sm:$0xff]
        %v748 = vld [vmem:[%s238 + $0x2e8] sm:$0xff]
        %v749 = vld [vmem:[%s238 + $0x2f0] sm:$0xff]
        %v750 = vld [vmem:[%s238 + $0x2f8] sm:$0xff]
        %v751 = vld [vmem:[%s238 + $0x300] sm:$0xff]
        %v752 = vld [vmem:[%s238 + $0x308] sm:$0xff]
        %v753 = vld [vmem:[%s238 + $0x310] sm:$0xff]
        %v754 = vld [vmem:[%s238 + $0x318] sm:$0xff]
        %v755 = vld [vmem:[%s238 + $0x320] sm:$0xff]
        %v756 = vld [vmem:[%s238 + $0x328] sm:$0xff]
        %v757 = vld [vmem:[%s238 + $0x330] sm:$0xff]
        %v758 = vld [vmem:[%s238 + $0x338] sm:$0xff]
        %v759 = vld [vmem:[%s238 + $0x340] sm:$0xff]
        %v760 = vld [vmem:[%s238 + $0x348] sm:$0xff]
        %v761 = vld [vmem:[%s238 + $0x350] sm:$0xff]
        %v762 = vld [vmem:[%s238 + $0x358] sm:$0xff]
        %v763 = vld [vmem:[%s238 + $0x360] sm:$0xff]
        %v764 = vld [vmem:[%s238 + $0x368] sm:$0xff]
        %v765 = vld [vmem:[%s238 + $0x370] sm:$0xff]
        %v766 = vld [vmem:[%s238 + $0x378] sm:$0xff]
        %v767 = vld [vmem:[%s238 + $0x380] sm:$0xff]
        %v768 = vld [vmem:[%s238 + $0x388] sm:$0xff]
        %v769 = vld [vmem:[%s238 + $0x390] sm:$0xff]
        %v770 = vld [vmem:[%s238 + $0x398] sm:$0xff]
        %v771 = vld [vmem:[%s238 + $0x3a0] sm:$0xff]
        %v772 = vld [vmem:[%s238 + $0x3a8] sm:$0xff]
        %v773 = vld [vmem:[%s238 + $0x3b0] sm:$0xff]
        %v774 = vld [vmem:[%s238 + $0x3b8] sm:$0xff]
        %v775 = vld [vmem:[%s238 + $0x3c0] sm:$0xff]
        %v776 = vld [vmem:[%s238 + $0x3c8] sm:$0xff]
        %v777 = vld [vmem:[%s238 + $0x3d0] sm:$0xff]
        %v778 = vld [vmem:[%s238 + $0x3d8] sm:$0xff]
        %v779 = vld [vmem:[%s238 + $0x3e0] sm:$0xff]
        %v780 = vld [vmem:[%s238 + $0x3e8] sm:$0xff]
        %v781 = vld [vmem:[%s238 + $0x3f0] sm:$0xff]
        %v782 = vld [vmem:[%s238 + $0x3f8] sm:$0xff]
        %v783 = vld [vmem:[%s238 + $0x400] sm:$0xff]
        %v784 = vld [vmem:[%s238 + $0x408] sm:$0xff]
        %v785 = vld [vmem:[%s238 + $0x410] sm:$0xff]
        %v786 = vld [vmem:[%s238 + $0x418] sm:$0xff]
        %v787 = vld [vmem:[%s238 + $0x420] sm:$0xff]
        %v788 = vld [vmem:[%s238 + $0x428] sm:$0xff]
        %v789 = vld [vmem:[%s238 + $0x430] sm:$0xff]
        %v790 = vld [vmem:[%s238 + $0x438] sm:$0xff]
        %v791 = vld [vmem:[%s238 + $0x440] sm:$0xff]
        %v792 = vld [vmem:[%s238 + $0x448] sm:$0xff]
        %v793 = vld [vmem:[%s238 + $0x450] sm:$0xff]
        %v794 = vld [vmem:[%s238 + $0x458] sm:$0xff]
        %v795 = vld [vmem:[%s238 + $0x460] sm:$0xff]
        %v796 = vld [vmem:[%s238 + $0x468] sm:$0xff]
        %v797 = vld [vmem:[%s238 + $0x470] sm:$0xff]
        %v798 = vld [vmem:[%s238 + $0x478] sm:$0xff]
        %v799 = vld [vmem:[%s238 + $0x480] sm:$0xff]
        %v800 = vld [vmem:[%s238 + $0x488] sm:$0xff]
        %v801 = vld [vmem:[%s238 + $0x490] sm:$0xff]
        %v802 = vld [vmem:[%s238 + $0x498] sm:$0xff]
        %v803 = vld [vmem:[%s238 + $0x4a0] sm:$0xff]
        %v804 = vld [vmem:[%s238 + $0x4a8] sm:$0xff]
        %v806 = vsel %vm263, %v655, 0
        %v809 = vsel %vm263, %v656, 0
        %v812 = vsel %vm263, %v657, 0
        %v815 = vsel %vm263, %v658, 0
        %v818 = vsel %vm263, %v659, 0
        %v821 = vsel %vm263, %v660, 0
        %v824 = vsel %vm263, %v661, 0
        %v827 = vsel %vm263, %v662, 0
        %v830 = vsel %vm263, %v663, 0
        %v833 = vsel %vm263, %v664, 0
        %v836 = vsel %vm263, %v665, 0
        %v839 = vsel %vm263, %v666, 0
        %v842 = vsel %vm263, %v667, 0
        %v845 = vsel %vm263, %v668, 0
        %v848 = vsel %vm263, %v669, 0
        %v851 = vsel %vm263, %v670, 0
        %v854 = vsel %vm263, %v671, 0
        %v857 = vsel %vm263, %v672, 0
        %v860 = vsel %vm263, %v673, 0
        %v863 = vsel %vm263, %v674, 0
        %v866 = vsel %vm263, %v675, 0
        %v869 = vsel %vm263, %v676, 0
        %v872 = vsel %vm263, %v677, 0
        %v875 = vsel %vm263, %v678, 0
        %v878 = vsel %vm263, %v679, 0
        %v881 = vsel %vm263, %v680, 0
        %v884 = vsel %vm263, %v681, 0
        %v887 = vsel %vm263, %v682, 0
        %v890 = vsel %vm263, %v683, 0
        %v893 = vsel %vm263, %v684, 0
        %v896 = vsel %vm263, %v685, 0
        %v899 = vsel %vm263, %v686, 0
        %v902 = vsel %vm263, %v687, 0
        %v905 = vsel %vm263, %v688, 0
        %v908 = vsel %vm263, %v689, 0
        %v911 = vsel %vm263, %v690, 0
        %v914 = vsel %vm263, %v691, 0
        %v917 = vsel %vm263, %v692, 0
        %v920 = vsel %vm263, %v693, 0
        %v923 = vsel %vm263, %v694, 0
        %v926 = vsel %vm263, %v695, 0
        %v929 = vsel %vm263, %v696, 0
        %v932 = vsel %vm263, %v697, 0
        %v935 = vsel %vm263, %v698, 0
        %v938 = vsel %vm263, %v699, 0
        %v941 = vsel %vm263, %v700, 0
        %v944 = vsel %vm263, %v701, 0
        %v947 = vsel %vm263, %v702, 0
        %v950 = vsel %vm263, %v703, 0
        %v953 = vsel %vm263, %v704, 0
        %v956 = vsel %vm263, %v705, 0
        %v959 = vsel %vm263, %v706, 0
        %v962 = vsel %vm263, %v707, 0
        %v965 = vsel %vm263, %v708, 0
        %v968 = vsel %vm263, %v709, 0
        %v971 = vsel %vm263, %v710, 0
        %v974 = vsel %vm263, %v711, 0
        %v977 = vsel %vm263, %v712, 0
        %v980 = vsel %vm263, %v713, 0
        %v983 = vsel %vm263, %v714, 0
        %v986 = vsel %vm263, %v715, 0
        %v989 = vsel %vm263, %v716, 0
        %v992 = vsel %vm263, %v717, 0
        %v995 = vsel %vm263, %v718, 0
        %v998 = vsel %vm263, %v719, 0
        %v1001 = vsel %vm263, %v720, 0
        %v1004 = vsel %vm263, %v721, 0
        %v1007 = vsel %vm263, %v722, 0
        %v1010 = vsel %vm263, %v723, 0
        %v1013 = vsel %vm263, %v724, 0
        %v1016 = vsel %vm263, %v725, 0
        %v1019 = vsel %vm263, %v726, 0
        %v1022 = vsel %vm263, %v727, 0
        %v1025 = vsel %vm263, %v728, 0
        %v1028 = vsel %vm263, %v729, 0
        %v1031 = vsel %vm263, %v730, 0
        %v1034 = vsel %vm263, %v731, 0
        %v1037 = vsel %vm263, %v732, 0
        %v1040 = vsel %vm263, %v733, 0
        %v1043 = vsel %vm263, %v734, 0
        %v1046 = vsel %vm263, %v735, 0
        %v1049 = vsel %vm263, %v736, 0
        %v1052 = vsel %vm263, %v737, 0
        %v1055 = vsel %vm263, %v738, 0
        %v1058 = vsel %vm263, %v739, 0
        %v1061 = vsel %vm263, %v740, 0
        %v1064 = vsel %vm263, %v741, 0
        %v1067 = vsel %vm263, %v742, 0
        %v1070 = vsel %vm263, %v743, 0
        %v1073 = vsel %vm263, %v744, 0
        %v1076 = vsel %vm263, %v745, 0
        %v1079 = vsel %vm263, %v746, 0
        %v1082 = vsel %vm263, %v747, 0
        %v1085 = vsel %vm263, %v748, 0
        %v1088 = vsel %vm263, %v749, 0
        %v1091 = vsel %vm263, %v750, 0
        %v1094 = vsel %vm263, %v751, 0
        %v1097 = vsel %vm263, %v752, 0
        %v1100 = vsel %vm263, %v753, 0
        %v1103 = vsel %vm263, %v754, 0
        %v1106 = vsel %vm263, %v755, 0
        %v1109 = vsel %vm263, %v756, 0
        %v1112 = vsel %vm263, %v757, 0
        %v1115 = vsel %vm263, %v758, 0
        %v1118 = vsel %vm263, %v759, 0
        %v1121 = vsel %vm263, %v760, 0
        %v1124 = vsel %vm263, %v761, 0
        %v1127 = vsel %vm263, %v762, 0
        %v1130 = vsel %vm263, %v763, 0
        %v1133 = vsel %vm263, %v764, 0
        %v1136 = vsel %vm263, %v765, 0
        %v1139 = vsel %vm263, %v766, 0
        %v1142 = vsel %vm263, %v767, 0
        %v1145 = vsel %vm263, %v768, 0
        %v1148 = vsel %vm263, %v769, 0
        %v1151 = vsel %vm263, %v770, 0
        %v1154 = vsel %vm263, %v771, 0
        %v1157 = vsel %vm263, %v772, 0
        %v1160 = vsel %vm263, %v773, 0
        %v1163 = vsel %vm263, %v774, 0
        %v1166 = vsel %vm263, %v775, 0
        %v1169 = vsel %vm263, %v776, 0
        %v1172 = vsel %vm263, %v777, 0
        %v1175 = vsel %vm263, %v778, 0
        %v1178 = vsel %vm263, %v779, 0
        %v1181 = vsel %vm263, %v780, 0
        %v1184 = vsel %vm263, %v781, 0
        %v1187 = vsel %vm263, %v782, 0
        %v1190 = vsel %vm263, %v783, 0
        %v1193 = vsel %vm263, %v784, 0
        %v1196 = vsel %vm263, %v785, 0
        %v1199 = vsel %vm263, %v786, 0
        %v1202 = vsel %vm263, %v787, 0
        %v1205 = vsel %vm263, %v788, 0
        %v1208 = vsel %vm263, %v789, 0
        %v1211 = vsel %vm263, %v790, 0
        %v1214 = vsel %vm263, %v791, 0
        %v1217 = vsel %vm263, %v792, 0
        %v1220 = vsel %vm263, %v793, 0
        %v1223 = vsel %vm263, %v794, 0
        %v1226 = vsel %vm263, %v795, 0
        %v1229 = vsel %vm263, %v796, 0
        %v1232 = vsel %vm263, %v797, 0
        %v1235 = vsel %vm263, %v798, 0
        %v1238 = vsel %vm263, %v799, 0
        %v1241 = vsel %vm263, %v800, 0
        %v1244 = vsel %vm263, %v801, 0
        %v1247 = vsel %vm263, %v802, 0
        %v1250 = vsel %vm263, %v803, 0
        %v1253 = vsel %vm263, %v804, 0
        %1255 = vmatprep.subr.mxu0 %v339
        %1256 = vmatpush1.msra.mxu0 %v337
        %1257 = vmatprep.subr.mxu0 %v345
        %1258 = vmatpush1.msra.mxu0 %v343
        %1259 = vmatprep.subr.mxu0 0.0
        %1260 = vmatpush1.msra.mxu0 0.0
        %1261 = vmatprep.subr.mxu0 0.0
        %1262 = vmatpush1.msra.mxu0 0.0
        %1263 = vmatprep.subr.mxu0 0.0
        %1264 = vmatpush1.msra.mxu0 0.0
        %1265 = vmatprep.subr.mxu0 0.0
        %1266 = vmatpush1.msra.mxu0 0.0
        %1267 = vmatprep.subr.mxu0 0.0
        %1268 = vmatpush1.msra.mxu0 0.0
        %1269 = vmatprep.subr.mxu0 0.0
        %1270 = vmatpush1.msra.mxu0 0.0
        %1271 = vmatprep.subr.mxu0 0.0
        %1272 = vmatpush1.msra.mxu0 0.0
        %1273 = vmatprep.subr.mxu0 0.0
        %1274 = vmatpush1.msra.mxu0 0.0
        %1275 = vmatprep.subr.mxu0 0.0
        %1276 = vmatpush1.msra.mxu0 0.0
        %1277 = vmatprep.subr.mxu0 0.0
        %1278 = vmatpush1.msra.mxu0 0.0
        %1279 = vmatprep.subr.mxu0 0.0
        %1280 = vmatpush1.msra.mxu0 0.0
        %1281 = vmatprep.subr.mxu0 0.0
        %1282 = vmatpush1.msra.mxu0 0.0
        %1283 = vmatprep.subr.mxu0 0.0
        %1284 = vmatpush1.msra.mxu0 0.0
        %1285 = vmatprep.subr.mxu0 0.0
        %1286 = vmatpush1.msra.mxu0 0.0
        %1287 = vmatprep.subr.mxu0 0.0
        %1288 = vmatpush1.msra.mxu0 0.0
        %1289 = vmatprep.subr.mxu0 0.0
        %1290 = vmatpush1.msra.mxu0 0.0
        %1291 = vmatprep.subr.mxu0 0.0
        %1292 = vmatpush1.msra.mxu0 0.0
        %1293 = vmatprep.subr.mxu0 0.0
        %1294 = vmatpush1.msra.mxu0 0.0
        %1295 = vmatprep.subr.mxu0 0.0
        %1296 = vmatpush1.msra.mxu0 0.0
        %1297 = vmatprep.subr.mxu0 0.0
        %1298 = vmatpush1.msra.mxu0 0.0
        %1299 = vmatprep.subr.mxu0 0.0
        %1300 = vmatpush1.msra.mxu0 0.0
        %1301 = vmatprep.subr.mxu0 0.0
        %1302 = vmatpush1.msra.mxu0 0.0
        %1303 = vmatprep.subr.mxu0 0.0
        %1304 = vmatpush1.msra.mxu0 0.0
        %1305 = vmatprep.subr.mxu0 0.0
        %1306 = vmatpush1.msra.mxu0 0.0
        %1307 = vmatprep.subr.mxu0 0.0
        %1308 = vmatpush1.msra.mxu0 0.0
        %1309 = vmatprep.subr.mxu0 0.0
        %1310 = vmatpush1.msra.mxu0 0.0
        %1311 = vmatprep.subr.mxu0 0.0
        %1312 = vmatpush1.msra.mxu0 0.0
        %1313 = vmatprep.subr.mxu0 0.0
        %1314 = vmatpush1.msra.mxu0 0.0
        %1315 = vmatprep.subr.mxu0 0.0
        %1316 = vmatpush1.msra.mxu0 0.0
        %1317 = vmatprep.subr.mxu0 0.0
        %1318 = vmatpush1.msra.mxu0 0.0
        %1319 = vmatprep.mubr.f32.mxu0 0.0
        %1320 = vmatmul.mubr.f32.gmra.mrb[0].mxu0 %v806
        %v1321 = vpop.f32.mrb[0].mxu0
        %v1322 = vadd.f32 0.0, %v1321
        %v1323 = vpop.f32.mrb[0].mxu0
        %v1324 = vadd.f32 0.0, %v1323
        %1325 = vmatprep.mubr.f32.mxu0 0.0
        %1326 = vmatmul.mubr.f32.gmra.mrb[0].mxu0 %v809
        %v1327 = vpop.f32.mrb[0].mxu0
        %v1328 = vadd.f32 0.0, %v1327
        %v1329 = vpop.f32.mrb[0].mxu0
        %v1330 = vadd.f32 0.0, %v1329
        %1331 = vmatprep.mubr.f32.mxu0 0.0
        %1332 = vmatmul.mubr.f32.gmra.mrb[0].mxu0 %v812
        %v1333 = vpop.f32.mrb[0].mxu0
        %v1334 = vadd.f32 0.0, %v1333
        %v1335 = vpop.f32.mrb[0].mxu0
        %v1336 = vadd.f32 0.0, %v1335
        %1337 = vmatprep.mubr.f32.mxu0 0.0
        %1338 = vmatmul.mubr.f32.gmra.mrb[0].mxu0 %v815
        %v1339 = vpop.f32.mrb[0].mxu0
        %v1340 = vadd.f32 0.0, %v1339
        %v1341 = vpop.f32.mrb[0].mxu0
        %v1342 = vadd.f32 0.0, %v1341
        %1343 = vmatprep.mubr.f32.mxu0 0.0
        %1344 = vmatmul.mubr.f32.gmra.mrb[0].mxu0 %v818
        %v1345 = vpop.f32.mrb[0].mxu0
        %v1346 = vadd.f32 0.0, %v1345
        %v1347 = vpop.f32.mrb[0].mxu0
        %v1348 = vadd.f32 0.0, %v1347
        %1349 = vmatprep.mubr.f32.mxu0 0.0
        %1350 = vmatmul.mubr.f32.gmra.mrb[0].mxu0 %v821
        %v1351 = vpop.f32.mrb[0].mxu0
        %v1352 = vadd.f32 0.0, %v1351
        %v1353 = vpop.f32.mrb[0].mxu0
        %v1354 = vadd.f32 0.0, %v1353
        %1355 = vmatprep.mubr.f32.mxu0 0.0
        %1356 = vmatmul.mubr.f32.gmra.mrb[0].mxu0 %v824
        %v1357 = vpop.f32.mrb[0].mxu0
        %v1358 = vadd.f32 0.0, %v1357
        %v1359 = vpop.f32.mrb[0].mxu0
        %v1360 = vadd.f32 0.0, %v1359
        %1361 = vmatprep.mubr.f32.mxu0 0.0
        %1362 = vmatmul.mubr.f32.gmra.mrb[0].mxu0 %v827
        %v1363 = vpop.f32.mrb[0].mxu0
        %v1364 = vadd.f32 0.0, %v1363
        %v1365 = vpop.f32.mrb[0].mxu0
        %v1366 = vadd.f32 0.0, %v1365
        %1367 = vmatprep.mubr.f32.mxu0 0.0
        %1368 = vmatmul.mubr.f32.gmra.mrb[0].mxu0 %v830
        %v1369 = vpop.f32.mrb[0].mxu0
        %v1370 = vadd.f32 0.0, %v1369
        %v1371 = vpop.f32.mrb[0].mxu0
        %v1372 = vadd.f32 0.0, %v1371
        %1373 = vmatprep.mubr.f32.mxu0 0.0
        %1374 = vmatmul.mubr.f32.gmra.mrb[0].mxu0 %v833
        %v1375 = vpop.f32.mrb[0].mxu0
        %v1376 = vadd.f32 0.0, %v1375
        %v1377 = vpop.f32.mrb[0].mxu0
        %v1378 = vadd.f32 0.0, %v1377
        %1379 = vmatprep.mubr.f32.mxu0 0.0
        %1380 = vmatmul.mubr.f32.gmra.mrb[0].mxu0 %v836
        %v1381 = vpop.f32.mrb[0].mxu0
        %v1382 = vadd.f32 0.0, %v1381
        %v1383 = vpop.f32.mrb[0].mxu0
        %v1384 = vadd.f32 0.0, %v1383
        %1385 = vmatprep.mubr.f32.mxu0 0.0
        %1386 = vmatmul.mubr.f32.gmra.mrb[0].mxu0 %v839
        %v1387 = vpop.f32.mrb[0].mxu0
        %v1388 = vadd.f32 0.0, %v1387
        %v1389 = vpop.f32.mrb[0].mxu0
        %v1390 = vadd.f32 0.0, %v1389
        %1391 = vmatprep.mubr.f32.mxu0 0.0
        %1392 = vmatmul.mubr.f32.gmra.mrb[0].mxu0 %v842
        %v1393 = vpop.f32.mrb[0].mxu0
        %v1394 = vadd.f32 0.0, %v1393
        %v1395 = vpop.f32.mrb[0].mxu0
        %v1396 = vadd.f32 0.0, %v1395
        %1397 = vmatprep.mubr.f32.mxu0 0.0
        %1398 = vmatmul.mubr.f32.gmra.mrb[0].mxu0 %v845
        %v1399 = vpop.f32.mrb[0].mxu0
        %v1400 = vadd.f32 0.0, %v1399
        %v1401 = vpop.f32.mrb[0].mxu0
        %v1402 = vadd.f32 0.0, %v1401
        %1403 = vmatprep.mubr.f32.mxu0 0.0
        %1404 = vmatmul.mubr.f32.gmra.mrb[0].mxu0 %v848
        %v1405 = vpop.f32.mrb[0].mxu0
        %v1406 = vadd.f32 0.0, %v1405
        %v1407 = vpop.f32.mrb[0].mxu0
        %v1408 = vadd.f32 0.0, %v1407
        %1409 = vmatprep.mubr.f32.mxu0 0.0
        %1410 = vmatmul.mubr.f32.gmra.mrb[0].mxu0 %v851
        %v1411 = vpop.f32.mrb[0].mxu0
        %v1412 = vadd.f32 0.0, %v1411
        %v1413 = vpop.f32.mrb[0].mxu0
        %v1414 = vadd.f32 0.0, %v1413
        %1415 = vmatprep.mubr.f32.mxu0 0.0
        %1416 = vmatmul.mubr.f32.gmra.mrb[0].mxu0 %v854
        %v1417 = vpop.f32.mrb[0].mxu0
        %v1418 = vadd.f32 0.0, %v1417
        %v1419 = vpop.f32.mrb[0].mxu0
        %v1420 = vadd.f32 0.0, %v1419
        %1421 = vmatprep.mubr.f32.mxu0 0.0
        %1422 = vmatmul.mubr.f32.gmra.mrb[0].mxu0 %v857
        %v1423 = vpop.f32.mrb[0].mxu0
        %v1424 = vadd.f32 0.0, %v1423
        %v1425 = vpop.f32.mrb[0].mxu0
        %v1426 = vadd.f32 0.0, %v1425
        %1427 = vmatprep.mubr.f32.mxu0 0.0
        %1428 = vmatmul.mubr.f32.gmra.mrb[0].mxu0 %v860
        %v1429 = vpop.f32.mrb[0].mxu0
        %v1430 = vadd.f32 0.0, %v1429
        %v1431 = vpop.f32.mrb[0].mxu0
        %v1432 = vadd.f32 0.0, %v1431
        %1433 = vmatprep.mubr.f32.mxu0 0.0
        %1434 = vmatmul.mubr.f32.gmra.mrb[0].mxu0 %v863
        %v1435 = vpop.f32.mrb[0].mxu0
        %v1436 = vadd.f32 0.0, %v1435
        %v1437 = vpop.f32.mrb[0].mxu0
        %v1438 = vadd.f32 0.0, %v1437
        %1439 = vmatprep.mubr.f32.mxu0 0.0
        %1440 = vmatmul.mubr.f32.gmra.mrb[0].mxu0 %v866
        %v1441 = vpop.f32.mrb[0].mxu0
        %v1442 = vadd.f32 0.0, %v1441
        %v1443 = vpop.f32.mrb[0].mxu0
        %v1444 = vadd.f32 0.0, %v1443
        %1445 = vmatprep.mubr.f32.mxu0 0.0
        %1446 = vmatmul.mubr.f32.gmra.mrb[0].mxu0 %v869
        %v1447 = vpop.f32.mrb[0].mxu0
        %v1448 = vadd.f32 0.0, %v1447
        %v1449 = vpop.f32.mrb[0].mxu0
        %v1450 = vadd.f32 0.0, %v1449
        %1451 = vmatprep.mubr.f32.mxu0 0.0
        %1452 = vmatmul.mubr.f32.gmra.mrb[0].mxu0 %v872
        %v1453 = vpop.f32.mrb[0].mxu0
        %v1454 = vadd.f32 0.0, %v1453
        %v1455 = vpop.f32.mrb[0].mxu0
        %v1456 = vadd.f32 0.0, %v1455
        %1457 = vmatprep.mubr.f32.mxu0 0.0
        %1458 = vmatmul.mubr.f32.gmra.mrb[0].mxu0 %v875
        %v1459 = vpop.f32.mrb[0].mxu0
        %v1460 = vadd.f32 0.0, %v1459
        %v1461 = vpop.f32.mrb[0].mxu0
        %v1462 = vadd.f32 0.0, %v1461
        %1463 = vmatprep.mubr.f32.mxu0 0.0
        %1464 = vmatmul.mubr.f32.gmra.mrb[0].mxu0 %v878
        %v1465 = vpop.f32.mrb[0].mxu0
        %v1466 = vadd.f32 0.0, %v1465
        %v1467 = vpop.f32.mrb[0].mxu0
        %v1468 = vadd.f32 0.0, %v1467
        %1469 = vmatprep.mubr.f32.mxu0 0.0
        %1470 = vmatmul.mubr.f32.gmra.mrb[0].mxu0 %v881
        %v1471 = vpop.f32.mrb[0].mxu0
        %v1472 = vadd.f32 0.0, %v1471
        %v1473 = vpop.f32.mrb[0].mxu0
        %v1474 = vadd.f32 0.0, %v1473
        %1475 = vmatprep.mubr.f32.mxu0 0.0
        %1476 = vmatmul.mubr.f32.gmra.mrb[0].mxu0 %v884
        %v1477 = vpop.f32.mrb[0].mxu0
        %v1478 = vadd.f32 0.0, %v1477
        %v1479 = vpop.f32.mrb[0].mxu0
        %v1480 = vadd.f32 0.0, %v1479
        %1481 = vmatprep.mubr.f32.mxu0 0.0
        %1482 = vmatmul.mubr.f32.gmra.mrb[0].mxu0 %v887
        %v1483 = vpop.f32.mrb[0].mxu0
        %v1484 = vadd.f32 0.0, %v1483
        %v1485 = vpop.f32.mrb[0].mxu0
        %v1486 = vadd.f32 0.0, %v1485
        %1487 = vmatprep.mubr.f32.mxu0 0.0
        %1488 = vmatmul.mubr.f32.gmra.mrb[0].mxu0 %v890
        %v1489 = vpop.f32.mrb[0].mxu0
        %v1490 = vadd.f32 0.0, %v1489
        %v1491 = vpop.f32.mrb[0].mxu0
        %v1492 = vadd.f32 0.0, %v1491
        %1493 = vmatprep.mubr.f32.mxu0 0.0
        %1494 = vmatmul.mubr.f32.gmra.mrb[0].mxu0 %v893
        %v1495 = vpop.f32.mrb[0].mxu0
        %v1496 = vadd.f32 0.0, %v1495
        %v1497 = vpop.f32.mrb[0].mxu0
        %v1498 = vadd.f32 0.0, %v1497
        %1499 = vmatprep.mubr.f32.mxu0 0.0
        %1500 = vmatmul.mubr.f32.gmra.mrb[0].mxu0 %v896
        %v1501 = vpop.f32.mrb[0].mxu0
        %v1502 = vadd.f32 0.0, %v1501
        %v1503 = vpop.f32.mrb[0].mxu0
        %v1504 = vadd.f32 0.0, %v1503
        %1505 = vmatprep.mubr.f32.mxu0 0.0
        %1506 = vmatmul.mubr.f32.gmra.mrb[0].mxu0 %v899
        %v1507 = vpop.f32.mrb[0].mxu0
        %v1508 = vadd.f32 0.0, %v1507
        %v1509 = vpop.f32.mrb[0].mxu0
        %v1510 = vadd.f32 0.0, %v1509
        %1511 = vmatprep.mubr.f32.mxu0 0.0
        %1512 = vmatmul.mubr.f32.gmra.mrb[0].mxu0 %v902
        %v1513 = vpop.f32.mrb[0].mxu0
        %v1514 = vadd.f32 0.0, %v1513
        %v1515 = vpop.f32.mrb[0].mxu0
        %v1516 = vadd.f32 0.0, %v1515
        %1517 = vmatprep.mubr.f32.mxu0 0.0
        %1518 = vmatmul.mubr.f32.gmra.mrb[0].mxu0 %v905
        %v1519 = vpop.f32.mrb[0].mxu0
        %v1520 = vadd.f32 0.0, %v1519
        %v1521 = vpop.f32.mrb[0].mxu0
        %v1522 = vadd.f32 0.0, %v1521
        %1523 = vmatprep.mubr.f32.mxu0 0.0
        %1524 = vmatmul.mubr.f32.gmra.mrb[0].mxu0 %v908
        %v1525 = vpop.f32.mrb[0].mxu0
        %v1526 = vadd.f32 0.0, %v1525
        %v1527 = vpop.f32.mrb[0].mxu0
        %v1528 = vadd.f32 0.0, %v1527
        %1529 = vmatprep.mubr.f32.mxu0 0.0
        %1530 = vmatmul.mubr.f32.gmra.mrb[0].mxu0 %v911
        %v1531 = vpop.f32.mrb[0].mxu0
        %v1532 = vadd.f32 0.0, %v1531
        %v1533 = vpop.f32.mrb[0].mxu0
        %v1534 = vadd.f32 0.0, %v1533
        %1535 = vmatprep.mubr.f32.mxu0 0.0
        %1536 = vmatmul.mubr.f32.gmra.mrb[0].mxu0 %v914
        %v1537 = vpop.f32.mrb[0].mxu0
        %v1538 = vadd.f32 0.0, %v1537
        %v1539 = vpop.f32.mrb[0].mxu0
        %v1540 = vadd.f32 0.0, %v1539
        %1541 = vmatprep.mubr.f32.mxu0 0.0
        %1542 = vmatmul.mubr.f32.gmra.mrb[0].mxu0 %v917
        %v1543 = vpop.f32.mrb[0].mxu0
        %v1544 = vadd.f32 0.0, %v1543
        %v1545 = vpop.f32.mrb[0].mxu0
        %v1546 = vadd.f32 0.0, %v1545
        %1547 = vmatprep.mubr.f32.mxu0 0.0
        %1548 = vmatmul.mubr.f32.gmra.mrb[0].mxu0 %v920
        %v1549 = vpop.f32.mrb[0].mxu0
        %v1550 = vadd.f32 0.0, %v1549
        %v1551 = vpop.f32.mrb[0].mxu0
        %v1552 = vadd.f32 0.0, %v1551
        %1553 = vmatprep.mubr.f32.mxu0 0.0
        %1554 = vmatmul.mubr.f32.gmra.mrb[0].mxu0 %v923
        %v1555 = vpop.f32.mrb[0].mxu0
        %v1556 = vadd.f32 0.0, %v1555
        %v1557 = vpop.f32.mrb[0].mxu0
        %v1558 = vadd.f32 0.0, %v1557
        %1559 = vmatprep.mubr.f32.mxu0 0.0
        %1560 = vmatmul.mubr.f32.gmra.mrb[0].mxu0 %v926
        %v1561 = vpop.f32.mrb[0].mxu0
        %v1562 = vadd.f32 0.0, %v1561
        %v1563 = vpop.f32.mrb[0].mxu0
        %v1564 = vadd.f32 0.0, %v1563
        %1565 = vmatprep.mubr.f32.mxu0 0.0
        %1566 = vmatmul.mubr.f32.gmra.mrb[0].mxu0 %v929
        %v1567 = vpop.f32.mrb[0].mxu0
        %v1568 = vadd.f32 0.0, %v1567
        %v1569 = vpop.f32.mrb[0].mxu0
        %v1570 = vadd.f32 0.0, %v1569
        %1571 = vmatprep.mubr.f32.mxu0 0.0
        %1572 = vmatmul.mubr.f32.gmra.mrb[0].mxu0 %v932
        %v1573 = vpop.f32.mrb[0].mxu0
        %v1574 = vadd.f32 0.0, %v1573
        %v1575 = vpop.f32.mrb[0].mxu0
        %v1576 = vadd.f32 0.0, %v1575
        %1577 = vmatprep.mubr.f32.mxu0 0.0
        %1578 = vmatmul.mubr.f32.gmra.mrb[0].mxu0 %v935
        %v1579 = vpop.f32.mrb[0].mxu0
        %v1580 = vadd.f32 0.0, %v1579
        %v1581 = vpop.f32.mrb[0].mxu0
        %v1582 = vadd.f32 0.0, %v1581
        %1583 = vmatprep.mubr.f32.mxu0 0.0
        %1584 = vmatmul.mubr.f32.gmra.mrb[0].mxu0 %v938
        %v1585 = vpop.f32.mrb[0].mxu0
        %v1586 = vadd.f32 0.0, %v1585
        %v1587 = vpop.f32.mrb[0].mxu0
        %v1588 = vadd.f32 0.0, %v1587
        %1589 = vmatprep.mubr.f32.mxu0 0.0
        %1590 = vmatmul.mubr.f32.gmra.mrb[0].mxu0 %v941
        %v1591 = vpop.f32.mrb[0].mxu0
        %v1592 = vadd.f32 0.0, %v1591
        %v1593 = vpop.f32.mrb[0].mxu0
        %v1594 = vadd.f32 0.0, %v1593
        %1595 = vmatprep.mubr.f32.mxu0 0.0
        %1596 = vmatmul.mubr.f32.gmra.mrb[0].mxu0 %v944
        %v1597 = vpop.f32.mrb[0].mxu0
        %v1598 = vadd.f32 0.0, %v1597
        %v1599 = vpop.f32.mrb[0].mxu0
        %v1600 = vadd.f32 0.0, %v1599
        %1601 = vmatprep.mubr.f32.mxu0 0.0
        %1602 = vmatmul.mubr.f32.gmra.mrb[0].mxu0 %v947
        %v1603 = vpop.f32.mrb[0].mxu0
        %v1604 = vadd.f32 0.0, %v1603
        %v1605 = vpop.f32.mrb[0].mxu0
        %v1606 = vadd.f32 0.0, %v1605
        %1607 = vmatprep.mubr.f32.mxu0 0.0
        %1608 = vmatmul.mubr.f32.gmra.mrb[0].mxu0 %v950
        %v1609 = vpop.f32.mrb[0].mxu0
        %v1610 = vadd.f32 0.0, %v1609
        %v1611 = vpop.f32.mrb[0].mxu0
        %v1612 = vadd.f32 0.0, %v1611
        %1613 = vmatprep.mubr.f32.mxu0 0.0
        %1614 = vmatmul.mubr.f32.gmra.mrb[0].mxu0 %v953
        %v1615 = vpop.f32.mrb[0].mxu0
        %v1616 = vadd.f32 0.0, %v1615
        %v1617 = vpop.f32.mrb[0].mxu0
        %v1618 = vadd.f32 0.0, %v1617
        %1619 = vmatprep.mubr.f32.mxu0 0.0
        %1620 = vmatmul.mubr.f32.gmra.mrb[0].mxu0 %v956
        %v1621 = vpop.f32.mrb[0].mxu0
        %v1622 = vadd.f32 0.0, %v1621
        %v1623 = vpop.f32.mrb[0].mxu0
        %v1624 = vadd.f32 0.0, %v1623
        %1625 = vmatprep.mubr.f32.mxu0 0.0
        %1626 = vmatmul.mubr.f32.gmra.mrb[0].mxu0 %v959
        %v1627 = vpop.f32.mrb[0].mxu0
        %v1628 = vadd.f32 0.0, %v1627
        %v1629 = vpop.f32.mrb[0].mxu0
        %v1630 = vadd.f32 0.0, %v1629
        %1631 = vmatprep.mubr.f32.mxu0 0.0
        %1632 = vmatmul.mubr.f32.gmra.mrb[0].mxu0 %v962
        %v1633 = vpop.f32.mrb[0].mxu0
        %v1634 = vadd.f32 0.0, %v1633
        %v1635 = vpop.f32.mrb[0].mxu0
        %v1636 = vadd.f32 0.0, %v1635
        %1637 = vmatprep.mubr.f32.mxu0 0.0
        %1638 = vmatmul.mubr.f32.gmra.mrb[0].mxu0 %v965
        %v1639 = vpop.f32.mrb[0].mxu0
        %v1640 = vadd.f32 0.0, %v1639
        %v1641 = vpop.f32.mrb[0].mxu0
        %v1642 = vadd.f32 0.0, %v1641
        %1643 = vmatprep.mubr.f32.mxu0 0.0
        %1644 = vmatmul.mubr.f32.gmra.mrb[0].mxu0 %v968
        %v1645 = vpop.f32.mrb[0].mxu0
        %v1646 = vadd.f32 0.0, %v1645
        %v1647 = vpop.f32.mrb[0].mxu0
        %v1648 = vadd.f32 0.0, %v1647
        %1649 = vmatprep.mubr.f32.mxu0 0.0
        %1650 = vmatmul.mubr.f32.gmra.mrb[0].mxu0 %v971
        %v1651 = vpop.f32.mrb[0].mxu0
        %v1652 = vadd.f32 0.0, %v1651
        %v1653 = vpop.f32.mrb[0].mxu0
        %v1654 = vadd.f32 0.0, %v1653
        %1655 = vmatprep.mubr.f32.mxu0 0.0
        %1656 = vmatmul.mubr.f32.gmra.mrb[0].mxu0 %v974
        %v1657 = vpop.f32.mrb[0].mxu0
        %v1658 = vadd.f32 0.0, %v1657
        %v1659 = vpop.f32.mrb[0].mxu0
        %v1660 = vadd.f32 0.0, %v1659
        %1661 = vmatprep.mubr.f32.mxu0 0.0
        %1662 = vmatmul.mubr.f32.gmra.mrb[0].mxu0 %v977
        %v1663 = vpop.f32.mrb[0].mxu0
        %v1664 = vadd.f32 0.0, %v1663
        %v1665 = vpop.f32.mrb[0].mxu0
        %v1666 = vadd.f32 0.0, %v1665
        %1667 = vmatprep.mubr.f32.mxu0 0.0
        %1668 = vmatmul.mubr.f32.gmra.mrb[0].mxu0 %v980
        %v1669 = vpop.f32.mrb[0].mxu0
        %v1670 = vadd.f32 0.0, %v1669
        %v1671 = vpop.f32.mrb[0].mxu0
        %v1672 = vadd.f32 0.0, %v1671
        %1673 = vmatprep.mubr.f32.mxu0 0.0
        %1674 = vmatmul.mubr.f32.gmra.mrb[0].mxu0 %v983
        %v1675 = vpop.f32.mrb[0].mxu0
        %v1676 = vadd.f32 0.0, %v1675
        %v1677 = vpop.f32.mrb[0].mxu0
        %v1678 = vadd.f32 0.0, %v1677
        %1679 = vmatprep.mubr.f32.mxu0 0.0
        %1680 = vmatmul.mubr.f32.gmra.mrb[0].mxu0 %v986
        %v1681 = vpop.f32.mrb[0].mxu0
        %v1682 = vadd.f32 0.0, %v1681
        %v1683 = vpop.f32.mrb[0].mxu0
        %v1684 = vadd.f32 0.0, %v1683
        %1685 = vmatprep.mubr.f32.mxu0 0.0
        %1686 = vmatmul.mubr.f32.gmra.mrb[0].mxu0 %v989
        %v1687 = vpop.f32.mrb[0].mxu0
        %v1688 = vadd.f32 0.0, %v1687
        %v1689 = vpop.f32.mrb[0].mxu0
        %v1690 = vadd.f32 0.0, %v1689
        %1691 = vmatprep.mubr.f32.mxu0 0.0
        %1692 = vmatmul.mubr.f32.gmra.mrb[0].mxu0 %v992
        %v1693 = vpop.f32.mrb[0].mxu0
        %v1694 = vadd.f32 0.0, %v1693
        %v1695 = vpop.f32.mrb[0].mxu0
        %v1696 = vadd.f32 0.0, %v1695
        %1697 = vmatprep.mubr.f32.mxu0 0.0
        %1698 = vmatmul.mubr.f32.gmra.mrb[0].mxu0 %v995
        %v1699 = vpop.f32.mrb[0].mxu0
        %v1700 = vadd.f32 0.0, %v1699
        %v1701 = vpop.f32.mrb[0].mxu0
        %v1702 = vadd.f32 0.0, %v1701
        %1703 = vmatprep.mubr.f32.mxu0 0.0
        %1704 = vmatmul.mubr.f32.gmra.mrb[0].mxu0 %v998
        %v1705 = vpop.f32.mrb[0].mxu0
        %v1706 = vadd.f32 0.0, %v1705
        %v1707 = vpop.f32.mrb[0].mxu0
        %v1708 = vadd.f32 0.0, %v1707
        %1709 = vmatprep.mubr.f32.mxu0 0.0
        %1710 = vmatmul.mubr.f32.gmra.mrb[0].mxu0 %v1001
        %v1711 = vpop.f32.mrb[0].mxu0
        %v1712 = vadd.f32 0.0, %v1711
        %v1713 = vpop.f32.mrb[0].mxu0
        %v1714 = vadd.f32 0.0, %v1713
        %1715 = vmatprep.mubr.f32.mxu0 0.0
        %1716 = vmatmul.mubr.f32.gmra.mrb[0].mxu0 %v1004
        %v1717 = vpop.f32.mrb[0].mxu0
        %v1718 = vadd.f32 0.0, %v1717
        %v1719 = vpop.f32.mrb[0].mxu0
        %v1720 = vadd.f32 0.0, %v1719
        %1721 = vmatprep.mubr.f32.mxu0 0.0
        %1722 = vmatmul.mubr.f32.gmra.mrb[0].mxu0 %v1007
        %v1723 = vpop.f32.mrb[0].mxu0
        %v1724 = vadd.f32 0.0, %v1723
        %v1725 = vpop.f32.mrb[0].mxu0
        %v1726 = vadd.f32 0.0, %v1725
        %1727 = vmatprep.mubr.f32.mxu0 0.0
        %1728 = vmatmul.mubr.f32.gmra.mrb[0].mxu0 %v1010
        %v1729 = vpop.f32.mrb[0].mxu0
        %v1730 = vadd.f32 0.0, %v1729
        %v1731 = vpop.f32.mrb[0].mxu0
        %v1732 = vadd.f32 0.0, %v1731
        %1733 = vmatprep.mubr.f32.mxu0 0.0
        %1734 = vmatmul.mubr.f32.gmra.mrb[0].mxu0 %v1013
        %v1735 = vpop.f32.mrb[0].mxu0
        %v1736 = vadd.f32 0.0, %v1735
        %v1737 = vpop.f32.mrb[0].mxu0
        %v1738 = vadd.f32 0.0, %v1737
        %1739 = vmatprep.mubr.f32.mxu0 0.0
        %1740 = vmatmul.mubr.f32.gmra.mrb[0].mxu0 %v1016
        %v1741 = vpop.f32.mrb[0].mxu0
        %v1742 = vadd.f32 0.0, %v1741
        %v1743 = vpop.f32.mrb[0].mxu0
        %v1744 = vadd.f32 0.0, %v1743
        %1745 = vmatprep.mubr.f32.mxu0 0.0
        %1746 = vmatmul.mubr.f32.gmra.mrb[0].mxu0 %v1019
        %v1747 = vpop.f32.mrb[0].mxu0
        %v1748 = vadd.f32 0.0, %v1747
        %v1749 = vpop.f32.mrb[0].mxu0
        %v1750 = vadd.f32 0.0, %v1749
        %1751 = vmatprep.mubr.f32.mxu0 0.0
        %1752 = vmatmul.mubr.f32.gmra.mrb[0].mxu0 %v1022
        %v1753 = vpop.f32.mrb[0].mxu0
        %v1754 = vadd.f32 0.0, %v1753
        %v1755 = vpop.f32.mrb[0].mxu0
        %v1756 = vadd.f32 0.0, %v1755
        %1757 = vmatprep.mubr.f32.mxu0 0.0
        %1758 = vmatmul.mubr.f32.gmra.mrb[0].mxu0 %v1025
        %v1759 = vpop.f32.mrb[0].mxu0
        %v1760 = vadd.f32 0.0, %v1759
        %v1761 = vpop.f32.mrb[0].mxu0
        %v1762 = vadd.f32 0.0, %v1761
        %1763 = vmatprep.mubr.f32.mxu0 0.0
        %1764 = vmatmul.mubr.f32.gmra.mrb[0].mxu0 %v1028
        %v1765 = vpop.f32.mrb[0].mxu0
        %v1766 = vadd.f32 0.0, %v1765
        %v1767 = vpop.f32.mrb[0].mxu0
        %v1768 = vadd.f32 0.0, %v1767
        %1769 = vmatprep.mubr.f32.mxu0 0.0
        %1770 = vmatmul.mubr.f32.gmra.mrb[0].mxu0 %v1031
        %v1771 = vpop.f32.mrb[0].mxu0
        %v1772 = vadd.f32 0.0, %v1771
        %v1773 = vpop.f32.mrb[0].mxu0
        %v1774 = vadd.f32 0.0, %v1773
        %1775 = vmatprep.mubr.f32.mxu0 0.0
        %1776 = vmatmul.mubr.f32.gmra.mrb[0].mxu0 %v1034
        %v1777 = vpop.f32.mrb[0].mxu0
        %v1778 = vadd.f32 0.0, %v1777
        %v1779 = vpop.f32.mrb[0].mxu0
        %v1780 = vadd.f32 0.0, %v1779
        %1781 = vmatprep.mubr.f32.mxu0 0.0
        %1782 = vmatmul.mubr.f32.gmra.mrb[0].mxu0 %v1037
        %v1783 = vpop.f32.mrb[0].mxu0
        %v1784 = vadd.f32 0.0, %v1783
        %v1785 = vpop.f32.mrb[0].mxu0
        %v1786 = vadd.f32 0.0, %v1785
        %1787 = vmatprep.mubr.f32.mxu0 0.0
        %1788 = vmatmul.mubr.f32.gmra.mrb[0].mxu0 %v1040
        %v1789 = vpop.f32.mrb[0].mxu0
        %v1790 = vadd.f32 0.0, %v1789
        %v1791 = vpop.f32.mrb[0].mxu0
        %v1792 = vadd.f32 0.0, %v1791
        %1793 = vmatprep.mubr.f32.mxu0 0.0
        %1794 = vmatmul.mubr.f32.gmra.mrb[0].mxu0 %v1043
        %v1795 = vpop.f32.mrb[0].mxu0
        %v1796 = vadd.f32 0.0, %v1795
        %v1797 = vpop.f32.mrb[0].mxu0
        %v1798 = vadd.f32 0.0, %v1797
        %1799 = vmatprep.mubr.f32.mxu0 0.0
        %1800 = vmatmul.mubr.f32.gmra.mrb[0].mxu0 %v1046
        %v1801 = vpop.f32.mrb[0].mxu0
        %v1802 = vadd.f32 0.0, %v1801
        %v1803 = vpop.f32.mrb[0].mxu0
        %v1804 = vadd.f32 0.0, %v1803
        %1805 = vmatprep.mubr.f32.mxu0 0.0
        %1806 = vmatmul.mubr.f32.gmra.mrb[0].mxu0 %v1049
        %v1807 = vpop.f32.mrb[0].mxu0
        %v1808 = vadd.f32 0.0, %v1807
        %v1809 = vpop.f32.mrb[0].mxu0
        %v1810 = vadd.f32 0.0, %v1809
        %1811 = vmatprep.mubr.f32.mxu0 0.0
        %1812 = vmatmul.mubr.f32.gmra.mrb[0].mxu0 %v1052
        %v1813 = vpop.f32.mrb[0].mxu0
        %v1814 = vadd.f32 0.0, %v1813
        %v1815 = vpop.f32.mrb[0].mxu0
        %v1816 = vadd.f32 0.0, %v1815
        %1817 = vmatprep.mubr.f32.mxu0 0.0
        %1818 = vmatmul.mubr.f32.gmra.mrb[0].mxu0 %v1055
        %v1819 = vpop.f32.mrb[0].mxu0
        %v1820 = vadd.f32 0.0, %v1819
        %v1821 = vpop.f32.mrb[0].mxu0
        %v1822 = vadd.f32 0.0, %v1821
        %1823 = vmatprep.mubr.f32.mxu0 0.0
        %1824 = vmatmul.mubr.f32.gmra.mrb[0].mxu0 %v1058
        %v1825 = vpop.f32.mrb[0].mxu0
        %v1826 = vadd.f32 0.0, %v1825
        %v1827 = vpop.f32.mrb[0].mxu0
        %v1828 = vadd.f32 0.0, %v1827
        %1829 = vmatprep.mubr.f32.mxu0 0.0
        %1830 = vmatmul.mubr.f32.gmra.mrb[0].mxu0 %v1061
        %v1831 = vpop.f32.mrb[0].mxu0
        %v1832 = vadd.f32 0.0, %v1831
        %v1833 = vpop.f32.mrb[0].mxu0
        %v1834 = vadd.f32 0.0, %v1833
        %1835 = vmatprep.mubr.f32.mxu0 0.0
        %1836 = vmatmul.mubr.f32.gmra.mrb[0].mxu0 %v1064
        %v1837 = vpop.f32.mrb[0].mxu0
        %v1838 = vadd.f32 0.0, %v1837
        %v1839 = vpop.f32.mrb[0].mxu0
        %v1840 = vadd.f32 0.0, %v1839
        %1841 = vmatprep.mubr.f32.mxu0 0.0
        %1842 = vmatmul.mubr.f32.gmra.mrb[0].mxu0 %v1067
        %v1843 = vpop.f32.mrb[0].mxu0
        %v1844 = vadd.f32 0.0, %v1843
        %v1845 = vpop.f32.mrb[0].mxu0
        %v1846 = vadd.f32 0.0, %v1845
        %1847 = vmatprep.mubr.f32.mxu0 0.0
        %1848 = vmatmul.mubr.f32.gmra.mrb[0].mxu0 %v1070
        %v1849 = vpop.f32.mrb[0].mxu0
        %v1850 = vadd.f32 0.0, %v1849
        %v1851 = vpop.f32.mrb[0].mxu0
        %v1852 = vadd.f32 0.0, %v1851
        %1853 = vmatprep.mubr.f32.mxu0 0.0
        %1854 = vmatmul.mubr.f32.gmra.mrb[0].mxu0 %v1073
        %v1855 = vpop.f32.mrb[0].mxu0
        %v1856 = vadd.f32 0.0, %v1855
        %v1857 = vpop.f32.mrb[0].mxu0
        %v1858 = vadd.f32 0.0, %v1857
        %1859 = vmatprep.mubr.f32.mxu0 0.0
        %1860 = vmatmul.mubr.f32.gmra.mrb[0].mxu0 %v1076
        %v1861 = vpop.f32.mrb[0].mxu0
        %v1862 = vadd.f32 0.0, %v1861
        %v1863 = vpop.f32.mrb[0].mxu0
        %v1864 = vadd.f32 0.0, %v1863
        %1865 = vmatprep.mubr.f32.mxu0 0.0
        %1866 = vmatmul.mubr.f32.gmra.mrb[0].mxu0 %v1079
        %v1867 = vpop.f32.mrb[0].mxu0
        %v1868 = vadd.f32 0.0, %v1867
        %v1869 = vpop.f32.mrb[0].mxu0
        %v1870 = vadd.f32 0.0, %v1869
        %1871 = vmatprep.mubr.f32.mxu0 0.0
        %1872 = vmatmul.mubr.f32.gmra.mrb[0].mxu0 %v1082
        %v1873 = vpop.f32.mrb[0].mxu0
        %v1874 = vadd.f32 0.0, %v1873
        %v1875 = vpop.f32.mrb[0].mxu0
        %v1876 = vadd.f32 0.0, %v1875
        %1877 = vmatprep.mubr.f32.mxu0 0.0
        %1878 = vmatmul.mubr.f32.gmra.mrb[0].mxu0 %v1085
        %v1879 = vpop.f32.mrb[0].mxu0
        %v1880 = vadd.f32 0.0, %v1879
        %v1881 = vpop.f32.mrb[0].mxu0
        %v1882 = vadd.f32 0.0, %v1881
        %1883 = vmatprep.mubr.f32.mxu0 0.0
        %1884 = vmatmul.mubr.f32.gmra.mrb[0].mxu0 %v1088
        %v1885 = vpop.f32.mrb[0].mxu0
        %v1886 = vadd.f32 0.0, %v1885
        %v1887 = vpop.f32.mrb[0].mxu0
        %v1888 = vadd.f32 0.0, %v1887
        %1889 = vmatprep.mubr.f32.mxu0 0.0
        %1890 = vmatmul.mubr.f32.gmra.mrb[0].mxu0 %v1091
        %v1891 = vpop.f32.mrb[0].mxu0
        %v1892 = vadd.f32 0.0, %v1891
        %v1893 = vpop.f32.mrb[0].mxu0
        %v1894 = vadd.f32 0.0, %v1893
        %1895 = vmatprep.mubr.f32.mxu0 0.0
        %1896 = vmatmul.mubr.f32.gmra.mrb[0].mxu0 %v1094
        %v1897 = vpop.f32.mrb[0].mxu0
        %v1898 = vadd.f32 0.0, %v1897
        %v1899 = vpop.f32.mrb[0].mxu0
        %v1900 = vadd.f32 0.0, %v1899
        %1901 = vmatprep.mubr.f32.mxu0 0.0
        %1902 = vmatmul.mubr.f32.gmra.mrb[0].mxu0 %v1097
        %v1903 = vpop.f32.mrb[0].mxu0
        %v1904 = vadd.f32 0.0, %v1903
        %v1905 = vpop.f32.mrb[0].mxu0
        %v1906 = vadd.f32 0.0, %v1905
        %1907 = vmatprep.mubr.f32.mxu0 0.0
        %1908 = vmatmul.mubr.f32.gmra.mrb[0].mxu0 %v1100
        %v1909 = vpop.f32.mrb[0].mxu0
        %v1910 = vadd.f32 0.0, %v1909
        %v1911 = vpop.f32.mrb[0].mxu0
        %v1912 = vadd.f32 0.0, %v1911
        %1913 = vmatprep.mubr.f32.mxu0 0.0
        %1914 = vmatmul.mubr.f32.gmra.mrb[0].mxu0 %v1103
        %v1915 = vpop.f32.mrb[0].mxu0
        %v1916 = vadd.f32 0.0, %v1915
        %v1917 = vpop.f32.mrb[0].mxu0
        %v1918 = vadd.f32 0.0, %v1917
        %1919 = vmatprep.mubr.f32.mxu0 0.0
        %1920 = vmatmul.mubr.f32.gmra.mrb[0].mxu0 %v1106
        %v1921 = vpop.f32.mrb[0].mxu0
        %v1922 = vadd.f32 0.0, %v1921
        %v1923 = vpop.f32.mrb[0].mxu0
        %v1924 = vadd.f32 0.0, %v1923
        %1925 = vmatprep.mubr.f32.mxu0 0.0
        %1926 = vmatmul.mubr.f32.gmra.mrb[0].mxu0 %v1109
        %v1927 = vpop.f32.mrb[0].mxu0
        %v1928 = vadd.f32 0.0, %v1927
        %v1929 = vpop.f32.mrb[0].mxu0
        %v1930 = vadd.f32 0.0, %v1929
        %1931 = vmatprep.mubr.f32.mxu0 0.0
        %1932 = vmatmul.mubr.f32.gmra.mrb[0].mxu0 %v1112
        %v1933 = vpop.f32.mrb[0].mxu0
        %v1934 = vadd.f32 0.0, %v1933
        %v1935 = vpop.f32.mrb[0].mxu0
        %v1936 = vadd.f32 0.0, %v1935
        %1937 = vmatprep.mubr.f32.mxu0 0.0
        %1938 = vmatmul.mubr.f32.gmra.mrb[0].mxu0 %v1115
        %v1939 = vpop.f32.mrb[0].mxu0
        %v1940 = vadd.f32 0.0, %v1939
        %v1941 = vpop.f32.mrb[0].mxu0
        %v1942 = vadd.f32 0.0, %v1941
        %1943 = vmatprep.mubr.f32.mxu0 0.0
        %1944 = vmatmul.mubr.f32.gmra.mrb[0].mxu0 %v1118
        %v1945 = vpop.f32.mrb[0].mxu0
        %v1946 = vadd.f32 0.0, %v1945
        %v1947 = vpop.f32.mrb[0].mxu0
        %v1948 = vadd.f32 0.0, %v1947
        %1949 = vmatprep.mubr.f32.mxu0 0.0
        %1950 = vmatmul.mubr.f32.gmra.mrb[0].mxu0 %v1121
        %v1951 = vpop.f32.mrb[0].mxu0
        %v1952 = vadd.f32 0.0, %v1951
        %v1953 = vpop.f32.mrb[0].mxu0
        %v1954 = vadd.f32 0.0, %v1953
        %1955 = vmatprep.mubr.f32.mxu0 0.0
        %1956 = vmatmul.mubr.f32.gmra.mrb[0].mxu0 %v1124
        %v1957 = vpop.f32.mrb[0].mxu0
        %v1958 = vadd.f32 0.0, %v1957
        %v1959 = vpop.f32.mrb[0].mxu0
        %v1960 = vadd.f32 0.0, %v1959
        %1961 = vmatprep.mubr.f32.mxu0 0.0
        %1962 = vmatmul.mubr.f32.gmra.mrb[0].mxu0 %v1127
        %v1963 = vpop.f32.mrb[0].mxu0
        %v1964 = vadd.f32 0.0, %v1963
        %v1965 = vpop.f32.mrb[0].mxu0
        %v1966 = vadd.f32 0.0, %v1965
        %1967 = vmatprep.mubr.f32.mxu0 0.0
        %1968 = vmatmul.mubr.f32.gmra.mrb[0].mxu0 %v1130
        %v1969 = vpop.f32.mrb[0].mxu0
        %v1970 = vadd.f32 0.0, %v1969
        %v1971 = vpop.f32.mrb[0].mxu0
        %v1972 = vadd.f32 0.0, %v1971
        %1973 = vmatprep.mubr.f32.mxu0 0.0
        %1974 = vmatmul.mubr.f32.gmra.mrb[0].mxu0 %v1133
        %v1975 = vpop.f32.mrb[0].mxu0
        %v1976 = vadd.f32 0.0, %v1975
        %v1977 = vpop.f32.mrb[0].mxu0
        %v1978 = vadd.f32 0.0, %v1977
        %1979 = vmatprep.mubr.f32.mxu0 0.0
        %1980 = vmatmul.mubr.f32.gmra.mrb[0].mxu0 %v1136
        %v1981 = vpop.f32.mrb[0].mxu0
        %v1982 = vadd.f32 0.0, %v1981
        %v1983 = vpop.f32.mrb[0].mxu0
        %v1984 = vadd.f32 0.0, %v1983
        %1985 = vmatprep.mubr.f32.mxu0 0.0
        %1986 = vmatmul.mubr.f32.gmra.mrb[0].mxu0 %v1139
        %v1987 = vpop.f32.mrb[0].mxu0
        %v1988 = vadd.f32 0.0, %v1987
        %v1989 = vpop.f32.mrb[0].mxu0
        %v1990 = vadd.f32 0.0, %v1989
        %1991 = vmatprep.mubr.f32.mxu0 0.0
        %1992 = vmatmul.mubr.f32.gmra.mrb[0].mxu0 %v1142
        %v1993 = vpop.f32.mrb[0].mxu0
        %v1994 = vadd.f32 0.0, %v1993
        %v1995 = vpop.f32.mrb[0].mxu0
        %v1996 = vadd.f32 0.0, %v1995
        %1997 = vmatprep.mubr.f32.mxu0 0.0
        %1998 = vmatmul.mubr.f32.gmra.mrb[0].mxu0 %v1145
        %v1999 = vpop.f32.mrb[0].mxu0
        %v2000 = vadd.f32 0.0, %v1999
        %v2001 = vpop.f32.mrb[0].mxu0
        %v2002 = vadd.f32 0.0, %v2001
        %2003 = vmatprep.mubr.f32.mxu0 0.0
        %2004 = vmatmul.mubr.f32.gmra.mrb[0].mxu0 %v1148
        %v2005 = vpop.f32.mrb[0].mxu0
        %v2006 = vadd.f32 0.0, %v2005
        %v2007 = vpop.f32.mrb[0].mxu0
        %v2008 = vadd.f32 0.0, %v2007
        %2009 = vmatprep.mubr.f32.mxu0 0.0
        %2010 = vmatmul.mubr.f32.gmra.mrb[0].mxu0 %v1151
        %v2011 = vpop.f32.mrb[0].mxu0
        %v2012 = vadd.f32 0.0, %v2011
        %v2013 = vpop.f32.mrb[0].mxu0
        %v2014 = vadd.f32 0.0, %v2013
        %2015 = vmatprep.mubr.f32.mxu0 0.0
        %2016 = vmatmul.mubr.f32.gmra.mrb[0].mxu0 %v1154
        %v2017 = vpop.f32.mrb[0].mxu0
        %v2018 = vadd.f32 0.0, %v2017
        %v2019 = vpop.f32.mrb[0].mxu0
        %v2020 = vadd.f32 0.0, %v2019
        %2021 = vmatprep.mubr.f32.mxu0 0.0
        %2022 = vmatmul.mubr.f32.gmra.mrb[0].mxu0 %v1157
        %v2023 = vpop.f32.mrb[0].mxu0
        %v2024 = vadd.f32 0.0, %v2023
        %v2025 = vpop.f32.mrb[0].mxu0
        %v2026 = vadd.f32 0.0, %v2025
        %2027 = vmatprep.mubr.f32.mxu0 0.0
        %2028 = vmatmul.mubr.f32.gmra.mrb[0].mxu0 %v1160
        %v2029 = vpop.f32.mrb[0].mxu0
        %v2030 = vadd.f32 0.0, %v2029
        %v2031 = vpop.f32.mrb[0].mxu0
        %v2032 = vadd.f32 0.0, %v2031
        %2033 = vmatprep.mubr.f32.mxu0 0.0
        %2034 = vmatmul.mubr.f32.gmra.mrb[0].mxu0 %v1163
        %v2035 = vpop.f32.mrb[0].mxu0
        %v2036 = vadd.f32 0.0, %v2035
        %v2037 = vpop.f32.mrb[0].mxu0
        %v2038 = vadd.f32 0.0, %v2037
        %2039 = vmatprep.mubr.f32.mxu0 0.0
        %2040 = vmatmul.mubr.f32.gmra.mrb[0].mxu0 %v1166
        %v2041 = vpop.f32.mrb[0].mxu0
        %v2042 = vadd.f32 0.0, %v2041
        %v2043 = vpop.f32.mrb[0].mxu0
        %v2044 = vadd.f32 0.0, %v2043
        %2045 = vmatprep.mubr.f32.mxu0 0.0
        %2046 = vmatmul.mubr.f32.gmra.mrb[0].mxu0 %v1169
        %v2047 = vpop.f32.mrb[0].mxu0
        %v2048 = vadd.f32 0.0, %v2047
        %v2049 = vpop.f32.mrb[0].mxu0
        %v2050 = vadd.f32 0.0, %v2049
        %2051 = vmatprep.mubr.f32.mxu0 0.0
        %2052 = vmatmul.mubr.f32.gmra.mrb[0].mxu0 %v1172
        %v2053 = vpop.f32.mrb[0].mxu0
        %v2054 = vadd.f32 0.0, %v2053
        %v2055 = vpop.f32.mrb[0].mxu0
        %v2056 = vadd.f32 0.0, %v2055
        %2057 = vmatprep.mubr.f32.mxu0 0.0
        %2058 = vmatmul.mubr.f32.gmra.mrb[0].mxu0 %v1175
        %v2059 = vpop.f32.mrb[0].mxu0
        %v2060 = vadd.f32 0.0, %v2059
        %v2061 = vpop.f32.mrb[0].mxu0
        %v2062 = vadd.f32 0.0, %v2061
        %2063 = vmatprep.mubr.f32.mxu0 0.0
        %2064 = vmatmul.mubr.f32.gmra.mrb[0].mxu0 %v1178
        %v2065 = vpop.f32.mrb[0].mxu0
        %v2066 = vadd.f32 0.0, %v2065
        %v2067 = vpop.f32.mrb[0].mxu0
        %v2068 = vadd.f32 0.0, %v2067
        %2069 = vmatprep.mubr.f32.mxu0 0.0
        %2070 = vmatmul.mubr.f32.gmra.mrb[0].mxu0 %v1181
        %v2071 = vpop.f32.mrb[0].mxu0
        %v2072 = vadd.f32 0.0, %v2071
        %v2073 = vpop.f32.mrb[0].mxu0
        %v2074 = vadd.f32 0.0, %v2073
        %2075 = vmatprep.mubr.f32.mxu0 0.0
        %2076 = vmatmul.mubr.f32.gmra.mrb[0].mxu0 %v1184
        %v2077 = vpop.f32.mrb[0].mxu0
        %v2078 = vadd.f32 0.0, %v2077
        %v2079 = vpop.f32.mrb[0].mxu0
        %v2080 = vadd.f32 0.0, %v2079
        %2081 = vmatprep.mubr.f32.mxu0 0.0
        %2082 = vmatmul.mubr.f32.gmra.mrb[0].mxu0 %v1187
        %v2083 = vpop.f32.mrb[0].mxu0
        %v2084 = vadd.f32 0.0, %v2083
        %v2085 = vpop.f32.mrb[0].mxu0
        %v2086 = vadd.f32 0.0, %v2085
        %2087 = vmatprep.mubr.f32.mxu0 0.0
        %2088 = vmatmul.mubr.f32.gmra.mrb[0].mxu0 %v1190
        %v2089 = vpop.f32.mrb[0].mxu0
        %v2090 = vadd.f32 0.0, %v2089
        %v2091 = vpop.f32.mrb[0].mxu0
        %v2092 = vadd.f32 0.0, %v2091
        %2093 = vmatprep.mubr.f32.mxu0 0.0
        %2094 = vmatmul.mubr.f32.gmra.mrb[0].mxu0 %v1193
        %v2095 = vpop.f32.mrb[0].mxu0
        %v2096 = vadd.f32 0.0, %v2095
        %v2097 = vpop.f32.mrb[0].mxu0
        %v2098 = vadd.f32 0.0, %v2097
        %2099 = vmatprep.mubr.f32.mxu0 0.0
        %2100 = vmatmul.mubr.f32.gmra.mrb[0].mxu0 %v1196
        %v2101 = vpop.f32.mrb[0].mxu0
        %v2102 = vadd.f32 0.0, %v2101
        %v2103 = vpop.f32.mrb[0].mxu0
        %v2104 = vadd.f32 0.0, %v2103
        %2105 = vmatprep.mubr.f32.mxu0 0.0
        %2106 = vmatmul.mubr.f32.gmra.mrb[0].mxu0 %v1199
        %v2107 = vpop.f32.mrb[0].mxu0
        %v2108 = vadd.f32 0.0, %v2107
        %v2109 = vpop.f32.mrb[0].mxu0
        %v2110 = vadd.f32 0.0, %v2109
        %2111 = vmatprep.mubr.f32.mxu0 0.0
        %2112 = vmatmul.mubr.f32.gmra.mrb[0].mxu0 %v1202
        %v2113 = vpop.f32.mrb[0].mxu0
        %v2114 = vadd.f32 0.0, %v2113
        %v2115 = vpop.f32.mrb[0].mxu0
        %v2116 = vadd.f32 0.0, %v2115
        %2117 = vmatprep.mubr.f32.mxu0 0.0
        %2118 = vmatmul.mubr.f32.gmra.mrb[0].mxu0 %v1205
        %v2119 = vpop.f32.mrb[0].mxu0
        %v2120 = vadd.f32 0.0, %v2119
        %v2121 = vpop.f32.mrb[0].mxu0
        %v2122 = vadd.f32 0.0, %v2121
        %2123 = vmatprep.mubr.f32.mxu0 0.0
        %2124 = vmatmul.mubr.f32.gmra.mrb[0].mxu0 %v1208
        %v2125 = vpop.f32.mrb[0].mxu0
        %v2126 = vadd.f32 0.0, %v2125
        %v2127 = vpop.f32.mrb[0].mxu0
        %v2128 = vadd.f32 0.0, %v2127
        %2129 = vmatprep.mubr.f32.mxu0 0.0
        %2130 = vmatmul.mubr.f32.gmra.mrb[0].mxu0 %v1211
        %v2131 = vpop.f32.mrb[0].mxu0
        %v2132 = vadd.f32 0.0, %v2131
        %v2133 = vpop.f32.mrb[0].mxu0
        %v2134 = vadd.f32 0.0, %v2133
        %2135 = vmatprep.mubr.f32.mxu0 0.0
        %2136 = vmatmul.mubr.f32.gmra.mrb[0].mxu0 %v1214
        %v2137 = vpop.f32.mrb[0].mxu0
        %v2138 = vadd.f32 0.0, %v2137
        %v2139 = vpop.f32.mrb[0].mxu0
        %v2140 = vadd.f32 0.0, %v2139
        %2141 = vmatprep.mubr.f32.mxu0 0.0
        %2142 = vmatmul.mubr.f32.gmra.mrb[0].mxu0 %v1217
        %v2143 = vpop.f32.mrb[0].mxu0
        %v2144 = vadd.f32 0.0, %v2143
        %v2145 = vpop.f32.mrb[0].mxu0
        %v2146 = vadd.f32 0.0, %v2145
        %2147 = vmatprep.mubr.f32.mxu0 0.0
        %2148 = vmatmul.mubr.f32.gmra.mrb[0].mxu0 %v1220
        %v2149 = vpop.f32.mrb[0].mxu0
        %v2150 = vadd.f32 0.0, %v2149
        %v2151 = vpop.f32.mrb[0].mxu0
        %v2152 = vadd.f32 0.0, %v2151
        %2153 = vmatprep.mubr.f32.mxu0 0.0
        %2154 = vmatmul.mubr.f32.gmra.mrb[0].mxu0 %v1223
        %v2155 = vpop.f32.mrb[0].mxu0
        %v2156 = vadd.f32 0.0, %v2155
        %v2157 = vpop.f32.mrb[0].mxu0
        %v2158 = vadd.f32 0.0, %v2157
        %2159 = vmatprep.mubr.f32.mxu0 0.0
        %2160 = vmatmul.mubr.f32.gmra.mrb[0].mxu0 %v1226
        %v2161 = vpop.f32.mrb[0].mxu0
        %v2162 = vadd.f32 0.0, %v2161
        %v2163 = vpop.f32.mrb[0].mxu0
        %v2164 = vadd.f32 0.0, %v2163
        %2165 = vmatprep.mubr.f32.mxu0 0.0
        %2166 = vmatmul.mubr.f32.gmra.mrb[0].mxu0 %v1229
        %v2167 = vpop.f32.mrb[0].mxu0
        %v2168 = vadd.f32 0.0, %v2167
        %v2169 = vpop.f32.mrb[0].mxu0
        %v2170 = vadd.f32 0.0, %v2169
        %2171 = vmatprep.mubr.f32.mxu0 0.0
        %2172 = vmatmul.mubr.f32.gmra.mrb[0].mxu0 %v1232
        %v2173 = vpop.f32.mrb[0].mxu0
        %v2174 = vadd.f32 0.0, %v2173
        %v2175 = vpop.f32.mrb[0].mxu0
        %v2176 = vadd.f32 0.0, %v2175
        %2177 = vmatprep.mubr.f32.mxu0 0.0
        %2178 = vmatmul.mubr.f32.gmra.mrb[0].mxu0 %v1235
        %v2179 = vpop.f32.mrb[0].mxu0
        %v2180 = vadd.f32 0.0, %v2179
        %v2181 = vpop.f32.mrb[0].mxu0
        %v2182 = vadd.f32 0.0, %v2181
        %2183 = vmatprep.mubr.f32.mxu0 0.0
        %2184 = vmatmul.mubr.f32.gmra.mrb[0].mxu0 %v1238
        %v2185 = vpop.f32.mrb[0].mxu0
        %v2186 = vadd.f32 0.0, %v2185
        %v2187 = vpop.f32.mrb[0].mxu0
        %v2188 = vadd.f32 0.0, %v2187
        %2189 = vmatprep.mubr.f32.mxu0 0.0
        %2190 = vmatmul.mubr.f32.gmra.mrb[0].mxu0 %v1241
        %v2191 = vpop.f32.mrb[0].mxu0
        %v2192 = vadd.f32 0.0, %v2191
        %v2193 = vpop.f32.mrb[0].mxu0
        %v2194 = vadd.f32 0.0, %v2193
        %2195 = vmatprep.mubr.f32.mxu0 0.0
        %2196 = vmatmul.mubr.f32.gmra.mrb[0].mxu0 %v1244
        %v2197 = vpop.f32.mrb[0].mxu0
        %v2198 = vadd.f32 0.0, %v2197
        %v2199 = vpop.f32.mrb[0].mxu0
        %v2200 = vadd.f32 0.0, %v2199
        %2201 = vmatprep.mubr.f32.mxu0 0.0
        %2202 = vmatmul.mubr.f32.gmra.mrb[0].mxu0 %v1247
        %v2203 = vpop.f32.mrb[0].mxu0
        %v2204 = vadd.f32 0.0, %v2203
        %v2205 = vpop.f32.mrb[0].mxu0
        %v2206 = vadd.f32 0.0, %v2205
        %2207 = vmatprep.mubr.f32.mxu0 0.0
        %2208 = vmatmul.mubr.f32.gmra.mrb[0].mxu0 %v1250
        %v2209 = vpop.f32.mrb[0].mxu0
        %v2210 = vadd.f32 0.0, %v2209
        %v2211 = vpop.f32.mrb[0].mxu0
        %v2212 = vadd.f32 0.0, %v2211
        %2213 = vmatprep.mubr.f32.mxu0 0.0
        %2214 = vmatmul.mubr.f32.gmra.mrb[0].mxu0 %v1253
        %v2215 = vpop.f32.mrb[0].mxu0
        %v2216 = vadd.f32 0.0, %v2215
        %v2217 = vpop.f32.mrb[0].mxu0
        %v2218 = vadd.f32 0.0, %v2217
        %2219 = vdwg.mxu0
        %2220 = vmatprep.subr.mxu0 %v416
        %2221 = vmatpush1.msra.mxu0 %v414
        %2222 = vmatprep.subr.mxu0 %v422
        %2223 = vmatpush1.msra.mxu0 %v420
        %2224 = vmatprep.subr.mxu0 0.0
        %2225 = vmatpush1.msra.mxu0 0.0
        %2226 = vmatprep.subr.mxu0 0.0
        %2227 = vmatpush1.msra.mxu0 0.0
        %2228 = vmatprep.subr.mxu0 0.0
        %2229 = vmatpush1.msra.mxu0 0.0
        %2230 = vmatprep.subr.mxu0 0.0
        %2231 = vmatpush1.msra.mxu0 0.0
        %2232 = vmatprep.subr.mxu0 0.0
        %2233 = vmatpush1.msra.mxu0 0.0
        %2234 = vmatprep.subr.mxu0 0.0
        %2235 = vmatpush1.msra.mxu0 0.0
        %2236 = vmatprep.subr.mxu0 0.0
        %2237 = vmatpush1.msra.mxu0 0.0
        %2238 = vmatprep.subr.mxu0 0.0
        %2239 = vmatpush1.msra.mxu0 0.0
        %2240 = vmatprep.subr.mxu0 0.0
        %2241 = vmatpush1.msra.mxu0 0.0
        %2242 = vmatprep.subr.mxu0 0.0
        %2243 = vmatpush1.msra.mxu0 0.0
        %2244 = vmatprep.subr.mxu0 0.0
        %2245 = vmatpush1.msra.mxu0 0.0
        %2246 = vmatprep.subr.mxu0 0.0
        %2247 = vmatpush1.msra.mxu0 0.0
        %2248 = vmatprep.subr.mxu0 0.0
        %2249 = vmatpush1.msra.mxu0 0.0
        %2250 = vmatprep.subr.mxu0 0.0
        %2251 = vmatpush1.msra.mxu0 0.0
        %2252 = vmatprep.subr.mxu0 0.0
        %2253 = vmatpush1.msra.mxu0 0.0
        %2254 = vmatprep.subr.mxu0 0.0
        %2255 = vmatpush1.msra.mxu0 0.0
        %2256 = vmatprep.subr.mxu0 0.0
        %2257 = vmatpush1.msra.mxu0 0.0
        %2258 = vmatprep.subr.mxu0 0.0
        %2259 = vmatpush1.msra.mxu0 0.0
        %2260 = vmatprep.subr.mxu0 0.0
        %2261 = vmatpush1.msra.mxu0 0.0
        %2262 = vmatprep.subr.mxu0 0.0
        %2263 = vmatpush1.msra.mxu0 0.0
        %2264 = vmatprep.subr.mxu0 0.0
        %2265 = vmatpush1.msra.mxu0 0.0
        %2266 = vmatprep.subr.mxu0 0.0
        %2267 = vmatpush1.msra.mxu0 0.0
        %2268 = vmatprep.subr.mxu0 0.0
        %2269 = vmatpush1.msra.mxu0 0.0
        %2270 = vmatprep.subr.mxu0 0.0
        %2271 = vmatpush1.msra.mxu0 0.0
        %2272 = vmatprep.subr.mxu0 0.0
        %2273 = vmatpush1.msra.mxu0 0.0
        %2274 = vmatprep.subr.mxu0 0.0
        %2275 = vmatpush1.msra.mxu0 0.0
        %2276 = vmatprep.subr.mxu0 0.0
        %2277 = vmatpush1.msra.mxu0 0.0
        %2278 = vmatprep.subr.mxu0 0.0
        %2279 = vmatpush1.msra.mxu0 0.0
        %2280 = vmatprep.subr.mxu0 0.0
        %2281 = vmatpush1.msra.mxu0 0.0
        %2282 = vmatprep.subr.mxu0 0.0
        %2283 = vmatpush1.msra.mxu0 0.0
        %2284 = vmatprep.mubr.f32.mxu0 0.0
        %2285 = vmatmul.mubr.f32.gmra.mrb[0].mxu0 %v806
        %v2286 = vpop.f32.mrb[0].mxu0
        %v2287 = vadd.f32 0.0, %v2286
        %v2288 = vpop.f32.mrb[0].mxu0
        %v2289 = vadd.f32 0.0, %v2288
        %2290 = vmatprep.mubr.f32.mxu0 0.0
        %2291 = vmatmul.mubr.f32.gmra.mrb[0].mxu0 %v809
        %v2292 = vpop.f32.mrb[0].mxu0
        %v2293 = vadd.f32 0.0, %v2292
        %v2294 = vpop.f32.mrb[0].mxu0
        %v2295 = vadd.f32 0.0, %v2294
        %2296 = vmatprep.mubr.f32.mxu0 0.0
        %2297 = vmatmul.mubr.f32.gmra.mrb[0].mxu0 %v812
        %v2298 = vpop.f32.mrb[0].mxu0
        %v2299 = vadd.f32 0.0, %v2298
        %v2300 = vpop.f32.mrb[0].mxu0
        %v2301 = vadd.f32 0.0, %v2300
        %2302 = vmatprep.mubr.f32.mxu0 0.0
        %2303 = vmatmul.mubr.f32.gmra.mrb[0].mxu0 %v815
        %v2304 = vpop.f32.mrb[0].mxu0
        %v2305 = vadd.f32 0.0, %v2304
        %v2306 = vpop.f32.mrb[0].mxu0
        %v2307 = vadd.f32 0.0, %v2306
        %2308 = vmatprep.mubr.f32.mxu0 0.0
        %2309 = vmatmul.mubr.f32.gmra.mrb[0].mxu0 %v818
        %v2310 = vpop.f32.mrb[0].mxu0
        %v2311 = vadd.f32 0.0, %v2310
        %v2312 = vpop.f32.mrb[0].mxu0
        %v2313 = vadd.f32 0.0, %v2312
        %2314 = vmatprep.mubr.f32.mxu0 0.0
        %2315 = vmatmul.mubr.f32.gmra.mrb[0].mxu0 %v821
        %v2316 = vpop.f32.mrb[0].mxu0
        %v2317 = vadd.f32 0.0, %v2316
        %v2318 = vpop.f32.mrb[0].mxu0
        %v2319 = vadd.f32 0.0, %v2318
        %2320 = vmatprep.mubr.f32.mxu0 0.0
        %2321 = vmatmul.mubr.f32.gmra.mrb[0].mxu0 %v824
        %v2322 = vpop.f32.mrb[0].mxu0
        %v2323 = vadd.f32 0.0, %v2322
        %v2324 = vpop.f32.mrb[0].mxu0
        %v2325 = vadd.f32 0.0, %v2324
        %2326 = vmatprep.mubr.f32.mxu0 0.0
        %2327 = vmatmul.mubr.f32.gmra.mrb[0].mxu0 %v827
        %v2328 = vpop.f32.mrb[0].mxu0
        %v2329 = vadd.f32 0.0, %v2328
        %v2330 = vpop.f32.mrb[0].mxu0
        %v2331 = vadd.f32 0.0, %v2330
        %2332 = vmatprep.mubr.f32.mxu0 0.0
        %2333 = vmatmul.mubr.f32.gmra.mrb[0].mxu0 %v830
        %v2334 = vpop.f32.mrb[0].mxu0
        %v2335 = vadd.f32 0.0, %v2334
        %v2336 = vpop.f32.mrb[0].mxu0
        %v2337 = vadd.f32 0.0, %v2336
        %2338 = vmatprep.mubr.f32.mxu0 0.0
        %2339 = vmatmul.mubr.f32.gmra.mrb[0].mxu0 %v833
        %v2340 = vpop.f32.mrb[0].mxu0
        %v2341 = vadd.f32 0.0, %v2340
        %v2342 = vpop.f32.mrb[0].mxu0
        %v2343 = vadd.f32 0.0, %v2342
        %2344 = vmatprep.mubr.f32.mxu0 0.0
        %2345 = vmatmul.mubr.f32.gmra.mrb[0].mxu0 %v836
        %v2346 = vpop.f32.mrb[0].mxu0
        %v2347 = vadd.f32 0.0, %v2346
        %v2348 = vpop.f32.mrb[0].mxu0
        %v2349 = vadd.f32 0.0, %v2348
        %2350 = vmatprep.mubr.f32.mxu0 0.0
        %2351 = vmatmul.mubr.f32.gmra.mrb[0].mxu0 %v839
        %v2352 = vpop.f32.mrb[0].mxu0
        %v2353 = vadd.f32 0.0, %v2352
        %v2354 = vpop.f32.mrb[0].mxu0
        %v2355 = vadd.f32 0.0, %v2354
        %2356 = vmatprep.mubr.f32.mxu0 0.0
        %2357 = vmatmul.mubr.f32.gmra.mrb[0].mxu0 %v842
        %v2358 = vpop.f32.mrb[0].mxu0
        %v2359 = vadd.f32 0.0, %v2358
        %v2360 = vpop.f32.mrb[0].mxu0
        %v2361 = vadd.f32 0.0, %v2360
        %2362 = vmatprep.mubr.f32.mxu0 0.0
        %2363 = vmatmul.mubr.f32.gmra.mrb[0].mxu0 %v845
        %v2364 = vpop.f32.mrb[0].mxu0
        %v2365 = vadd.f32 0.0, %v2364
        %v2366 = vpop.f32.mrb[0].mxu0
        %v2367 = vadd.f32 0.0, %v2366
        %2368 = vmatprep.mubr.f32.mxu0 0.0
        %2369 = vmatmul.mubr.f32.gmra.mrb[0].mxu0 %v848
        %v2370 = vpop.f32.mrb[0].mxu0
        %v2371 = vadd.f32 0.0, %v2370
        %v2372 = vpop.f32.mrb[0].mxu0
        %v2373 = vadd.f32 0.0, %v2372
        %2374 = vmatprep.mubr.f32.mxu0 0.0
        %2375 = vmatmul.mubr.f32.gmra.mrb[0].mxu0 %v851
        %v2376 = vpop.f32.mrb[0].mxu0
        %v2377 = vadd.f32 0.0, %v2376
        %v2378 = vpop.f32.mrb[0].mxu0
        %v2379 = vadd.f32 0.0, %v2378
        %2380 = vmatprep.mubr.f32.mxu0 0.0
        %2381 = vmatmul.mubr.f32.gmra.mrb[0].mxu0 %v854
        %v2382 = vpop.f32.mrb[0].mxu0
        %v2383 = vadd.f32 0.0, %v2382
        %v2384 = vpop.f32.mrb[0].mxu0
        %v2385 = vadd.f32 0.0, %v2384
        %2386 = vmatprep.mubr.f32.mxu0 0.0
        %2387 = vmatmul.mubr.f32.gmra.mrb[0].mxu0 %v857
        %v2388 = vpop.f32.mrb[0].mxu0
        %v2389 = vadd.f32 0.0, %v2388
        %v2390 = vpop.f32.mrb[0].mxu0
        %v2391 = vadd.f32 0.0, %v2390
        %2392 = vmatprep.mubr.f32.mxu0 0.0
        %2393 = vmatmul.mubr.f32.gmra.mrb[0].mxu0 %v860
        %v2394 = vpop.f32.mrb[0].mxu0
        %v2395 = vadd.f32 0.0, %v2394
        %v2396 = vpop.f32.mrb[0].mxu0
        %v2397 = vadd.f32 0.0, %v2396
        %2398 = vmatprep.mubr.f32.mxu0 0.0
        %2399 = vmatmul.mubr.f32.gmra.mrb[0].mxu0 %v863
        %v2400 = vpop.f32.mrb[0].mxu0
        %v2401 = vadd.f32 0.0, %v2400
        %v2402 = vpop.f32.mrb[0].mxu0
        %v2403 = vadd.f32 0.0, %v2402
        %2404 = vmatprep.mubr.f32.mxu0 0.0
        %2405 = vmatmul.mubr.f32.gmra.mrb[0].mxu0 %v866
        %v2406 = vpop.f32.mrb[0].mxu0
        %v2407 = vadd.f32 0.0, %v2406
        %v2408 = vpop.f32.mrb[0].mxu0
        %v2409 = vadd.f32 0.0, %v2408
        %2410 = vmatprep.mubr.f32.mxu0 0.0
        %2411 = vmatmul.mubr.f32.gmra.mrb[0].mxu0 %v869
        %v2412 = vpop.f32.mrb[0].mxu0
        %v2413 = vadd.f32 0.0, %v2412
        %v2414 = vpop.f32.mrb[0].mxu0
        %v2415 = vadd.f32 0.0, %v2414
        %2416 = vmatprep.mubr.f32.mxu0 0.0
        %2417 = vmatmul.mubr.f32.gmra.mrb[0].mxu0 %v872
        %v2418 = vpop.f32.mrb[0].mxu0
        %v2419 = vadd.f32 0.0, %v2418
        %v2420 = vpop.f32.mrb[0].mxu0
        %v2421 = vadd.f32 0.0, %v2420
        %2422 = vmatprep.mubr.f32.mxu0 0.0
        %2423 = vmatmul.mubr.f32.gmra.mrb[0].mxu0 %v875
        %v2424 = vpop.f32.mrb[0].mxu0
        %v2425 = vadd.f32 0.0, %v2424
        %v2426 = vpop.f32.mrb[0].mxu0
        %v2427 = vadd.f32 0.0, %v2426
        %2428 = vmatprep.mubr.f32.mxu0 0.0
        %2429 = vmatmul.mubr.f32.gmra.mrb[0].mxu0 %v878
        %v2430 = vpop.f32.mrb[0].mxu0
        %v2431 = vadd.f32 0.0, %v2430
        %v2432 = vpop.f32.mrb[0].mxu0
        %v2433 = vadd.f32 0.0, %v2432
        %2434 = vmatprep.mubr.f32.mxu0 0.0
        %2435 = vmatmul.mubr.f32.gmra.mrb[0].mxu0 %v881
        %v2436 = vpop.f32.mrb[0].mxu0
        %v2437 = vadd.f32 0.0, %v2436
        %v2438 = vpop.f32.mrb[0].mxu0
        %v2439 = vadd.f32 0.0, %v2438
        %2440 = vmatprep.mubr.f32.mxu0 0.0
        %2441 = vmatmul.mubr.f32.gmra.mrb[0].mxu0 %v884
        %v2442 = vpop.f32.mrb[0].mxu0
        %v2443 = vadd.f32 0.0, %v2442
        %v2444 = vpop.f32.mrb[0].mxu0
        %v2445 = vadd.f32 0.0, %v2444
        %2446 = vmatprep.mubr.f32.mxu0 0.0
        %2447 = vmatmul.mubr.f32.gmra.mrb[0].mxu0 %v887
        %v2448 = vpop.f32.mrb[0].mxu0
        %v2449 = vadd.f32 0.0, %v2448
        %v2450 = vpop.f32.mrb[0].mxu0
        %v2451 = vadd.f32 0.0, %v2450
        %2452 = vmatprep.mubr.f32.mxu0 0.0
        %2453 = vmatmul.mubr.f32.gmra.mrb[0].mxu0 %v890
        %v2454 = vpop.f32.mrb[0].mxu0
        %v2455 = vadd.f32 0.0, %v2454
        %v2456 = vpop.f32.mrb[0].mxu0
        %v2457 = vadd.f32 0.0, %v2456
        %2458 = vmatprep.mubr.f32.mxu0 0.0
        %2459 = vmatmul.mubr.f32.gmra.mrb[0].mxu0 %v893
        %v2460 = vpop.f32.mrb[0].mxu0
        %v2461 = vadd.f32 0.0, %v2460
        %v2462 = vpop.f32.mrb[0].mxu0
        %v2463 = vadd.f32 0.0, %v2462
        %2464 = vmatprep.mubr.f32.mxu0 0.0
        %2465 = vmatmul.mubr.f32.gmra.mrb[0].mxu0 %v896
        %v2466 = vpop.f32.mrb[0].mxu0
        %v2467 = vadd.f32 0.0, %v2466
        %v2468 = vpop.f32.mrb[0].mxu0
        %v2469 = vadd.f32 0.0, %v2468
        %2470 = vmatprep.mubr.f32.mxu0 0.0
        %2471 = vmatmul.mubr.f32.gmra.mrb[0].mxu0 %v899
        %v2472 = vpop.f32.mrb[0].mxu0
        %v2473 = vadd.f32 0.0, %v2472
        %v2474 = vpop.f32.mrb[0].mxu0
        %v2475 = vadd.f32 0.0, %v2474
        %2476 = vmatprep.mubr.f32.mxu0 0.0
        %2477 = vmatmul.mubr.f32.gmra.mrb[0].mxu0 %v902
        %v2478 = vpop.f32.mrb[0].mxu0
        %v2479 = vadd.f32 0.0, %v2478
        %v2480 = vpop.f32.mrb[0].mxu0
        %v2481 = vadd.f32 0.0, %v2480
        %2482 = vmatprep.mubr.f32.mxu0 0.0
        %2483 = vmatmul.mubr.f32.gmra.mrb[0].mxu0 %v905
        %v2484 = vpop.f32.mrb[0].mxu0
        %v2485 = vadd.f32 0.0, %v2484
        %v2486 = vpop.f32.mrb[0].mxu0
        %v2487 = vadd.f32 0.0, %v2486
        %2488 = vmatprep.mubr.f32.mxu0 0.0
        %2489 = vmatmul.mubr.f32.gmra.mrb[0].mxu0 %v908
        %v2490 = vpop.f32.mrb[0].mxu0
        %v2491 = vadd.f32 0.0, %v2490
        %v2492 = vpop.f32.mrb[0].mxu0
        %v2493 = vadd.f32 0.0, %v2492
        %2494 = vmatprep.mubr.f32.mxu0 0.0
        %2495 = vmatmul.mubr.f32.gmra.mrb[0].mxu0 %v911
        %v2496 = vpop.f32.mrb[0].mxu0
        %v2497 = vadd.f32 0.0, %v2496
        %v2498 = vpop.f32.mrb[0].mxu0
        %v2499 = vadd.f32 0.0, %v2498
        %2500 = vmatprep.mubr.f32.mxu0 0.0
        %2501 = vmatmul.mubr.f32.gmra.mrb[0].mxu0 %v914
        %v2502 = vpop.f32.mrb[0].mxu0
        %v2503 = vadd.f32 0.0, %v2502
        %v2504 = vpop.f32.mrb[0].mxu0
        %v2505 = vadd.f32 0.0, %v2504
        %2506 = vmatprep.mubr.f32.mxu0 0.0
        %2507 = vmatmul.mubr.f32.gmra.mrb[0].mxu0 %v917
        %v2508 = vpop.f32.mrb[0].mxu0
        %v2509 = vadd.f32 0.0, %v2508
        %v2510 = vpop.f32.mrb[0].mxu0
        %v2511 = vadd.f32 0.0, %v2510
        %2512 = vmatprep.mubr.f32.mxu0 0.0
        %2513 = vmatmul.mubr.f32.gmra.mrb[0].mxu0 %v920
        %v2514 = vpop.f32.mrb[0].mxu0
        %v2515 = vadd.f32 0.0, %v2514
        %v2516 = vpop.f32.mrb[0].mxu0
        %v2517 = vadd.f32 0.0, %v2516
        %2518 = vmatprep.mubr.f32.mxu0 0.0
        %2519 = vmatmul.mubr.f32.gmra.mrb[0].mxu0 %v923
        %v2520 = vpop.f32.mrb[0].mxu0
        %v2521 = vadd.f32 0.0, %v2520
        %v2522 = vpop.f32.mrb[0].mxu0
        %v2523 = vadd.f32 0.0, %v2522
        %2524 = vmatprep.mubr.f32.mxu0 0.0
        %2525 = vmatmul.mubr.f32.gmra.mrb[0].mxu0 %v926
        %v2526 = vpop.f32.mrb[0].mxu0
        %v2527 = vadd.f32 0.0, %v2526
        %v2528 = vpop.f32.mrb[0].mxu0
        %v2529 = vadd.f32 0.0, %v2528
        %2530 = vmatprep.mubr.f32.mxu0 0.0
        %2531 = vmatmul.mubr.f32.gmra.mrb[0].mxu0 %v929
        %v2532 = vpop.f32.mrb[0].mxu0
        %v2533 = vadd.f32 0.0, %v2532
        %v2534 = vpop.f32.mrb[0].mxu0
        %v2535 = vadd.f32 0.0, %v2534
        %2536 = vmatprep.mubr.f32.mxu0 0.0
        %2537 = vmatmul.mubr.f32.gmra.mrb[0].mxu0 %v932
        %v2538 = vpop.f32.mrb[0].mxu0
        %v2539 = vadd.f32 0.0, %v2538
        %v2540 = vpop.f32.mrb[0].mxu0
        %v2541 = vadd.f32 0.0, %v2540
        %2542 = vmatprep.mubr.f32.mxu0 0.0
        %2543 = vmatmul.mubr.f32.gmra.mrb[0].mxu0 %v935
        %v2544 = vpop.f32.mrb[0].mxu0
        %v2545 = vadd.f32 0.0, %v2544
        %v2546 = vpop.f32.mrb[0].mxu0
        %v2547 = vadd.f32 0.0, %v2546
        %2548 = vmatprep.mubr.f32.mxu0 0.0
        %2549 = vmatmul.mubr.f32.gmra.mrb[0].mxu0 %v938
        %v2550 = vpop.f32.mrb[0].mxu0
        %v2551 = vadd.f32 0.0, %v2550
        %v2552 = vpop.f32.mrb[0].mxu0
        %v2553 = vadd.f32 0.0, %v2552
        %2554 = vmatprep.mubr.f32.mxu0 0.0
        %2555 = vmatmul.mubr.f32.gmra.mrb[0].mxu0 %v941
        %v2556 = vpop.f32.mrb[0].mxu0
        %v2557 = vadd.f32 0.0, %v2556
        %v2558 = vpop.f32.mrb[0].mxu0
        %v2559 = vadd.f32 0.0, %v2558
        %2560 = vmatprep.mubr.f32.mxu0 0.0
        %2561 = vmatmul.mubr.f32.gmra.mrb[0].mxu0 %v944
        %v2562 = vpop.f32.mrb[0].mxu0
        %v2563 = vadd.f32 0.0, %v2562
        %v2564 = vpop.f32.mrb[0].mxu0
        %v2565 = vadd.f32 0.0, %v2564
        %2566 = vmatprep.mubr.f32.mxu0 0.0
        %2567 = vmatmul.mubr.f32.gmra.mrb[0].mxu0 %v947
        %v2568 = vpop.f32.mrb[0].mxu0
        %v2569 = vadd.f32 0.0, %v2568
        %v2570 = vpop.f32.mrb[0].mxu0
        %v2571 = vadd.f32 0.0, %v2570
        %2572 = vmatprep.mubr.f32.mxu0 0.0
        %2573 = vmatmul.mubr.f32.gmra.mrb[0].mxu0 %v950
        %v2574 = vpop.f32.mrb[0].mxu0
        %v2575 = vadd.f32 0.0, %v2574
        %v2576 = vpop.f32.mrb[0].mxu0
        %v2577 = vadd.f32 0.0, %v2576
        %2578 = vmatprep.mubr.f32.mxu0 0.0
        %2579 = vmatmul.mubr.f32.gmra.mrb[0].mxu0 %v953
        %v2580 = vpop.f32.mrb[0].mxu0
        %v2581 = vadd.f32 0.0, %v2580
        %v2582 = vpop.f32.mrb[0].mxu0
        %v2583 = vadd.f32 0.0, %v2582
        %2584 = vmatprep.mubr.f32.mxu0 0.0
        %2585 = vmatmul.mubr.f32.gmra.mrb[0].mxu0 %v956
        %v2586 = vpop.f32.mrb[0].mxu0
        %v2587 = vadd.f32 0.0, %v2586
        %v2588 = vpop.f32.mrb[0].mxu0
        %v2589 = vadd.f32 0.0, %v2588
        %2590 = vmatprep.mubr.f32.mxu0 0.0
        %2591 = vmatmul.mubr.f32.gmra.mrb[0].mxu0 %v959
        %v2592 = vpop.f32.mrb[0].mxu0
        %v2593 = vadd.f32 0.0, %v2592
        %v2594 = vpop.f32.mrb[0].mxu0
        %v2595 = vadd.f32 0.0, %v2594
        %2596 = vmatprep.mubr.f32.mxu0 0.0
        %2597 = vmatmul.mubr.f32.gmra.mrb[0].mxu0 %v962
        %v2598 = vpop.f32.mrb[0].mxu0
        %v2599 = vadd.f32 0.0, %v2598
        %v2600 = vpop.f32.mrb[0].mxu0
        %v2601 = vadd.f32 0.0, %v2600
        %2602 = vmatprep.mubr.f32.mxu0 0.0
        %2603 = vmatmul.mubr.f32.gmra.mrb[0].mxu0 %v965
        %v2604 = vpop.f32.mrb[0].mxu0
        %v2605 = vadd.f32 0.0, %v2604
        %v2606 = vpop.f32.mrb[0].mxu0
        %v2607 = vadd.f32 0.0, %v2606
        %2608 = vmatprep.mubr.f32.mxu0 0.0
        %2609 = vmatmul.mubr.f32.gmra.mrb[0].mxu0 %v968
        %v2610 = vpop.f32.mrb[0].mxu0
        %v2611 = vadd.f32 0.0, %v2610
        %v2612 = vpop.f32.mrb[0].mxu0
        %v2613 = vadd.f32 0.0, %v2612
        %2614 = vmatprep.mubr.f32.mxu0 0.0
        %2615 = vmatmul.mubr.f32.gmra.mrb[0].mxu0 %v971
        %v2616 = vpop.f32.mrb[0].mxu0
        %v2617 = vadd.f32 0.0, %v2616
        %v2618 = vpop.f32.mrb[0].mxu0
        %v2619 = vadd.f32 0.0, %v2618
        %2620 = vmatprep.mubr.f32.mxu0 0.0
        %2621 = vmatmul.mubr.f32.gmra.mrb[0].mxu0 %v974
        %v2622 = vpop.f32.mrb[0].mxu0
        %v2623 = vadd.f32 0.0, %v2622
        %v2624 = vpop.f32.mrb[0].mxu0
        %v2625 = vadd.f32 0.0, %v2624
        %2626 = vmatprep.mubr.f32.mxu0 0.0
        %2627 = vmatmul.mubr.f32.gmra.mrb[0].mxu0 %v977
        %v2628 = vpop.f32.mrb[0].mxu0
        %v2629 = vadd.f32 0.0, %v2628
        %v2630 = vpop.f32.mrb[0].mxu0
        %v2631 = vadd.f32 0.0, %v2630
        %2632 = vmatprep.mubr.f32.mxu0 0.0
        %2633 = vmatmul.mubr.f32.gmra.mrb[0].mxu0 %v980
        %v2634 = vpop.f32.mrb[0].mxu0
        %v2635 = vadd.f32 0.0, %v2634
        %v2636 = vpop.f32.mrb[0].mxu0
        %v2637 = vadd.f32 0.0, %v2636
        %2638 = vmatprep.mubr.f32.mxu0 0.0
        %2639 = vmatmul.mubr.f32.gmra.mrb[0].mxu0 %v983
        %v2640 = vpop.f32.mrb[0].mxu0
        %v2641 = vadd.f32 0.0, %v2640
        %v2642 = vpop.f32.mrb[0].mxu0
        %v2643 = vadd.f32 0.0, %v2642
        %2644 = vmatprep.mubr.f32.mxu0 0.0
        %2645 = vmatmul.mubr.f32.gmra.mrb[0].mxu0 %v986
        %v2646 = vpop.f32.mrb[0].mxu0
        %v2647 = vadd.f32 0.0, %v2646
        %v2648 = vpop.f32.mrb[0].mxu0
        %v2649 = vadd.f32 0.0, %v2648
        %2650 = vmatprep.mubr.f32.mxu0 0.0
        %2651 = vmatmul.mubr.f32.gmra.mrb[0].mxu0 %v989
        %v2652 = vpop.f32.mrb[0].mxu0
        %v2653 = vadd.f32 0.0, %v2652
        %v2654 = vpop.f32.mrb[0].mxu0
        %v2655 = vadd.f32 0.0, %v2654
        %2656 = vmatprep.mubr.f32.mxu0 0.0
        %2657 = vmatmul.mubr.f32.gmra.mrb[0].mxu0 %v992
        %v2658 = vpop.f32.mrb[0].mxu0
        %v2659 = vadd.f32 0.0, %v2658
        %v2660 = vpop.f32.mrb[0].mxu0
        %v2661 = vadd.f32 0.0, %v2660
        %2662 = vmatprep.mubr.f32.mxu0 0.0
        %2663 = vmatmul.mubr.f32.gmra.mrb[0].mxu0 %v995
        %v2664 = vpop.f32.mrb[0].mxu0
        %v2665 = vadd.f32 0.0, %v2664
        %v2666 = vpop.f32.mrb[0].mxu0
        %v2667 = vadd.f32 0.0, %v2666
        %2668 = vmatprep.mubr.f32.mxu0 0.0
        %2669 = vmatmul.mubr.f32.gmra.mrb[0].mxu0 %v998
        %v2670 = vpop.f32.mrb[0].mxu0
        %v2671 = vadd.f32 0.0, %v2670
        %v2672 = vpop.f32.mrb[0].mxu0
        %v2673 = vadd.f32 0.0, %v2672
        %2674 = vmatprep.mubr.f32.mxu0 0.0
        %2675 = vmatmul.mubr.f32.gmra.mrb[0].mxu0 %v1001
        %v2676 = vpop.f32.mrb[0].mxu0
        %v2677 = vadd.f32 0.0, %v2676
        %v2678 = vpop.f32.mrb[0].mxu0
        %v2679 = vadd.f32 0.0, %v2678
        %2680 = vmatprep.mubr.f32.mxu0 0.0
        %2681 = vmatmul.mubr.f32.gmra.mrb[0].mxu0 %v1004
        %v2682 = vpop.f32.mrb[0].mxu0
        %v2683 = vadd.f32 0.0, %v2682
        %v2684 = vpop.f32.mrb[0].mxu0
        %v2685 = vadd.f32 0.0, %v2684
        %2686 = vmatprep.mubr.f32.mxu0 0.0
        %2687 = vmatmul.mubr.f32.gmra.mrb[0].mxu0 %v1007
        %v2688 = vpop.f32.mrb[0].mxu0
        %v2689 = vadd.f32 0.0, %v2688
        %v2690 = vpop.f32.mrb[0].mxu0
        %v2691 = vadd.f32 0.0, %v2690
        %2692 = vmatprep.mubr.f32.mxu0 0.0
        %2693 = vmatmul.mubr.f32.gmra.mrb[0].mxu0 %v1010
        %v2694 = vpop.f32.mrb[0].mxu0
        %v2695 = vadd.f32 0.0, %v2694
        %v2696 = vpop.f32.mrb[0].mxu0
        %v2697 = vadd.f32 0.0, %v2696
        %2698 = vmatprep.mubr.f32.mxu0 0.0
        %2699 = vmatmul.mubr.f32.gmra.mrb[0].mxu0 %v1013
        %v2700 = vpop.f32.mrb[0].mxu0
        %v2701 = vadd.f32 0.0, %v2700
        %v2702 = vpop.f32.mrb[0].mxu0
        %v2703 = vadd.f32 0.0, %v2702
        %2704 = vmatprep.mubr.f32.mxu0 0.0
        %2705 = vmatmul.mubr.f32.gmra.mrb[0].mxu0 %v1016
        %v2706 = vpop.f32.mrb[0].mxu0
        %v2707 = vadd.f32 0.0, %v2706
        %v2708 = vpop.f32.mrb[0].mxu0
        %v2709 = vadd.f32 0.0, %v2708
        %2710 = vmatprep.mubr.f32.mxu0 0.0
        %2711 = vmatmul.mubr.f32.gmra.mrb[0].mxu0 %v1019
        %v2712 = vpop.f32.mrb[0].mxu0
        %v2713 = vadd.f32 0.0, %v2712
        %v2714 = vpop.f32.mrb[0].mxu0
        %v2715 = vadd.f32 0.0, %v2714
        %2716 = vmatprep.mubr.f32.mxu0 0.0
        %2717 = vmatmul.mubr.f32.gmra.mrb[0].mxu0 %v1022
        %v2718 = vpop.f32.mrb[0].mxu0
        %v2719 = vadd.f32 0.0, %v2718
        %v2720 = vpop.f32.mrb[0].mxu0
        %v2721 = vadd.f32 0.0, %v2720
        %2722 = vmatprep.mubr.f32.mxu0 0.0
        %2723 = vmatmul.mubr.f32.gmra.mrb[0].mxu0 %v1025
        %v2724 = vpop.f32.mrb[0].mxu0
        %v2725 = vadd.f32 0.0, %v2724
        %v2726 = vpop.f32.mrb[0].mxu0
        %v2727 = vadd.f32 0.0, %v2726
        %2728 = vmatprep.mubr.f32.mxu0 0.0
        %2729 = vmatmul.mubr.f32.gmra.mrb[0].mxu0 %v1028
        %v2730 = vpop.f32.mrb[0].mxu0
        %v2731 = vadd.f32 0.0, %v2730
        %v2732 = vpop.f32.mrb[0].mxu0
        %v2733 = vadd.f32 0.0, %v2732
        %2734 = vmatprep.mubr.f32.mxu0 0.0
        %2735 = vmatmul.mubr.f32.gmra.mrb[0].mxu0 %v1031
        %v2736 = vpop.f32.mrb[0].mxu0
        %v2737 = vadd.f32 0.0, %v2736
        %v2738 = vpop.f32.mrb[0].mxu0
        %v2739 = vadd.f32 0.0, %v2738
        %2740 = vmatprep.mubr.f32.mxu0 0.0
        %2741 = vmatmul.mubr.f32.gmra.mrb[0].mxu0 %v1034
        %v2742 = vpop.f32.mrb[0].mxu0
        %v2743 = vadd.f32 0.0, %v2742
        %v2744 = vpop.f32.mrb[0].mxu0
        %v2745 = vadd.f32 0.0, %v2744
        %2746 = vmatprep.mubr.f32.mxu0 0.0
        %2747 = vmatmul.mubr.f32.gmra.mrb[0].mxu0 %v1037
        %v2748 = vpop.f32.mrb[0].mxu0
        %v2749 = vadd.f32 0.0, %v2748
        %v2750 = vpop.f32.mrb[0].mxu0
        %v2751 = vadd.f32 0.0, %v2750
        %2752 = vmatprep.mubr.f32.mxu0 0.0
        %2753 = vmatmul.mubr.f32.gmra.mrb[0].mxu0 %v1040
        %v2754 = vpop.f32.mrb[0].mxu0
        %v2755 = vadd.f32 0.0, %v2754
        %v2756 = vpop.f32.mrb[0].mxu0
        %v2757 = vadd.f32 0.0, %v2756
        %2758 = vmatprep.mubr.f32.mxu0 0.0
        %2759 = vmatmul.mubr.f32.gmra.mrb[0].mxu0 %v1043
        %v2760 = vpop.f32.mrb[0].mxu0
        %v2761 = vadd.f32 0.0, %v2760
        %v2762 = vpop.f32.mrb[0].mxu0
        %v2763 = vadd.f32 0.0, %v2762
        %2764 = vmatprep.mubr.f32.mxu0 0.0
        %2765 = vmatmul.mubr.f32.gmra.mrb[0].mxu0 %v1046
        %v2766 = vpop.f32.mrb[0].mxu0
        %v2767 = vadd.f32 0.0, %v2766
        %v2768 = vpop.f32.mrb[0].mxu0
        %v2769 = vadd.f32 0.0, %v2768
        %2770 = vmatprep.mubr.f32.mxu0 0.0
        %2771 = vmatmul.mubr.f32.gmra.mrb[0].mxu0 %v1049
        %v2772 = vpop.f32.mrb[0].mxu0
        %v2773 = vadd.f32 0.0, %v2772
        %v2774 = vpop.f32.mrb[0].mxu0
        %v2775 = vadd.f32 0.0, %v2774
        %2776 = vmatprep.mubr.f32.mxu0 0.0
        %2777 = vmatmul.mubr.f32.gmra.mrb[0].mxu0 %v1052
        %v2778 = vpop.f32.mrb[0].mxu0
        %v2779 = vadd.f32 0.0, %v2778
        %v2780 = vpop.f32.mrb[0].mxu0
        %v2781 = vadd.f32 0.0, %v2780
        %2782 = vmatprep.mubr.f32.mxu0 0.0
        %2783 = vmatmul.mubr.f32.gmra.mrb[0].mxu0 %v1055
        %v2784 = vpop.f32.mrb[0].mxu0
        %v2785 = vadd.f32 0.0, %v2784
        %v2786 = vpop.f32.mrb[0].mxu0
        %v2787 = vadd.f32 0.0, %v2786
        %2788 = vmatprep.mubr.f32.mxu0 0.0
        %2789 = vmatmul.mubr.f32.gmra.mrb[0].mxu0 %v1058
        %v2790 = vpop.f32.mrb[0].mxu0
        %v2791 = vadd.f32 0.0, %v2790
        %v2792 = vpop.f32.mrb[0].mxu0
        %v2793 = vadd.f32 0.0, %v2792
        %2794 = vmatprep.mubr.f32.mxu0 0.0
        %2795 = vmatmul.mubr.f32.gmra.mrb[0].mxu0 %v1061
        %v2796 = vpop.f32.mrb[0].mxu0
        %v2797 = vadd.f32 0.0, %v2796
        %v2798 = vpop.f32.mrb[0].mxu0
        %v2799 = vadd.f32 0.0, %v2798
        %2800 = vmatprep.mubr.f32.mxu0 0.0
        %2801 = vmatmul.mubr.f32.gmra.mrb[0].mxu0 %v1064
        %v2802 = vpop.f32.mrb[0].mxu0
        %v2803 = vadd.f32 0.0, %v2802
        %v2804 = vpop.f32.mrb[0].mxu0
        %v2805 = vadd.f32 0.0, %v2804
        %2806 = vmatprep.mubr.f32.mxu0 0.0
        %2807 = vmatmul.mubr.f32.gmra.mrb[0].mxu0 %v1067
        %v2808 = vpop.f32.mrb[0].mxu0
        %v2809 = vadd.f32 0.0, %v2808
        %v2810 = vpop.f32.mrb[0].mxu0
        %v2811 = vadd.f32 0.0, %v2810
        %2812 = vmatprep.mubr.f32.mxu0 0.0
        %2813 = vmatmul.mubr.f32.gmra.mrb[0].mxu0 %v1070
        %v2814 = vpop.f32.mrb[0].mxu0
        %v2815 = vadd.f32 0.0, %v2814
        %v2816 = vpop.f32.mrb[0].mxu0
        %v2817 = vadd.f32 0.0, %v2816
        %2818 = vmatprep.mubr.f32.mxu0 0.0
        %2819 = vmatmul.mubr.f32.gmra.mrb[0].mxu0 %v1073
        %v2820 = vpop.f32.mrb[0].mxu0
        %v2821 = vadd.f32 0.0, %v2820
        %v2822 = vpop.f32.mrb[0].mxu0
        %v2823 = vadd.f32 0.0, %v2822
        %2824 = vmatprep.mubr.f32.mxu0 0.0
        %2825 = vmatmul.mubr.f32.gmra.mrb[0].mxu0 %v1076
        %v2826 = vpop.f32.mrb[0].mxu0
        %v2827 = vadd.f32 0.0, %v2826
        %v2828 = vpop.f32.mrb[0].mxu0
        %v2829 = vadd.f32 0.0, %v2828
        %2830 = vmatprep.mubr.f32.mxu0 0.0
        %2831 = vmatmul.mubr.f32.gmra.mrb[0].mxu0 %v1079
        %v2832 = vpop.f32.mrb[0].mxu0
        %v2833 = vadd.f32 0.0, %v2832
        %v2834 = vpop.f32.mrb[0].mxu0
        %v2835 = vadd.f32 0.0, %v2834
        %2836 = vmatprep.mubr.f32.mxu0 0.0
        %2837 = vmatmul.mubr.f32.gmra.mrb[0].mxu0 %v1082
        %v2838 = vpop.f32.mrb[0].mxu0
        %v2839 = vadd.f32 0.0, %v2838
        %v2840 = vpop.f32.mrb[0].mxu0
        %v2841 = vadd.f32 0.0, %v2840
        %2842 = vmatprep.mubr.f32.mxu0 0.0
        %2843 = vmatmul.mubr.f32.gmra.mrb[0].mxu0 %v1085
        %v2844 = vpop.f32.mrb[0].mxu0
        %v2845 = vadd.f32 0.0, %v2844
        %v2846 = vpop.f32.mrb[0].mxu0
        %v2847 = vadd.f32 0.0, %v2846
        %2848 = vmatprep.mubr.f32.mxu0 0.0
        %2849 = vmatmul.mubr.f32.gmra.mrb[0].mxu0 %v1088
        %v2850 = vpop.f32.mrb[0].mxu0
        %v2851 = vadd.f32 0.0, %v2850
        %v2852 = vpop.f32.mrb[0].mxu0
        %v2853 = vadd.f32 0.0, %v2852
        %2854 = vmatprep.mubr.f32.mxu0 0.0
        %2855 = vmatmul.mubr.f32.gmra.mrb[0].mxu0 %v1091
        %v2856 = vpop.f32.mrb[0].mxu0
        %v2857 = vadd.f32 0.0, %v2856
        %v2858 = vpop.f32.mrb[0].mxu0
        %v2859 = vadd.f32 0.0, %v2858
        %2860 = vmatprep.mubr.f32.mxu0 0.0
        %2861 = vmatmul.mubr.f32.gmra.mrb[0].mxu0 %v1094
        %v2862 = vpop.f32.mrb[0].mxu0
        %v2863 = vadd.f32 0.0, %v2862
        %v2864 = vpop.f32.mrb[0].mxu0
        %v2865 = vadd.f32 0.0, %v2864
        %2866 = vmatprep.mubr.f32.mxu0 0.0
        %2867 = vmatmul.mubr.f32.gmra.mrb[0].mxu0 %v1097
        %v2868 = vpop.f32.mrb[0].mxu0
        %v2869 = vadd.f32 0.0, %v2868
        %v2870 = vpop.f32.mrb[0].mxu0
        %v2871 = vadd.f32 0.0, %v2870
        %2872 = vmatprep.mubr.f32.mxu0 0.0
        %2873 = vmatmul.mubr.f32.gmra.mrb[0].mxu0 %v1100
        %v2874 = vpop.f32.mrb[0].mxu0
        %v2875 = vadd.f32 0.0, %v2874
        %v2876 = vpop.f32.mrb[0].mxu0
        %v2877 = vadd.f32 0.0, %v2876
        %2878 = vmatprep.mubr.f32.mxu0 0.0
        %2879 = vmatmul.mubr.f32.gmra.mrb[0].mxu0 %v1103
        %v2880 = vpop.f32.mrb[0].mxu0
        %v2881 = vadd.f32 0.0, %v2880
        %v2882 = vpop.f32.mrb[0].mxu0
        %v2883 = vadd.f32 0.0, %v2882
        %2884 = vmatprep.mubr.f32.mxu0 0.0
        %2885 = vmatmul.mubr.f32.gmra.mrb[0].mxu0 %v1106
        %v2886 = vpop.f32.mrb[0].mxu0
        %v2887 = vadd.f32 0.0, %v2886
        %v2888 = vpop.f32.mrb[0].mxu0
        %v2889 = vadd.f32 0.0, %v2888
        %2890 = vmatprep.mubr.f32.mxu0 0.0
        %2891 = vmatmul.mubr.f32.gmra.mrb[0].mxu0 %v1109
        %v2892 = vpop.f32.mrb[0].mxu0
        %v2893 = vadd.f32 0.0, %v2892
        %v2894 = vpop.f32.mrb[0].mxu0
        %v2895 = vadd.f32 0.0, %v2894
        %2896 = vmatprep.mubr.f32.mxu0 0.0
        %2897 = vmatmul.mubr.f32.gmra.mrb[0].mxu0 %v1112
        %v2898 = vpop.f32.mrb[0].mxu0
        %v2899 = vadd.f32 0.0, %v2898
        %v2900 = vpop.f32.mrb[0].mxu0
        %v2901 = vadd.f32 0.0, %v2900
        %2902 = vmatprep.mubr.f32.mxu0 0.0
        %2903 = vmatmul.mubr.f32.gmra.mrb[0].mxu0 %v1115
        %v2904 = vpop.f32.mrb[0].mxu0
        %v2905 = vadd.f32 0.0, %v2904
        %v2906 = vpop.f32.mrb[0].mxu0
        %v2907 = vadd.f32 0.0, %v2906
        %2908 = vmatprep.mubr.f32.mxu0 0.0
        %2909 = vmatmul.mubr.f32.gmra.mrb[0].mxu0 %v1118
        %v2910 = vpop.f32.mrb[0].mxu0
        %v2911 = vadd.f32 0.0, %v2910
        %v2912 = vpop.f32.mrb[0].mxu0
        %v2913 = vadd.f32 0.0, %v2912
        %2914 = vmatprep.mubr.f32.mxu0 0.0
        %2915 = vmatmul.mubr.f32.gmra.mrb[0].mxu0 %v1121
        %v2916 = vpop.f32.mrb[0].mxu0
        %v2917 = vadd.f32 0.0, %v2916
        %v2918 = vpop.f32.mrb[0].mxu0
        %v2919 = vadd.f32 0.0, %v2918
        %2920 = vmatprep.mubr.f32.mxu0 0.0
        %2921 = vmatmul.mubr.f32.gmra.mrb[0].mxu0 %v1124
        %v2922 = vpop.f32.mrb[0].mxu0
        %v2923 = vadd.f32 0.0, %v2922
        %v2924 = vpop.f32.mrb[0].mxu0
        %v2925 = vadd.f32 0.0, %v2924
        %2926 = vmatprep.mubr.f32.mxu0 0.0
        %2927 = vmatmul.mubr.f32.gmra.mrb[0].mxu0 %v1127
        %v2928 = vpop.f32.mrb[0].mxu0
        %v2929 = vadd.f32 0.0, %v2928
        %v2930 = vpop.f32.mrb[0].mxu0
        %v2931 = vadd.f32 0.0, %v2930
        %2932 = vmatprep.mubr.f32.mxu0 0.0
        %2933 = vmatmul.mubr.f32.gmra.mrb[0].mxu0 %v1130
        %v2934 = vpop.f32.mrb[0].mxu0
        %v2935 = vadd.f32 0.0, %v2934
        %v2936 = vpop.f32.mrb[0].mxu0
        %v2937 = vadd.f32 0.0, %v2936
        %2938 = vmatprep.mubr.f32.mxu0 0.0
        %2939 = vmatmul.mubr.f32.gmra.mrb[0].mxu0 %v1133
        %v2940 = vpop.f32.mrb[0].mxu0
        %v2941 = vadd.f32 0.0, %v2940
        %v2942 = vpop.f32.mrb[0].mxu0
        %v2943 = vadd.f32 0.0, %v2942
        %2944 = vmatprep.mubr.f32.mxu0 0.0
        %2945 = vmatmul.mubr.f32.gmra.mrb[0].mxu0 %v1136
        %v2946 = vpop.f32.mrb[0].mxu0
        %v2947 = vadd.f32 0.0, %v2946
        %v2948 = vpop.f32.mrb[0].mxu0
        %v2949 = vadd.f32 0.0, %v2948
        %2950 = vmatprep.mubr.f32.mxu0 0.0
        %2951 = vmatmul.mubr.f32.gmra.mrb[0].mxu0 %v1139
        %v2952 = vpop.f32.mrb[0].mxu0
        %v2953 = vadd.f32 0.0, %v2952
        %v2954 = vpop.f32.mrb[0].mxu0
        %v2955 = vadd.f32 0.0, %v2954
        %2956 = vmatprep.mubr.f32.mxu0 0.0
        %2957 = vmatmul.mubr.f32.gmra.mrb[0].mxu0 %v1142
        %v2958 = vpop.f32.mrb[0].mxu0
        %v2959 = vadd.f32 0.0, %v2958
        %v2960 = vpop.f32.mrb[0].mxu0
        %v2961 = vadd.f32 0.0, %v2960
        %2962 = vmatprep.mubr.f32.mxu0 0.0
        %2963 = vmatmul.mubr.f32.gmra.mrb[0].mxu0 %v1145
        %v2964 = vpop.f32.mrb[0].mxu0
        %v2965 = vadd.f32 0.0, %v2964
        %v2966 = vpop.f32.mrb[0].mxu0
        %v2967 = vadd.f32 0.0, %v2966
        %2968 = vmatprep.mubr.f32.mxu0 0.0
        %2969 = vmatmul.mubr.f32.gmra.mrb[0].mxu0 %v1148
        %v2970 = vpop.f32.mrb[0].mxu0
        %v2971 = vadd.f32 0.0, %v2970
        %v2972 = vpop.f32.mrb[0].mxu0
        %v2973 = vadd.f32 0.0, %v2972
        %2974 = vmatprep.mubr.f32.mxu0 0.0
        %2975 = vmatmul.mubr.f32.gmra.mrb[0].mxu0 %v1151
        %v2976 = vpop.f32.mrb[0].mxu0
        %v2977 = vadd.f32 0.0, %v2976
        %v2978 = vpop.f32.mrb[0].mxu0
        %v2979 = vadd.f32 0.0, %v2978
        %2980 = vmatprep.mubr.f32.mxu0 0.0
        %2981 = vmatmul.mubr.f32.gmra.mrb[0].mxu0 %v1154
        %v2982 = vpop.f32.mrb[0].mxu0
        %v2983 = vadd.f32 0.0, %v2982
        %v2984 = vpop.f32.mrb[0].mxu0
        %v2985 = vadd.f32 0.0, %v2984
        %2986 = vmatprep.mubr.f32.mxu0 0.0
        %2987 = vmatmul.mubr.f32.gmra.mrb[0].mxu0 %v1157
        %v2988 = vpop.f32.mrb[0].mxu0
        %v2989 = vadd.f32 0.0, %v2988
        %v2990 = vpop.f32.mrb[0].mxu0
        %v2991 = vadd.f32 0.0, %v2990
        %2992 = vmatprep.mubr.f32.mxu0 0.0
        %2993 = vmatmul.mubr.f32.gmra.mrb[0].mxu0 %v1160
        %v2994 = vpop.f32.mrb[0].mxu0
        %v2995 = vadd.f32 0.0, %v2994
        %v2996 = vpop.f32.mrb[0].mxu0
        %v2997 = vadd.f32 0.0, %v2996
        %2998 = vmatprep.mubr.f32.mxu0 0.0
        %2999 = vmatmul.mubr.f32.gmra.mrb[0].mxu0 %v1163
        %v3000 = vpop.f32.mrb[0].mxu0
        %v3001 = vadd.f32 0.0, %v3000
        %v3002 = vpop.f32.mrb[0].mxu0
        %v3003 = vadd.f32 0.0, %v3002
        %3004 = vmatprep.mubr.f32.mxu0 0.0
        %3005 = vmatmul.mubr.f32.gmra.mrb[0].mxu0 %v1166
        %v3006 = vpop.f32.mrb[0].mxu0
        %v3007 = vadd.f32 0.0, %v3006
        %v3008 = vpop.f32.mrb[0].mxu0
        %v3009 = vadd.f32 0.0, %v3008
        %3010 = vmatprep.mubr.f32.mxu0 0.0
        %3011 = vmatmul.mubr.f32.gmra.mrb[0].mxu0 %v1169
        %v3012 = vpop.f32.mrb[0].mxu0
        %v3013 = vadd.f32 0.0, %v3012
        %v3014 = vpop.f32.mrb[0].mxu0
        %v3015 = vadd.f32 0.0, %v3014
        %3016 = vmatprep.mubr.f32.mxu0 0.0
        %3017 = vmatmul.mubr.f32.gmra.mrb[0].mxu0 %v1172
        %v3018 = vpop.f32.mrb[0].mxu0
        %v3019 = vadd.f32 0.0, %v3018
        %v3020 = vpop.f32.mrb[0].mxu0
        %v3021 = vadd.f32 0.0, %v3020
        %3022 = vmatprep.mubr.f32.mxu0 0.0
        %3023 = vmatmul.mubr.f32.gmra.mrb[0].mxu0 %v1175
        %v3024 = vpop.f32.mrb[0].mxu0
        %v3025 = vadd.f32 0.0, %v3024
        %v3026 = vpop.f32.mrb[0].mxu0
        %v3027 = vadd.f32 0.0, %v3026
        %3028 = vmatprep.mubr.f32.mxu0 0.0
        %3029 = vmatmul.mubr.f32.gmra.mrb[0].mxu0 %v1178
        %v3030 = vpop.f32.mrb[0].mxu0
        %v3031 = vadd.f32 0.0, %v3030
        %v3032 = vpop.f32.mrb[0].mxu0
        %v3033 = vadd.f32 0.0, %v3032
        %3034 = vmatprep.mubr.f32.mxu0 0.0
        %3035 = vmatmul.mubr.f32.gmra.mrb[0].mxu0 %v1181
        %v3036 = vpop.f32.mrb[0].mxu0
        %v3037 = vadd.f32 0.0, %v3036
        %v3038 = vpop.f32.mrb[0].mxu0
        %v3039 = vadd.f32 0.0, %v3038
        %3040 = vmatprep.mubr.f32.mxu0 0.0
        %3041 = vmatmul.mubr.f32.gmra.mrb[0].mxu0 %v1184
        %v3042 = vpop.f32.mrb[0].mxu0
        %v3043 = vadd.f32 0.0, %v3042
        %v3044 = vpop.f32.mrb[0].mxu0
        %v3045 = vadd.f32 0.0, %v3044
        %3046 = vmatprep.mubr.f32.mxu0 0.0
        %3047 = vmatmul.mubr.f32.gmra.mrb[0].mxu0 %v1187
        %v3048 = vpop.f32.mrb[0].mxu0
        %v3049 = vadd.f32 0.0, %v3048
        %v3050 = vpop.f32.mrb[0].mxu0
        %v3051 = vadd.f32 0.0, %v3050
        %3052 = vmatprep.mubr.f32.mxu0 0.0
        %3053 = vmatmul.mubr.f32.gmra.mrb[0].mxu0 %v1190
        %v3054 = vpop.f32.mrb[0].mxu0
        %v3055 = vadd.f32 0.0, %v3054
        %v3056 = vpop.f32.mrb[0].mxu0
        %v3057 = vadd.f32 0.0, %v3056
        %3058 = vmatprep.mubr.f32.mxu0 0.0
        %3059 = vmatmul.mubr.f32.gmra.mrb[0].mxu0 %v1193
        %v3060 = vpop.f32.mrb[0].mxu0
        %v3061 = vadd.f32 0.0, %v3060
        %v3062 = vpop.f32.mrb[0].mxu0
        %v3063 = vadd.f32 0.0, %v3062
        %3064 = vmatprep.mubr.f32.mxu0 0.0
        %3065 = vmatmul.mubr.f32.gmra.mrb[0].mxu0 %v1196
        %v3066 = vpop.f32.mrb[0].mxu0
        %v3067 = vadd.f32 0.0, %v3066
        %v3068 = vpop.f32.mrb[0].mxu0
        %v3069 = vadd.f32 0.0, %v3068
        %3070 = vmatprep.mubr.f32.mxu0 0.0
        %3071 = vmatmul.mubr.f32.gmra.mrb[0].mxu0 %v1199
        %v3072 = vpop.f32.mrb[0].mxu0
        %v3073 = vadd.f32 0.0, %v3072
        %v3074 = vpop.f32.mrb[0].mxu0
        %v3075 = vadd.f32 0.0, %v3074
        %3076 = vmatprep.mubr.f32.mxu0 0.0
        %3077 = vmatmul.mubr.f32.gmra.mrb[0].mxu0 %v1202
        %v3078 = vpop.f32.mrb[0].mxu0
        %v3079 = vadd.f32 0.0, %v3078
        %v3080 = vpop.f32.mrb[0].mxu0
        %v3081 = vadd.f32 0.0, %v3080
        %3082 = vmatprep.mubr.f32.mxu0 0.0
        %3083 = vmatmul.mubr.f32.gmra.mrb[0].mxu0 %v1205
        %v3084 = vpop.f32.mrb[0].mxu0
        %v3085 = vadd.f32 0.0, %v3084
        %v3086 = vpop.f32.mrb[0].mxu0
        %v3087 = vadd.f32 0.0, %v3086
        %3088 = vmatprep.mubr.f32.mxu0 0.0
        %3089 = vmatmul.mubr.f32.gmra.mrb[0].mxu0 %v1208
        %v3090 = vpop.f32.mrb[0].mxu0
        %v3091 = vadd.f32 0.0, %v3090
        %v3092 = vpop.f32.mrb[0].mxu0
        %v3093 = vadd.f32 0.0, %v3092
        %3094 = vmatprep.mubr.f32.mxu0 0.0
        %3095 = vmatmul.mubr.f32.gmra.mrb[0].mxu0 %v1211
        %v3096 = vpop.f32.mrb[0].mxu0
        %v3097 = vadd.f32 0.0, %v3096
        %v3098 = vpop.f32.mrb[0].mxu0
        %v3099 = vadd.f32 0.0, %v3098
        %3100 = vmatprep.mubr.f32.mxu0 0.0
        %3101 = vmatmul.mubr.f32.gmra.mrb[0].mxu0 %v1214
        %v3102 = vpop.f32.mrb[0].mxu0
        %v3103 = vadd.f32 0.0, %v3102
        %v3104 = vpop.f32.mrb[0].mxu0
        %v3105 = vadd.f32 0.0, %v3104
        %3106 = vmatprep.mubr.f32.mxu0 0.0
        %3107 = vmatmul.mubr.f32.gmra.mrb[0].mxu0 %v1217
        %v3108 = vpop.f32.mrb[0].mxu0
        %v3109 = vadd.f32 0.0, %v3108
        %v3110 = vpop.f32.mrb[0].mxu0
        %v3111 = vadd.f32 0.0, %v3110
        %3112 = vmatprep.mubr.f32.mxu0 0.0
        %3113 = vmatmul.mubr.f32.gmra.mrb[0].mxu0 %v1220
        %v3114 = vpop.f32.mrb[0].mxu0
        %v3115 = vadd.f32 0.0, %v3114
        %v3116 = vpop.f32.mrb[0].mxu0
        %v3117 = vadd.f32 0.0, %v3116
        %3118 = vmatprep.mubr.f32.mxu0 0.0
        %3119 = vmatmul.mubr.f32.gmra.mrb[0].mxu0 %v1223
        %v3120 = vpop.f32.mrb[0].mxu0
        %v3121 = vadd.f32 0.0, %v3120
        %v3122 = vpop.f32.mrb[0].mxu0
        %v3123 = vadd.f32 0.0, %v3122
        %3124 = vmatprep.mubr.f32.mxu0 0.0
        %3125 = vmatmul.mubr.f32.gmra.mrb[0].mxu0 %v1226
        %v3126 = vpop.f32.mrb[0].mxu0
        %v3127 = vadd.f32 0.0, %v3126
        %v3128 = vpop.f32.mrb[0].mxu0
        %v3129 = vadd.f32 0.0, %v3128
        %3130 = vmatprep.mubr.f32.mxu0 0.0
        %3131 = vmatmul.mubr.f32.gmra.mrb[0].mxu0 %v1229
        %v3132 = vpop.f32.mrb[0].mxu0
        %v3133 = vadd.f32 0.0, %v3132
        %v3134 = vpop.f32.mrb[0].mxu0
        %v3135 = vadd.f32 0.0, %v3134
        %3136 = vmatprep.mubr.f32.mxu0 0.0
        %3137 = vmatmul.mubr.f32.gmra.mrb[0].mxu0 %v1232
        %v3138 = vpop.f32.mrb[0].mxu0
        %v3139 = vadd.f32 0.0, %v3138
        %v3140 = vpop.f32.mrb[0].mxu0
        %v3141 = vadd.f32 0.0, %v3140
        %3142 = vmatprep.mubr.f32.mxu0 0.0
        %3143 = vmatmul.mubr.f32.gmra.mrb[0].mxu0 %v1235
        %v3144 = vpop.f32.mrb[0].mxu0
        %v3145 = vadd.f32 0.0, %v3144
        %v3146 = vpop.f32.mrb[0].mxu0
        %v3147 = vadd.f32 0.0, %v3146
        %3148 = vmatprep.mubr.f32.mxu0 0.0
        %3149 = vmatmul.mubr.f32.gmra.mrb[0].mxu0 %v1238
        %v3150 = vpop.f32.mrb[0].mxu0
        %v3151 = vadd.f32 0.0, %v3150
        %v3152 = vpop.f32.mrb[0].mxu0
        %v3153 = vadd.f32 0.0, %v3152
        %3154 = vmatprep.mubr.f32.mxu0 0.0
        %3155 = vmatmul.mubr.f32.gmra.mrb[0].mxu0 %v1241
        %v3156 = vpop.f32.mrb[0].mxu0
        %v3157 = vadd.f32 0.0, %v3156
        %v3158 = vpop.f32.mrb[0].mxu0
        %v3159 = vadd.f32 0.0, %v3158
        %3160 = vmatprep.mubr.f32.mxu0 0.0
        %3161 = vmatmul.mubr.f32.gmra.mrb[0].mxu0 %v1244
        %v3162 = vpop.f32.mrb[0].mxu0
        %v3163 = vadd.f32 0.0, %v3162
        %v3164 = vpop.f32.mrb[0].mxu0
        %v3165 = vadd.f32 0.0, %v3164
        %3166 = vmatprep.mubr.f32.mxu0 0.0
        %3167 = vmatmul.mubr.f32.gmra.mrb[0].mxu0 %v1247
        %v3168 = vpop.f32.mrb[0].mxu0
        %v3169 = vadd.f32 0.0, %v3168
        %v3170 = vpop.f32.mrb[0].mxu0
        %v3171 = vadd.f32 0.0, %v3170
        %3172 = vmatprep.mubr.f32.mxu0 0.0
        %3173 = vmatmul.mubr.f32.gmra.mrb[0].mxu0 %v1250
        %v3174 = vpop.f32.mrb[0].mxu0
        %v3175 = vadd.f32 0.0, %v3174
        %v3176 = vpop.f32.mrb[0].mxu0
        %v3177 = vadd.f32 0.0, %v3176
        %3178 = vmatprep.mubr.f32.mxu0 0.0
        %3179 = vmatmul.mubr.f32.gmra.mrb[0].mxu0 %v1253
        %v3180 = vpop.f32.mrb[0].mxu0
        %v3181 = vadd.f32 0.0, %v3180
        %v3182 = vpop.f32.mrb[0].mxu0
        %v3183 = vadd.f32 0.0, %v3182
        %3184 = vdwg.mxu0
        %3185 = vmatprep.subr.mxu0 %v493
        %3186 = vmatpush1.msra.mxu0 %v491
        %3187 = vmatprep.subr.mxu0 %v499
        %3188 = vmatpush1.msra.mxu0 %v497
        %3189 = vmatprep.subr.mxu0 0.0
        %3190 = vmatpush1.msra.mxu0 0.0
        %3191 = vmatprep.subr.mxu0 0.0
        %3192 = vmatpush1.msra.mxu0 0.0
        %3193 = vmatprep.subr.mxu0 0.0
        %3194 = vmatpush1.msra.mxu0 0.0
        %3195 = vmatprep.subr.mxu0 0.0
        %3196 = vmatpush1.msra.mxu0 0.0
        %3197 = vmatprep.subr.mxu0 0.0
        %3198 = vmatpush1.msra.mxu0 0.0
        %3199 = vmatprep.subr.mxu0 0.0
        %3200 = vmatpush1.msra.mxu0 0.0
        %3201 = vmatprep.subr.mxu0 0.0
        %3202 = vmatpush1.msra.mxu0 0.0
        %3203 = vmatprep.subr.mxu0 0.0
        %3204 = vmatpush1.msra.mxu0 0.0
        %3205 = vmatprep.subr.mxu0 0.0
        %3206 = vmatpush1.msra.mxu0 0.0
        %3207 = vmatprep.subr.mxu0 0.0
        %3208 = vmatpush1.msra.mxu0 0.0
        %3209 = vmatprep.subr.mxu0 0.0
        %3210 = vmatpush1.msra.mxu0 0.0
        %3211 = vmatprep.subr.mxu0 0.0
        %3212 = vmatpush1.msra.mxu0 0.0
        %3213 = vmatprep.subr.mxu0 0.0
        %3214 = vmatpush1.msra.mxu0 0.0
        %3215 = vmatprep.subr.mxu0 0.0
        %3216 = vmatpush1.msra.mxu0 0.0
        %3217 = vmatprep.subr.mxu0 0.0
        %3218 = vmatpush1.msra.mxu0 0.0
        %3219 = vmatprep.subr.mxu0 0.0
        %3220 = vmatpush1.msra.mxu0 0.0
        %3221 = vmatprep.subr.mxu0 0.0
        %3222 = vmatpush1.msra.mxu0 0.0
        %3223 = vmatprep.subr.mxu0 0.0
        %3224 = vmatpush1.msra.mxu0 0.0
        %3225 = vmatprep.subr.mxu0 0.0
        %3226 = vmatpush1.msra.mxu0 0.0
        %3227 = vmatprep.subr.mxu0 0.0
        %3228 = vmatpush1.msra.mxu0 0.0
        %3229 = vmatprep.subr.mxu0 0.0
        %3230 = vmatpush1.msra.mxu0 0.0
        %3231 = vmatprep.subr.mxu0 0.0
        %3232 = vmatpush1.msra.mxu0 0.0
        %3233 = vmatprep.subr.mxu0 0.0
        %3234 = vmatpush1.msra.mxu0 0.0
        %3235 = vmatprep.subr.mxu0 0.0
        %3236 = vmatpush1.msra.mxu0 0.0
        %3237 = vmatprep.subr.mxu0 0.0
        %3238 = vmatpush1.msra.mxu0 0.0
        %3239 = vmatprep.subr.mxu0 0.0
        %3240 = vmatpush1.msra.mxu0 0.0
        %3241 = vmatprep.subr.mxu0 0.0
        %3242 = vmatpush1.msra.mxu0 0.0
        %3243 = vmatprep.subr.mxu0 0.0
        %3244 = vmatpush1.msra.mxu0 0.0
        %3245 = vmatprep.subr.mxu0 0.0
        %3246 = vmatpush1.msra.mxu0 0.0
        %3247 = vmatprep.subr.mxu0 0.0
        %3248 = vmatpush1.msra.mxu0 0.0
        %3249 = vmatprep.mubr.f32.mxu0 0.0
        %3250 = vmatmul.mubr.f32.gmra.mrb[0].mxu0 %v806
        %v3251 = vpop.f32.mrb[0].mxu0
        %v3252 = vadd.f32 0.0, %v3251
        %v3253 = vpop.f32.mrb[0].mxu0
        %v3254 = vadd.f32 0.0, %v3253
        %3255 = vmatprep.mubr.f32.mxu0 0.0
        %3256 = vmatmul.mubr.f32.gmra.mrb[0].mxu0 %v809
        %v3257 = vpop.f32.mrb[0].mxu0
        %v3258 = vadd.f32 0.0, %v3257
        %v3259 = vpop.f32.mrb[0].mxu0
        %v3260 = vadd.f32 0.0, %v3259
        %3261 = vmatprep.mubr.f32.mxu0 0.0
        %3262 = vmatmul.mubr.f32.gmra.mrb[0].mxu0 %v812
        %v3263 = vpop.f32.mrb[0].mxu0
        %v3264 = vadd.f32 0.0, %v3263
        %v3265 = vpop.f32.mrb[0].mxu0
        %v3266 = vadd.f32 0.0, %v3265
        %3267 = vmatprep.mubr.f32.mxu0 0.0
        %3268 = vmatmul.mubr.f32.gmra.mrb[0].mxu0 %v815
        %v3269 = vpop.f32.mrb[0].mxu0
        %v3270 = vadd.f32 0.0, %v3269
        %v3271 = vpop.f32.mrb[0].mxu0
        %v3272 = vadd.f32 0.0, %v3271
        %3273 = vmatprep.mubr.f32.mxu0 0.0
        %3274 = vmatmul.mubr.f32.gmra.mrb[0].mxu0 %v818
        %v3275 = vpop.f32.mrb[0].mxu0
        %v3276 = vadd.f32 0.0, %v3275
        %v3277 = vpop.f32.mrb[0].mxu0
        %v3278 = vadd.f32 0.0, %v3277
        %3279 = vmatprep.mubr.f32.mxu0 0.0
        %3280 = vmatmul.mubr.f32.gmra.mrb[0].mxu0 %v821
        %v3281 = vpop.f32.mrb[0].mxu0
        %v3282 = vadd.f32 0.0, %v3281
        %v3283 = vpop.f32.mrb[0].mxu0
        %v3284 = vadd.f32 0.0, %v3283
        %3285 = vmatprep.mubr.f32.mxu0 0.0
        %3286 = vmatmul.mubr.f32.gmra.mrb[0].mxu0 %v824
        %v3287 = vpop.f32.mrb[0].mxu0
        %v3288 = vadd.f32 0.0, %v3287
        %v3289 = vpop.f32.mrb[0].mxu0
        %v3290 = vadd.f32 0.0, %v3289
        %3291 = vmatprep.mubr.f32.mxu0 0.0
        %3292 = vmatmul.mubr.f32.gmra.mrb[0].mxu0 %v827
        %v3293 = vpop.f32.mrb[0].mxu0
        %v3294 = vadd.f32 0.0, %v3293
        %v3295 = vpop.f32.mrb[0].mxu0
        %v3296 = vadd.f32 0.0, %v3295
        %3297 = vmatprep.mubr.f32.mxu0 0.0
        %3298 = vmatmul.mubr.f32.gmra.mrb[0].mxu0 %v830
        %v3299 = vpop.f32.mrb[0].mxu0
        %v3300 = vadd.f32 0.0, %v3299
        %v3301 = vpop.f32.mrb[0].mxu0
        %v3302 = vadd.f32 0.0, %v3301
        %3303 = vmatprep.mubr.f32.mxu0 0.0
        %3304 = vmatmul.mubr.f32.gmra.mrb[0].mxu0 %v833
        %v3305 = vpop.f32.mrb[0].mxu0
        %v3306 = vadd.f32 0.0, %v3305
        %v3307 = vpop.f32.mrb[0].mxu0
        %v3308 = vadd.f32 0.0, %v3307
        %3309 = vmatprep.mubr.f32.mxu0 0.0
        %3310 = vmatmul.mubr.f32.gmra.mrb[0].mxu0 %v836
        %v3311 = vpop.f32.mrb[0].mxu0
        %v3312 = vadd.f32 0.0, %v3311
        %v3313 = vpop.f32.mrb[0].mxu0
        %v3314 = vadd.f32 0.0, %v3313
        %3315 = vmatprep.mubr.f32.mxu0 0.0
        %3316 = vmatmul.mubr.f32.gmra.mrb[0].mxu0 %v839
        %v3317 = vpop.f32.mrb[0].mxu0
        %v3318 = vadd.f32 0.0, %v3317
        %v3319 = vpop.f32.mrb[0].mxu0
        %v3320 = vadd.f32 0.0, %v3319
        %3321 = vmatprep.mubr.f32.mxu0 0.0
        %3322 = vmatmul.mubr.f32.gmra.mrb[0].mxu0 %v842
        %v3323 = vpop.f32.mrb[0].mxu0
        %v3324 = vadd.f32 0.0, %v3323
        %v3325 = vpop.f32.mrb[0].mxu0
        %v3326 = vadd.f32 0.0, %v3325
        %3327 = vmatprep.mubr.f32.mxu0 0.0
        %3328 = vmatmul.mubr.f32.gmra.mrb[0].mxu0 %v845
        %v3329 = vpop.f32.mrb[0].mxu0
        %v3330 = vadd.f32 0.0, %v3329
        %v3331 = vpop.f32.mrb[0].mxu0
        %v3332 = vadd.f32 0.0, %v3331
        %3333 = vmatprep.mubr.f32.mxu0 0.0
        %3334 = vmatmul.mubr.f32.gmra.mrb[0].mxu0 %v848
        %v3335 = vpop.f32.mrb[0].mxu0
        %v3336 = vadd.f32 0.0, %v3335
        %v3337 = vpop.f32.mrb[0].mxu0
        %v3338 = vadd.f32 0.0, %v3337
        %3339 = vmatprep.mubr.f32.mxu0 0.0
        %3340 = vmatmul.mubr.f32.gmra.mrb[0].mxu0 %v851
        %v3341 = vpop.f32.mrb[0].mxu0
        %v3342 = vadd.f32 0.0, %v3341
        %v3343 = vpop.f32.mrb[0].mxu0
        %v3344 = vadd.f32 0.0, %v3343
        %3345 = vmatprep.mubr.f32.mxu0 0.0
        %3346 = vmatmul.mubr.f32.gmra.mrb[0].mxu0 %v854
        %v3347 = vpop.f32.mrb[0].mxu0
        %v3348 = vadd.f32 0.0, %v3347
        %v3349 = vpop.f32.mrb[0].mxu0
        %v3350 = vadd.f32 0.0, %v3349
        %3351 = vmatprep.mubr.f32.mxu0 0.0
        %3352 = vmatmul.mubr.f32.gmra.mrb[0].mxu0 %v857
        %v3353 = vpop.f32.mrb[0].mxu0
        %v3354 = vadd.f32 0.0, %v3353
        %v3355 = vpop.f32.mrb[0].mxu0
        %v3356 = vadd.f32 0.0, %v3355
        %3357 = vmatprep.mubr.f32.mxu0 0.0
        %3358 = vmatmul.mubr.f32.gmra.mrb[0].mxu0 %v860
        %v3359 = vpop.f32.mrb[0].mxu0
        %v3360 = vadd.f32 0.0, %v3359
        %v3361 = vpop.f32.mrb[0].mxu0
        %v3362 = vadd.f32 0.0, %v3361
        %3363 = vmatprep.mubr.f32.mxu0 0.0
        %3364 = vmatmul.mubr.f32.gmra.mrb[0].mxu0 %v863
        %v3365 = vpop.f32.mrb[0].mxu0
        %v3366 = vadd.f32 0.0, %v3365
        %v3367 = vpop.f32.mrb[0].mxu0
        %v3368 = vadd.f32 0.0, %v3367
        %3369 = vmatprep.mubr.f32.mxu0 0.0
        %3370 = vmatmul.mubr.f32.gmra.mrb[0].mxu0 %v866
        %v3371 = vpop.f32.mrb[0].mxu0
        %v3372 = vadd.f32 0.0, %v3371
        %v3373 = vpop.f32.mrb[0].mxu0
        %v3374 = vadd.f32 0.0, %v3373
        %3375 = vmatprep.mubr.f32.mxu0 0.0
        %3376 = vmatmul.mubr.f32.gmra.mrb[0].mxu0 %v869
        %v3377 = vpop.f32.mrb[0].mxu0
        %v3378 = vadd.f32 0.0, %v3377
        %v3379 = vpop.f32.mrb[0].mxu0
        %v3380 = vadd.f32 0.0, %v3379
        %3381 = vmatprep.mubr.f32.mxu0 0.0
        %3382 = vmatmul.mubr.f32.gmra.mrb[0].mxu0 %v872
        %v3383 = vpop.f32.mrb[0].mxu0
        %v3384 = vadd.f32 0.0, %v3383
        %v3385 = vpop.f32.mrb[0].mxu0
        %v3386 = vadd.f32 0.0, %v3385
        %3387 = vmatprep.mubr.f32.mxu0 0.0
        %3388 = vmatmul.mubr.f32.gmra.mrb[0].mxu0 %v875
        %v3389 = vpop.f32.mrb[0].mxu0
        %v3390 = vadd.f32 0.0, %v3389
        %v3391 = vpop.f32.mrb[0].mxu0
        %v3392 = vadd.f32 0.0, %v3391
        %3393 = vmatprep.mubr.f32.mxu0 0.0
        %3394 = vmatmul.mubr.f32.gmra.mrb[0].mxu0 %v878
        %v3395 = vpop.f32.mrb[0].mxu0
        %v3396 = vadd.f32 0.0, %v3395
        %v3397 = vpop.f32.mrb[0].mxu0
        %v3398 = vadd.f32 0.0, %v3397
        %3399 = vmatprep.mubr.f32.mxu0 0.0
        %3400 = vmatmul.mubr.f32.gmra.mrb[0].mxu0 %v881
        %v3401 = vpop.f32.mrb[0].mxu0
        %v3402 = vadd.f32 0.0, %v3401
        %v3403 = vpop.f32.mrb[0].mxu0
        %v3404 = vadd.f32 0.0, %v3403
        %3405 = vmatprep.mubr.f32.mxu0 0.0
        %3406 = vmatmul.mubr.f32.gmra.mrb[0].mxu0 %v884
        %v3407 = vpop.f32.mrb[0].mxu0
        %v3408 = vadd.f32 0.0, %v3407
        %v3409 = vpop.f32.mrb[0].mxu0
        %v3410 = vadd.f32 0.0, %v3409
        %3411 = vmatprep.mubr.f32.mxu0 0.0
        %3412 = vmatmul.mubr.f32.gmra.mrb[0].mxu0 %v887
        %v3413 = vpop.f32.mrb[0].mxu0
        %v3414 = vadd.f32 0.0, %v3413
        %v3415 = vpop.f32.mrb[0].mxu0
        %v3416 = vadd.f32 0.0, %v3415
        %3417 = vmatprep.mubr.f32.mxu0 0.0
        %3418 = vmatmul.mubr.f32.gmra.mrb[0].mxu0 %v890
        %v3419 = vpop.f32.mrb[0].mxu0
        %v3420 = vadd.f32 0.0, %v3419
        %v3421 = vpop.f32.mrb[0].mxu0
        %v3422 = vadd.f32 0.0, %v3421
        %3423 = vmatprep.mubr.f32.mxu0 0.0
        %3424 = vmatmul.mubr.f32.gmra.mrb[0].mxu0 %v893
        %v3425 = vpop.f32.mrb[0].mxu0
        %v3426 = vadd.f32 0.0, %v3425
        %v3427 = vpop.f32.mrb[0].mxu0
        %v3428 = vadd.f32 0.0, %v3427
        %3429 = vmatprep.mubr.f32.mxu0 0.0
        %3430 = vmatmul.mubr.f32.gmra.mrb[0].mxu0 %v896
        %v3431 = vpop.f32.mrb[0].mxu0
        %v3432 = vadd.f32 0.0, %v3431
        %v3433 = vpop.f32.mrb[0].mxu0
        %v3434 = vadd.f32 0.0, %v3433
        %3435 = vmatprep.mubr.f32.mxu0 0.0
        %3436 = vmatmul.mubr.f32.gmra.mrb[0].mxu0 %v899
        %v3437 = vpop.f32.mrb[0].mxu0
        %v3438 = vadd.f32 0.0, %v3437
        %v3439 = vpop.f32.mrb[0].mxu0
        %v3440 = vadd.f32 0.0, %v3439
        %3441 = vmatprep.mubr.f32.mxu0 0.0
        %3442 = vmatmul.mubr.f32.gmra.mrb[0].mxu0 %v902
        %v3443 = vpop.f32.mrb[0].mxu0
        %v3444 = vadd.f32 0.0, %v3443
        %v3445 = vpop.f32.mrb[0].mxu0
        %v3446 = vadd.f32 0.0, %v3445
        %3447 = vmatprep.mubr.f32.mxu0 0.0
        %3448 = vmatmul.mubr.f32.gmra.mrb[0].mxu0 %v905
        %v3449 = vpop.f32.mrb[0].mxu0
        %v3450 = vadd.f32 0.0, %v3449
        %v3451 = vpop.f32.mrb[0].mxu0
        %v3452 = vadd.f32 0.0, %v3451
        %3453 = vmatprep.mubr.f32.mxu0 0.0
        %3454 = vmatmul.mubr.f32.gmra.mrb[0].mxu0 %v908
        %v3455 = vpop.f32.mrb[0].mxu0
        %v3456 = vadd.f32 0.0, %v3455
        %v3457 = vpop.f32.mrb[0].mxu0
        %v3458 = vadd.f32 0.0, %v3457
        %3459 = vmatprep.mubr.f32.mxu0 0.0
        %3460 = vmatmul.mubr.f32.gmra.mrb[0].mxu0 %v911
        %v3461 = vpop.f32.mrb[0].mxu0
        %v3462 = vadd.f32 0.0, %v3461
        %v3463 = vpop.f32.mrb[0].mxu0
        %v3464 = vadd.f32 0.0, %v3463
        %3465 = vmatprep.mubr.f32.mxu0 0.0
        %3466 = vmatmul.mubr.f32.gmra.mrb[0].mxu0 %v914
        %v3467 = vpop.f32.mrb[0].mxu0
        %v3468 = vadd.f32 0.0, %v3467
        %v3469 = vpop.f32.mrb[0].mxu0
        %v3470 = vadd.f32 0.0, %v3469
        %3471 = vmatprep.mubr.f32.mxu0 0.0
        %3472 = vmatmul.mubr.f32.gmra.mrb[0].mxu0 %v917
        %v3473 = vpop.f32.mrb[0].mxu0
        %v3474 = vadd.f32 0.0, %v3473
        %v3475 = vpop.f32.mrb[0].mxu0
        %v3476 = vadd.f32 0.0, %v3475
        %3477 = vmatprep.mubr.f32.mxu0 0.0
        %3478 = vmatmul.mubr.f32.gmra.mrb[0].mxu0 %v920
        %v3479 = vpop.f32.mrb[0].mxu0
        %v3480 = vadd.f32 0.0, %v3479
        %v3481 = vpop.f32.mrb[0].mxu0
        %v3482 = vadd.f32 0.0, %v3481
        %3483 = vmatprep.mubr.f32.mxu0 0.0
        %3484 = vmatmul.mubr.f32.gmra.mrb[0].mxu0 %v923
        %v3485 = vpop.f32.mrb[0].mxu0
        %v3486 = vadd.f32 0.0, %v3485
        %v3487 = vpop.f32.mrb[0].mxu0
        %v3488 = vadd.f32 0.0, %v3487
        %3489 = vmatprep.mubr.f32.mxu0 0.0
        %3490 = vmatmul.mubr.f32.gmra.mrb[0].mxu0 %v926
        %v3491 = vpop.f32.mrb[0].mxu0
        %v3492 = vadd.f32 0.0, %v3491
        %v3493 = vpop.f32.mrb[0].mxu0
        %v3494 = vadd.f32 0.0, %v3493
        %3495 = vmatprep.mubr.f32.mxu0 0.0
        %3496 = vmatmul.mubr.f32.gmra.mrb[0].mxu0 %v929
        %v3497 = vpop.f32.mrb[0].mxu0
        %v3498 = vadd.f32 0.0, %v3497
        %v3499 = vpop.f32.mrb[0].mxu0
        %v3500 = vadd.f32 0.0, %v3499
        %3501 = vmatprep.mubr.f32.mxu0 0.0
        %3502 = vmatmul.mubr.f32.gmra.mrb[0].mxu0 %v932
        %v3503 = vpop.f32.mrb[0].mxu0
        %v3504 = vadd.f32 0.0, %v3503
        %v3505 = vpop.f32.mrb[0].mxu0
        %v3506 = vadd.f32 0.0, %v3505
        %3507 = vmatprep.mubr.f32.mxu0 0.0
        %3508 = vmatmul.mubr.f32.gmra.mrb[0].mxu0 %v935
        %v3509 = vpop.f32.mrb[0].mxu0
        %v3510 = vadd.f32 0.0, %v3509
        %v3511 = vpop.f32.mrb[0].mxu0
        %v3512 = vadd.f32 0.0, %v3511
        %3513 = vmatprep.mubr.f32.mxu0 0.0
        %3514 = vmatmul.mubr.f32.gmra.mrb[0].mxu0 %v938
        %v3515 = vpop.f32.mrb[0].mxu0
        %v3516 = vadd.f32 0.0, %v3515
        %v3517 = vpop.f32.mrb[0].mxu0
        %v3518 = vadd.f32 0.0, %v3517
        %3519 = vmatprep.mubr.f32.mxu0 0.0
        %3520 = vmatmul.mubr.f32.gmra.mrb[0].mxu0 %v941
        %v3521 = vpop.f32.mrb[0].mxu0
        %v3522 = vadd.f32 0.0, %v3521
        %v3523 = vpop.f32.mrb[0].mxu0
        %v3524 = vadd.f32 0.0, %v3523
        %3525 = vmatprep.mubr.f32.mxu0 0.0
        %3526 = vmatmul.mubr.f32.gmra.mrb[0].mxu0 %v944
        %v3527 = vpop.f32.mrb[0].mxu0
        %v3528 = vadd.f32 0.0, %v3527
        %v3529 = vpop.f32.mrb[0].mxu0
        %v3530 = vadd.f32 0.0, %v3529
        %3531 = vmatprep.mubr.f32.mxu0 0.0
        %3532 = vmatmul.mubr.f32.gmra.mrb[0].mxu0 %v947
        %v3533 = vpop.f32.mrb[0].mxu0
        %v3534 = vadd.f32 0.0, %v3533
        %v3535 = vpop.f32.mrb[0].mxu0
        %v3536 = vadd.f32 0.0, %v3535
        %3537 = vmatprep.mubr.f32.mxu0 0.0
        %3538 = vmatmul.mubr.f32.gmra.mrb[0].mxu0 %v950
        %v3539 = vpop.f32.mrb[0].mxu0
        %v3540 = vadd.f32 0.0, %v3539
        %v3541 = vpop.f32.mrb[0].mxu0
        %v3542 = vadd.f32 0.0, %v3541
        %3543 = vmatprep.mubr.f32.mxu0 0.0
        %3544 = vmatmul.mubr.f32.gmra.mrb[0].mxu0 %v953
        %v3545 = vpop.f32.mrb[0].mxu0
        %v3546 = vadd.f32 0.0, %v3545
        %v3547 = vpop.f32.mrb[0].mxu0
        %v3548 = vadd.f32 0.0, %v3547
        %3549 = vmatprep.mubr.f32.mxu0 0.0
        %3550 = vmatmul.mubr.f32.gmra.mrb[0].mxu0 %v956
        %v3551 = vpop.f32.mrb[0].mxu0
        %v3552 = vadd.f32 0.0, %v3551
        %v3553 = vpop.f32.mrb[0].mxu0
        %v3554 = vadd.f32 0.0, %v3553
        %3555 = vmatprep.mubr.f32.mxu0 0.0
        %3556 = vmatmul.mubr.f32.gmra.mrb[0].mxu0 %v959
        %v3557 = vpop.f32.mrb[0].mxu0
        %v3558 = vadd.f32 0.0, %v3557
        %v3559 = vpop.f32.mrb[0].mxu0
        %v3560 = vadd.f32 0.0, %v3559
        %3561 = vmatprep.mubr.f32.mxu0 0.0
        %3562 = vmatmul.mubr.f32.gmra.mrb[0].mxu0 %v962
        %v3563 = vpop.f32.mrb[0].mxu0
        %v3564 = vadd.f32 0.0, %v3563
        %v3565 = vpop.f32.mrb[0].mxu0
        %v3566 = vadd.f32 0.0, %v3565
        %3567 = vmatprep.mubr.f32.mxu0 0.0
        %3568 = vmatmul.mubr.f32.gmra.mrb[0].mxu0 %v965
        %v3569 = vpop.f32.mrb[0].mxu0
        %v3570 = vadd.f32 0.0, %v3569
        %v3571 = vpop.f32.mrb[0].mxu0
        %v3572 = vadd.f32 0.0, %v3571
        %3573 = vmatprep.mubr.f32.mxu0 0.0
        %3574 = vmatmul.mubr.f32.gmra.mrb[0].mxu0 %v968
        %v3575 = vpop.f32.mrb[0].mxu0
        %v3576 = vadd.f32 0.0, %v3575
        %v3577 = vpop.f32.mrb[0].mxu0
        %v3578 = vadd.f32 0.0, %v3577
        %3579 = vmatprep.mubr.f32.mxu0 0.0
        %3580 = vmatmul.mubr.f32.gmra.mrb[0].mxu0 %v971
        %v3581 = vpop.f32.mrb[0].mxu0
        %v3582 = vadd.f32 0.0, %v3581
        %v3583 = vpop.f32.mrb[0].mxu0
        %v3584 = vadd.f32 0.0, %v3583
        %3585 = vmatprep.mubr.f32.mxu0 0.0
        %3586 = vmatmul.mubr.f32.gmra.mrb[0].mxu0 %v974
        %v3587 = vpop.f32.mrb[0].mxu0
        %v3588 = vadd.f32 0.0, %v3587
        %v3589 = vpop.f32.mrb[0].mxu0
        %v3590 = vadd.f32 0.0, %v3589
        %3591 = vmatprep.mubr.f32.mxu0 0.0
        %3592 = vmatmul.mubr.f32.gmra.mrb[0].mxu0 %v977
        %v3593 = vpop.f32.mrb[0].mxu0
        %v3594 = vadd.f32 0.0, %v3593
        %v3595 = vpop.f32.mrb[0].mxu0
        %v3596 = vadd.f32 0.0, %v3595
        %3597 = vmatprep.mubr.f32.mxu0 0.0
        %3598 = vmatmul.mubr.f32.gmra.mrb[0].mxu0 %v980
        %v3599 = vpop.f32.mrb[0].mxu0
        %v3600 = vadd.f32 0.0, %v3599
        %v3601 = vpop.f32.mrb[0].mxu0
        %v3602 = vadd.f32 0.0, %v3601
        %3603 = vmatprep.mubr.f32.mxu0 0.0
        %3604 = vmatmul.mubr.f32.gmra.mrb[0].mxu0 %v983
        %v3605 = vpop.f32.mrb[0].mxu0
        %v3606 = vadd.f32 0.0, %v3605
        %v3607 = vpop.f32.mrb[0].mxu0
        %v3608 = vadd.f32 0.0, %v3607
        %3609 = vmatprep.mubr.f32.mxu0 0.0
        %3610 = vmatmul.mubr.f32.gmra.mrb[0].mxu0 %v986
        %v3611 = vpop.f32.mrb[0].mxu0
        %v3612 = vadd.f32 0.0, %v3611
        %v3613 = vpop.f32.mrb[0].mxu0
        %v3614 = vadd.f32 0.0, %v3613
        %3615 = vmatprep.mubr.f32.mxu0 0.0
        %3616 = vmatmul.mubr.f32.gmra.mrb[0].mxu0 %v989
        %v3617 = vpop.f32.mrb[0].mxu0
        %v3618 = vadd.f32 0.0, %v3617
        %v3619 = vpop.f32.mrb[0].mxu0
        %v3620 = vadd.f32 0.0, %v3619
        %3621 = vmatprep.mubr.f32.mxu0 0.0
        %3622 = vmatmul.mubr.f32.gmra.mrb[0].mxu0 %v992
        %v3623 = vpop.f32.mrb[0].mxu0
        %v3624 = vadd.f32 0.0, %v3623
        %v3625 = vpop.f32.mrb[0].mxu0
        %v3626 = vadd.f32 0.0, %v3625
        %3627 = vmatprep.mubr.f32.mxu0 0.0
        %3628 = vmatmul.mubr.f32.gmra.mrb[0].mxu0 %v995
        %v3629 = vpop.f32.mrb[0].mxu0
        %v3630 = vadd.f32 0.0, %v3629
        %v3631 = vpop.f32.mrb[0].mxu0
        %v3632 = vadd.f32 0.0, %v3631
        %3633 = vmatprep.mubr.f32.mxu0 0.0
        %3634 = vmatmul.mubr.f32.gmra.mrb[0].mxu0 %v998
        %v3635 = vpop.f32.mrb[0].mxu0
        %v3636 = vadd.f32 0.0, %v3635
        %v3637 = vpop.f32.mrb[0].mxu0
        %v3638 = vadd.f32 0.0, %v3637
        %3639 = vmatprep.mubr.f32.mxu0 0.0
        %3640 = vmatmul.mubr.f32.gmra.mrb[0].mxu0 %v1001
        %v3641 = vpop.f32.mrb[0].mxu0
        %v3642 = vadd.f32 0.0, %v3641
        %v3643 = vpop.f32.mrb[0].mxu0
        %v3644 = vadd.f32 0.0, %v3643
        %3645 = vmatprep.mubr.f32.mxu0 0.0
        %3646 = vmatmul.mubr.f32.gmra.mrb[0].mxu0 %v1004
        %v3647 = vpop.f32.mrb[0].mxu0
        %v3648 = vadd.f32 0.0, %v3647
        %v3649 = vpop.f32.mrb[0].mxu0
        %v3650 = vadd.f32 0.0, %v3649
        %3651 = vmatprep.mubr.f32.mxu0 0.0
        %3652 = vmatmul.mubr.f32.gmra.mrb[0].mxu0 %v1007
        %v3653 = vpop.f32.mrb[0].mxu0
        %v3654 = vadd.f32 0.0, %v3653
        %v3655 = vpop.f32.mrb[0].mxu0
        %v3656 = vadd.f32 0.0, %v3655
        %3657 = vmatprep.mubr.f32.mxu0 0.0
        %3658 = vmatmul.mubr.f32.gmra.mrb[0].mxu0 %v1010
        %v3659 = vpop.f32.mrb[0].mxu0
        %v3660 = vadd.f32 0.0, %v3659
        %v3661 = vpop.f32.mrb[0].mxu0
        %v3662 = vadd.f32 0.0, %v3661
        %3663 = vmatprep.mubr.f32.mxu0 0.0
        %3664 = vmatmul.mubr.f32.gmra.mrb[0].mxu0 %v1013
        %v3665 = vpop.f32.mrb[0].mxu0
        %v3666 = vadd.f32 0.0, %v3665
        %v3667 = vpop.f32.mrb[0].mxu0
        %v3668 = vadd.f32 0.0, %v3667
        %3669 = vmatprep.mubr.f32.mxu0 0.0
        %3670 = vmatmul.mubr.f32.gmra.mrb[0].mxu0 %v1016
        %v3671 = vpop.f32.mrb[0].mxu0
        %v3672 = vadd.f32 0.0, %v3671
        %v3673 = vpop.f32.mrb[0].mxu0
        %v3674 = vadd.f32 0.0, %v3673
        %3675 = vmatprep.mubr.f32.mxu0 0.0
        %3676 = vmatmul.mubr.f32.gmra.mrb[0].mxu0 %v1019
        %v3677 = vpop.f32.mrb[0].mxu0
        %v3678 = vadd.f32 0.0, %v3677
        %v3679 = vpop.f32.mrb[0].mxu0
        %v3680 = vadd.f32 0.0, %v3679
        %3681 = vmatprep.mubr.f32.mxu0 0.0
        %3682 = vmatmul.mubr.f32.gmra.mrb[0].mxu0 %v1022
        %v3683 = vpop.f32.mrb[0].mxu0
        %v3684 = vadd.f32 0.0, %v3683
        %v3685 = vpop.f32.mrb[0].mxu0
        %v3686 = vadd.f32 0.0, %v3685
        %3687 = vmatprep.mubr.f32.mxu0 0.0
        %3688 = vmatmul.mubr.f32.gmra.mrb[0].mxu0 %v1025
        %v3689 = vpop.f32.mrb[0].mxu0
        %v3690 = vadd.f32 0.0, %v3689
        %v3691 = vpop.f32.mrb[0].mxu0
        %v3692 = vadd.f32 0.0, %v3691
        %3693 = vmatprep.mubr.f32.mxu0 0.0
        %3694 = vmatmul.mubr.f32.gmra.mrb[0].mxu0 %v1028
        %v3695 = vpop.f32.mrb[0].mxu0
        %v3696 = vadd.f32 0.0, %v3695
        %v3697 = vpop.f32.mrb[0].mxu0
        %v3698 = vadd.f32 0.0, %v3697
        %3699 = vmatprep.mubr.f32.mxu0 0.0
        %3700 = vmatmul.mubr.f32.gmra.mrb[0].mxu0 %v1031
        %v3701 = vpop.f32.mrb[0].mxu0
        %v3702 = vadd.f32 0.0, %v3701
        %v3703 = vpop.f32.mrb[0].mxu0
        %v3704 = vadd.f32 0.0, %v3703
        %3705 = vmatprep.mubr.f32.mxu0 0.0
        %3706 = vmatmul.mubr.f32.gmra.mrb[0].mxu0 %v1034
        %v3707 = vpop.f32.mrb[0].mxu0
        %v3708 = vadd.f32 0.0, %v3707
        %v3709 = vpop.f32.mrb[0].mxu0
        %v3710 = vadd.f32 0.0, %v3709
        %3711 = vmatprep.mubr.f32.mxu0 0.0
        %3712 = vmatmul.mubr.f32.gmra.mrb[0].mxu0 %v1037
        %v3713 = vpop.f32.mrb[0].mxu0
        %v3714 = vadd.f32 0.0, %v3713
        %v3715 = vpop.f32.mrb[0].mxu0
        %v3716 = vadd.f32 0.0, %v3715
        %3717 = vmatprep.mubr.f32.mxu0 0.0
        %3718 = vmatmul.mubr.f32.gmra.mrb[0].mxu0 %v1040
        %v3719 = vpop.f32.mrb[0].mxu0
        %v3720 = vadd.f32 0.0, %v3719
        %v3721 = vpop.f32.mrb[0].mxu0
        %v3722 = vadd.f32 0.0, %v3721
        %3723 = vmatprep.mubr.f32.mxu0 0.0
        %3724 = vmatmul.mubr.f32.gmra.mrb[0].mxu0 %v1043
        %v3725 = vpop.f32.mrb[0].mxu0
        %v3726 = vadd.f32 0.0, %v3725
        %v3727 = vpop.f32.mrb[0].mxu0
        %v3728 = vadd.f32 0.0, %v3727
        %3729 = vmatprep.mubr.f32.mxu0 0.0
        %3730 = vmatmul.mubr.f32.gmra.mrb[0].mxu0 %v1046
        %v3731 = vpop.f32.mrb[0].mxu0
        %v3732 = vadd.f32 0.0, %v3731
        %v3733 = vpop.f32.mrb[0].mxu0
        %v3734 = vadd.f32 0.0, %v3733
        %3735 = vmatprep.mubr.f32.mxu0 0.0
        %3736 = vmatmul.mubr.f32.gmra.mrb[0].mxu0 %v1049
        %v3737 = vpop.f32.mrb[0].mxu0
        %v3738 = vadd.f32 0.0, %v3737
        %v3739 = vpop.f32.mrb[0].mxu0
        %v3740 = vadd.f32 0.0, %v3739
        %3741 = vmatprep.mubr.f32.mxu0 0.0
        %3742 = vmatmul.mubr.f32.gmra.mrb[0].mxu0 %v1052
        %v3743 = vpop.f32.mrb[0].mxu0
        %v3744 = vadd.f32 0.0, %v3743
        %v3745 = vpop.f32.mrb[0].mxu0
        %v3746 = vadd.f32 0.0, %v3745
        %3747 = vmatprep.mubr.f32.mxu0 0.0
        %3748 = vmatmul.mubr.f32.gmra.mrb[0].mxu0 %v1055
        %v3749 = vpop.f32.mrb[0].mxu0
        %v3750 = vadd.f32 0.0, %v3749
        %v3751 = vpop.f32.mrb[0].mxu0
        %v3752 = vadd.f32 0.0, %v3751
        %3753 = vmatprep.mubr.f32.mxu0 0.0
        %3754 = vmatmul.mubr.f32.gmra.mrb[0].mxu0 %v1058
        %v3755 = vpop.f32.mrb[0].mxu0
        %v3756 = vadd.f32 0.0, %v3755
        %v3757 = vpop.f32.mrb[0].mxu0
        %v3758 = vadd.f32 0.0, %v3757
        %3759 = vmatprep.mubr.f32.mxu0 0.0
        %3760 = vmatmul.mubr.f32.gmra.mrb[0].mxu0 %v1061
        %v3761 = vpop.f32.mrb[0].mxu0
        %v3762 = vadd.f32 0.0, %v3761
        %v3763 = vpop.f32.mrb[0].mxu0
        %v3764 = vadd.f32 0.0, %v3763
        %3765 = vmatprep.mubr.f32.mxu0 0.0
        %3766 = vmatmul.mubr.f32.gmra.mrb[0].mxu0 %v1064
        %v3767 = vpop.f32.mrb[0].mxu0
        %v3768 = vadd.f32 0.0, %v3767
        %v3769 = vpop.f32.mrb[0].mxu0
        %v3770 = vadd.f32 0.0, %v3769
        %3771 = vmatprep.mubr.f32.mxu0 0.0
        %3772 = vmatmul.mubr.f32.gmra.mrb[0].mxu0 %v1067
        %v3773 = vpop.f32.mrb[0].mxu0
        %v3774 = vadd.f32 0.0, %v3773
        %v3775 = vpop.f32.mrb[0].mxu0
        %v3776 = vadd.f32 0.0, %v3775
        %3777 = vmatprep.mubr.f32.mxu0 0.0
        %3778 = vmatmul.mubr.f32.gmra.mrb[0].mxu0 %v1070
        %v3779 = vpop.f32.mrb[0].mxu0
        %v3780 = vadd.f32 0.0, %v3779
        %v3781 = vpop.f32.mrb[0].mxu0
        %v3782 = vadd.f32 0.0, %v3781
        %3783 = vmatprep.mubr.f32.mxu0 0.0
        %3784 = vmatmul.mubr.f32.gmra.mrb[0].mxu0 %v1073
        %v3785 = vpop.f32.mrb[0].mxu0
        %v3786 = vadd.f32 0.0, %v3785
        %v3787 = vpop.f32.mrb[0].mxu0
        %v3788 = vadd.f32 0.0, %v3787
        %3789 = vmatprep.mubr.f32.mxu0 0.0
        %3790 = vmatmul.mubr.f32.gmra.mrb[0].mxu0 %v1076
        %v3791 = vpop.f32.mrb[0].mxu0
        %v3792 = vadd.f32 0.0, %v3791
        %v3793 = vpop.f32.mrb[0].mxu0
        %v3794 = vadd.f32 0.0, %v3793
        %3795 = vmatprep.mubr.f32.mxu0 0.0
        %3796 = vmatmul.mubr.f32.gmra.mrb[0].mxu0 %v1079
        %v3797 = vpop.f32.mrb[0].mxu0
        %v3798 = vadd.f32 0.0, %v3797
        %v3799 = vpop.f32.mrb[0].mxu0
        %v3800 = vadd.f32 0.0, %v3799
        %3801 = vmatprep.mubr.f32.mxu0 0.0
        %3802 = vmatmul.mubr.f32.gmra.mrb[0].mxu0 %v1082
        %v3803 = vpop.f32.mrb[0].mxu0
        %v3804 = vadd.f32 0.0, %v3803
        %v3805 = vpop.f32.mrb[0].mxu0
        %v3806 = vadd.f32 0.0, %v3805
        %3807 = vmatprep.mubr.f32.mxu0 0.0
        %3808 = vmatmul.mubr.f32.gmra.mrb[0].mxu0 %v1085
        %v3809 = vpop.f32.mrb[0].mxu0
        %v3810 = vadd.f32 0.0, %v3809
        %v3811 = vpop.f32.mrb[0].mxu0
        %v3812 = vadd.f32 0.0, %v3811
        %3813 = vmatprep.mubr.f32.mxu0 0.0
        %3814 = vmatmul.mubr.f32.gmra.mrb[0].mxu0 %v1088
        %v3815 = vpop.f32.mrb[0].mxu0
        %v3816 = vadd.f32 0.0, %v3815
        %v3817 = vpop.f32.mrb[0].mxu0
        %v3818 = vadd.f32 0.0, %v3817
        %3819 = vmatprep.mubr.f32.mxu0 0.0
        %3820 = vmatmul.mubr.f32.gmra.mrb[0].mxu0 %v1091
        %v3821 = vpop.f32.mrb[0].mxu0
        %v3822 = vadd.f32 0.0, %v3821
        %v3823 = vpop.f32.mrb[0].mxu0
        %v3824 = vadd.f32 0.0, %v3823
        %3825 = vmatprep.mubr.f32.mxu0 0.0
        %3826 = vmatmul.mubr.f32.gmra.mrb[0].mxu0 %v1094
        %v3827 = vpop.f32.mrb[0].mxu0
        %v3828 = vadd.f32 0.0, %v3827
        %v3829 = vpop.f32.mrb[0].mxu0
        %v3830 = vadd.f32 0.0, %v3829
        %3831 = vmatprep.mubr.f32.mxu0 0.0
        %3832 = vmatmul.mubr.f32.gmra.mrb[0].mxu0 %v1097
        %v3833 = vpop.f32.mrb[0].mxu0
        %v3834 = vadd.f32 0.0, %v3833
        %v3835 = vpop.f32.mrb[0].mxu0
        %v3836 = vadd.f32 0.0, %v3835
        %3837 = vmatprep.mubr.f32.mxu0 0.0
        %3838 = vmatmul.mubr.f32.gmra.mrb[0].mxu0 %v1100
        %v3839 = vpop.f32.mrb[0].mxu0
        %v3840 = vadd.f32 0.0, %v3839
        %v3841 = vpop.f32.mrb[0].mxu0
        %v3842 = vadd.f32 0.0, %v3841
        %3843 = vmatprep.mubr.f32.mxu0 0.0
        %3844 = vmatmul.mubr.f32.gmra.mrb[0].mxu0 %v1103
        %v3845 = vpop.f32.mrb[0].mxu0
        %v3846 = vadd.f32 0.0, %v3845
        %v3847 = vpop.f32.mrb[0].mxu0
        %v3848 = vadd.f32 0.0, %v3847
        %3849 = vmatprep.mubr.f32.mxu0 0.0
        %3850 = vmatmul.mubr.f32.gmra.mrb[0].mxu0 %v1106
        %v3851 = vpop.f32.mrb[0].mxu0
        %v3852 = vadd.f32 0.0, %v3851
        %v3853 = vpop.f32.mrb[0].mxu0
        %v3854 = vadd.f32 0.0, %v3853
        %3855 = vmatprep.mubr.f32.mxu0 0.0
        %3856 = vmatmul.mubr.f32.gmra.mrb[0].mxu0 %v1109
        %v3857 = vpop.f32.mrb[0].mxu0
        %v3858 = vadd.f32 0.0, %v3857
        %v3859 = vpop.f32.mrb[0].mxu0
        %v3860 = vadd.f32 0.0, %v3859
        %3861 = vmatprep.mubr.f32.mxu0 0.0
        %3862 = vmatmul.mubr.f32.gmra.mrb[0].mxu0 %v1112
        %v3863 = vpop.f32.mrb[0].mxu0
        %v3864 = vadd.f32 0.0, %v3863
        %v3865 = vpop.f32.mrb[0].mxu0
        %v3866 = vadd.f32 0.0, %v3865
        %3867 = vmatprep.mubr.f32.mxu0 0.0
        %3868 = vmatmul.mubr.f32.gmra.mrb[0].mxu0 %v1115
        %v3869 = vpop.f32.mrb[0].mxu0
        %v3870 = vadd.f32 0.0, %v3869
        %v3871 = vpop.f32.mrb[0].mxu0
        %v3872 = vadd.f32 0.0, %v3871
        %3873 = vmatprep.mubr.f32.mxu0 0.0
        %3874 = vmatmul.mubr.f32.gmra.mrb[0].mxu0 %v1118
        %v3875 = vpop.f32.mrb[0].mxu0
        %v3876 = vadd.f32 0.0, %v3875
        %v3877 = vpop.f32.mrb[0].mxu0
        %v3878 = vadd.f32 0.0, %v3877
        %3879 = vmatprep.mubr.f32.mxu0 0.0
        %3880 = vmatmul.mubr.f32.gmra.mrb[0].mxu0 %v1121
        %v3881 = vpop.f32.mrb[0].mxu0
        %v3882 = vadd.f32 0.0, %v3881
        %v3883 = vpop.f32.mrb[0].mxu0
        %v3884 = vadd.f32 0.0, %v3883
        %3885 = vmatprep.mubr.f32.mxu0 0.0
        %3886 = vmatmul.mubr.f32.gmra.mrb[0].mxu0 %v1124
        %v3887 = vpop.f32.mrb[0].mxu0
        %v3888 = vadd.f32 0.0, %v3887
        %v3889 = vpop.f32.mrb[0].mxu0
        %v3890 = vadd.f32 0.0, %v3889
        %3891 = vmatprep.mubr.f32.mxu0 0.0
        %3892 = vmatmul.mubr.f32.gmra.mrb[0].mxu0 %v1127
        %v3893 = vpop.f32.mrb[0].mxu0
        %v3894 = vadd.f32 0.0, %v3893
        %v3895 = vpop.f32.mrb[0].mxu0
        %v3896 = vadd.f32 0.0, %v3895
        %3897 = vmatprep.mubr.f32.mxu0 0.0
        %3898 = vmatmul.mubr.f32.gmra.mrb[0].mxu0 %v1130
        %v3899 = vpop.f32.mrb[0].mxu0
        %v3900 = vadd.f32 0.0, %v3899
        %v3901 = vpop.f32.mrb[0].mxu0
        %v3902 = vadd.f32 0.0, %v3901
        %3903 = vmatprep.mubr.f32.mxu0 0.0
        %3904 = vmatmul.mubr.f32.gmra.mrb[0].mxu0 %v1133
        %v3905 = vpop.f32.mrb[0].mxu0
        %v3906 = vadd.f32 0.0, %v3905
        %v3907 = vpop.f32.mrb[0].mxu0
        %v3908 = vadd.f32 0.0, %v3907
        %3909 = vmatprep.mubr.f32.mxu0 0.0
        %3910 = vmatmul.mubr.f32.gmra.mrb[0].mxu0 %v1136
        %v3911 = vpop.f32.mrb[0].mxu0
        %v3912 = vadd.f32 0.0, %v3911
        %v3913 = vpop.f32.mrb[0].mxu0
        %v3914 = vadd.f32 0.0, %v3913
        %3915 = vmatprep.mubr.f32.mxu0 0.0
        %3916 = vmatmul.mubr.f32.gmra.mrb[0].mxu0 %v1139
        %v3917 = vpop.f32.mrb[0].mxu0
        %v3918 = vadd.f32 0.0, %v3917
        %v3919 = vpop.f32.mrb[0].mxu0
        %v3920 = vadd.f32 0.0, %v3919
        %3921 = vmatprep.mubr.f32.mxu0 0.0
        %3922 = vmatmul.mubr.f32.gmra.mrb[0].mxu0 %v1142
        %v3923 = vpop.f32.mrb[0].mxu0
        %v3924 = vadd.f32 0.0, %v3923
        %v3925 = vpop.f32.mrb[0].mxu0
        %v3926 = vadd.f32 0.0, %v3925
        %3927 = vmatprep.mubr.f32.mxu0 0.0
        %3928 = vmatmul.mubr.f32.gmra.mrb[0].mxu0 %v1145
        %v3929 = vpop.f32.mrb[0].mxu0
        %v3930 = vadd.f32 0.0, %v3929
        %v3931 = vpop.f32.mrb[0].mxu0
        %v3932 = vadd.f32 0.0, %v3931
        %3933 = vmatprep.mubr.f32.mxu0 0.0
        %3934 = vmatmul.mubr.f32.gmra.mrb[0].mxu0 %v1148
        %v3935 = vpop.f32.mrb[0].mxu0
        %v3936 = vadd.f32 0.0, %v3935
        %v3937 = vpop.f32.mrb[0].mxu0
        %v3938 = vadd.f32 0.0, %v3937
        %3939 = vmatprep.mubr.f32.mxu0 0.0
        %3940 = vmatmul.mubr.f32.gmra.mrb[0].mxu0 %v1151
        %v3941 = vpop.f32.mrb[0].mxu0
        %v3942 = vadd.f32 0.0, %v3941
        %v3943 = vpop.f32.mrb[0].mxu0
        %v3944 = vadd.f32 0.0, %v3943
        %3945 = vmatprep.mubr.f32.mxu0 0.0
        %3946 = vmatmul.mubr.f32.gmra.mrb[0].mxu0 %v1154
        %v3947 = vpop.f32.mrb[0].mxu0
        %v3948 = vadd.f32 0.0, %v3947
        %v3949 = vpop.f32.mrb[0].mxu0
        %v3950 = vadd.f32 0.0, %v3949
        %3951 = vmatprep.mubr.f32.mxu0 0.0
        %3952 = vmatmul.mubr.f32.gmra.mrb[0].mxu0 %v1157
        %v3953 = vpop.f32.mrb[0].mxu0
        %v3954 = vadd.f32 0.0, %v3953
        %v3955 = vpop.f32.mrb[0].mxu0
        %v3956 = vadd.f32 0.0, %v3955
        %3957 = vmatprep.mubr.f32.mxu0 0.0
        %3958 = vmatmul.mubr.f32.gmra.mrb[0].mxu0 %v1160
        %v3959 = vpop.f32.mrb[0].mxu0
        %v3960 = vadd.f32 0.0, %v3959
        %v3961 = vpop.f32.mrb[0].mxu0
        %v3962 = vadd.f32 0.0, %v3961
        %3963 = vmatprep.mubr.f32.mxu0 0.0
        %3964 = vmatmul.mubr.f32.gmra.mrb[0].mxu0 %v1163
        %v3965 = vpop.f32.mrb[0].mxu0
        %v3966 = vadd.f32 0.0, %v3965
        %v3967 = vpop.f32.mrb[0].mxu0
        %v3968 = vadd.f32 0.0, %v3967
        %3969 = vmatprep.mubr.f32.mxu0 0.0
        %3970 = vmatmul.mubr.f32.gmra.mrb[0].mxu0 %v1166
        %v3971 = vpop.f32.mrb[0].mxu0
        %v3972 = vadd.f32 0.0, %v3971
        %v3973 = vpop.f32.mrb[0].mxu0
        %v3974 = vadd.f32 0.0, %v3973
        %3975 = vmatprep.mubr.f32.mxu0 0.0
        %3976 = vmatmul.mubr.f32.gmra.mrb[0].mxu0 %v1169
        %v3977 = vpop.f32.mrb[0].mxu0
        %v3978 = vadd.f32 0.0, %v3977
        %v3979 = vpop.f32.mrb[0].mxu0
        %v3980 = vadd.f32 0.0, %v3979
        %3981 = vmatprep.mubr.f32.mxu0 0.0
        %3982 = vmatmul.mubr.f32.gmra.mrb[0].mxu0 %v1172
        %v3983 = vpop.f32.mrb[0].mxu0
        %v3984 = vadd.f32 0.0, %v3983
        %v3985 = vpop.f32.mrb[0].mxu0
        %v3986 = vadd.f32 0.0, %v3985
        %3987 = vmatprep.mubr.f32.mxu0 0.0
        %3988 = vmatmul.mubr.f32.gmra.mrb[0].mxu0 %v1175
        %v3989 = vpop.f32.mrb[0].mxu0
        %v3990 = vadd.f32 0.0, %v3989
        %v3991 = vpop.f32.mrb[0].mxu0
        %v3992 = vadd.f32 0.0, %v3991
        %3993 = vmatprep.mubr.f32.mxu0 0.0
        %3994 = vmatmul.mubr.f32.gmra.mrb[0].mxu0 %v1178
        %v3995 = vpop.f32.mrb[0].mxu0
        %v3996 = vadd.f32 0.0, %v3995
        %v3997 = vpop.f32.mrb[0].mxu0
        %v3998 = vadd.f32 0.0, %v3997
        %3999 = vmatprep.mubr.f32.mxu0 0.0
        %4000 = vmatmul.mubr.f32.gmra.mrb[0].mxu0 %v1181
        %v4001 = vpop.f32.mrb[0].mxu0
        %v4002 = vadd.f32 0.0, %v4001
        %v4003 = vpop.f32.mrb[0].mxu0
        %v4004 = vadd.f32 0.0, %v4003
        %4005 = vmatprep.mubr.f32.mxu0 0.0
        %4006 = vmatmul.mubr.f32.gmra.mrb[0].mxu0 %v1184
        %v4007 = vpop.f32.mrb[0].mxu0
        %v4008 = vadd.f32 0.0, %v4007
        %v4009 = vpop.f32.mrb[0].mxu0
        %v4010 = vadd.f32 0.0, %v4009
        %4011 = vmatprep.mubr.f32.mxu0 0.0
        %4012 = vmatmul.mubr.f32.gmra.mrb[0].mxu0 %v1187
        %v4013 = vpop.f32.mrb[0].mxu0
        %v4014 = vadd.f32 0.0, %v4013
        %v4015 = vpop.f32.mrb[0].mxu0
        %v4016 = vadd.f32 0.0, %v4015
        %4017 = vmatprep.mubr.f32.mxu0 0.0
        %4018 = vmatmul.mubr.f32.gmra.mrb[0].mxu0 %v1190
        %v4019 = vpop.f32.mrb[0].mxu0
        %v4020 = vadd.f32 0.0, %v4019
        %v4021 = vpop.f32.mrb[0].mxu0
        %v4022 = vadd.f32 0.0, %v4021
        %4023 = vmatprep.mubr.f32.mxu0 0.0
        %4024 = vmatmul.mubr.f32.gmra.mrb[0].mxu0 %v1193
        %v4025 = vpop.f32.mrb[0].mxu0
        %v4026 = vadd.f32 0.0, %v4025
        %v4027 = vpop.f32.mrb[0].mxu0
        %v4028 = vadd.f32 0.0, %v4027
        %4029 = vmatprep.mubr.f32.mxu0 0.0
        %4030 = vmatmul.mubr.f32.gmra.mrb[0].mxu0 %v1196
        %v4031 = vpop.f32.mrb[0].mxu0
        %v4032 = vadd.f32 0.0, %v4031
        %v4033 = vpop.f32.mrb[0].mxu0
        %v4034 = vadd.f32 0.0, %v4033
        %4035 = vmatprep.mubr.f32.mxu0 0.0
        %4036 = vmatmul.mubr.f32.gmra.mrb[0].mxu0 %v1199
        %v4037 = vpop.f32.mrb[0].mxu0
        %v4038 = vadd.f32 0.0, %v4037
        %v4039 = vpop.f32.mrb[0].mxu0
        %v4040 = vadd.f32 0.0, %v4039
        %4041 = vmatprep.mubr.f32.mxu0 0.0
        %4042 = vmatmul.mubr.f32.gmra.mrb[0].mxu0 %v1202
        %v4043 = vpop.f32.mrb[0].mxu0
        %v4044 = vadd.f32 0.0, %v4043
        %v4045 = vpop.f32.mrb[0].mxu0
        %v4046 = vadd.f32 0.0, %v4045
        %4047 = vmatprep.mubr.f32.mxu0 0.0
        %4048 = vmatmul.mubr.f32.gmra.mrb[0].mxu0 %v1205
        %v4049 = vpop.f32.mrb[0].mxu0
        %v4050 = vadd.f32 0.0, %v4049
        %v4051 = vpop.f32.mrb[0].mxu0
        %v4052 = vadd.f32 0.0, %v4051
        %4053 = vmatprep.mubr.f32.mxu0 0.0
        %4054 = vmatmul.mubr.f32.gmra.mrb[0].mxu0 %v1208
        %v4055 = vpop.f32.mrb[0].mxu0
        %v4056 = vadd.f32 0.0, %v4055
        %v4057 = vpop.f32.mrb[0].mxu0
        %v4058 = vadd.f32 0.0, %v4057
        %4059 = vmatprep.mubr.f32.mxu0 0.0
        %4060 = vmatmul.mubr.f32.gmra.mrb[0].mxu0 %v1211
        %v4061 = vpop.f32.mrb[0].mxu0
        %v4062 = vadd.f32 0.0, %v4061
        %v4063 = vpop.f32.mrb[0].mxu0
        %v4064 = vadd.f32 0.0, %v4063
        %4065 = vmatprep.mubr.f32.mxu0 0.0
        %4066 = vmatmul.mubr.f32.gmra.mrb[0].mxu0 %v1214
        %v4067 = vpop.f32.mrb[0].mxu0
        %v4068 = vadd.f32 0.0, %v4067
        %v4069 = vpop.f32.mrb[0].mxu0
        %v4070 = vadd.f32 0.0, %v4069
        %4071 = vmatprep.mubr.f32.mxu0 0.0
        %4072 = vmatmul.mubr.f32.gmra.mrb[0].mxu0 %v1217
        %v4073 = vpop.f32.mrb[0].mxu0
        %v4074 = vadd.f32 0.0, %v4073
        %v4075 = vpop.f32.mrb[0].mxu0
        %v4076 = vadd.f32 0.0, %v4075
        %4077 = vmatprep.mubr.f32.mxu0 0.0
        %4078 = vmatmul.mubr.f32.gmra.mrb[0].mxu0 %v1220
        %v4079 = vpop.f32.mrb[0].mxu0
        %v4080 = vadd.f32 0.0, %v4079
        %v4081 = vpop.f32.mrb[0].mxu0
        %v4082 = vadd.f32 0.0, %v4081
        %4083 = vmatprep.mubr.f32.mxu0 0.0
        %4084 = vmatmul.mubr.f32.gmra.mrb[0].mxu0 %v1223
        %v4085 = vpop.f32.mrb[0].mxu0
        %v4086 = vadd.f32 0.0, %v4085
        %v4087 = vpop.f32.mrb[0].mxu0
        %v4088 = vadd.f32 0.0, %v4087
        %4089 = vmatprep.mubr.f32.mxu0 0.0
        %4090 = vmatmul.mubr.f32.gmra.mrb[0].mxu0 %v1226
        %v4091 = vpop.f32.mrb[0].mxu0
        %v4092 = vadd.f32 0.0, %v4091
        %v4093 = vpop.f32.mrb[0].mxu0
        %v4094 = vadd.f32 0.0, %v4093
        %4095 = vmatprep.mubr.f32.mxu0 0.0
        %4096 = vmatmul.mubr.f32.gmra.mrb[0].mxu0 %v1229
        %v4097 = vpop.f32.mrb[0].mxu0
        %v4098 = vadd.f32 0.0, %v4097
        %v4099 = vpop.f32.mrb[0].mxu0
        %v4100 = vadd.f32 0.0, %v4099
        %4101 = vmatprep.mubr.f32.mxu0 0.0
        %4102 = vmatmul.mubr.f32.gmra.mrb[0].mxu0 %v1232
        %v4103 = vpop.f32.mrb[0].mxu0
        %v4104 = vadd.f32 0.0, %v4103
        %v4105 = vpop.f32.mrb[0].mxu0
        %v4106 = vadd.f32 0.0, %v4105
        %4107 = vmatprep.mubr.f32.mxu0 0.0
        %4108 = vmatmul.mubr.f32.gmra.mrb[0].mxu0 %v1235
        %v4109 = vpop.f32.mrb[0].mxu0
        %v4110 = vadd.f32 0.0, %v4109
        %v4111 = vpop.f32.mrb[0].mxu0
        %v4112 = vadd.f32 0.0, %v4111
        %4113 = vmatprep.mubr.f32.mxu0 0.0
        %4114 = vmatmul.mubr.f32.gmra.mrb[0].mxu0 %v1238
        %v4115 = vpop.f32.mrb[0].mxu0
        %v4116 = vadd.f32 0.0, %v4115
        %v4117 = vpop.f32.mrb[0].mxu0
        %v4118 = vadd.f32 0.0, %v4117
        %4119 = vmatprep.mubr.f32.mxu0 0.0
        %4120 = vmatmul.mubr.f32.gmra.mrb[0].mxu0 %v1241
        %v4121 = vpop.f32.mrb[0].mxu0
        %v4122 = vadd.f32 0.0, %v4121
        %v4123 = vpop.f32.mrb[0].mxu0
        %v4124 = vadd.f32 0.0, %v4123
        %4125 = vmatprep.mubr.f32.mxu0 0.0
        %4126 = vmatmul.mubr.f32.gmra.mrb[0].mxu0 %v1244
        %v4127 = vpop.f32.mrb[0].mxu0
        %v4128 = vadd.f32 0.0, %v4127
        %v4129 = vpop.f32.mrb[0].mxu0
        %v4130 = vadd.f32 0.0, %v4129
        %4131 = vmatprep.mubr.f32.mxu0 0.0
        %4132 = vmatmul.mubr.f32.gmra.mrb[0].mxu0 %v1247
        %v4133 = vpop.f32.mrb[0].mxu0
        %v4134 = vadd.f32 0.0, %v4133
        %v4135 = vpop.f32.mrb[0].mxu0
        %v4136 = vadd.f32 0.0, %v4135
        %4137 = vmatprep.mubr.f32.mxu0 0.0
        %4138 = vmatmul.mubr.f32.gmra.mrb[0].mxu0 %v1250
        %v4139 = vpop.f32.mrb[0].mxu0
        %v4140 = vadd.f32 0.0, %v4139
        %v4141 = vpop.f32.mrb[0].mxu0
        %v4142 = vadd.f32 0.0, %v4141
        %4143 = vmatprep.mubr.f32.mxu0 0.0
        %4144 = vmatmul.mubr.f32.gmra.mrb[0].mxu0 %v1253
        %v4145 = vpop.f32.mrb[0].mxu0
        %v4146 = vadd.f32 0.0, %v4145
        %v4147 = vpop.f32.mrb[0].mxu0
        %v4148 = vadd.f32 0.0, %v4147
        %4149 = vdwg.mxu0
        %4150 = vmatprep.subr.mxu0 %v570
        %4151 = vmatpush1.msra.mxu0 %v568
        %4152 = vmatprep.subr.mxu0 %v576
        %4153 = vmatpush1.msra.mxu0 %v574
        %4154 = vmatprep.subr.mxu0 0.0
        %4155 = vmatpush1.msra.mxu0 0.0
        %4156 = vmatprep.subr.mxu0 0.0
        %4157 = vmatpush1.msra.mxu0 0.0
        %4158 = vmatprep.subr.mxu0 0.0
        %4159 = vmatpush1.msra.mxu0 0.0
        %4160 = vmatprep.subr.mxu0 0.0
        %4161 = vmatpush1.msra.mxu0 0.0
        %4162 = vmatprep.subr.mxu0 0.0
        %4163 = vmatpush1.msra.mxu0 0.0
        %4164 = vmatprep.subr.mxu0 0.0
        %4165 = vmatpush1.msra.mxu0 0.0
        %4166 = vmatprep.subr.mxu0 0.0
        %4167 = vmatpush1.msra.mxu0 0.0
        %4168 = vmatprep.subr.mxu0 0.0
        %4169 = vmatpush1.msra.mxu0 0.0
        %4170 = vmatprep.subr.mxu0 0.0
        %4171 = vmatpush1.msra.mxu0 0.0
        %4172 = vmatprep.subr.mxu0 0.0
        %4173 = vmatpush1.msra.mxu0 0.0
        %4174 = vmatprep.subr.mxu0 0.0
        %4175 = vmatpush1.msra.mxu0 0.0
        %4176 = vmatprep.subr.mxu0 0.0
        %4177 = vmatpush1.msra.mxu0 0.0
        %4178 = vmatprep.subr.mxu0 0.0
        %4179 = vmatpush1.msra.mxu0 0.0
        %4180 = vmatprep.subr.mxu0 0.0
        %4181 = vmatpush1.msra.mxu0 0.0
        %4182 = vmatprep.subr.mxu0 0.0
        %4183 = vmatpush1.msra.mxu0 0.0
        %4184 = vmatprep.subr.mxu0 0.0
        %4185 = vmatpush1.msra.mxu0 0.0
        %4186 = vmatprep.subr.mxu0 0.0
        %4187 = vmatpush1.msra.mxu0 0.0
        %4188 = vmatprep.subr.mxu0 0.0
        %4189 = vmatpush1.msra.mxu0 0.0
        %4190 = vmatprep.subr.mxu0 0.0
        %4191 = vmatpush1.msra.mxu0 0.0
        %4192 = vmatprep.subr.mxu0 0.0
        %4193 = vmatpush1.msra.mxu0 0.0
        %4194 = vmatprep.subr.mxu0 0.0
        %4195 = vmatpush1.msra.mxu0 0.0
        %4196 = vmatprep.subr.mxu0 0.0
        %4197 = vmatpush1.msra.mxu0 0.0
        %4198 = vmatprep.subr.mxu0 0.0
        %4199 = vmatpush1.msra.mxu0 0.0
        %4200 = vmatprep.subr.mxu0 0.0
        %4201 = vmatpush1.msra.mxu0 0.0
        %4202 = vmatprep.subr.mxu0 0.0
        %4203 = vmatpush1.msra.mxu0 0.0
        %4204 = vmatprep.subr.mxu0 0.0
        %4205 = vmatpush1.msra.mxu0 0.0
        %4206 = vmatprep.subr.mxu0 0.0
        %4207 = vmatpush1.msra.mxu0 0.0
        %4208 = vmatprep.subr.mxu0 0.0
        %4209 = vmatpush1.msra.mxu0 0.0
        %4210 = vmatprep.subr.mxu0 0.0
        %4211 = vmatpush1.msra.mxu0 0.0
        %4212 = vmatprep.subr.mxu0 0.0
        %4213 = vmatpush1.msra.mxu0 0.0
        %4214 = vmatprep.mubr.f32.mxu0 0.0
        %4215 = vmatmul.mubr.f32.gmra.mrb[0].mxu0 %v806
        %v4216 = vpop.f32.mrb[0].mxu0
        %v4217 = vadd.f32 0.0, %v4216
        %v4218 = vpop.f32.mrb[0].mxu0
        %v4219 = vadd.f32 0.0, %v4218
        %4220 = vmatprep.mubr.f32.mxu0 0.0
        %4221 = vmatmul.mubr.f32.gmra.mrb[0].mxu0 %v809
        %v4222 = vpop.f32.mrb[0].mxu0
        %v4223 = vadd.f32 0.0, %v4222
        %v4224 = vpop.f32.mrb[0].mxu0
        %v4225 = vadd.f32 0.0, %v4224
        %4226 = vmatprep.mubr.f32.mxu0 0.0
        %4227 = vmatmul.mubr.f32.gmra.mrb[0].mxu0 %v812
        %v4228 = vpop.f32.mrb[0].mxu0
        %v4229 = vadd.f32 0.0, %v4228
        %v4230 = vpop.f32.mrb[0].mxu0
        %v4231 = vadd.f32 0.0, %v4230
        %4232 = vmatprep.mubr.f32.mxu0 0.0
        %4233 = vmatmul.mubr.f32.gmra.mrb[0].mxu0 %v815
        %v4234 = vpop.f32.mrb[0].mxu0
        %v4235 = vadd.f32 0.0, %v4234
        %v4236 = vpop.f32.mrb[0].mxu0
        %v4237 = vadd.f32 0.0, %v4236
        %4238 = vmatprep.mubr.f32.mxu0 0.0
        %4239 = vmatmul.mubr.f32.gmra.mrb[0].mxu0 %v818
        %v4240 = vpop.f32.mrb[0].mxu0
        %v4241 = vadd.f32 0.0, %v4240
        %v4242 = vpop.f32.mrb[0].mxu0
        %v4243 = vadd.f32 0.0, %v4242
        %4244 = vmatprep.mubr.f32.mxu0 0.0
        %4245 = vmatmul.mubr.f32.gmra.mrb[0].mxu0 %v821
        %v4246 = vpop.f32.mrb[0].mxu0
        %v4247 = vadd.f32 0.0, %v4246
        %v4248 = vpop.f32.mrb[0].mxu0
        %v4249 = vadd.f32 0.0, %v4248
        %4250 = vmatprep.mubr.f32.mxu0 0.0
        %4251 = vmatmul.mubr.f32.gmra.mrb[0].mxu0 %v824
        %v4252 = vpop.f32.mrb[0].mxu0
        %v4253 = vadd.f32 0.0, %v4252
        %v4254 = vpop.f32.mrb[0].mxu0
        %v4255 = vadd.f32 0.0, %v4254
        %4256 = vmatprep.mubr.f32.mxu0 0.0
        %4257 = vmatmul.mubr.f32.gmra.mrb[0].mxu0 %v827
        %v4258 = vpop.f32.mrb[0].mxu0
        %v4259 = vadd.f32 0.0, %v4258
        %v4260 = vpop.f32.mrb[0].mxu0
        %v4261 = vadd.f32 0.0, %v4260
        %4262 = vmatprep.mubr.f32.mxu0 0.0
        %4263 = vmatmul.mubr.f32.gmra.mrb[0].mxu0 %v830
        %v4264 = vpop.f32.mrb[0].mxu0
        %v4265 = vadd.f32 0.0, %v4264
        %v4266 = vpop.f32.mrb[0].mxu0
        %v4267 = vadd.f32 0.0, %v4266
        %4268 = vmatprep.mubr.f32.mxu0 0.0
        %4269 = vmatmul.mubr.f32.gmra.mrb[0].mxu0 %v833
        %v4270 = vpop.f32.mrb[0].mxu0
        %v4271 = vadd.f32 0.0, %v4270
        %v4272 = vpop.f32.mrb[0].mxu0
        %v4273 = vadd.f32 0.0, %v4272
        %4274 = vmatprep.mubr.f32.mxu0 0.0
        %4275 = vmatmul.mubr.f32.gmra.mrb[0].mxu0 %v836
        %v4276 = vpop.f32.mrb[0].mxu0
        %v4277 = vadd.f32 0.0, %v4276
        %v4278 = vpop.f32.mrb[0].mxu0
        %v4279 = vadd.f32 0.0, %v4278
        %4280 = vmatprep.mubr.f32.mxu0 0.0
        %4281 = vmatmul.mubr.f32.gmra.mrb[0].mxu0 %v839
        %v4282 = vpop.f32.mrb[0].mxu0
        %v4283 = vadd.f32 0.0, %v4282
        %v4284 = vpop.f32.mrb[0].mxu0
        %v4285 = vadd.f32 0.0, %v4284
        %4286 = vmatprep.mubr.f32.mxu0 0.0
        %4287 = vmatmul.mubr.f32.gmra.mrb[0].mxu0 %v842
        %v4288 = vpop.f32.mrb[0].mxu0
        %v4289 = vadd.f32 0.0, %v4288
        %v4290 = vpop.f32.mrb[0].mxu0
        %v4291 = vadd.f32 0.0, %v4290
        %4292 = vmatprep.mubr.f32.mxu0 0.0
        %4293 = vmatmul.mubr.f32.gmra.mrb[0].mxu0 %v845
        %v4294 = vpop.f32.mrb[0].mxu0
        %v4295 = vadd.f32 0.0, %v4294
        %v4296 = vpop.f32.mrb[0].mxu0
        %v4297 = vadd.f32 0.0, %v4296
        %4298 = vmatprep.mubr.f32.mxu0 0.0
        %4299 = vmatmul.mubr.f32.gmra.mrb[0].mxu0 %v848
        %v4300 = vpop.f32.mrb[0].mxu0
        %v4301 = vadd.f32 0.0, %v4300
        %v4302 = vpop.f32.mrb[0].mxu0
        %v4303 = vadd.f32 0.0, %v4302
        %4304 = vmatprep.mubr.f32.mxu0 0.0
        %4305 = vmatmul.mubr.f32.gmra.mrb[0].mxu0 %v851
        %v4306 = vpop.f32.mrb[0].mxu0
        %v4307 = vadd.f32 0.0, %v4306
        %v4308 = vpop.f32.mrb[0].mxu0
        %v4309 = vadd.f32 0.0, %v4308
        %4310 = vmatprep.mubr.f32.mxu0 0.0
        %4311 = vmatmul.mubr.f32.gmra.mrb[0].mxu0 %v854
        %v4312 = vpop.f32.mrb[0].mxu0
        %v4313 = vadd.f32 0.0, %v4312
        %v4314 = vpop.f32.mrb[0].mxu0
        %v4315 = vadd.f32 0.0, %v4314
        %4316 = vmatprep.mubr.f32.mxu0 0.0
        %4317 = vmatmul.mubr.f32.gmra.mrb[0].mxu0 %v857
        %v4318 = vpop.f32.mrb[0].mxu0
        %v4319 = vadd.f32 0.0, %v4318
        %v4320 = vpop.f32.mrb[0].mxu0
        %v4321 = vadd.f32 0.0, %v4320
        %4322 = vmatprep.mubr.f32.mxu0 0.0
        %4323 = vmatmul.mubr.f32.gmra.mrb[0].mxu0 %v860
        %v4324 = vpop.f32.mrb[0].mxu0
        %v4325 = vadd.f32 0.0, %v4324
        %v4326 = vpop.f32.mrb[0].mxu0
        %v4327 = vadd.f32 0.0, %v4326
        %4328 = vmatprep.mubr.f32.mxu0 0.0
        %4329 = vmatmul.mubr.f32.gmra.mrb[0].mxu0 %v863
        %v4330 = vpop.f32.mrb[0].mxu0
        %v4331 = vadd.f32 0.0, %v4330
        %v4332 = vpop.f32.mrb[0].mxu0
        %v4333 = vadd.f32 0.0, %v4332
        %4334 = vmatprep.mubr.f32.mxu0 0.0
        %4335 = vmatmul.mubr.f32.gmra.mrb[0].mxu0 %v866
        %v4336 = vpop.f32.mrb[0].mxu0
        %v4337 = vadd.f32 0.0, %v4336
        %v4338 = vpop.f32.mrb[0].mxu0
        %v4339 = vadd.f32 0.0, %v4338
        %4340 = vmatprep.mubr.f32.mxu0 0.0
        %4341 = vmatmul.mubr.f32.gmra.mrb[0].mxu0 %v869
        %v4342 = vpop.f32.mrb[0].mxu0
        %v4343 = vadd.f32 0.0, %v4342
        %v4344 = vpop.f32.mrb[0].mxu0
        %v4345 = vadd.f32 0.0, %v4344
        %4346 = vmatprep.mubr.f32.mxu0 0.0
        %4347 = vmatmul.mubr.f32.gmra.mrb[0].mxu0 %v872
        %v4348 = vpop.f32.mrb[0].mxu0
        %v4349 = vadd.f32 0.0, %v4348
        %v4350 = vpop.f32.mrb[0].mxu0
        %v4351 = vadd.f32 0.0, %v4350
        %4352 = vmatprep.mubr.f32.mxu0 0.0
        %4353 = vmatmul.mubr.f32.gmra.mrb[0].mxu0 %v875
        %v4354 = vpop.f32.mrb[0].mxu0
        %v4355 = vadd.f32 0.0, %v4354
        %v4356 = vpop.f32.mrb[0].mxu0
        %v4357 = vadd.f32 0.0, %v4356
        %4358 = vmatprep.mubr.f32.mxu0 0.0
        %4359 = vmatmul.mubr.f32.gmra.mrb[0].mxu0 %v878
        %v4360 = vpop.f32.mrb[0].mxu0
        %v4361 = vadd.f32 0.0, %v4360
        %v4362 = vpop.f32.mrb[0].mxu0
        %v4363 = vadd.f32 0.0, %v4362
        %4364 = vmatprep.mubr.f32.mxu0 0.0
        %4365 = vmatmul.mubr.f32.gmra.mrb[0].mxu0 %v881
        %v4366 = vpop.f32.mrb[0].mxu0
        %v4367 = vadd.f32 0.0, %v4366
        %v4368 = vpop.f32.mrb[0].mxu0
        %v4369 = vadd.f32 0.0, %v4368
        %4370 = vmatprep.mubr.f32.mxu0 0.0
        %4371 = vmatmul.mubr.f32.gmra.mrb[0].mxu0 %v884
        %v4372 = vpop.f32.mrb[0].mxu0
        %v4373 = vadd.f32 0.0, %v4372
        %v4374 = vpop.f32.mrb[0].mxu0
        %v4375 = vadd.f32 0.0, %v4374
        %4376 = vmatprep.mubr.f32.mxu0 0.0
        %4377 = vmatmul.mubr.f32.gmra.mrb[0].mxu0 %v887
        %v4378 = vpop.f32.mrb[0].mxu0
        %v4379 = vadd.f32 0.0, %v4378
        %v4380 = vpop.f32.mrb[0].mxu0
        %v4381 = vadd.f32 0.0, %v4380
        %4382 = vmatprep.mubr.f32.mxu0 0.0
        %4383 = vmatmul.mubr.f32.gmra.mrb[0].mxu0 %v890
        %v4384 = vpop.f32.mrb[0].mxu0
        %v4385 = vadd.f32 0.0, %v4384
        %v4386 = vpop.f32.mrb[0].mxu0
        %v4387 = vadd.f32 0.0, %v4386
        %4388 = vmatprep.mubr.f32.mxu0 0.0
        %4389 = vmatmul.mubr.f32.gmra.mrb[0].mxu0 %v893
        %v4390 = vpop.f32.mrb[0].mxu0
        %v4391 = vadd.f32 0.0, %v4390
        %v4392 = vpop.f32.mrb[0].mxu0
        %v4393 = vadd.f32 0.0, %v4392
        %4394 = vmatprep.mubr.f32.mxu0 0.0
        %4395 = vmatmul.mubr.f32.gmra.mrb[0].mxu0 %v896
        %v4396 = vpop.f32.mrb[0].mxu0
        %v4397 = vadd.f32 0.0, %v4396
        %v4398 = vpop.f32.mrb[0].mxu0
        %v4399 = vadd.f32 0.0, %v4398
        %4400 = vmatprep.mubr.f32.mxu0 0.0
        %4401 = vmatmul.mubr.f32.gmra.mrb[0].mxu0 %v899
        %v4402 = vpop.f32.mrb[0].mxu0
        %v4403 = vadd.f32 0.0, %v4402
        %v4404 = vpop.f32.mrb[0].mxu0
        %v4405 = vadd.f32 0.0, %v4404
        %4406 = vmatprep.mubr.f32.mxu0 0.0
        %4407 = vmatmul.mubr.f32.gmra.mrb[0].mxu0 %v902
        %v4408 = vpop.f32.mrb[0].mxu0
        %v4409 = vadd.f32 0.0, %v4408
        %v4410 = vpop.f32.mrb[0].mxu0
        %v4411 = vadd.f32 0.0, %v4410
        %4412 = vmatprep.mubr.f32.mxu0 0.0
        %4413 = vmatmul.mubr.f32.gmra.mrb[0].mxu0 %v905
        %v4414 = vpop.f32.mrb[0].mxu0
        %v4415 = vadd.f32 0.0, %v4414
        %v4416 = vpop.f32.mrb[0].mxu0
        %v4417 = vadd.f32 0.0, %v4416
        %4418 = vmatprep.mubr.f32.mxu0 0.0
        %4419 = vmatmul.mubr.f32.gmra.mrb[0].mxu0 %v908
        %v4420 = vpop.f32.mrb[0].mxu0
        %v4421 = vadd.f32 0.0, %v4420
        %v4422 = vpop.f32.mrb[0].mxu0
        %v4423 = vadd.f32 0.0, %v4422
        %4424 = vmatprep.mubr.f32.mxu0 0.0
        %4425 = vmatmul.mubr.f32.gmra.mrb[0].mxu0 %v911
        %v4426 = vpop.f32.mrb[0].mxu0
        %v4427 = vadd.f32 0.0, %v4426
        %v4428 = vpop.f32.mrb[0].mxu0
        %v4429 = vadd.f32 0.0, %v4428
        %4430 = vmatprep.mubr.f32.mxu0 0.0
        %4431 = vmatmul.mubr.f32.gmra.mrb[0].mxu0 %v914
        %v4432 = vpop.f32.mrb[0].mxu0
        %v4433 = vadd.f32 0.0, %v4432
        %v4434 = vpop.f32.mrb[0].mxu0
        %v4435 = vadd.f32 0.0, %v4434
        %4436 = vmatprep.mubr.f32.mxu0 0.0
        %4437 = vmatmul.mubr.f32.gmra.mrb[0].mxu0 %v917
        %v4438 = vpop.f32.mrb[0].mxu0
        %v4439 = vadd.f32 0.0, %v4438
        %v4440 = vpop.f32.mrb[0].mxu0
        %v4441 = vadd.f32 0.0, %v4440
        %4442 = vmatprep.mubr.f32.mxu0 0.0
        %4443 = vmatmul.mubr.f32.gmra.mrb[0].mxu0 %v920
        %v4444 = vpop.f32.mrb[0].mxu0
        %v4445 = vadd.f32 0.0, %v4444
        %v4446 = vpop.f32.mrb[0].mxu0
        %v4447 = vadd.f32 0.0, %v4446
        %4448 = vmatprep.mubr.f32.mxu0 0.0
        %4449 = vmatmul.mubr.f32.gmra.mrb[0].mxu0 %v923
        %v4450 = vpop.f32.mrb[0].mxu0
        %v4451 = vadd.f32 0.0, %v4450
        %v4452 = vpop.f32.mrb[0].mxu0
        %v4453 = vadd.f32 0.0, %v4452
        %4454 = vmatprep.mubr.f32.mxu0 0.0
        %4455 = vmatmul.mubr.f32.gmra.mrb[0].mxu0 %v926
        %v4456 = vpop.f32.mrb[0].mxu0
        %v4457 = vadd.f32 0.0, %v4456
        %v4458 = vpop.f32.mrb[0].mxu0
        %v4459 = vadd.f32 0.0, %v4458
        %4460 = vmatprep.mubr.f32.mxu0 0.0
        %4461 = vmatmul.mubr.f32.gmra.mrb[0].mxu0 %v929
        %v4462 = vpop.f32.mrb[0].mxu0
        %v4463 = vadd.f32 0.0, %v4462
        %v4464 = vpop.f32.mrb[0].mxu0
        %v4465 = vadd.f32 0.0, %v4464
        %4466 = vmatprep.mubr.f32.mxu0 0.0
        %4467 = vmatmul.mubr.f32.gmra.mrb[0].mxu0 %v932
        %v4468 = vpop.f32.mrb[0].mxu0
        %v4469 = vadd.f32 0.0, %v4468
        %v4470 = vpop.f32.mrb[0].mxu0
        %v4471 = vadd.f32 0.0, %v4470
        %4472 = vmatprep.mubr.f32.mxu0 0.0
        %4473 = vmatmul.mubr.f32.gmra.mrb[0].mxu0 %v935
        %v4474 = vpop.f32.mrb[0].mxu0
        %v4475 = vadd.f32 0.0, %v4474
        %v4476 = vpop.f32.mrb[0].mxu0
        %v4477 = vadd.f32 0.0, %v4476
        %4478 = vmatprep.mubr.f32.mxu0 0.0
        %4479 = vmatmul.mubr.f32.gmra.mrb[0].mxu0 %v938
        %v4480 = vpop.f32.mrb[0].mxu0
        %v4481 = vadd.f32 0.0, %v4480
        %v4482 = vpop.f32.mrb[0].mxu0
        %v4483 = vadd.f32 0.0, %v4482
        %4484 = vmatprep.mubr.f32.mxu0 0.0
        %4485 = vmatmul.mubr.f32.gmra.mrb[0].mxu0 %v941
        %v4486 = vpop.f32.mrb[0].mxu0
        %v4487 = vadd.f32 0.0, %v4486
        %v4488 = vpop.f32.mrb[0].mxu0
        %v4489 = vadd.f32 0.0, %v4488
        %4490 = vmatprep.mubr.f32.mxu0 0.0
        %4491 = vmatmul.mubr.f32.gmra.mrb[0].mxu0 %v944
        %v4492 = vpop.f32.mrb[0].mxu0
        %v4493 = vadd.f32 0.0, %v4492
        %v4494 = vpop.f32.mrb[0].mxu0
        %v4495 = vadd.f32 0.0, %v4494
        %4496 = vmatprep.mubr.f32.mxu0 0.0
        %4497 = vmatmul.mubr.f32.gmra.mrb[0].mxu0 %v947
        %v4498 = vpop.f32.mrb[0].mxu0
        %v4499 = vadd.f32 0.0, %v4498
        %v4500 = vpop.f32.mrb[0].mxu0
        %v4501 = vadd.f32 0.0, %v4500
        %4502 = vmatprep.mubr.f32.mxu0 0.0
        %4503 = vmatmul.mubr.f32.gmra.mrb[0].mxu0 %v950
        %v4504 = vpop.f32.mrb[0].mxu0
        %v4505 = vadd.f32 0.0, %v4504
        %v4506 = vpop.f32.mrb[0].mxu0
        %v4507 = vadd.f32 0.0, %v4506
        %4508 = vmatprep.mubr.f32.mxu0 0.0
        %4509 = vmatmul.mubr.f32.gmra.mrb[0].mxu0 %v953
        %v4510 = vpop.f32.mrb[0].mxu0
        %v4511 = vadd.f32 0.0, %v4510
        %v4512 = vpop.f32.mrb[0].mxu0
        %v4513 = vadd.f32 0.0, %v4512
        %4514 = vmatprep.mubr.f32.mxu0 0.0
        %4515 = vmatmul.mubr.f32.gmra.mrb[0].mxu0 %v956
        %v4516 = vpop.f32.mrb[0].mxu0
        %v4517 = vadd.f32 0.0, %v4516
        %v4518 = vpop.f32.mrb[0].mxu0
        %v4519 = vadd.f32 0.0, %v4518
        %4520 = vmatprep.mubr.f32.mxu0 0.0
        %4521 = vmatmul.mubr.f32.gmra.mrb[0].mxu0 %v959
        %v4522 = vpop.f32.mrb[0].mxu0
        %v4523 = vadd.f32 0.0, %v4522
        %v4524 = vpop.f32.mrb[0].mxu0
        %v4525 = vadd.f32 0.0, %v4524
        %4526 = vmatprep.mubr.f32.mxu0 0.0
        %4527 = vmatmul.mubr.f32.gmra.mrb[0].mxu0 %v962
        %v4528 = vpop.f32.mrb[0].mxu0
        %v4529 = vadd.f32 0.0, %v4528
        %v4530 = vpop.f32.mrb[0].mxu0
        %v4531 = vadd.f32 0.0, %v4530
        %4532 = vmatprep.mubr.f32.mxu0 0.0
        %4533 = vmatmul.mubr.f32.gmra.mrb[0].mxu0 %v965
        %v4534 = vpop.f32.mrb[0].mxu0
        %v4535 = vadd.f32 0.0, %v4534
        %v4536 = vpop.f32.mrb[0].mxu0
        %v4537 = vadd.f32 0.0, %v4536
        %4538 = vmatprep.mubr.f32.mxu0 0.0
        %4539 = vmatmul.mubr.f32.gmra.mrb[0].mxu0 %v968
        %v4540 = vpop.f32.mrb[0].mxu0
        %v4541 = vadd.f32 0.0, %v4540
        %v4542 = vpop.f32.mrb[0].mxu0
        %v4543 = vadd.f32 0.0, %v4542
        %4544 = vmatprep.mubr.f32.mxu0 0.0
        %4545 = vmatmul.mubr.f32.gmra.mrb[0].mxu0 %v971
        %v4546 = vpop.f32.mrb[0].mxu0
        %v4547 = vadd.f32 0.0, %v4546
        %v4548 = vpop.f32.mrb[0].mxu0
        %v4549 = vadd.f32 0.0, %v4548
        %4550 = vmatprep.mubr.f32.mxu0 0.0
        %4551 = vmatmul.mubr.f32.gmra.mrb[0].mxu0 %v974
        %v4552 = vpop.f32.mrb[0].mxu0
        %v4553 = vadd.f32 0.0, %v4552
        %v4554 = vpop.f32.mrb[0].mxu0
        %v4555 = vadd.f32 0.0, %v4554
        %4556 = vmatprep.mubr.f32.mxu0 0.0
        %4557 = vmatmul.mubr.f32.gmra.mrb[0].mxu0 %v977
        %v4558 = vpop.f32.mrb[0].mxu0
        %v4559 = vadd.f32 0.0, %v4558
        %v4560 = vpop.f32.mrb[0].mxu0
        %v4561 = vadd.f32 0.0, %v4560
        %4562 = vmatprep.mubr.f32.mxu0 0.0
        %4563 = vmatmul.mubr.f32.gmra.mrb[0].mxu0 %v980
        %v4564 = vpop.f32.mrb[0].mxu0
        %v4565 = vadd.f32 0.0, %v4564
        %v4566 = vpop.f32.mrb[0].mxu0
        %v4567 = vadd.f32 0.0, %v4566
        %4568 = vmatprep.mubr.f32.mxu0 0.0
        %4569 = vmatmul.mubr.f32.gmra.mrb[0].mxu0 %v983
        %v4570 = vpop.f32.mrb[0].mxu0
        %v4571 = vadd.f32 0.0, %v4570
        %v4572 = vpop.f32.mrb[0].mxu0
        %v4573 = vadd.f32 0.0, %v4572
        %4574 = vmatprep.mubr.f32.mxu0 0.0
        %4575 = vmatmul.mubr.f32.gmra.mrb[0].mxu0 %v986
        %v4576 = vpop.f32.mrb[0].mxu0
        %v4577 = vadd.f32 0.0, %v4576
        %v4578 = vpop.f32.mrb[0].mxu0
        %v4579 = vadd.f32 0.0, %v4578
        %4580 = vmatprep.mubr.f32.mxu0 0.0
        %4581 = vmatmul.mubr.f32.gmra.mrb[0].mxu0 %v989
        %v4582 = vpop.f32.mrb[0].mxu0
        %v4583 = vadd.f32 0.0, %v4582
        %v4584 = vpop.f32.mrb[0].mxu0
        %v4585 = vadd.f32 0.0, %v4584
        %4586 = vmatprep.mubr.f32.mxu0 0.0
        %4587 = vmatmul.mubr.f32.gmra.mrb[0].mxu0 %v992
        %v4588 = vpop.f32.mrb[0].mxu0
        %v4589 = vadd.f32 0.0, %v4588
        %v4590 = vpop.f32.mrb[0].mxu0
        %v4591 = vadd.f32 0.0, %v4590
        %4592 = vmatprep.mubr.f32.mxu0 0.0
        %4593 = vmatmul.mubr.f32.gmra.mrb[0].mxu0 %v995
        %v4594 = vpop.f32.mrb[0].mxu0
        %v4595 = vadd.f32 0.0, %v4594
        %v4596 = vpop.f32.mrb[0].mxu0
        %v4597 = vadd.f32 0.0, %v4596
        %4598 = vmatprep.mubr.f32.mxu0 0.0
        %4599 = vmatmul.mubr.f32.gmra.mrb[0].mxu0 %v998
        %v4600 = vpop.f32.mrb[0].mxu0
        %v4601 = vadd.f32 0.0, %v4600
        %v4602 = vpop.f32.mrb[0].mxu0
        %v4603 = vadd.f32 0.0, %v4602
        %4604 = vmatprep.mubr.f32.mxu0 0.0
        %4605 = vmatmul.mubr.f32.gmra.mrb[0].mxu0 %v1001
        %v4606 = vpop.f32.mrb[0].mxu0
        %v4607 = vadd.f32 0.0, %v4606
        %v4608 = vpop.f32.mrb[0].mxu0
        %v4609 = vadd.f32 0.0, %v4608
        %4610 = vmatprep.mubr.f32.mxu0 0.0
        %4611 = vmatmul.mubr.f32.gmra.mrb[0].mxu0 %v1004
        %v4612 = vpop.f32.mrb[0].mxu0
        %v4613 = vadd.f32 0.0, %v4612
        %v4614 = vpop.f32.mrb[0].mxu0
        %v4615 = vadd.f32 0.0, %v4614
        %4616 = vmatprep.mubr.f32.mxu0 0.0
        %4617 = vmatmul.mubr.f32.gmra.mrb[0].mxu0 %v1007
        %v4618 = vpop.f32.mrb[0].mxu0
        %v4619 = vadd.f32 0.0, %v4618
        %v4620 = vpop.f32.mrb[0].mxu0
        %v4621 = vadd.f32 0.0, %v4620
        %4622 = vmatprep.mubr.f32.mxu0 0.0
        %4623 = vmatmul.mubr.f32.gmra.mrb[0].mxu0 %v1010
        %v4624 = vpop.f32.mrb[0].mxu0
        %v4625 = vadd.f32 0.0, %v4624
        %v4626 = vpop.f32.mrb[0].mxu0
        %v4627 = vadd.f32 0.0, %v4626
        %4628 = vmatprep.mubr.f32.mxu0 0.0
        %4629 = vmatmul.mubr.f32.gmra.mrb[0].mxu0 %v1013
        %v4630 = vpop.f32.mrb[0].mxu0
        %v4631 = vadd.f32 0.0, %v4630
        %v4632 = vpop.f32.mrb[0].mxu0
        %v4633 = vadd.f32 0.0, %v4632
        %4634 = vmatprep.mubr.f32.mxu0 0.0
        %4635 = vmatmul.mubr.f32.gmra.mrb[0].mxu0 %v1016
        %v4636 = vpop.f32.mrb[0].mxu0
        %v4637 = vadd.f32 0.0, %v4636
        %v4638 = vpop.f32.mrb[0].mxu0
        %v4639 = vadd.f32 0.0, %v4638
        %4640 = vmatprep.mubr.f32.mxu0 0.0
        %4641 = vmatmul.mubr.f32.gmra.mrb[0].mxu0 %v1019
        %v4642 = vpop.f32.mrb[0].mxu0
        %v4643 = vadd.f32 0.0, %v4642
        %v4644 = vpop.f32.mrb[0].mxu0
        %v4645 = vadd.f32 0.0, %v4644
        %4646 = vmatprep.mubr.f32.mxu0 0.0
        %4647 = vmatmul.mubr.f32.gmra.mrb[0].mxu0 %v1022
        %v4648 = vpop.f32.mrb[0].mxu0
        %v4649 = vadd.f32 0.0, %v4648
        %v4650 = vpop.f32.mrb[0].mxu0
        %v4651 = vadd.f32 0.0, %v4650
        %4652 = vmatprep.mubr.f32.mxu0 0.0
        %4653 = vmatmul.mubr.f32.gmra.mrb[0].mxu0 %v1025
        %v4654 = vpop.f32.mrb[0].mxu0
        %v4655 = vadd.f32 0.0, %v4654
        %v4656 = vpop.f32.mrb[0].mxu0
        %v4657 = vadd.f32 0.0, %v4656
        %4658 = vmatprep.mubr.f32.mxu0 0.0
        %4659 = vmatmul.mubr.f32.gmra.mrb[0].mxu0 %v1028
        %v4660 = vpop.f32.mrb[0].mxu0
        %v4661 = vadd.f32 0.0, %v4660
        %v4662 = vpop.f32.mrb[0].mxu0
        %v4663 = vadd.f32 0.0, %v4662
        %4664 = vmatprep.mubr.f32.mxu0 0.0
        %4665 = vmatmul.mubr.f32.gmra.mrb[0].mxu0 %v1031
        %v4666 = vpop.f32.mrb[0].mxu0
        %v4667 = vadd.f32 0.0, %v4666
        %v4668 = vpop.f32.mrb[0].mxu0
        %v4669 = vadd.f32 0.0, %v4668
        %4670 = vmatprep.mubr.f32.mxu0 0.0
        %4671 = vmatmul.mubr.f32.gmra.mrb[0].mxu0 %v1034
        %v4672 = vpop.f32.mrb[0].mxu0
        %v4673 = vadd.f32 0.0, %v4672
        %v4674 = vpop.f32.mrb[0].mxu0
        %v4675 = vadd.f32 0.0, %v4674
        %4676 = vmatprep.mubr.f32.mxu0 0.0
        %4677 = vmatmul.mubr.f32.gmra.mrb[0].mxu0 %v1037
        %v4678 = vpop.f32.mrb[0].mxu0
        %v4679 = vadd.f32 0.0, %v4678
        %v4680 = vpop.f32.mrb[0].mxu0
        %v4681 = vadd.f32 0.0, %v4680
        %4682 = vmatprep.mubr.f32.mxu0 0.0
        %4683 = vmatmul.mubr.f32.gmra.mrb[0].mxu0 %v1040
        %v4684 = vpop.f32.mrb[0].mxu0
        %v4685 = vadd.f32 0.0, %v4684
        %v4686 = vpop.f32.mrb[0].mxu0
        %v4687 = vadd.f32 0.0, %v4686
        %4688 = vmatprep.mubr.f32.mxu0 0.0
        %4689 = vmatmul.mubr.f32.gmra.mrb[0].mxu0 %v1043
        %v4690 = vpop.f32.mrb[0].mxu0
        %v4691 = vadd.f32 0.0, %v4690
        %v4692 = vpop.f32.mrb[0].mxu0
        %v4693 = vadd.f32 0.0, %v4692
        %4694 = vmatprep.mubr.f32.mxu0 0.0
        %4695 = vmatmul.mubr.f32.gmra.mrb[0].mxu0 %v1046
        %v4696 = vpop.f32.mrb[0].mxu0
        %v4697 = vadd.f32 0.0, %v4696
        %v4698 = vpop.f32.mrb[0].mxu0
        %v4699 = vadd.f32 0.0, %v4698
        %4700 = vmatprep.mubr.f32.mxu0 0.0
        %4701 = vmatmul.mubr.f32.gmra.mrb[0].mxu0 %v1049
        %v4702 = vpop.f32.mrb[0].mxu0
        %v4703 = vadd.f32 0.0, %v4702
        %v4704 = vpop.f32.mrb[0].mxu0
        %v4705 = vadd.f32 0.0, %v4704
        %4706 = vmatprep.mubr.f32.mxu0 0.0
        %4707 = vmatmul.mubr.f32.gmra.mrb[0].mxu0 %v1052
        %v4708 = vpop.f32.mrb[0].mxu0
        %v4709 = vadd.f32 0.0, %v4708
        %v4710 = vpop.f32.mrb[0].mxu0
        %v4711 = vadd.f32 0.0, %v4710
        %4712 = vmatprep.mubr.f32.mxu0 0.0
        %4713 = vmatmul.mubr.f32.gmra.mrb[0].mxu0 %v1055
        %v4714 = vpop.f32.mrb[0].mxu0
        %v4715 = vadd.f32 0.0, %v4714
        %v4716 = vpop.f32.mrb[0].mxu0
        %v4717 = vadd.f32 0.0, %v4716
        %4718 = vmatprep.mubr.f32.mxu0 0.0
        %4719 = vmatmul.mubr.f32.gmra.mrb[0].mxu0 %v1058
        %v4720 = vpop.f32.mrb[0].mxu0
        %v4721 = vadd.f32 0.0, %v4720
        %v4722 = vpop.f32.mrb[0].mxu0
        %v4723 = vadd.f32 0.0, %v4722
        %4724 = vmatprep.mubr.f32.mxu0 0.0
        %4725 = vmatmul.mubr.f32.gmra.mrb[0].mxu0 %v1061
        %v4726 = vpop.f32.mrb[0].mxu0
        %v4727 = vadd.f32 0.0, %v4726
        %v4728 = vpop.f32.mrb[0].mxu0
        %v4729 = vadd.f32 0.0, %v4728
        %4730 = vmatprep.mubr.f32.mxu0 0.0
        %4731 = vmatmul.mubr.f32.gmra.mrb[0].mxu0 %v1064
        %v4732 = vpop.f32.mrb[0].mxu0
        %v4733 = vadd.f32 0.0, %v4732
        %v4734 = vpop.f32.mrb[0].mxu0
        %v4735 = vadd.f32 0.0, %v4734
        %4736 = vmatprep.mubr.f32.mxu0 0.0
        %4737 = vmatmul.mubr.f32.gmra.mrb[0].mxu0 %v1067
        %v4738 = vpop.f32.mrb[0].mxu0
        %v4739 = vadd.f32 0.0, %v4738
        %v4740 = vpop.f32.mrb[0].mxu0
        %v4741 = vadd.f32 0.0, %v4740
        %4742 = vmatprep.mubr.f32.mxu0 0.0
        %4743 = vmatmul.mubr.f32.gmra.mrb[0].mxu0 %v1070
        %v4744 = vpop.f32.mrb[0].mxu0
        %v4745 = vadd.f32 0.0, %v4744
        %v4746 = vpop.f32.mrb[0].mxu0
        %v4747 = vadd.f32 0.0, %v4746
        %4748 = vmatprep.mubr.f32.mxu0 0.0
        %4749 = vmatmul.mubr.f32.gmra.mrb[0].mxu0 %v1073
        %v4750 = vpop.f32.mrb[0].mxu0
        %v4751 = vadd.f32 0.0, %v4750
        %v4752 = vpop.f32.mrb[0].mxu0
        %v4753 = vadd.f32 0.0, %v4752
        %4754 = vmatprep.mubr.f32.mxu0 0.0
        %4755 = vmatmul.mubr.f32.gmra.mrb[0].mxu0 %v1076
        %v4756 = vpop.f32.mrb[0].mxu0
        %v4757 = vadd.f32 0.0, %v4756
        %v4758 = vpop.f32.mrb[0].mxu0
        %v4759 = vadd.f32 0.0, %v4758
        %4760 = vmatprep.mubr.f32.mxu0 0.0
        %4761 = vmatmul.mubr.f32.gmra.mrb[0].mxu0 %v1079
        %v4762 = vpop.f32.mrb[0].mxu0
        %v4763 = vadd.f32 0.0, %v4762
        %v4764 = vpop.f32.mrb[0].mxu0
        %v4765 = vadd.f32 0.0, %v4764
        %4766 = vmatprep.mubr.f32.mxu0 0.0
        %4767 = vmatmul.mubr.f32.gmra.mrb[0].mxu0 %v1082
        %v4768 = vpop.f32.mrb[0].mxu0
        %v4769 = vadd.f32 0.0, %v4768
        %v4770 = vpop.f32.mrb[0].mxu0
        %v4771 = vadd.f32 0.0, %v4770
        %4772 = vmatprep.mubr.f32.mxu0 0.0
        %4773 = vmatmul.mubr.f32.gmra.mrb[0].mxu0 %v1085
        %v4774 = vpop.f32.mrb[0].mxu0
        %v4775 = vadd.f32 0.0, %v4774
        %v4776 = vpop.f32.mrb[0].mxu0
        %v4777 = vadd.f32 0.0, %v4776
        %4778 = vmatprep.mubr.f32.mxu0 0.0
        %4779 = vmatmul.mubr.f32.gmra.mrb[0].mxu0 %v1088
        %v4780 = vpop.f32.mrb[0].mxu0
        %v4781 = vadd.f32 0.0, %v4780
        %v4782 = vpop.f32.mrb[0].mxu0
        %v4783 = vadd.f32 0.0, %v4782
        %4784 = vmatprep.mubr.f32.mxu0 0.0
        %4785 = vmatmul.mubr.f32.gmra.mrb[0].mxu0 %v1091
        %v4786 = vpop.f32.mrb[0].mxu0
        %v4787 = vadd.f32 0.0, %v4786
        %v4788 = vpop.f32.mrb[0].mxu0
        %v4789 = vadd.f32 0.0, %v4788
        %4790 = vmatprep.mubr.f32.mxu0 0.0
        %4791 = vmatmul.mubr.f32.gmra.mrb[0].mxu0 %v1094
        %v4792 = vpop.f32.mrb[0].mxu0
        %v4793 = vadd.f32 0.0, %v4792
        %v4794 = vpop.f32.mrb[0].mxu0
        %v4795 = vadd.f32 0.0, %v4794
        %4796 = vmatprep.mubr.f32.mxu0 0.0
        %4797 = vmatmul.mubr.f32.gmra.mrb[0].mxu0 %v1097
        %v4798 = vpop.f32.mrb[0].mxu0
        %v4799 = vadd.f32 0.0, %v4798
        %v4800 = vpop.f32.mrb[0].mxu0
        %v4801 = vadd.f32 0.0, %v4800
        %4802 = vmatprep.mubr.f32.mxu0 0.0
        %4803 = vmatmul.mubr.f32.gmra.mrb[0].mxu0 %v1100
        %v4804 = vpop.f32.mrb[0].mxu0
        %v4805 = vadd.f32 0.0, %v4804
        %v4806 = vpop.f32.mrb[0].mxu0
        %v4807 = vadd.f32 0.0, %v4806
        %4808 = vmatprep.mubr.f32.mxu0 0.0
        %4809 = vmatmul.mubr.f32.gmra.mrb[0].mxu0 %v1103
        %v4810 = vpop.f32.mrb[0].mxu0
        %v4811 = vadd.f32 0.0, %v4810
        %v4812 = vpop.f32.mrb[0].mxu0
        %v4813 = vadd.f32 0.0, %v4812
        %4814 = vmatprep.mubr.f32.mxu0 0.0
        %4815 = vmatmul.mubr.f32.gmra.mrb[0].mxu0 %v1106
        %v4816 = vpop.f32.mrb[0].mxu0
        %v4817 = vadd.f32 0.0, %v4816
        %v4818 = vpop.f32.mrb[0].mxu0
        %v4819 = vadd.f32 0.0, %v4818
        %4820 = vmatprep.mubr.f32.mxu0 0.0
        %4821 = vmatmul.mubr.f32.gmra.mrb[0].mxu0 %v1109
        %v4822 = vpop.f32.mrb[0].mxu0
        %v4823 = vadd.f32 0.0, %v4822
        %v4824 = vpop.f32.mrb[0].mxu0
        %v4825 = vadd.f32 0.0, %v4824
        %4826 = vmatprep.mubr.f32.mxu0 0.0
        %4827 = vmatmul.mubr.f32.gmra.mrb[0].mxu0 %v1112
        %v4828 = vpop.f32.mrb[0].mxu0
        %v4829 = vadd.f32 0.0, %v4828
        %v4830 = vpop.f32.mrb[0].mxu0
        %v4831 = vadd.f32 0.0, %v4830
        %4832 = vmatprep.mubr.f32.mxu0 0.0
        %4833 = vmatmul.mubr.f32.gmra.mrb[0].mxu0 %v1115
        %v4834 = vpop.f32.mrb[0].mxu0
        %v4835 = vadd.f32 0.0, %v4834
        %v4836 = vpop.f32.mrb[0].mxu0
        %v4837 = vadd.f32 0.0, %v4836
        %4838 = vmatprep.mubr.f32.mxu0 0.0
        %4839 = vmatmul.mubr.f32.gmra.mrb[0].mxu0 %v1118
        %v4840 = vpop.f32.mrb[0].mxu0
        %v4841 = vadd.f32 0.0, %v4840
        %v4842 = vpop.f32.mrb[0].mxu0
        %v4843 = vadd.f32 0.0, %v4842
        %4844 = vmatprep.mubr.f32.mxu0 0.0
        %4845 = vmatmul.mubr.f32.gmra.mrb[0].mxu0 %v1121
        %v4846 = vpop.f32.mrb[0].mxu0
        %v4847 = vadd.f32 0.0, %v4846
        %v4848 = vpop.f32.mrb[0].mxu0
        %v4849 = vadd.f32 0.0, %v4848
        %4850 = vmatprep.mubr.f32.mxu0 0.0
        %4851 = vmatmul.mubr.f32.gmra.mrb[0].mxu0 %v1124
        %v4852 = vpop.f32.mrb[0].mxu0
        %v4853 = vadd.f32 0.0, %v4852
        %v4854 = vpop.f32.mrb[0].mxu0
        %v4855 = vadd.f32 0.0, %v4854
        %4856 = vmatprep.mubr.f32.mxu0 0.0
        %4857 = vmatmul.mubr.f32.gmra.mrb[0].mxu0 %v1127
        %v4858 = vpop.f32.mrb[0].mxu0
        %v4859 = vadd.f32 0.0, %v4858
        %v4860 = vpop.f32.mrb[0].mxu0
        %v4861 = vadd.f32 0.0, %v4860
        %4862 = vmatprep.mubr.f32.mxu0 0.0
        %4863 = vmatmul.mubr.f32.gmra.mrb[0].mxu0 %v1130
        %v4864 = vpop.f32.mrb[0].mxu0
        %v4865 = vadd.f32 0.0, %v4864
        %v4866 = vpop.f32.mrb[0].mxu0
        %v4867 = vadd.f32 0.0, %v4866
        %4868 = vmatprep.mubr.f32.mxu0 0.0
        %4869 = vmatmul.mubr.f32.gmra.mrb[0].mxu0 %v1133
        %v4870 = vpop.f32.mrb[0].mxu0
        %v4871 = vadd.f32 0.0, %v4870
        %v4872 = vpop.f32.mrb[0].mxu0
        %v4873 = vadd.f32 0.0, %v4872
        %4874 = vmatprep.mubr.f32.mxu0 0.0
        %4875 = vmatmul.mubr.f32.gmra.mrb[0].mxu0 %v1136
        %v4876 = vpop.f32.mrb[0].mxu0
        %v4877 = vadd.f32 0.0, %v4876
        %v4878 = vpop.f32.mrb[0].mxu0
        %v4879 = vadd.f32 0.0, %v4878
        %4880 = vmatprep.mubr.f32.mxu0 0.0
        %4881 = vmatmul.mubr.f32.gmra.mrb[0].mxu0 %v1139
        %v4882 = vpop.f32.mrb[0].mxu0
        %v4883 = vadd.f32 0.0, %v4882
        %v4884 = vpop.f32.mrb[0].mxu0
        %v4885 = vadd.f32 0.0, %v4884
        %4886 = vmatprep.mubr.f32.mxu0 0.0
        %4887 = vmatmul.mubr.f32.gmra.mrb[0].mxu0 %v1142
        %v4888 = vpop.f32.mrb[0].mxu0
        %v4889 = vadd.f32 0.0, %v4888
        %v4890 = vpop.f32.mrb[0].mxu0
        %v4891 = vadd.f32 0.0, %v4890
        %4892 = vmatprep.mubr.f32.mxu0 0.0
        %4893 = vmatmul.mubr.f32.gmra.mrb[0].mxu0 %v1145
        %v4894 = vpop.f32.mrb[0].mxu0
        %v4895 = vadd.f32 0.0, %v4894
        %v4896 = vpop.f32.mrb[0].mxu0
        %v4897 = vadd.f32 0.0, %v4896
        %4898 = vmatprep.mubr.f32.mxu0 0.0
        %4899 = vmatmul.mubr.f32.gmra.mrb[0].mxu0 %v1148
        %v4900 = vpop.f32.mrb[0].mxu0
        %v4901 = vadd.f32 0.0, %v4900
        %v4902 = vpop.f32.mrb[0].mxu0
        %v4903 = vadd.f32 0.0, %v4902
        %4904 = vmatprep.mubr.f32.mxu0 0.0
        %4905 = vmatmul.mubr.f32.gmra.mrb[0].mxu0 %v1151
        %v4906 = vpop.f32.mrb[0].mxu0
        %v4907 = vadd.f32 0.0, %v4906
        %v4908 = vpop.f32.mrb[0].mxu0
        %v4909 = vadd.f32 0.0, %v4908
        %4910 = vmatprep.mubr.f32.mxu0 0.0
        %4911 = vmatmul.mubr.f32.gmra.mrb[0].mxu0 %v1154
        %v4912 = vpop.f32.mrb[0].mxu0
        %v4913 = vadd.f32 0.0, %v4912
        %v4914 = vpop.f32.mrb[0].mxu0
        %v4915 = vadd.f32 0.0, %v4914
        %4916 = vmatprep.mubr.f32.mxu0 0.0
        %4917 = vmatmul.mubr.f32.gmra.mrb[0].mxu0 %v1157
        %v4918 = vpop.f32.mrb[0].mxu0
        %v4919 = vadd.f32 0.0, %v4918
        %v4920 = vpop.f32.mrb[0].mxu0
        %v4921 = vadd.f32 0.0, %v4920
        %4922 = vmatprep.mubr.f32.mxu0 0.0
        %4923 = vmatmul.mubr.f32.gmra.mrb[0].mxu0 %v1160
        %v4924 = vpop.f32.mrb[0].mxu0
        %v4925 = vadd.f32 0.0, %v4924
        %v4926 = vpop.f32.mrb[0].mxu0
        %v4927 = vadd.f32 0.0, %v4926
        %4928 = vmatprep.mubr.f32.mxu0 0.0
        %4929 = vmatmul.mubr.f32.gmra.mrb[0].mxu0 %v1163
        %v4930 = vpop.f32.mrb[0].mxu0
        %v4931 = vadd.f32 0.0, %v4930
        %v4932 = vpop.f32.mrb[0].mxu0
        %v4933 = vadd.f32 0.0, %v4932
        %4934 = vmatprep.mubr.f32.mxu0 0.0
        %4935 = vmatmul.mubr.f32.gmra.mrb[0].mxu0 %v1166
        %v4936 = vpop.f32.mrb[0].mxu0
        %v4937 = vadd.f32 0.0, %v4936
        %v4938 = vpop.f32.mrb[0].mxu0
        %v4939 = vadd.f32 0.0, %v4938
        %4940 = vmatprep.mubr.f32.mxu0 0.0
        %4941 = vmatmul.mubr.f32.gmra.mrb[0].mxu0 %v1169
        %v4942 = vpop.f32.mrb[0].mxu0
        %v4943 = vadd.f32 0.0, %v4942
        %v4944 = vpop.f32.mrb[0].mxu0
        %v4945 = vadd.f32 0.0, %v4944
        %4946 = vmatprep.mubr.f32.mxu0 0.0
        %4947 = vmatmul.mubr.f32.gmra.mrb[0].mxu0 %v1172
        %v4948 = vpop.f32.mrb[0].mxu0
        %v4949 = vadd.f32 0.0, %v4948
        %v4950 = vpop.f32.mrb[0].mxu0
        %v4951 = vadd.f32 0.0, %v4950
        %4952 = vmatprep.mubr.f32.mxu0 0.0
        %4953 = vmatmul.mubr.f32.gmra.mrb[0].mxu0 %v1175
        %v4954 = vpop.f32.mrb[0].mxu0
        %v4955 = vadd.f32 0.0, %v4954
        %v4956 = vpop.f32.mrb[0].mxu0
        %v4957 = vadd.f32 0.0, %v4956
        %4958 = vmatprep.mubr.f32.mxu0 0.0
        %4959 = vmatmul.mubr.f32.gmra.mrb[0].mxu0 %v1178
        %v4960 = vpop.f32.mrb[0].mxu0
        %v4961 = vadd.f32 0.0, %v4960
        %v4962 = vpop.f32.mrb[0].mxu0
        %v4963 = vadd.f32 0.0, %v4962
        %4964 = vmatprep.mubr.f32.mxu0 0.0
        %4965 = vmatmul.mubr.f32.gmra.mrb[0].mxu0 %v1181
        %v4966 = vpop.f32.mrb[0].mxu0
        %v4967 = vadd.f32 0.0, %v4966
        %v4968 = vpop.f32.mrb[0].mxu0
        %v4969 = vadd.f32 0.0, %v4968
        %4970 = vmatprep.mubr.f32.mxu0 0.0
        %4971 = vmatmul.mubr.f32.gmra.mrb[0].mxu0 %v1184
        %v4972 = vpop.f32.mrb[0].mxu0
        %v4973 = vadd.f32 0.0, %v4972
        %v4974 = vpop.f32.mrb[0].mxu0
        %v4975 = vadd.f32 0.0, %v4974
        %4976 = vmatprep.mubr.f32.mxu0 0.0
        %4977 = vmatmul.mubr.f32.gmra.mrb[0].mxu0 %v1187
        %v4978 = vpop.f32.mrb[0].mxu0
        %v4979 = vadd.f32 0.0, %v4978
        %v4980 = vpop.f32.mrb[0].mxu0
        %v4981 = vadd.f32 0.0, %v4980
        %4982 = vmatprep.mubr.f32.mxu0 0.0
        %4983 = vmatmul.mubr.f32.gmra.mrb[0].mxu0 %v1190
        %v4984 = vpop.f32.mrb[0].mxu0
        %v4985 = vadd.f32 0.0, %v4984
        %v4986 = vpop.f32.mrb[0].mxu0
        %v4987 = vadd.f32 0.0, %v4986
        %4988 = vmatprep.mubr.f32.mxu0 0.0
        %4989 = vmatmul.mubr.f32.gmra.mrb[0].mxu0 %v1193
        %v4990 = vpop.f32.mrb[0].mxu0
        %v4991 = vadd.f32 0.0, %v4990
        %v4992 = vpop.f32.mrb[0].mxu0
        %v4993 = vadd.f32 0.0, %v4992
        %4994 = vmatprep.mubr.f32.mxu0 0.0
        %4995 = vmatmul.mubr.f32.gmra.mrb[0].mxu0 %v1196
        %v4996 = vpop.f32.mrb[0].mxu0
        %v4997 = vadd.f32 0.0, %v4996
        %v4998 = vpop.f32.mrb[0].mxu0
        %v4999 = vadd.f32 0.0, %v4998
        %5000 = vmatprep.mubr.f32.mxu0 0.0
        %5001 = vmatmul.mubr.f32.gmra.mrb[0].mxu0 %v1199
        %v5002 = vpop.f32.mrb[0].mxu0
        %v5003 = vadd.f32 0.0, %v5002
        %v5004 = vpop.f32.mrb[0].mxu0
        %v5005 = vadd.f32 0.0, %v5004
        %5006 = vmatprep.mubr.f32.mxu0 0.0
        %5007 = vmatmul.mubr.f32.gmra.mrb[0].mxu0 %v1202
        %v5008 = vpop.f32.mrb[0].mxu0
        %v5009 = vadd.f32 0.0, %v5008
        %v5010 = vpop.f32.mrb[0].mxu0
        %v5011 = vadd.f32 0.0, %v5010
        %5012 = vmatprep.mubr.f32.mxu0 0.0
        %5013 = vmatmul.mubr.f32.gmra.mrb[0].mxu0 %v1205
        %v5014 = vpop.f32.mrb[0].mxu0
        %v5015 = vadd.f32 0.0, %v5014
        %v5016 = vpop.f32.mrb[0].mxu0
        %v5017 = vadd.f32 0.0, %v5016
        %5018 = vmatprep.mubr.f32.mxu0 0.0
        %5019 = vmatmul.mubr.f32.gmra.mrb[0].mxu0 %v1208
        %v5020 = vpop.f32.mrb[0].mxu0
        %v5021 = vadd.f32 0.0, %v5020
        %v5022 = vpop.f32.mrb[0].mxu0
        %v5023 = vadd.f32 0.0, %v5022
        %5024 = vmatprep.mubr.f32.mxu0 0.0
        %5025 = vmatmul.mubr.f32.gmra.mrb[0].mxu0 %v1211
        %v5026 = vpop.f32.mrb[0].mxu0
        %v5027 = vadd.f32 0.0, %v5026
        %v5028 = vpop.f32.mrb[0].mxu0
        %v5029 = vadd.f32 0.0, %v5028
        %5030 = vmatprep.mubr.f32.mxu0 0.0
        %5031 = vmatmul.mubr.f32.gmra.mrb[0].mxu0 %v1214
        %v5032 = vpop.f32.mrb[0].mxu0
        %v5033 = vadd.f32 0.0, %v5032
        %v5034 = vpop.f32.mrb[0].mxu0
        %v5035 = vadd.f32 0.0, %v5034
        %5036 = vmatprep.mubr.f32.mxu0 0.0
        %5037 = vmatmul.mubr.f32.gmra.mrb[0].mxu0 %v1217
        %v5038 = vpop.f32.mrb[0].mxu0
        %v5039 = vadd.f32 0.0, %v5038
        %v5040 = vpop.f32.mrb[0].mxu0
        %v5041 = vadd.f32 0.0, %v5040
        %5042 = vmatprep.mubr.f32.mxu0 0.0
        %5043 = vmatmul.mubr.f32.gmra.mrb[0].mxu0 %v1220
        %v5044 = vpop.f32.mrb[0].mxu0
        %v5045 = vadd.f32 0.0, %v5044
        %v5046 = vpop.f32.mrb[0].mxu0
        %v5047 = vadd.f32 0.0, %v5046
        %5048 = vmatprep.mubr.f32.mxu0 0.0
        %5049 = vmatmul.mubr.f32.gmra.mrb[0].mxu0 %v1223
        %v5050 = vpop.f32.mrb[0].mxu0
        %v5051 = vadd.f32 0.0, %v5050
        %v5052 = vpop.f32.mrb[0].mxu0
        %v5053 = vadd.f32 0.0, %v5052
        %5054 = vmatprep.mubr.f32.mxu0 0.0
        %5055 = vmatmul.mubr.f32.gmra.mrb[0].mxu0 %v1226
        %v5056 = vpop.f32.mrb[0].mxu0
        %v5057 = vadd.f32 0.0, %v5056
        %v5058 = vpop.f32.mrb[0].mxu0
        %v5059 = vadd.f32 0.0, %v5058
        %5060 = vmatprep.mubr.f32.mxu0 0.0
        %5061 = vmatmul.mubr.f32.gmra.mrb[0].mxu0 %v1229
        %v5062 = vpop.f32.mrb[0].mxu0
        %v5063 = vadd.f32 0.0, %v5062
        %v5064 = vpop.f32.mrb[0].mxu0
        %v5065 = vadd.f32 0.0, %v5064
        %5066 = vmatprep.mubr.f32.mxu0 0.0
        %5067 = vmatmul.mubr.f32.gmra.mrb[0].mxu0 %v1232
        %v5068 = vpop.f32.mrb[0].mxu0
        %v5069 = vadd.f32 0.0, %v5068
        %v5070 = vpop.f32.mrb[0].mxu0
        %v5071 = vadd.f32 0.0, %v5070
        %5072 = vmatprep.mubr.f32.mxu0 0.0
        %5073 = vmatmul.mubr.f32.gmra.mrb[0].mxu0 %v1235
        %v5074 = vpop.f32.mrb[0].mxu0
        %v5075 = vadd.f32 0.0, %v5074
        %v5076 = vpop.f32.mrb[0].mxu0
        %v5077 = vadd.f32 0.0, %v5076
        %5078 = vmatprep.mubr.f32.mxu0 0.0
        %5079 = vmatmul.mubr.f32.gmra.mrb[0].mxu0 %v1238
        %v5080 = vpop.f32.mrb[0].mxu0
        %v5081 = vadd.f32 0.0, %v5080
        %v5082 = vpop.f32.mrb[0].mxu0
        %v5083 = vadd.f32 0.0, %v5082
        %5084 = vmatprep.mubr.f32.mxu0 0.0
        %5085 = vmatmul.mubr.f32.gmra.mrb[0].mxu0 %v1241
        %v5086 = vpop.f32.mrb[0].mxu0
        %v5087 = vadd.f32 0.0, %v5086
        %v5088 = vpop.f32.mrb[0].mxu0
        %v5089 = vadd.f32 0.0, %v5088
        %5090 = vmatprep.mubr.f32.mxu0 0.0
        %5091 = vmatmul.mubr.f32.gmra.mrb[0].mxu0 %v1244
        %v5092 = vpop.f32.mrb[0].mxu0
        %v5093 = vadd.f32 0.0, %v5092
        %v5094 = vpop.f32.mrb[0].mxu0
        %v5095 = vadd.f32 0.0, %v5094
        %5096 = vmatprep.mubr.f32.mxu0 0.0
        %5097 = vmatmul.mubr.f32.gmra.mrb[0].mxu0 %v1247
        %v5098 = vpop.f32.mrb[0].mxu0
        %v5099 = vadd.f32 0.0, %v5098
        %v5100 = vpop.f32.mrb[0].mxu0
        %v5101 = vadd.f32 0.0, %v5100
        %5102 = vmatprep.mubr.f32.mxu0 0.0
        %5103 = vmatmul.mubr.f32.gmra.mrb[0].mxu0 %v1250
        %v5104 = vpop.f32.mrb[0].mxu0
        %v5105 = vadd.f32 0.0, %v5104
        %v5106 = vpop.f32.mrb[0].mxu0
        %v5107 = vadd.f32 0.0, %v5106
        %5108 = vmatprep.mubr.f32.mxu0 0.0
        %5109 = vmatmul.mubr.f32.gmra.mrb[0].mxu0 %v1253
        %v5110 = vpop.f32.mrb[0].mxu0
        %v5111 = vadd.f32 0.0, %v5110
        %v5112 = vpop.f32.mrb[0].mxu0
        %v5113 = vadd.f32 0.0, %v5112
        %5114 = vdwg.mxu0
        %5115 = vmatprep.subr.mxu0 %v647
        %5116 = vmatpush1.msra.mxu0 %v645
        %5117 = vmatprep.subr.mxu0 %v653
        %5118 = vmatpush1.msra.mxu0 %v651
        %5119 = vmatprep.subr.mxu0 0.0
        %5120 = vmatpush1.msra.mxu0 0.0
        %5121 = vmatprep.subr.mxu0 0.0
        %5122 = vmatpush1.msra.mxu0 0.0
        %5123 = vmatprep.subr.mxu0 0.0
        %5124 = vmatpush1.msra.mxu0 0.0
        %5125 = vmatprep.subr.mxu0 0.0
        %5126 = vmatpush1.msra.mxu0 0.0
        %5127 = vmatprep.subr.mxu0 0.0
        %5128 = vmatpush1.msra.mxu0 0.0
        %5129 = vmatprep.subr.mxu0 0.0
        %5130 = vmatpush1.msra.mxu0 0.0
        %5131 = vmatprep.subr.mxu0 0.0
        %5132 = vmatpush1.msra.mxu0 0.0
        %5133 = vmatprep.subr.mxu0 0.0
        %5134 = vmatpush1.msra.mxu0 0.0
        %5135 = vmatprep.subr.mxu0 0.0
        %5136 = vmatpush1.msra.mxu0 0.0
        %5137 = vmatprep.subr.mxu0 0.0
        %5138 = vmatpush1.msra.mxu0 0.0
        %5139 = vmatprep.subr.mxu0 0.0
        %5140 = vmatpush1.msra.mxu0 0.0
        %5141 = vmatprep.subr.mxu0 0.0
        %5142 = vmatpush1.msra.mxu0 0.0
        %5143 = vmatprep.subr.mxu0 0.0
        %5144 = vmatpush1.msra.mxu0 0.0
        %5145 = vmatprep.subr.mxu0 0.0
        %5146 = vmatpush1.msra.mxu0 0.0
        %5147 = vmatprep.subr.mxu0 0.0
        %5148 = vmatpush1.msra.mxu0 0.0
        %5149 = vmatprep.subr.mxu0 0.0
        %5150 = vmatpush1.msra.mxu0 0.0
        %5151 = vmatprep.subr.mxu0 0.0
        %5152 = vmatpush1.msra.mxu0 0.0
        %5153 = vmatprep.subr.mxu0 0.0
        %5154 = vmatpush1.msra.mxu0 0.0
        %5155 = vmatprep.subr.mxu0 0.0
        %5156 = vmatpush1.msra.mxu0 0.0
        %5157 = vmatprep.subr.mxu0 0.0
        %5158 = vmatpush1.msra.mxu0 0.0
        %5159 = vmatprep.subr.mxu0 0.0
        %5160 = vmatpush1.msra.mxu0 0.0
        %5161 = vmatprep.subr.mxu0 0.0
        %5162 = vmatpush1.msra.mxu0 0.0
        %5163 = vmatprep.subr.mxu0 0.0
        %5164 = vmatpush1.msra.mxu0 0.0
        %5165 = vmatprep.subr.mxu0 0.0
        %5166 = vmatpush1.msra.mxu0 0.0
        %5167 = vmatprep.subr.mxu0 0.0
        %5168 = vmatpush1.msra.mxu0 0.0
        %5169 = vmatprep.subr.mxu0 0.0
        %5170 = vmatpush1.msra.mxu0 0.0
        %5171 = vmatprep.subr.mxu0 0.0
        %5172 = vmatpush1.msra.mxu0 0.0
        %5173 = vmatprep.subr.mxu0 0.0
        %5174 = vmatpush1.msra.mxu0 0.0
        %5175 = vmatprep.subr.mxu0 0.0
        %5176 = vmatpush1.msra.mxu0 0.0
        %5177 = vmatprep.subr.mxu0 0.0
        %5178 = vmatpush1.msra.mxu0 0.0
        %5179 = vmatprep.mubr.f32.mxu0 0.0
        %5180 = vmatmul.mubr.f32.gmra.mrb[0].mxu0 %v806
        %v5181 = vpop.f32.mrb[0].mxu0
        %v5182 = vadd.f32 0.0, %v5181
        %v5183 = vpop.f32.mrb[0].mxu0
        %v5184 = vadd.f32 0.0, %v5183
        %5185 = vmatprep.mubr.f32.mxu0 0.0
        %5186 = vmatmul.mubr.f32.gmra.mrb[0].mxu0 %v809
        %v5187 = vpop.f32.mrb[0].mxu0
        %v5188 = vadd.f32 0.0, %v5187
        %v5189 = vpop.f32.mrb[0].mxu0
        %v5190 = vadd.f32 0.0, %v5189
        %5191 = vmatprep.mubr.f32.mxu0 0.0
        %5192 = vmatmul.mubr.f32.gmra.mrb[0].mxu0 %v812
        %v5193 = vpop.f32.mrb[0].mxu0
        %v5194 = vadd.f32 0.0, %v5193
        %v5195 = vpop.f32.mrb[0].mxu0
        %v5196 = vadd.f32 0.0, %v5195
        %5197 = vmatprep.mubr.f32.mxu0 0.0
        %5198 = vmatmul.mubr.f32.gmra.mrb[0].mxu0 %v815
        %v5199 = vpop.f32.mrb[0].mxu0
        %v5200 = vadd.f32 0.0, %v5199
        %v5201 = vpop.f32.mrb[0].mxu0
        %v5202 = vadd.f32 0.0, %v5201
        %5203 = vmatprep.mubr.f32.mxu0 0.0
        %5204 = vmatmul.mubr.f32.gmra.mrb[0].mxu0 %v818
        %v5205 = vpop.f32.mrb[0].mxu0
        %v5206 = vadd.f32 0.0, %v5205
        %v5207 = vpop.f32.mrb[0].mxu0
        %v5208 = vadd.f32 0.0, %v5207
        %5209 = vmatprep.mubr.f32.mxu0 0.0
        %5210 = vmatmul.mubr.f32.gmra.mrb[0].mxu0 %v821
        %v5211 = vpop.f32.mrb[0].mxu0
        %v5212 = vadd.f32 0.0, %v5211
        %v5213 = vpop.f32.mrb[0].mxu0
        %v5214 = vadd.f32 0.0, %v5213
        %5215 = vmatprep.mubr.f32.mxu0 0.0
        %5216 = vmatmul.mubr.f32.gmra.mrb[0].mxu0 %v824
        %v5217 = vpop.f32.mrb[0].mxu0
        %v5218 = vadd.f32 0.0, %v5217
        %v5219 = vpop.f32.mrb[0].mxu0
        %v5220 = vadd.f32 0.0, %v5219
        %5221 = vmatprep.mubr.f32.mxu0 0.0
        %5222 = vmatmul.mubr.f32.gmra.mrb[0].mxu0 %v827
        %v5223 = vpop.f32.mrb[0].mxu0
        %v5224 = vadd.f32 0.0, %v5223
        %v5225 = vpop.f32.mrb[0].mxu0
        %v5226 = vadd.f32 0.0, %v5225
        %5227 = vmatprep.mubr.f32.mxu0 0.0
        %5228 = vmatmul.mubr.f32.gmra.mrb[0].mxu0 %v830
        %v5229 = vpop.f32.mrb[0].mxu0
        %v5230 = vadd.f32 0.0, %v5229
        %v5231 = vpop.f32.mrb[0].mxu0
        %v5232 = vadd.f32 0.0, %v5231
        %5233 = vmatprep.mubr.f32.mxu0 0.0
        %5234 = vmatmul.mubr.f32.gmra.mrb[0].mxu0 %v833
        %v5235 = vpop.f32.mrb[0].mxu0
        %v5236 = vadd.f32 0.0, %v5235
        %v5237 = vpop.f32.mrb[0].mxu0
        %v5238 = vadd.f32 0.0, %v5237
        %5239 = vmatprep.mubr.f32.mxu0 0.0
        %5240 = vmatmul.mubr.f32.gmra.mrb[0].mxu0 %v836
        %v5241 = vpop.f32.mrb[0].mxu0
        %v5242 = vadd.f32 0.0, %v5241
        %v5243 = vpop.f32.mrb[0].mxu0
        %v5244 = vadd.f32 0.0, %v5243
        %5245 = vmatprep.mubr.f32.mxu0 0.0
        %5246 = vmatmul.mubr.f32.gmra.mrb[0].mxu0 %v839
        %v5247 = vpop.f32.mrb[0].mxu0
        %v5248 = vadd.f32 0.0, %v5247
        %v5249 = vpop.f32.mrb[0].mxu0
        %v5250 = vadd.f32 0.0, %v5249
        %5251 = vmatprep.mubr.f32.mxu0 0.0
        %5252 = vmatmul.mubr.f32.gmra.mrb[0].mxu0 %v842
        %v5253 = vpop.f32.mrb[0].mxu0
        %v5254 = vadd.f32 0.0, %v5253
        %v5255 = vpop.f32.mrb[0].mxu0
        %v5256 = vadd.f32 0.0, %v5255
        %5257 = vmatprep.mubr.f32.mxu0 0.0
        %5258 = vmatmul.mubr.f32.gmra.mrb[0].mxu0 %v845
        %v5259 = vpop.f32.mrb[0].mxu0
        %v5260 = vadd.f32 0.0, %v5259
        %v5261 = vpop.f32.mrb[0].mxu0
        %v5262 = vadd.f32 0.0, %v5261
        %5263 = vmatprep.mubr.f32.mxu0 0.0
        %5264 = vmatmul.mubr.f32.gmra.mrb[0].mxu0 %v848
        %v5265 = vpop.f32.mrb[0].mxu0
        %v5266 = vadd.f32 0.0, %v5265
        %v5267 = vpop.f32.mrb[0].mxu0
        %v5268 = vadd.f32 0.0, %v5267
        %5269 = vmatprep.mubr.f32.mxu0 0.0
        %5270 = vmatmul.mubr.f32.gmra.mrb[0].mxu0 %v851
        %v5271 = vpop.f32.mrb[0].mxu0
        %v5272 = vadd.f32 0.0, %v5271
        %v5273 = vpop.f32.mrb[0].mxu0
        %v5274 = vadd.f32 0.0, %v5273
        %5275 = vmatprep.mubr.f32.mxu0 0.0
        %5276 = vmatmul.mubr.f32.gmra.mrb[0].mxu0 %v854
        %v5277 = vpop.f32.mrb[0].mxu0
        %v5278 = vadd.f32 0.0, %v5277
        %v5279 = vpop.f32.mrb[0].mxu0
        %v5280 = vadd.f32 0.0, %v5279
        %5281 = vmatprep.mubr.f32.mxu0 0.0
        %5282 = vmatmul.mubr.f32.gmra.mrb[0].mxu0 %v857
        %v5283 = vpop.f32.mrb[0].mxu0
        %v5284 = vadd.f32 0.0, %v5283
        %v5285 = vpop.f32.mrb[0].mxu0
        %v5286 = vadd.f32 0.0, %v5285
        %5287 = vmatprep.mubr.f32.mxu0 0.0
        %5288 = vmatmul.mubr.f32.gmra.mrb[0].mxu0 %v860
        %v5289 = vpop.f32.mrb[0].mxu0
        %v5290 = vadd.f32 0.0, %v5289
        %v5291 = vpop.f32.mrb[0].mxu0
        %v5292 = vadd.f32 0.0, %v5291
        %5293 = vmatprep.mubr.f32.mxu0 0.0
        %5294 = vmatmul.mubr.f32.gmra.mrb[0].mxu0 %v863
        %v5295 = vpop.f32.mrb[0].mxu0
        %v5296 = vadd.f32 0.0, %v5295
        %v5297 = vpop.f32.mrb[0].mxu0
        %v5298 = vadd.f32 0.0, %v5297
        %5299 = vmatprep.mubr.f32.mxu0 0.0
        %5300 = vmatmul.mubr.f32.gmra.mrb[0].mxu0 %v866
        %v5301 = vpop.f32.mrb[0].mxu0
        %v5302 = vadd.f32 0.0, %v5301
        %v5303 = vpop.f32.mrb[0].mxu0
        %v5304 = vadd.f32 0.0, %v5303
        %5305 = vmatprep.mubr.f32.mxu0 0.0
        %5306 = vmatmul.mubr.f32.gmra.mrb[0].mxu0 %v869
        %v5307 = vpop.f32.mrb[0].mxu0
        %v5308 = vadd.f32 0.0, %v5307
        %v5309 = vpop.f32.mrb[0].mxu0
        %v5310 = vadd.f32 0.0, %v5309
        %5311 = vmatprep.mubr.f32.mxu0 0.0
        %5312 = vmatmul.mubr.f32.gmra.mrb[0].mxu0 %v872
        %v5313 = vpop.f32.mrb[0].mxu0
        %v5314 = vadd.f32 0.0, %v5313
        %v5315 = vpop.f32.mrb[0].mxu0
        %v5316 = vadd.f32 0.0, %v5315
        %5317 = vmatprep.mubr.f32.mxu0 0.0
        %5318 = vmatmul.mubr.f32.gmra.mrb[0].mxu0 %v875
        %v5319 = vpop.f32.mrb[0].mxu0
        %v5320 = vadd.f32 0.0, %v5319
        %v5321 = vpop.f32.mrb[0].mxu0
        %v5322 = vadd.f32 0.0, %v5321
        %5323 = vmatprep.mubr.f32.mxu0 0.0
        %5324 = vmatmul.mubr.f32.gmra.mrb[0].mxu0 %v878
        %v5325 = vpop.f32.mrb[0].mxu0
        %v5326 = vadd.f32 0.0, %v5325
        %v5327 = vpop.f32.mrb[0].mxu0
        %v5328 = vadd.f32 0.0, %v5327
        %5329 = vmatprep.mubr.f32.mxu0 0.0
        %5330 = vmatmul.mubr.f32.gmra.mrb[0].mxu0 %v881
        %v5331 = vpop.f32.mrb[0].mxu0
        %v5332 = vadd.f32 0.0, %v5331
        %v5333 = vpop.f32.mrb[0].mxu0
        %v5334 = vadd.f32 0.0, %v5333
        %5335 = vmatprep.mubr.f32.mxu0 0.0
        %5336 = vmatmul.mubr.f32.gmra.mrb[0].mxu0 %v884
        %v5337 = vpop.f32.mrb[0].mxu0
        %v5338 = vadd.f32 0.0, %v5337
        %v5339 = vpop.f32.mrb[0].mxu0
        %v5340 = vadd.f32 0.0, %v5339
        %5341 = vmatprep.mubr.f32.mxu0 0.0
        %5342 = vmatmul.mubr.f32.gmra.mrb[0].mxu0 %v887
        %v5343 = vpop.f32.mrb[0].mxu0
        %v5344 = vadd.f32 0.0, %v5343
        %v5345 = vpop.f32.mrb[0].mxu0
        %v5346 = vadd.f32 0.0, %v5345
        %5347 = vmatprep.mubr.f32.mxu0 0.0
        %5348 = vmatmul.mubr.f32.gmra.mrb[0].mxu0 %v890
        %v5349 = vpop.f32.mrb[0].mxu0
        %v5350 = vadd.f32 0.0, %v5349
        %v5351 = vpop.f32.mrb[0].mxu0
        %v5352 = vadd.f32 0.0, %v5351
        %5353 = vmatprep.mubr.f32.mxu0 0.0
        %5354 = vmatmul.mubr.f32.gmra.mrb[0].mxu0 %v893
        %v5355 = vpop.f32.mrb[0].mxu0
        %v5356 = vadd.f32 0.0, %v5355
        %v5357 = vpop.f32.mrb[0].mxu0
        %v5358 = vadd.f32 0.0, %v5357
        %5359 = vmatprep.mubr.f32.mxu0 0.0
        %5360 = vmatmul.mubr.f32.gmra.mrb[0].mxu0 %v896
        %v5361 = vpop.f32.mrb[0].mxu0
        %v5362 = vadd.f32 0.0, %v5361
        %v5363 = vpop.f32.mrb[0].mxu0
        %v5364 = vadd.f32 0.0, %v5363
        %5365 = vmatprep.mubr.f32.mxu0 0.0
        %5366 = vmatmul.mubr.f32.gmra.mrb[0].mxu0 %v899
        %v5367 = vpop.f32.mrb[0].mxu0
        %v5368 = vadd.f32 0.0, %v5367
        %v5369 = vpop.f32.mrb[0].mxu0
        %v5370 = vadd.f32 0.0, %v5369
        %5371 = vmatprep.mubr.f32.mxu0 0.0
        %5372 = vmatmul.mubr.f32.gmra.mrb[0].mxu0 %v902
        %v5373 = vpop.f32.mrb[0].mxu0
        %v5374 = vadd.f32 0.0, %v5373
        %v5375 = vpop.f32.mrb[0].mxu0
        %v5376 = vadd.f32 0.0, %v5375
        %5377 = vmatprep.mubr.f32.mxu0 0.0
        %5378 = vmatmul.mubr.f32.gmra.mrb[0].mxu0 %v905
        %v5379 = vpop.f32.mrb[0].mxu0
        %v5380 = vadd.f32 0.0, %v5379
        %v5381 = vpop.f32.mrb[0].mxu0
        %v5382 = vadd.f32 0.0, %v5381
        %5383 = vmatprep.mubr.f32.mxu0 0.0
        %5384 = vmatmul.mubr.f32.gmra.mrb[0].mxu0 %v908
        %v5385 = vpop.f32.mrb[0].mxu0
        %v5386 = vadd.f32 0.0, %v5385
        %v5387 = vpop.f32.mrb[0].mxu0
        %v5388 = vadd.f32 0.0, %v5387
        %5389 = vmatprep.mubr.f32.mxu0 0.0
        %5390 = vmatmul.mubr.f32.gmra.mrb[0].mxu0 %v911
        %v5391 = vpop.f32.mrb[0].mxu0
        %v5392 = vadd.f32 0.0, %v5391
        %v5393 = vpop.f32.mrb[0].mxu0
        %v5394 = vadd.f32 0.0, %v5393
        %5395 = vmatprep.mubr.f32.mxu0 0.0
        %5396 = vmatmul.mubr.f32.gmra.mrb[0].mxu0 %v914
        %v5397 = vpop.f32.mrb[0].mxu0
        %v5398 = vadd.f32 0.0, %v5397
        %v5399 = vpop.f32.mrb[0].mxu0
        %v5400 = vadd.f32 0.0, %v5399
        %5401 = vmatprep.mubr.f32.mxu0 0.0
        %5402 = vmatmul.mubr.f32.gmra.mrb[0].mxu0 %v917
        %v5403 = vpop.f32.mrb[0].mxu0
        %v5404 = vadd.f32 0.0, %v5403
        %v5405 = vpop.f32.mrb[0].mxu0
        %v5406 = vadd.f32 0.0, %v5405
        %5407 = vmatprep.mubr.f32.mxu0 0.0
        %5408 = vmatmul.mubr.f32.gmra.mrb[0].mxu0 %v920
        %v5409 = vpop.f32.mrb[0].mxu0
        %v5410 = vadd.f32 0.0, %v5409
        %v5411 = vpop.f32.mrb[0].mxu0
        %v5412 = vadd.f32 0.0, %v5411
        %5413 = vmatprep.mubr.f32.mxu0 0.0
        %5414 = vmatmul.mubr.f32.gmra.mrb[0].mxu0 %v923
        %v5415 = vpop.f32.mrb[0].mxu0
        %v5416 = vadd.f32 0.0, %v5415
        %v5417 = vpop.f32.mrb[0].mxu0
        %v5418 = vadd.f32 0.0, %v5417
        %5419 = vmatprep.mubr.f32.mxu0 0.0
        %5420 = vmatmul.mubr.f32.gmra.mrb[0].mxu0 %v926
        %v5421 = vpop.f32.mrb[0].mxu0
        %v5422 = vadd.f32 0.0, %v5421
        %v5423 = vpop.f32.mrb[0].mxu0
        %v5424 = vadd.f32 0.0, %v5423
        %5425 = vmatprep.mubr.f32.mxu0 0.0
        %5426 = vmatmul.mubr.f32.gmra.mrb[0].mxu0 %v929
        %v5427 = vpop.f32.mrb[0].mxu0
        %v5428 = vadd.f32 0.0, %v5427
        %v5429 = vpop.f32.mrb[0].mxu0
        %v5430 = vadd.f32 0.0, %v5429
        %5431 = vmatprep.mubr.f32.mxu0 0.0
        %5432 = vmatmul.mubr.f32.gmra.mrb[0].mxu0 %v932
        %v5433 = vpop.f32.mrb[0].mxu0
        %v5434 = vadd.f32 0.0, %v5433
        %v5435 = vpop.f32.mrb[0].mxu0
        %v5436 = vadd.f32 0.0, %v5435
        %5437 = vmatprep.mubr.f32.mxu0 0.0
        %5438 = vmatmul.mubr.f32.gmra.mrb[0].mxu0 %v935
        %v5439 = vpop.f32.mrb[0].mxu0
        %v5440 = vadd.f32 0.0, %v5439
        %v5441 = vpop.f32.mrb[0].mxu0
        %v5442 = vadd.f32 0.0, %v5441
        %5443 = vmatprep.mubr.f32.mxu0 0.0
        %5444 = vmatmul.mubr.f32.gmra.mrb[0].mxu0 %v938
        %v5445 = vpop.f32.mrb[0].mxu0
        %v5446 = vadd.f32 0.0, %v5445
        %v5447 = vpop.f32.mrb[0].mxu0
        %v5448 = vadd.f32 0.0, %v5447
        %5449 = vmatprep.mubr.f32.mxu0 0.0
        %5450 = vmatmul.mubr.f32.gmra.mrb[0].mxu0 %v941
        %v5451 = vpop.f32.mrb[0].mxu0
        %v5452 = vadd.f32 0.0, %v5451
        %v5453 = vpop.f32.mrb[0].mxu0
        %v5454 = vadd.f32 0.0, %v5453
        %5455 = vmatprep.mubr.f32.mxu0 0.0
        %5456 = vmatmul.mubr.f32.gmra.mrb[0].mxu0 %v944
        %v5457 = vpop.f32.mrb[0].mxu0
        %v5458 = vadd.f32 0.0, %v5457
        %v5459 = vpop.f32.mrb[0].mxu0
        %v5460 = vadd.f32 0.0, %v5459
        %5461 = vmatprep.mubr.f32.mxu0 0.0
        %5462 = vmatmul.mubr.f32.gmra.mrb[0].mxu0 %v947
        %v5463 = vpop.f32.mrb[0].mxu0
        %v5464 = vadd.f32 0.0, %v5463
        %v5465 = vpop.f32.mrb[0].mxu0
        %v5466 = vadd.f32 0.0, %v5465
        %5467 = vmatprep.mubr.f32.mxu0 0.0
        %5468 = vmatmul.mubr.f32.gmra.mrb[0].mxu0 %v950
        %v5469 = vpop.f32.mrb[0].mxu0
        %v5470 = vadd.f32 0.0, %v5469
        %v5471 = vpop.f32.mrb[0].mxu0
        %v5472 = vadd.f32 0.0, %v5471
        %5473 = vmatprep.mubr.f32.mxu0 0.0
        %5474 = vmatmul.mubr.f32.gmra.mrb[0].mxu0 %v953
        %v5475 = vpop.f32.mrb[0].mxu0
        %v5476 = vadd.f32 0.0, %v5475
        %v5477 = vpop.f32.mrb[0].mxu0
        %v5478 = vadd.f32 0.0, %v5477
        %5479 = vmatprep.mubr.f32.mxu0 0.0
        %5480 = vmatmul.mubr.f32.gmra.mrb[0].mxu0 %v956
        %v5481 = vpop.f32.mrb[0].mxu0
        %v5482 = vadd.f32 0.0, %v5481
        %v5483 = vpop.f32.mrb[0].mxu0
        %v5484 = vadd.f32 0.0, %v5483
        %5485 = vmatprep.mubr.f32.mxu0 0.0
        %5486 = vmatmul.mubr.f32.gmra.mrb[0].mxu0 %v959
        %v5487 = vpop.f32.mrb[0].mxu0
        %v5488 = vadd.f32 0.0, %v5487
        %v5489 = vpop.f32.mrb[0].mxu0
        %v5490 = vadd.f32 0.0, %v5489
        %5491 = vmatprep.mubr.f32.mxu0 0.0
        %5492 = vmatmul.mubr.f32.gmra.mrb[0].mxu0 %v962
        %v5493 = vpop.f32.mrb[0].mxu0
        %v5494 = vadd.f32 0.0, %v5493
        %v5495 = vpop.f32.mrb[0].mxu0
        %v5496 = vadd.f32 0.0, %v5495
        %5497 = vmatprep.mubr.f32.mxu0 0.0
        %5498 = vmatmul.mubr.f32.gmra.mrb[0].mxu0 %v965
        %v5499 = vpop.f32.mrb[0].mxu0
        %v5500 = vadd.f32 0.0, %v5499
        %v5501 = vpop.f32.mrb[0].mxu0
        %v5502 = vadd.f32 0.0, %v5501
        %5503 = vmatprep.mubr.f32.mxu0 0.0
        %5504 = vmatmul.mubr.f32.gmra.mrb[0].mxu0 %v968
        %v5505 = vpop.f32.mrb[0].mxu0
        %v5506 = vadd.f32 0.0, %v5505
        %v5507 = vpop.f32.mrb[0].mxu0
        %v5508 = vadd.f32 0.0, %v5507
        %5509 = vmatprep.mubr.f32.mxu0 0.0
        %5510 = vmatmul.mubr.f32.gmra.mrb[0].mxu0 %v971
        %v5511 = vpop.f32.mrb[0].mxu0
        %v5512 = vadd.f32 0.0, %v5511
        %v5513 = vpop.f32.mrb[0].mxu0
        %v5514 = vadd.f32 0.0, %v5513
        %5515 = vmatprep.mubr.f32.mxu0 0.0
        %5516 = vmatmul.mubr.f32.gmra.mrb[0].mxu0 %v974
        %v5517 = vpop.f32.mrb[0].mxu0
        %v5518 = vadd.f32 0.0, %v5517
        %v5519 = vpop.f32.mrb[0].mxu0
        %v5520 = vadd.f32 0.0, %v5519
        %5521 = vmatprep.mubr.f32.mxu0 0.0
        %5522 = vmatmul.mubr.f32.gmra.mrb[0].mxu0 %v977
        %v5523 = vpop.f32.mrb[0].mxu0
        %v5524 = vadd.f32 0.0, %v5523
        %v5525 = vpop.f32.mrb[0].mxu0
        %v5526 = vadd.f32 0.0, %v5525
        %5527 = vmatprep.mubr.f32.mxu0 0.0
        %5528 = vmatmul.mubr.f32.gmra.mrb[0].mxu0 %v980
        %v5529 = vpop.f32.mrb[0].mxu0
        %v5530 = vadd.f32 0.0, %v5529
        %v5531 = vpop.f32.mrb[0].mxu0
        %v5532 = vadd.f32 0.0, %v5531
        %5533 = vmatprep.mubr.f32.mxu0 0.0
        %5534 = vmatmul.mubr.f32.gmra.mrb[0].mxu0 %v983
        %v5535 = vpop.f32.mrb[0].mxu0
        %v5536 = vadd.f32 0.0, %v5535
        %v5537 = vpop.f32.mrb[0].mxu0
        %v5538 = vadd.f32 0.0, %v5537
        %5539 = vmatprep.mubr.f32.mxu0 0.0
        %5540 = vmatmul.mubr.f32.gmra.mrb[0].mxu0 %v986
        %v5541 = vpop.f32.mrb[0].mxu0
        %v5542 = vadd.f32 0.0, %v5541
        %v5543 = vpop.f32.mrb[0].mxu0
        %v5544 = vadd.f32 0.0, %v5543
        %5545 = vmatprep.mubr.f32.mxu0 0.0
        %5546 = vmatmul.mubr.f32.gmra.mrb[0].mxu0 %v989
        %v5547 = vpop.f32.mrb[0].mxu0
        %v5548 = vadd.f32 0.0, %v5547
        %v5549 = vpop.f32.mrb[0].mxu0
        %v5550 = vadd.f32 0.0, %v5549
        %5551 = vmatprep.mubr.f32.mxu0 0.0
        %5552 = vmatmul.mubr.f32.gmra.mrb[0].mxu0 %v992
        %v5553 = vpop.f32.mrb[0].mxu0
        %v5554 = vadd.f32 0.0, %v5553
        %v5555 = vpop.f32.mrb[0].mxu0
        %v5556 = vadd.f32 0.0, %v5555
        %5557 = vmatprep.mubr.f32.mxu0 0.0
        %5558 = vmatmul.mubr.f32.gmra.mrb[0].mxu0 %v995
        %v5559 = vpop.f32.mrb[0].mxu0
        %v5560 = vadd.f32 0.0, %v5559
        %v5561 = vpop.f32.mrb[0].mxu0
        %v5562 = vadd.f32 0.0, %v5561
        %5563 = vmatprep.mubr.f32.mxu0 0.0
        %5564 = vmatmul.mubr.f32.gmra.mrb[0].mxu0 %v998
        %v5565 = vpop.f32.mrb[0].mxu0
        %v5566 = vadd.f32 0.0, %v5565
        %v5567 = vpop.f32.mrb[0].mxu0
        %v5568 = vadd.f32 0.0, %v5567
        %5569 = vmatprep.mubr.f32.mxu0 0.0
        %5570 = vmatmul.mubr.f32.gmra.mrb[0].mxu0 %v1001
        %v5571 = vpop.f32.mrb[0].mxu0
        %v5572 = vadd.f32 0.0, %v5571
        %v5573 = vpop.f32.mrb[0].mxu0
        %v5574 = vadd.f32 0.0, %v5573
        %5575 = vmatprep.mubr.f32.mxu0 0.0
        %5576 = vmatmul.mubr.f32.gmra.mrb[0].mxu0 %v1004
        %v5577 = vpop.f32.mrb[0].mxu0
        %v5578 = vadd.f32 0.0, %v5577
        %v5579 = vpop.f32.mrb[0].mxu0
        %v5580 = vadd.f32 0.0, %v5579
        %5581 = vmatprep.mubr.f32.mxu0 0.0
        %5582 = vmatmul.mubr.f32.gmra.mrb[0].mxu0 %v1007
        %v5583 = vpop.f32.mrb[0].mxu0
        %v5584 = vadd.f32 0.0, %v5583
        %v5585 = vpop.f32.mrb[0].mxu0
        %v5586 = vadd.f32 0.0, %v5585
        %5587 = vmatprep.mubr.f32.mxu0 0.0
        %5588 = vmatmul.mubr.f32.gmra.mrb[0].mxu0 %v1010
        %v5589 = vpop.f32.mrb[0].mxu0
        %v5590 = vadd.f32 0.0, %v5589
        %v5591 = vpop.f32.mrb[0].mxu0
        %v5592 = vadd.f32 0.0, %v5591
        %5593 = vmatprep.mubr.f32.mxu0 0.0
        %5594 = vmatmul.mubr.f32.gmra.mrb[0].mxu0 %v1013
        %v5595 = vpop.f32.mrb[0].mxu0
        %v5596 = vadd.f32 0.0, %v5595
        %v5597 = vpop.f32.mrb[0].mxu0
        %v5598 = vadd.f32 0.0, %v5597
        %5599 = vmatprep.mubr.f32.mxu0 0.0
        %5600 = vmatmul.mubr.f32.gmra.mrb[0].mxu0 %v1016
        %v5601 = vpop.f32.mrb[0].mxu0
        %v5602 = vadd.f32 0.0, %v5601
        %v5603 = vpop.f32.mrb[0].mxu0
        %v5604 = vadd.f32 0.0, %v5603
        %5605 = vmatprep.mubr.f32.mxu0 0.0
        %5606 = vmatmul.mubr.f32.gmra.mrb[0].mxu0 %v1019
        %v5607 = vpop.f32.mrb[0].mxu0
        %v5608 = vadd.f32 0.0, %v5607
        %v5609 = vpop.f32.mrb[0].mxu0
        %v5610 = vadd.f32 0.0, %v5609
        %5611 = vmatprep.mubr.f32.mxu0 0.0
        %5612 = vmatmul.mubr.f32.gmra.mrb[0].mxu0 %v1022
        %v5613 = vpop.f32.mrb[0].mxu0
        %v5614 = vadd.f32 0.0, %v5613
        %v5615 = vpop.f32.mrb[0].mxu0
        %v5616 = vadd.f32 0.0, %v5615
        %5617 = vmatprep.mubr.f32.mxu0 0.0
        %5618 = vmatmul.mubr.f32.gmra.mrb[0].mxu0 %v1025
        %v5619 = vpop.f32.mrb[0].mxu0
        %v5620 = vadd.f32 0.0, %v5619
        %v5621 = vpop.f32.mrb[0].mxu0
        %v5622 = vadd.f32 0.0, %v5621
        %5623 = vmatprep.mubr.f32.mxu0 0.0
        %5624 = vmatmul.mubr.f32.gmra.mrb[0].mxu0 %v1028
        %v5625 = vpop.f32.mrb[0].mxu0
        %v5626 = vadd.f32 0.0, %v5625
        %v5627 = vpop.f32.mrb[0].mxu0
        %v5628 = vadd.f32 0.0, %v5627
        %5629 = vmatprep.mubr.f32.mxu0 0.0
        %5630 = vmatmul.mubr.f32.gmra.mrb[0].mxu0 %v1031
        %v5631 = vpop.f32.mrb[0].mxu0
        %v5632 = vadd.f32 0.0, %v5631
        %v5633 = vpop.f32.mrb[0].mxu0
        %v5634 = vadd.f32 0.0, %v5633
        %5635 = vmatprep.mubr.f32.mxu0 0.0
        %5636 = vmatmul.mubr.f32.gmra.mrb[0].mxu0 %v1034
        %v5637 = vpop.f32.mrb[0].mxu0
        %v5638 = vadd.f32 0.0, %v5637
        %v5639 = vpop.f32.mrb[0].mxu0
        %v5640 = vadd.f32 0.0, %v5639
        %5641 = vmatprep.mubr.f32.mxu0 0.0
        %5642 = vmatmul.mubr.f32.gmra.mrb[0].mxu0 %v1037
        %v5643 = vpop.f32.mrb[0].mxu0
        %v5644 = vadd.f32 0.0, %v5643
        %v5645 = vpop.f32.mrb[0].mxu0
        %v5646 = vadd.f32 0.0, %v5645
        %5647 = vmatprep.mubr.f32.mxu0 0.0
        %5648 = vmatmul.mubr.f32.gmra.mrb[0].mxu0 %v1040
        %v5649 = vpop.f32.mrb[0].mxu0
        %v5650 = vadd.f32 0.0, %v5649
        %v5651 = vpop.f32.mrb[0].mxu0
        %v5652 = vadd.f32 0.0, %v5651
        %5653 = vmatprep.mubr.f32.mxu0 0.0
        %5654 = vmatmul.mubr.f32.gmra.mrb[0].mxu0 %v1043
        %v5655 = vpop.f32.mrb[0].mxu0
        %v5656 = vadd.f32 0.0, %v5655
        %v5657 = vpop.f32.mrb[0].mxu0
        %v5658 = vadd.f32 0.0, %v5657
        %5659 = vmatprep.mubr.f32.mxu0 0.0
        %5660 = vmatmul.mubr.f32.gmra.mrb[0].mxu0 %v1046
        %v5661 = vpop.f32.mrb[0].mxu0
        %v5662 = vadd.f32 0.0, %v5661
        %v5663 = vpop.f32.mrb[0].mxu0
        %v5664 = vadd.f32 0.0, %v5663
        %5665 = vmatprep.mubr.f32.mxu0 0.0
        %5666 = vmatmul.mubr.f32.gmra.mrb[0].mxu0 %v1049
        %v5667 = vpop.f32.mrb[0].mxu0
        %v5668 = vadd.f32 0.0, %v5667
        %v5669 = vpop.f32.mrb[0].mxu0
        %v5670 = vadd.f32 0.0, %v5669
        %5671 = vmatprep.mubr.f32.mxu0 0.0
        %5672 = vmatmul.mubr.f32.gmra.mrb[0].mxu0 %v1052
        %v5673 = vpop.f32.mrb[0].mxu0
        %v5674 = vadd.f32 0.0, %v5673
        %v5675 = vpop.f32.mrb[0].mxu0
        %v5676 = vadd.f32 0.0, %v5675
        %5677 = vmatprep.mubr.f32.mxu0 0.0
        %5678 = vmatmul.mubr.f32.gmra.mrb[0].mxu0 %v1055
        %v5679 = vpop.f32.mrb[0].mxu0
        %v5680 = vadd.f32 0.0, %v5679
        %v5681 = vpop.f32.mrb[0].mxu0
        %v5682 = vadd.f32 0.0, %v5681
        %5683 = vmatprep.mubr.f32.mxu0 0.0
        %5684 = vmatmul.mubr.f32.gmra.mrb[0].mxu0 %v1058
        %v5685 = vpop.f32.mrb[0].mxu0
        %v5686 = vadd.f32 0.0, %v5685
        %v5687 = vpop.f32.mrb[0].mxu0
        %v5688 = vadd.f32 0.0, %v5687
        %5689 = vmatprep.mubr.f32.mxu0 0.0
        %5690 = vmatmul.mubr.f32.gmra.mrb[0].mxu0 %v1061
        %v5691 = vpop.f32.mrb[0].mxu0
        %v5692 = vadd.f32 0.0, %v5691
        %v5693 = vpop.f32.mrb[0].mxu0
        %v5694 = vadd.f32 0.0, %v5693
        %5695 = vmatprep.mubr.f32.mxu0 0.0
        %5696 = vmatmul.mubr.f32.gmra.mrb[0].mxu0 %v1064
        %v5697 = vpop.f32.mrb[0].mxu0
        %v5698 = vadd.f32 0.0, %v5697
        %v5699 = vpop.f32.mrb[0].mxu0
        %v5700 = vadd.f32 0.0, %v5699
        %5701 = vmatprep.mubr.f32.mxu0 0.0
        %5702 = vmatmul.mubr.f32.gmra.mrb[0].mxu0 %v1067
        %v5703 = vpop.f32.mrb[0].mxu0
        %v5704 = vadd.f32 0.0, %v5703
        %v5705 = vpop.f32.mrb[0].mxu0
        %v5706 = vadd.f32 0.0, %v5705
        %5707 = vmatprep.mubr.f32.mxu0 0.0
        %5708 = vmatmul.mubr.f32.gmra.mrb[0].mxu0 %v1070
        %v5709 = vpop.f32.mrb[0].mxu0
        %v5710 = vadd.f32 0.0, %v5709
        %v5711 = vpop.f32.mrb[0].mxu0
        %v5712 = vadd.f32 0.0, %v5711
        %5713 = vmatprep.mubr.f32.mxu0 0.0
        %5714 = vmatmul.mubr.f32.gmra.mrb[0].mxu0 %v1073
        %v5715 = vpop.f32.mrb[0].mxu0
        %v5716 = vadd.f32 0.0, %v5715
        %v5717 = vpop.f32.mrb[0].mxu0
        %v5718 = vadd.f32 0.0, %v5717
        %5719 = vmatprep.mubr.f32.mxu0 0.0
        %5720 = vmatmul.mubr.f32.gmra.mrb[0].mxu0 %v1076
        %v5721 = vpop.f32.mrb[0].mxu0
        %v5722 = vadd.f32 0.0, %v5721
        %v5723 = vpop.f32.mrb[0].mxu0
        %v5724 = vadd.f32 0.0, %v5723
        %5725 = vmatprep.mubr.f32.mxu0 0.0
        %5726 = vmatmul.mubr.f32.gmra.mrb[0].mxu0 %v1079
        %v5727 = vpop.f32.mrb[0].mxu0
        %v5728 = vadd.f32 0.0, %v5727
        %v5729 = vpop.f32.mrb[0].mxu0
        %v5730 = vadd.f32 0.0, %v5729
        %5731 = vmatprep.mubr.f32.mxu0 0.0
        %5732 = vmatmul.mubr.f32.gmra.mrb[0].mxu0 %v1082
        %v5733 = vpop.f32.mrb[0].mxu0
        %v5734 = vadd.f32 0.0, %v5733
        %v5735 = vpop.f32.mrb[0].mxu0
        %v5736 = vadd.f32 0.0, %v5735
        %5737 = vmatprep.mubr.f32.mxu0 0.0
        %5738 = vmatmul.mubr.f32.gmra.mrb[0].mxu0 %v1085
        %v5739 = vpop.f32.mrb[0].mxu0
        %v5740 = vadd.f32 0.0, %v5739
        %v5741 = vpop.f32.mrb[0].mxu0
        %v5742 = vadd.f32 0.0, %v5741
        %5743 = vmatprep.mubr.f32.mxu0 0.0
        %5744 = vmatmul.mubr.f32.gmra.mrb[0].mxu0 %v1088
        %v5745 = vpop.f32.mrb[0].mxu0
        %v5746 = vadd.f32 0.0, %v5745
        %v5747 = vpop.f32.mrb[0].mxu0
        %v5748 = vadd.f32 0.0, %v5747
        %5749 = vmatprep.mubr.f32.mxu0 0.0
        %5750 = vmatmul.mubr.f32.gmra.mrb[0].mxu0 %v1091
        %v5751 = vpop.f32.mrb[0].mxu0
        %v5752 = vadd.f32 0.0, %v5751
        %v5753 = vpop.f32.mrb[0].mxu0
        %v5754 = vadd.f32 0.0, %v5753
        %5755 = vmatprep.mubr.f32.mxu0 0.0
        %5756 = vmatmul.mubr.f32.gmra.mrb[0].mxu0 %v1094
        %v5757 = vpop.f32.mrb[0].mxu0
        %v5758 = vadd.f32 0.0, %v5757
        %v5759 = vpop.f32.mrb[0].mxu0
        %v5760 = vadd.f32 0.0, %v5759
        %5761 = vmatprep.mubr.f32.mxu0 0.0
        %5762 = vmatmul.mubr.f32.gmra.mrb[0].mxu0 %v1097
        %v5763 = vpop.f32.mrb[0].mxu0
        %v5764 = vadd.f32 0.0, %v5763
        %v5765 = vpop.f32.mrb[0].mxu0
        %v5766 = vadd.f32 0.0, %v5765
        %5767 = vmatprep.mubr.f32.mxu0 0.0
        %5768 = vmatmul.mubr.f32.gmra.mrb[0].mxu0 %v1100
        %v5769 = vpop.f32.mrb[0].mxu0
        %v5770 = vadd.f32 0.0, %v5769
        %v5771 = vpop.f32.mrb[0].mxu0
        %v5772 = vadd.f32 0.0, %v5771
        %5773 = vmatprep.mubr.f32.mxu0 0.0
        %5774 = vmatmul.mubr.f32.gmra.mrb[0].mxu0 %v1103
        %v5775 = vpop.f32.mrb[0].mxu0
        %v5776 = vadd.f32 0.0, %v5775
        %v5777 = vpop.f32.mrb[0].mxu0
        %v5778 = vadd.f32 0.0, %v5777
        %5779 = vmatprep.mubr.f32.mxu0 0.0
        %5780 = vmatmul.mubr.f32.gmra.mrb[0].mxu0 %v1106
        %v5781 = vpop.f32.mrb[0].mxu0
        %v5782 = vadd.f32 0.0, %v5781
        %v5783 = vpop.f32.mrb[0].mxu0
        %v5784 = vadd.f32 0.0, %v5783
        %5785 = vmatprep.mubr.f32.mxu0 0.0
        %5786 = vmatmul.mubr.f32.gmra.mrb[0].mxu0 %v1109
        %v5787 = vpop.f32.mrb[0].mxu0
        %v5788 = vadd.f32 0.0, %v5787
        %v5789 = vpop.f32.mrb[0].mxu0
        %v5790 = vadd.f32 0.0, %v5789
        %5791 = vmatprep.mubr.f32.mxu0 0.0
        %5792 = vmatmul.mubr.f32.gmra.mrb[0].mxu0 %v1112
        %v5793 = vpop.f32.mrb[0].mxu0
        %v5794 = vadd.f32 0.0, %v5793
        %v5795 = vpop.f32.mrb[0].mxu0
        %v5796 = vadd.f32 0.0, %v5795
        %5797 = vmatprep.mubr.f32.mxu0 0.0
        %5798 = vmatmul.mubr.f32.gmra.mrb[0].mxu0 %v1115
        %v5799 = vpop.f32.mrb[0].mxu0
        %v5800 = vadd.f32 0.0, %v5799
        %v5801 = vpop.f32.mrb[0].mxu0
        %v5802 = vadd.f32 0.0, %v5801
        %5803 = vmatprep.mubr.f32.mxu0 0.0
        %5804 = vmatmul.mubr.f32.gmra.mrb[0].mxu0 %v1118
        %v5805 = vpop.f32.mrb[0].mxu0
        %v5806 = vadd.f32 0.0, %v5805
        %v5807 = vpop.f32.mrb[0].mxu0
        %v5808 = vadd.f32 0.0, %v5807
        %5809 = vmatprep.mubr.f32.mxu0 0.0
        %5810 = vmatmul.mubr.f32.gmra.mrb[0].mxu0 %v1121
        %v5811 = vpop.f32.mrb[0].mxu0
        %v5812 = vadd.f32 0.0, %v5811
        %v5813 = vpop.f32.mrb[0].mxu0
        %v5814 = vadd.f32 0.0, %v5813
        %5815 = vmatprep.mubr.f32.mxu0 0.0
        %5816 = vmatmul.mubr.f32.gmra.mrb[0].mxu0 %v1124
        %v5817 = vpop.f32.mrb[0].mxu0
        %v5818 = vadd.f32 0.0, %v5817
        %v5819 = vpop.f32.mrb[0].mxu0
        %v5820 = vadd.f32 0.0, %v5819
        %5821 = vmatprep.mubr.f32.mxu0 0.0
        %5822 = vmatmul.mubr.f32.gmra.mrb[0].mxu0 %v1127
        %v5823 = vpop.f32.mrb[0].mxu0
        %v5824 = vadd.f32 0.0, %v5823
        %v5825 = vpop.f32.mrb[0].mxu0
        %v5826 = vadd.f32 0.0, %v5825
        %5827 = vmatprep.mubr.f32.mxu0 0.0
        %5828 = vmatmul.mubr.f32.gmra.mrb[0].mxu0 %v1130
        %v5829 = vpop.f32.mrb[0].mxu0
        %v5830 = vadd.f32 0.0, %v5829
        %v5831 = vpop.f32.mrb[0].mxu0
        %v5832 = vadd.f32 0.0, %v5831
        %5833 = vmatprep.mubr.f32.mxu0 0.0
        %5834 = vmatmul.mubr.f32.gmra.mrb[0].mxu0 %v1133
        %v5835 = vpop.f32.mrb[0].mxu0
        %v5836 = vadd.f32 0.0, %v5835
        %v5837 = vpop.f32.mrb[0].mxu0
        %v5838 = vadd.f32 0.0, %v5837
        %5839 = vmatprep.mubr.f32.mxu0 0.0
        %5840 = vmatmul.mubr.f32.gmra.mrb[0].mxu0 %v1136
        %v5841 = vpop.f32.mrb[0].mxu0
        %v5842 = vadd.f32 0.0, %v5841
        %v5843 = vpop.f32.mrb[0].mxu0
        %v5844 = vadd.f32 0.0, %v5843
        %5845 = vmatprep.mubr.f32.mxu0 0.0
        %5846 = vmatmul.mubr.f32.gmra.mrb[0].mxu0 %v1139
        %v5847 = vpop.f32.mrb[0].mxu0
        %v5848 = vadd.f32 0.0, %v5847
        %v5849 = vpop.f32.mrb[0].mxu0
        %v5850 = vadd.f32 0.0, %v5849
        %5851 = vmatprep.mubr.f32.mxu0 0.0
        %5852 = vmatmul.mubr.f32.gmra.mrb[0].mxu0 %v1142
        %v5853 = vpop.f32.mrb[0].mxu0
        %v5854 = vadd.f32 0.0, %v5853
        %v5855 = vpop.f32.mrb[0].mxu0
        %v5856 = vadd.f32 0.0, %v5855
        %5857 = vmatprep.mubr.f32.mxu0 0.0
        %5858 = vmatmul.mubr.f32.gmra.mrb[0].mxu0 %v1145
        %v5859 = vpop.f32.mrb[0].mxu0
        %v5860 = vadd.f32 0.0, %v5859
        %v5861 = vpop.f32.mrb[0].mxu0
        %v5862 = vadd.f32 0.0, %v5861
        %5863 = vmatprep.mubr.f32.mxu0 0.0
        %5864 = vmatmul.mubr.f32.gmra.mrb[0].mxu0 %v1148
        %v5865 = vpop.f32.mrb[0].mxu0
        %v5866 = vadd.f32 0.0, %v5865
        %v5867 = vpop.f32.mrb[0].mxu0
        %v5868 = vadd.f32 0.0, %v5867
        %5869 = vmatprep.mubr.f32.mxu0 0.0
        %5870 = vmatmul.mubr.f32.gmra.mrb[0].mxu0 %v1151
        %v5871 = vpop.f32.mrb[0].mxu0
        %v5872 = vadd.f32 0.0, %v5871
        %v5873 = vpop.f32.mrb[0].mxu0
        %v5874 = vadd.f32 0.0, %v5873
        %5875 = vmatprep.mubr.f32.mxu0 0.0
        %5876 = vmatmul.mubr.f32.gmra.mrb[0].mxu0 %v1154
        %v5877 = vpop.f32.mrb[0].mxu0
        %v5878 = vadd.f32 0.0, %v5877
        %v5879 = vpop.f32.mrb[0].mxu0
        %v5880 = vadd.f32 0.0, %v5879
        %5881 = vmatprep.mubr.f32.mxu0 0.0
        %5882 = vmatmul.mubr.f32.gmra.mrb[0].mxu0 %v1157
        %v5883 = vpop.f32.mrb[0].mxu0
        %v5884 = vadd.f32 0.0, %v5883
        %v5885 = vpop.f32.mrb[0].mxu0
        %v5886 = vadd.f32 0.0, %v5885
        %5887 = vmatprep.mubr.f32.mxu0 0.0
        %5888 = vmatmul.mubr.f32.gmra.mrb[0].mxu0 %v1160
        %v5889 = vpop.f32.mrb[0].mxu0
        %v5890 = vadd.f32 0.0, %v5889
        %v5891 = vpop.f32.mrb[0].mxu0
        %v5892 = vadd.f32 0.0, %v5891
        %5893 = vmatprep.mubr.f32.mxu0 0.0
        %5894 = vmatmul.mubr.f32.gmra.mrb[0].mxu0 %v1163
        %v5895 = vpop.f32.mrb[0].mxu0
        %v5896 = vadd.f32 0.0, %v5895
        %v5897 = vpop.f32.mrb[0].mxu0
        %v5898 = vadd.f32 0.0, %v5897
        %5899 = vmatprep.mubr.f32.mxu0 0.0
        %5900 = vmatmul.mubr.f32.gmra.mrb[0].mxu0 %v1166
        %v5901 = vpop.f32.mrb[0].mxu0
        %v5902 = vadd.f32 0.0, %v5901
        %v5903 = vpop.f32.mrb[0].mxu0
        %v5904 = vadd.f32 0.0, %v5903
        %5905 = vmatprep.mubr.f32.mxu0 0.0
        %5906 = vmatmul.mubr.f32.gmra.mrb[0].mxu0 %v1169
        %v5907 = vpop.f32.mrb[0].mxu0
        %v5908 = vadd.f32 0.0, %v5907
        %v5909 = vpop.f32.mrb[0].mxu0
        %v5910 = vadd.f32 0.0, %v5909
        %5911 = vmatprep.mubr.f32.mxu0 0.0
        %5912 = vmatmul.mubr.f32.gmra.mrb[0].mxu0 %v1172
        %v5913 = vpop.f32.mrb[0].mxu0
        %v5914 = vadd.f32 0.0, %v5913
        %v5915 = vpop.f32.mrb[0].mxu0
        %v5916 = vadd.f32 0.0, %v5915
        %5917 = vmatprep.mubr.f32.mxu0 0.0
        %5918 = vmatmul.mubr.f32.gmra.mrb[0].mxu0 %v1175
        %v5919 = vpop.f32.mrb[0].mxu0
        %v5920 = vadd.f32 0.0, %v5919
        %v5921 = vpop.f32.mrb[0].mxu0
        %v5922 = vadd.f32 0.0, %v5921
        %5923 = vmatprep.mubr.f32.mxu0 0.0
        %5924 = vmatmul.mubr.f32.gmra.mrb[0].mxu0 %v1178
        %v5925 = vpop.f32.mrb[0].mxu0
        %v5926 = vadd.f32 0.0, %v5925
        %v5927 = vpop.f32.mrb[0].mxu0
        %v5928 = vadd.f32 0.0, %v5927
        %5929 = vmatprep.mubr.f32.mxu0 0.0
        %5930 = vmatmul.mubr.f32.gmra.mrb[0].mxu0 %v1181
        %v5931 = vpop.f32.mrb[0].mxu0
        %v5932 = vadd.f32 0.0, %v5931
        %v5933 = vpop.f32.mrb[0].mxu0
        %v5934 = vadd.f32 0.0, %v5933
        %5935 = vmatprep.mubr.f32.mxu0 0.0
        %5936 = vmatmul.mubr.f32.gmra.mrb[0].mxu0 %v1184
        %v5937 = vpop.f32.mrb[0].mxu0
        %v5938 = vadd.f32 0.0, %v5937
        %v5939 = vpop.f32.mrb[0].mxu0
        %v5940 = vadd.f32 0.0, %v5939
        %5941 = vmatprep.mubr.f32.mxu0 0.0
        %5942 = vmatmul.mubr.f32.gmra.mrb[0].mxu0 %v1187
        %v5943 = vpop.f32.mrb[0].mxu0
        %v5944 = vadd.f32 0.0, %v5943
        %v5945 = vpop.f32.mrb[0].mxu0
        %v5946 = vadd.f32 0.0, %v5945
        %5947 = vmatprep.mubr.f32.mxu0 0.0
        %5948 = vmatmul.mubr.f32.gmra.mrb[0].mxu0 %v1190
        %v5949 = vpop.f32.mrb[0].mxu0
        %v5950 = vadd.f32 0.0, %v5949
        %v5951 = vpop.f32.mrb[0].mxu0
        %v5952 = vadd.f32 0.0, %v5951
        %5953 = vmatprep.mubr.f32.mxu0 0.0
        %5954 = vmatmul.mubr.f32.gmra.mrb[0].mxu0 %v1193
        %v5955 = vpop.f32.mrb[0].mxu0
        %v5956 = vadd.f32 0.0, %v5955
        %v5957 = vpop.f32.mrb[0].mxu0
        %v5958 = vadd.f32 0.0, %v5957
        %5959 = vmatprep.mubr.f32.mxu0 0.0
        %5960 = vmatmul.mubr.f32.gmra.mrb[0].mxu0 %v1196
        %v5961 = vpop.f32.mrb[0].mxu0
        %v5962 = vadd.f32 0.0, %v5961
        %v5963 = vpop.f32.mrb[0].mxu0
        %v5964 = vadd.f32 0.0, %v5963
        %5965 = vmatprep.mubr.f32.mxu0 0.0
        %5966 = vmatmul.mubr.f32.gmra.mrb[0].mxu0 %v1199
        %v5967 = vpop.f32.mrb[0].mxu0
        %v5968 = vadd.f32 0.0, %v5967
        %v5969 = vpop.f32.mrb[0].mxu0
        %v5970 = vadd.f32 0.0, %v5969
        %5971 = vmatprep.mubr.f32.mxu0 0.0
        %5972 = vmatmul.mubr.f32.gmra.mrb[0].mxu0 %v1202
        %v5973 = vpop.f32.mrb[0].mxu0
        %v5974 = vadd.f32 0.0, %v5973
        %v5975 = vpop.f32.mrb[0].mxu0
        %v5976 = vadd.f32 0.0, %v5975
        %5977 = vmatprep.mubr.f32.mxu0 0.0
        %5978 = vmatmul.mubr.f32.gmra.mrb[0].mxu0 %v1205
        %v5979 = vpop.f32.mrb[0].mxu0
        %v5980 = vadd.f32 0.0, %v5979
        %v5981 = vpop.f32.mrb[0].mxu0
        %v5982 = vadd.f32 0.0, %v5981
        %5983 = vmatprep.mubr.f32.mxu0 0.0
        %5984 = vmatmul.mubr.f32.gmra.mrb[0].mxu0 %v1208
        %v5985 = vpop.f32.mrb[0].mxu0
        %v5986 = vadd.f32 0.0, %v5985
        %v5987 = vpop.f32.mrb[0].mxu0
        %v5988 = vadd.f32 0.0, %v5987
        %5989 = vmatprep.mubr.f32.mxu0 0.0
        %5990 = vmatmul.mubr.f32.gmra.mrb[0].mxu0 %v1211
        %v5991 = vpop.f32.mrb[0].mxu0
        %v5992 = vadd.f32 0.0, %v5991
        %v5993 = vpop.f32.mrb[0].mxu0
        %v5994 = vadd.f32 0.0, %v5993
        %5995 = vmatprep.mubr.f32.mxu0 0.0
        %5996 = vmatmul.mubr.f32.gmra.mrb[0].mxu0 %v1214
        %v5997 = vpop.f32.mrb[0].mxu0
        %v5998 = vadd.f32 0.0, %v5997
        %v5999 = vpop.f32.mrb[0].mxu0
        %v6000 = vadd.f32 0.0, %v5999
        %6001 = vmatprep.mubr.f32.mxu0 0.0
        %6002 = vmatmul.mubr.f32.gmra.mrb[0].mxu0 %v1217
        %v6003 = vpop.f32.mrb[0].mxu0
        %v6004 = vadd.f32 0.0, %v6003
        %v6005 = vpop.f32.mrb[0].mxu0
        %v6006 = vadd.f32 0.0, %v6005
        %6007 = vmatprep.mubr.f32.mxu0 0.0
        %6008 = vmatmul.mubr.f32.gmra.mrb[0].mxu0 %v1220
        %v6009 = vpop.f32.mrb[0].mxu0
        %v6010 = vadd.f32 0.0, %v6009
        %v6011 = vpop.f32.mrb[0].mxu0
        %v6012 = vadd.f32 0.0, %v6011
        %6013 = vmatprep.mubr.f32.mxu0 0.0
        %6014 = vmatmul.mubr.f32.gmra.mrb[0].mxu0 %v1223
        %v6015 = vpop.f32.mrb[0].mxu0
        %v6016 = vadd.f32 0.0, %v6015
        %v6017 = vpop.f32.mrb[0].mxu0
        %v6018 = vadd.f32 0.0, %v6017
        %6019 = vmatprep.mubr.f32.mxu0 0.0
        %6020 = vmatmul.mubr.f32.gmra.mrb[0].mxu0 %v1226
        %v6021 = vpop.f32.mrb[0].mxu0
        %v6022 = vadd.f32 0.0, %v6021
        %v6023 = vpop.f32.mrb[0].mxu0
        %v6024 = vadd.f32 0.0, %v6023
        %6025 = vmatprep.mubr.f32.mxu0 0.0
        %6026 = vmatmul.mubr.f32.gmra.mrb[0].mxu0 %v1229
        %v6027 = vpop.f32.mrb[0].mxu0
        %v6028 = vadd.f32 0.0, %v6027
        %v6029 = vpop.f32.mrb[0].mxu0
        %v6030 = vadd.f32 0.0, %v6029
        %6031 = vmatprep.mubr.f32.mxu0 0.0
        %6032 = vmatmul.mubr.f32.gmra.mrb[0].mxu0 %v1232
        %v6033 = vpop.f32.mrb[0].mxu0
        %v6034 = vadd.f32 0.0, %v6033
        %v6035 = vpop.f32.mrb[0].mxu0
        %v6036 = vadd.f32 0.0, %v6035
        %6037 = vmatprep.mubr.f32.mxu0 0.0
        %6038 = vmatmul.mubr.f32.gmra.mrb[0].mxu0 %v1235
        %v6039 = vpop.f32.mrb[0].mxu0
        %v6040 = vadd.f32 0.0, %v6039
        %v6041 = vpop.f32.mrb[0].mxu0
        %v6042 = vadd.f32 0.0, %v6041
        %6043 = vmatprep.mubr.f32.mxu0 0.0
        %6044 = vmatmul.mubr.f32.gmra.mrb[0].mxu0 %v1238
        %v6045 = vpop.f32.mrb[0].mxu0
        %v6046 = vadd.f32 0.0, %v6045
        %v6047 = vpop.f32.mrb[0].mxu0
        %v6048 = vadd.f32 0.0, %v6047
        %6049 = vmatprep.mubr.f32.mxu0 0.0
        %6050 = vmatmul.mubr.f32.gmra.mrb[0].mxu0 %v1241
        %v6051 = vpop.f32.mrb[0].mxu0
        %v6052 = vadd.f32 0.0, %v6051
        %v6053 = vpop.f32.mrb[0].mxu0
        %v6054 = vadd.f32 0.0, %v6053
        %6055 = vmatprep.mubr.f32.mxu0 0.0
        %6056 = vmatmul.mubr.f32.gmra.mrb[0].mxu0 %v1244
        %v6057 = vpop.f32.mrb[0].mxu0
        %v6058 = vadd.f32 0.0, %v6057
        %v6059 = vpop.f32.mrb[0].mxu0
        %v6060 = vadd.f32 0.0, %v6059
        %6061 = vmatprep.mubr.f32.mxu0 0.0
        %6062 = vmatmul.mubr.f32.gmra.mrb[0].mxu0 %v1247
        %v6063 = vpop.f32.mrb[0].mxu0
        %v6064 = vadd.f32 0.0, %v6063
        %v6065 = vpop.f32.mrb[0].mxu0
        %v6066 = vadd.f32 0.0, %v6065
        %6067 = vmatprep.mubr.f32.mxu0 0.0
        %6068 = vmatmul.mubr.f32.gmra.mrb[0].mxu0 %v1250
        %v6069 = vpop.f32.mrb[0].mxu0
        %v6070 = vadd.f32 0.0, %v6069
        %v6071 = vpop.f32.mrb[0].mxu0
        %v6072 = vadd.f32 0.0, %v6071
        %6073 = vmatprep.mubr.f32.mxu0 0.0
        %6074 = vmatmul.mubr.f32.gmra.mrb[0].mxu0 %v1253
        %v6075 = vpop.f32.mrb[0].mxu0
        %v6076 = vadd.f32 0.0, %v6075
        %v6077 = vpop.f32.mrb[0].mxu0
        %v6078 = vadd.f32 0.0, %v6077
        %6079 = vdwg.mxu0
        %6080 = vst [vmem:[%s233] sm:$0xff] %v1322
        %6081 = vst [vmem:[%s233 + $0x8] sm:$0xff] %v1324
        %6082 = vst [vmem:[%s233 + $0x10] sm:$0xff] %v2287
        %6083 = vst [vmem:[%s233 + $0x18] sm:$0xff] %v2289
        %6084 = vst [vmem:[%s233 + $0x20] sm:$0xff] %v3252
        %6085 = vst [vmem:[%s233 + $0x28] sm:$0xff] %v3254
        %6086 = vst [vmem:[%s233 + $0x30] sm:$0xff] %v4217
        %6087 = vst [vmem:[%s233 + $0x38] sm:$0xff] %v4219
        %6088 = vst [vmem:[%s233 + $0x40] sm:$0xff] %v5182
        %vm6089 = vcmask 392192
        %6090 = vst.msk [vmem:[%s233 + $0x48] sm:$0xff] %vm6089, %v5184
        %6091 = vst [vmem:[%s233 + $0x50] sm:$0xff] %v1328
        %6092 = vst [vmem:[%s233 + $0x58] sm:$0xff] %v1330
        %6093 = vst [vmem:[%s233 + $0x60] sm:$0xff] %v2293
        %6094 = vst [vmem:[%s233 + $0x68] sm:$0xff] %v2295
        %6095 = vst [vmem:[%s233 + $0x70] sm:$0xff] %v3258
        %6096 = vst [vmem:[%s233 + $0x78] sm:$0xff] %v3260
        %6097 = vst [vmem:[%s233 + $0x80] sm:$0xff] %v4223
        %6098 = vst [vmem:[%s233 + $0x88] sm:$0xff] %v4225
        %6099 = vst [vmem:[%s233 + $0x90] sm:$0xff] %v5188
        %6100 = vst.msk [vmem:[%s233 + $0x98] sm:$0xff] %vm6089, %v5190
        %6101 = vst [vmem:[%s233 + $0xa0] sm:$0xff] %v1334
        %6102 = vst [vmem:[%s233 + $0xa8] sm:$0xff] %v1336
        %6103 = vst [vmem:[%s233 + $0xb0] sm:$0xff] %v2299
        %6104 = vst [vmem:[%s233 + $0xb8] sm:$0xff] %v2301
        %6105 = vst [vmem:[%s233 + $0xc0] sm:$0xff] %v3264
        %6106 = vst [vmem:[%s233 + $0xc8] sm:$0xff] %v3266
        %6107 = vst [vmem:[%s233 + $0xd0] sm:$0xff] %v4229
        %6108 = vst [vmem:[%s233 + $0xd8] sm:$0xff] %v4231
        %6109 = vst [vmem:[%s233 + $0xe0] sm:$0xff] %v5194
        %6110 = vst.msk [vmem:[%s233 + $0xe8] sm:$0xff] %vm6089, %v5196
        %6111 = vst [vmem:[%s233 + $0xf0] sm:$0xff] %v1340
        %6112 = vst [vmem:[%s233 + $0xf8] sm:$0xff] %v1342
        %6113 = vst [vmem:[%s233 + $0x100] sm:$0xff] %v2305
        %6114 = vst [vmem:[%s233 + $0x108] sm:$0xff] %v2307
        %6115 = vst [vmem:[%s233 + $0x110] sm:$0xff] %v3270
        %6116 = vst [vmem:[%s233 + $0x118] sm:$0xff] %v3272
        %6117 = vst [vmem:[%s233 + $0x120] sm:$0xff] %v4235
        %6118 = vst [vmem:[%s233 + $0x128] sm:$0xff] %v4237
        %6119 = vst [vmem:[%s233 + $0x130] sm:$0xff] %v5200
        %6120 = vst.msk [vmem:[%s233 + $0x138] sm:$0xff] %vm6089, %v5202
        %6121 = vst [vmem:[%s233 + $0x140] sm:$0xff] %v1346
        %6122 = vst [vmem:[%s233 + $0x148] sm:$0xff] %v1348
        %6123 = vst [vmem:[%s233 + $0x150] sm:$0xff] %v2311
        %6124 = vst [vmem:[%s233 + $0x158] sm:$0xff] %v2313
        %6125 = vst [vmem:[%s233 + $0x160] sm:$0xff] %v3276
        %6126 = vst [vmem:[%s233 + $0x168] sm:$0xff] %v3278
        %6127 = vst [vmem:[%s233 + $0x170] sm:$0xff] %v4241
        %6128 = vst [vmem:[%s233 + $0x178] sm:$0xff] %v4243
        %6129 = vst [vmem:[%s233 + $0x180] sm:$0xff] %v5206
        %6130 = vst.msk [vmem:[%s233 + $0x188] sm:$0xff] %vm6089, %v5208
        %6131 = vst [vmem:[%s233 + $0x190] sm:$0xff] %v1352
        %6132 = vst [vmem:[%s233 + $0x198] sm:$0xff] %v1354
        %6133 = vst [vmem:[%s233 + $0x1a0] sm:$0xff] %v2317
        %6134 = vst [vmem:[%s233 + $0x1a8] sm:$0xff] %v2319
        %6135 = vst [vmem:[%s233 + $0x1b0] sm:$0xff] %v3282
        %6136 = vst [vmem:[%s233 + $0x1b8] sm:$0xff] %v3284
        %6137 = vst [vmem:[%s233 + $0x1c0] sm:$0xff] %v4247
        %6138 = vst [vmem:[%s233 + $0x1c8] sm:$0xff] %v4249
        %6139 = vst [vmem:[%s233 + $0x1d0] sm:$0xff] %v5212
        %6140 = vst.msk [vmem:[%s233 + $0x1d8] sm:$0xff] %vm6089, %v5214
        %6141 = vst [vmem:[%s233 + $0x1e0] sm:$0xff] %v1358
        %6142 = vst [vmem:[%s233 + $0x1e8] sm:$0xff] %v1360
        %6143 = vst [vmem:[%s233 + $0x1f0] sm:$0xff] %v2323
        %6144 = vst [vmem:[%s233 + $0x1f8] sm:$0xff] %v2325
        %6145 = vst [vmem:[%s233 + $0x200] sm:$0xff] %v3288
        %6146 = vst [vmem:[%s233 + $0x208] sm:$0xff] %v3290
        %6147 = vst [vmem:[%s233 + $0x210] sm:$0xff] %v4253
        %6148 = vst [vmem:[%s233 + $0x218] sm:$0xff] %v4255
        %6149 = vst [vmem:[%s233 + $0x220] sm:$0xff] %v5218
        %6150 = vst.msk [vmem:[%s233 + $0x228] sm:$0xff] %vm6089, %v5220
        %6151 = vst [vmem:[%s233 + $0x230] sm:$0xff] %v1364
        %6152 = vst [vmem:[%s233 + $0x238] sm:$0xff] %v1366
        %6153 = vst [vmem:[%s233 + $0x240] sm:$0xff] %v2329
        %6154 = vst [vmem:[%s233 + $0x248] sm:$0xff] %v2331
        %6155 = vst [vmem:[%s233 + $0x250] sm:$0xff] %v3294
        %6156 = vst [vmem:[%s233 + $0x258] sm:$0xff] %v3296
        %6157 = vst [vmem:[%s233 + $0x260] sm:$0xff] %v4259
        %6158 = vst [vmem:[%s233 + $0x268] sm:$0xff] %v4261
        %6159 = vst [vmem:[%s233 + $0x270] sm:$0xff] %v5224
        %6160 = vst.msk [vmem:[%s233 + $0x278] sm:$0xff] %vm6089, %v5226
        %6161 = vst [vmem:[%s233 + $0x280] sm:$0xff] %v1370
        %6162 = vst [vmem:[%s233 + $0x288] sm:$0xff] %v1372
        %6163 = vst [vmem:[%s233 + $0x290] sm:$0xff] %v2335
        %6164 = vst [vmem:[%s233 + $0x298] sm:$0xff] %v2337
        %6165 = vst [vmem:[%s233 + $0x2a0] sm:$0xff] %v3300
        %6166 = vst [vmem:[%s233 + $0x2a8] sm:$0xff] %v3302
        %6167 = vst [vmem:[%s233 + $0x2b0] sm:$0xff] %v4265
        %6168 = vst [vmem:[%s233 + $0x2b8] sm:$0xff] %v4267
        %6169 = vst [vmem:[%s233 + $0x2c0] sm:$0xff] %v5230
        %6170 = vst.msk [vmem:[%s233 + $0x2c8] sm:$0xff] %vm6089, %v5232
        %6171 = vst [vmem:[%s233 + $0x2d0] sm:$0xff] %v1376
        %6172 = vst [vmem:[%s233 + $0x2d8] sm:$0xff] %v1378
        %6173 = vst [vmem:[%s233 + $0x2e0] sm:$0xff] %v2341
        %6174 = vst [vmem:[%s233 + $0x2e8] sm:$0xff] %v2343
        %6175 = vst [vmem:[%s233 + $0x2f0] sm:$0xff] %v3306
        %6176 = vst [vmem:[%s233 + $0x2f8] sm:$0xff] %v3308
        %6177 = vst [vmem:[%s233 + $0x300] sm:$0xff] %v4271
        %6178 = vst [vmem:[%s233 + $0x308] sm:$0xff] %v4273
        %6179 = vst [vmem:[%s233 + $0x310] sm:$0xff] %v5236
        %6180 = vst.msk [vmem:[%s233 + $0x318] sm:$0xff] %vm6089, %v5238
        %6181 = vst [vmem:[%s233 + $0x320] sm:$0xff] %v1382
        %6182 = vst [vmem:[%s233 + $0x328] sm:$0xff] %v1384
        %6183 = vst [vmem:[%s233 + $0x330] sm:$0xff] %v2347
        %6184 = vst [vmem:[%s233 + $0x338] sm:$0xff] %v2349
        %6185 = vst [vmem:[%s233 + $0x340] sm:$0xff] %v3312
        %6186 = vst [vmem:[%s233 + $0x348] sm:$0xff] %v3314
        %6187 = vst [vmem:[%s233 + $0x350] sm:$0xff] %v4277
        %6188 = vst [vmem:[%s233 + $0x358] sm:$0xff] %v4279
        %6189 = vst [vmem:[%s233 + $0x360] sm:$0xff] %v5242
        %6190 = vst.msk [vmem:[%s233 + $0x368] sm:$0xff] %vm6089, %v5244
        %6191 = vst [vmem:[%s233 + $0x370] sm:$0xff] %v1388
        %6192 = vst [vmem:[%s233 + $0x378] sm:$0xff] %v1390
        %6193 = vst [vmem:[%s233 + $0x380] sm:$0xff] %v2353
        %6194 = vst [vmem:[%s233 + $0x388] sm:$0xff] %v2355
        %6195 = vst [vmem:[%s233 + $0x390] sm:$0xff] %v3318
        %6196 = vst [vmem:[%s233 + $0x398] sm:$0xff] %v3320
        %6197 = vst [vmem:[%s233 + $0x3a0] sm:$0xff] %v4283
        %6198 = vst [vmem:[%s233 + $0x3a8] sm:$0xff] %v4285
        %6199 = vst [vmem:[%s233 + $0x3b0] sm:$0xff] %v5248
        %6200 = vst.msk [vmem:[%s233 + $0x3b8] sm:$0xff] %vm6089, %v5250
        %6201 = vst [vmem:[%s233 + $0x3c0] sm:$0xff] %v1394
        %6202 = vst [vmem:[%s233 + $0x3c8] sm:$0xff] %v1396
        %6203 = vst [vmem:[%s233 + $0x3d0] sm:$0xff] %v2359
        %6204 = vst [vmem:[%s233 + $0x3d8] sm:$0xff] %v2361
        %6205 = vst [vmem:[%s233 + $0x3e0] sm:$0xff] %v3324
        %6206 = vst [vmem:[%s233 + $0x3e8] sm:$0xff] %v3326
        %6207 = vst [vmem:[%s233 + $0x3f0] sm:$0xff] %v4289
        %6208 = vst [vmem:[%s233 + $0x3f8] sm:$0xff] %v4291
        %6209 = vst [vmem:[%s233 + $0x400] sm:$0xff] %v5254
        %6210 = vst.msk [vmem:[%s233 + $0x408] sm:$0xff] %vm6089, %v5256
        %6211 = vst [vmem:[%s233 + $0x410] sm:$0xff] %v1400
        %6212 = vst [vmem:[%s233 + $0x418] sm:$0xff] %v1402
        %6213 = vst [vmem:[%s233 + $0x420] sm:$0xff] %v2365
        %6214 = vst [vmem:[%s233 + $0x428] sm:$0xff] %v2367
        %6215 = vst [vmem:[%s233 + $0x430] sm:$0xff] %v3330
        %6216 = vst [vmem:[%s233 + $0x438] sm:$0xff] %v3332
        %6217 = vst [vmem:[%s233 + $0x440] sm:$0xff] %v4295
        %6218 = vst [vmem:[%s233 + $0x448] sm:$0xff] %v4297
        %6219 = vst [vmem:[%s233 + $0x450] sm:$0xff] %v5260
        %6220 = vst.msk [vmem:[%s233 + $0x458] sm:$0xff] %vm6089, %v5262
        %6221 = vst [vmem:[%s233 + $0x460] sm:$0xff] %v1406
        %6222 = vst [vmem:[%s233 + $0x468] sm:$0xff] %v1408
        %6223 = vst [vmem:[%s233 + $0x470] sm:$0xff] %v2371
        %6224 = vst [vmem:[%s233 + $0x478] sm:$0xff] %v2373
        %6225 = vst [vmem:[%s233 + $0x480] sm:$0xff] %v3336
        %6226 = vst [vmem:[%s233 + $0x488] sm:$0xff] %v3338
        %6227 = vst [vmem:[%s233 + $0x490] sm:$0xff] %v4301
        %6228 = vst [vmem:[%s233 + $0x498] sm:$0xff] %v4303
        %6229 = vst [vmem:[%s233 + $0x4a0] sm:$0xff] %v5266
        %6230 = vst.msk [vmem:[%s233 + $0x4a8] sm:$0xff] %vm6089, %v5268
        %6231 = vst [vmem:[%s233 + $0x4b0] sm:$0xff] %v1412
        %6232 = vst [vmem:[%s233 + $0x4b8] sm:$0xff] %v1414
        %6233 = vst [vmem:[%s233 + $0x4c0] sm:$0xff] %v2377
        %6234 = vst [vmem:[%s233 + $0x4c8] sm:$0xff] %v2379
        %6235 = vst [vmem:[%s233 + $0x4d0] sm:$0xff] %v3342
        %6236 = vst [vmem:[%s233 + $0x4d8] sm:$0xff] %v3344
        %6237 = vst [vmem:[%s233 + $0x4e0] sm:$0xff] %v4307
        %6238 = vst [vmem:[%s233 + $0x4e8] sm:$0xff] %v4309
        %6239 = vst [vmem:[%s233 + $0x4f0] sm:$0xff] %v5272
        %6240 = vst.msk [vmem:[%s233 + $0x4f8] sm:$0xff] %vm6089, %v5274
        %6241 = vst [vmem:[%s233 + $0x500] sm:$0xff] %v1418
        %6242 = vst [vmem:[%s233 + $0x508] sm:$0xff] %v1420
        %6243 = vst [vmem:[%s233 + $0x510] sm:$0xff] %v2383
        %6244 = vst [vmem:[%s233 + $0x518] sm:$0xff] %v2385
        %6245 = vst [vmem:[%s233 + $0x520] sm:$0xff] %v3348
        %6246 = vst [vmem:[%s233 + $0x528] sm:$0xff] %v3350
        %6247 = vst [vmem:[%s233 + $0x530] sm:$0xff] %v4313
        %6248 = vst [vmem:[%s233 + $0x538] sm:$0xff] %v4315
        %6249 = vst [vmem:[%s233 + $0x540] sm:$0xff] %v5278
        %6250 = vst.msk [vmem:[%s233 + $0x548] sm:$0xff] %vm6089, %v5280
        %6251 = vst [vmem:[%s233 + $0x550] sm:$0xff] %v1424
        %6252 = vst [vmem:[%s233 + $0x558] sm:$0xff] %v1426
        %6253 = vst [vmem:[%s233 + $0x560] sm:$0xff] %v2389
        %6254 = vst [vmem:[%s233 + $0x568] sm:$0xff] %v2391
        %6255 = vst [vmem:[%s233 + $0x570] sm:$0xff] %v3354
        %6256 = vst [vmem:[%s233 + $0x578] sm:$0xff] %v3356
        %6257 = vst [vmem:[%s233 + $0x580] sm:$0xff] %v4319
        %6258 = vst [vmem:[%s233 + $0x588] sm:$0xff] %v4321
        %6259 = vst [vmem:[%s233 + $0x590] sm:$0xff] %v5284
        %6260 = vst.msk [vmem:[%s233 + $0x598] sm:$0xff] %vm6089, %v5286
        %6261 = vst [vmem:[%s233 + $0x5a0] sm:$0xff] %v1430
        %6262 = vst [vmem:[%s233 + $0x5a8] sm:$0xff] %v1432
        %6263 = vst [vmem:[%s233 + $0x5b0] sm:$0xff] %v2395
        %6264 = vst [vmem:[%s233 + $0x5b8] sm:$0xff] %v2397
        %6265 = vst [vmem:[%s233 + $0x5c0] sm:$0xff] %v3360
        %6266 = vst [vmem:[%s233 + $0x5c8] sm:$0xff] %v3362
        %6267 = vst [vmem:[%s233 + $0x5d0] sm:$0xff] %v4325
        %6268 = vst [vmem:[%s233 + $0x5d8] sm:$0xff] %v4327
        %6269 = vst [vmem:[%s233 + $0x5e0] sm:$0xff] %v5290
        %6270 = vst.msk [vmem:[%s233 + $0x5e8] sm:$0xff] %vm6089, %v5292
        %6271 = vst [vmem:[%s233 + $0x5f0] sm:$0xff] %v1436
        %6272 = vst [vmem:[%s233 + $0x5f8] sm:$0xff] %v1438
        %6273 = vst [vmem:[%s233 + $0x600] sm:$0xff] %v2401
        %6274 = vst [vmem:[%s233 + $0x608] sm:$0xff] %v2403
        %6275 = vst [vmem:[%s233 + $0x610] sm:$0xff] %v3366
        %6276 = vst [vmem:[%s233 + $0x618] sm:$0xff] %v3368
        %6277 = vst [vmem:[%s233 + $0x620] sm:$0xff] %v4331
        %6278 = vst [vmem:[%s233 + $0x628] sm:$0xff] %v4333
        %6279 = vst [vmem:[%s233 + $0x630] sm:$0xff] %v5296
        %6280 = vst.msk [vmem:[%s233 + $0x638] sm:$0xff] %vm6089, %v5298
        %6281 = vst [vmem:[%s233 + $0x640] sm:$0xff] %v1442
        %6282 = vst [vmem:[%s233 + $0x648] sm:$0xff] %v1444
        %6283 = vst [vmem:[%s233 + $0x650] sm:$0xff] %v2407
        %6284 = vst [vmem:[%s233 + $0x658] sm:$0xff] %v2409
        %6285 = vst [vmem:[%s233 + $0x660] sm:$0xff] %v3372
        %6286 = vst [vmem:[%s233 + $0x668] sm:$0xff] %v3374
        %6287 = vst [vmem:[%s233 + $0x670] sm:$0xff] %v4337
        %6288 = vst [vmem:[%s233 + $0x678] sm:$0xff] %v4339
        %6289 = vst [vmem:[%s233 + $0x680] sm:$0xff] %v5302
        %6290 = vst.msk [vmem:[%s233 + $0x688] sm:$0xff] %vm6089, %v5304
        %6291 = vst [vmem:[%s233 + $0x690] sm:$0xff] %v1448
        %6292 = vst [vmem:[%s233 + $0x698] sm:$0xff] %v1450
        %6293 = vst [vmem:[%s233 + $0x6a0] sm:$0xff] %v2413
        %6294 = vst [vmem:[%s233 + $0x6a8] sm:$0xff] %v2415
        %6295 = vst [vmem:[%s233 + $0x6b0] sm:$0xff] %v3378
        %6296 = vst [vmem:[%s233 + $0x6b8] sm:$0xff] %v3380
        %6297 = vst [vmem:[%s233 + $0x6c0] sm:$0xff] %v4343
        %6298 = vst [vmem:[%s233 + $0x6c8] sm:$0xff] %v4345
        %6299 = vst [vmem:[%s233 + $0x6d0] sm:$0xff] %v5308
        %6300 = vst.msk [vmem:[%s233 + $0x6d8] sm:$0xff] %vm6089, %v5310
        %6301 = vst [vmem:[%s233 + $0x6e0] sm:$0xff] %v1454
        %6302 = vst [vmem:[%s233 + $0x6e8] sm:$0xff] %v1456
        %6303 = vst [vmem:[%s233 + $0x6f0] sm:$0xff] %v2419
        %6304 = vst [vmem:[%s233 + $0x6f8] sm:$0xff] %v2421
        %6305 = vst [vmem:[%s233 + $0x700] sm:$0xff] %v3384
        %6306 = vst [vmem:[%s233 + $0x708] sm:$0xff] %v3386
        %6307 = vst [vmem:[%s233 + $0x710] sm:$0xff] %v4349
        %6308 = vst [vmem:[%s233 + $0x718] sm:$0xff] %v4351
        %6309 = vst [vmem:[%s233 + $0x720] sm:$0xff] %v5314
        %6310 = vst.msk [vmem:[%s233 + $0x728] sm:$0xff] %vm6089, %v5316
        %6311 = vst [vmem:[%s233 + $0x730] sm:$0xff] %v1460
        %6312 = vst [vmem:[%s233 + $0x738] sm:$0xff] %v1462
        %6313 = vst [vmem:[%s233 + $0x740] sm:$0xff] %v2425
        %6314 = vst [vmem:[%s233 + $0x748] sm:$0xff] %v2427
        %6315 = vst [vmem:[%s233 + $0x750] sm:$0xff] %v3390
        %6316 = vst [vmem:[%s233 + $0x758] sm:$0xff] %v3392
        %6317 = vst [vmem:[%s233 + $0x760] sm:$0xff] %v4355
        %6318 = vst [vmem:[%s233 + $0x768] sm:$0xff] %v4357
        %6319 = vst [vmem:[%s233 + $0x770] sm:$0xff] %v5320
        %6320 = vst.msk [vmem:[%s233 + $0x778] sm:$0xff] %vm6089, %v5322
        %6321 = vst [vmem:[%s233 + $0x780] sm:$0xff] %v1466
        %6322 = vst [vmem:[%s233 + $0x788] sm:$0xff] %v1468
        %6323 = vst [vmem:[%s233 + $0x790] sm:$0xff] %v2431
        %6324 = vst [vmem:[%s233 + $0x798] sm:$0xff] %v2433
        %6325 = vst [vmem:[%s233 + $0x7a0] sm:$0xff] %v3396
        %6326 = vst [vmem:[%s233 + $0x7a8] sm:$0xff] %v3398
        %6327 = vst [vmem:[%s233 + $0x7b0] sm:$0xff] %v4361
        %6328 = vst [vmem:[%s233 + $0x7b8] sm:$0xff] %v4363
        %6329 = vst [vmem:[%s233 + $0x7c0] sm:$0xff] %v5326
        %6330 = vst.msk [vmem:[%s233 + $0x7c8] sm:$0xff] %vm6089, %v5328
        %6331 = vst [vmem:[%s233 + $0x7d0] sm:$0xff] %v1472
        %6332 = vst [vmem:[%s233 + $0x7d8] sm:$0xff] %v1474
        %6333 = vst [vmem:[%s233 + $0x7e0] sm:$0xff] %v2437
        %6334 = vst [vmem:[%s233 + $0x7e8] sm:$0xff] %v2439
        %6335 = vst [vmem:[%s233 + $0x7f0] sm:$0xff] %v3402
        %6336 = vst [vmem:[%s233 + $0x7f8] sm:$0xff] %v3404
        %6337 = vst [vmem:[%s233 + $0x800] sm:$0xff] %v4367
        %6338 = vst [vmem:[%s233 + $0x808] sm:$0xff] %v4369
        %6339 = vst [vmem:[%s233 + $0x810] sm:$0xff] %v5332
        %6340 = vst.msk [vmem:[%s233 + $0x818] sm:$0xff] %vm6089, %v5334
        %6341 = vst [vmem:[%s233 + $0x820] sm:$0xff] %v1478
        %6342 = vst [vmem:[%s233 + $0x828] sm:$0xff] %v1480
        %6343 = vst [vmem:[%s233 + $0x830] sm:$0xff] %v2443
        %6344 = vst [vmem:[%s233 + $0x838] sm:$0xff] %v2445
        %6345 = vst [vmem:[%s233 + $0x840] sm:$0xff] %v3408
        %6346 = vst [vmem:[%s233 + $0x848] sm:$0xff] %v3410
        %6347 = vst [vmem:[%s233 + $0x850] sm:$0xff] %v4373
        %6348 = vst [vmem:[%s233 + $0x858] sm:$0xff] %v4375
        %6349 = vst [vmem:[%s233 + $0x860] sm:$0xff] %v5338
        %6350 = vst.msk [vmem:[%s233 + $0x868] sm:$0xff] %vm6089, %v5340
        %6351 = vst [vmem:[%s233 + $0x870] sm:$0xff] %v1484
        %6352 = vst [vmem:[%s233 + $0x878] sm:$0xff] %v1486
        %6353 = vst [vmem:[%s233 + $0x880] sm:$0xff] %v2449
        %6354 = vst [vmem:[%s233 + $0x888] sm:$0xff] %v2451
        %6355 = vst [vmem:[%s233 + $0x890] sm:$0xff] %v3414
        %6356 = vst [vmem:[%s233 + $0x898] sm:$0xff] %v3416
        %6357 = vst [vmem:[%s233 + $0x8a0] sm:$0xff] %v4379
        %6358 = vst [vmem:[%s233 + $0x8a8] sm:$0xff] %v4381
        %6359 = vst [vmem:[%s233 + $0x8b0] sm:$0xff] %v5344
        %6360 = vst.msk [vmem:[%s233 + $0x8b8] sm:$0xff] %vm6089, %v5346
        %6361 = vst [vmem:[%s233 + $0x8c0] sm:$0xff] %v1490
        %6362 = vst [vmem:[%s233 + $0x8c8] sm:$0xff] %v1492
        %6363 = vst [vmem:[%s233 + $0x8d0] sm:$0xff] %v2455
        %6364 = vst [vmem:[%s233 + $0x8d8] sm:$0xff] %v2457
        %6365 = vst [vmem:[%s233 + $0x8e0] sm:$0xff] %v3420
        %6366 = vst [vmem:[%s233 + $0x8e8] sm:$0xff] %v3422
        %6367 = vst [vmem:[%s233 + $0x8f0] sm:$0xff] %v4385
        %6368 = vst [vmem:[%s233 + $0x8f8] sm:$0xff] %v4387
        %6369 = vst [vmem:[%s233 + $0x900] sm:$0xff] %v5350
        %6370 = vst.msk [vmem:[%s233 + $0x908] sm:$0xff] %vm6089, %v5352
        %6371 = vst [vmem:[%s233 + $0x910] sm:$0xff] %v1496
        %6372 = vst [vmem:[%s233 + $0x918] sm:$0xff] %v1498
        %6373 = vst [vmem:[%s233 + $0x920] sm:$0xff] %v2461
        %6374 = vst [vmem:[%s233 + $0x928] sm:$0xff] %v2463
        %6375 = vst [vmem:[%s233 + $0x930] sm:$0xff] %v3426
        %6376 = vst [vmem:[%s233 + $0x938] sm:$0xff] %v3428
        %6377 = vst [vmem:[%s233 + $0x940] sm:$0xff] %v4391
        %6378 = vst [vmem:[%s233 + $0x948] sm:$0xff] %v4393
        %6379 = vst [vmem:[%s233 + $0x950] sm:$0xff] %v5356
        %6380 = vst.msk [vmem:[%s233 + $0x958] sm:$0xff] %vm6089, %v5358
        %6381 = vst [vmem:[%s233 + $0x960] sm:$0xff] %v1502
        %6382 = vst [vmem:[%s233 + $0x968] sm:$0xff] %v1504
        %6383 = vst [vmem:[%s233 + $0x970] sm:$0xff] %v2467
        %6384 = vst [vmem:[%s233 + $0x978] sm:$0xff] %v2469
        %6385 = vst [vmem:[%s233 + $0x980] sm:$0xff] %v3432
        %6386 = vst [vmem:[%s233 + $0x988] sm:$0xff] %v3434
        %6387 = vst [vmem:[%s233 + $0x990] sm:$0xff] %v4397
        %6388 = vst [vmem:[%s233 + $0x998] sm:$0xff] %v4399
        %6389 = vst [vmem:[%s233 + $0x9a0] sm:$0xff] %v5362
        %6390 = vst.msk [vmem:[%s233 + $0x9a8] sm:$0xff] %vm6089, %v5364
        %6391 = vst [vmem:[%s233 + $0x9b0] sm:$0xff] %v1508
        %6392 = vst [vmem:[%s233 + $0x9b8] sm:$0xff] %v1510
        %6393 = vst [vmem:[%s233 + $0x9c0] sm:$0xff] %v2473
        %6394 = vst [vmem:[%s233 + $0x9c8] sm:$0xff] %v2475
        %6395 = vst [vmem:[%s233 + $0x9d0] sm:$0xff] %v3438
        %6396 = vst [vmem:[%s233 + $0x9d8] sm:$0xff] %v3440
        %6397 = vst [vmem:[%s233 + $0x9e0] sm:$0xff] %v4403
        %6398 = vst [vmem:[%s233 + $0x9e8] sm:$0xff] %v4405
        %6399 = vst [vmem:[%s233 + $0x9f0] sm:$0xff] %v5368
        %6400 = vst.msk [vmem:[%s233 + $0x9f8] sm:$0xff] %vm6089, %v5370
        %6401 = vst [vmem:[%s233 + $0xa00] sm:$0xff] %v1514
        %6402 = vst [vmem:[%s233 + $0xa08] sm:$0xff] %v1516
        %6403 = vst [vmem:[%s233 + $0xa10] sm:$0xff] %v2479
        %6404 = vst [vmem:[%s233 + $0xa18] sm:$0xff] %v2481
        %6405 = vst [vmem:[%s233 + $0xa20] sm:$0xff] %v3444
        %6406 = vst [vmem:[%s233 + $0xa28] sm:$0xff] %v3446
        %6407 = vst [vmem:[%s233 + $0xa30] sm:$0xff] %v4409
        %6408 = vst [vmem:[%s233 + $0xa38] sm:$0xff] %v4411
        %6409 = vst [vmem:[%s233 + $0xa40] sm:$0xff] %v5374
        %6410 = vst.msk [vmem:[%s233 + $0xa48] sm:$0xff] %vm6089, %v5376
        %6411 = vst [vmem:[%s233 + $0xa50] sm:$0xff] %v1520
        %6412 = vst [vmem:[%s233 + $0xa58] sm:$0xff] %v1522
        %6413 = vst [vmem:[%s233 + $0xa60] sm:$0xff] %v2485
        %6414 = vst [vmem:[%s233 + $0xa68] sm:$0xff] %v2487
        %6415 = vst [vmem:[%s233 + $0xa70] sm:$0xff] %v3450
        %6416 = vst [vmem:[%s233 + $0xa78] sm:$0xff] %v3452
        %6417 = vst [vmem:[%s233 + $0xa80] sm:$0xff] %v4415
        %6418 = vst [vmem:[%s233 + $0xa88] sm:$0xff] %v4417
        %6419 = vst [vmem:[%s233 + $0xa90] sm:$0xff] %v5380
        %6420 = vst.msk [vmem:[%s233 + $0xa98] sm:$0xff] %vm6089, %v5382
        %6421 = vst [vmem:[%s233 + $0xaa0] sm:$0xff] %v1526
        %6422 = vst [vmem:[%s233 + $0xaa8] sm:$0xff] %v1528
        %6423 = vst [vmem:[%s233 + $0xab0] sm:$0xff] %v2491
        %6424 = vst [vmem:[%s233 + $0xab8] sm:$0xff] %v2493
        %6425 = vst [vmem:[%s233 + $0xac0] sm:$0xff] %v3456
        %6426 = vst [vmem:[%s233 + $0xac8] sm:$0xff] %v3458
        %6427 = vst [vmem:[%s233 + $0xad0] sm:$0xff] %v4421
        %6428 = vst [vmem:[%s233 + $0xad8] sm:$0xff] %v4423
        %6429 = vst [vmem:[%s233 + $0xae0] sm:$0xff] %v5386
        %6430 = vst.msk [vmem:[%s233 + $0xae8] sm:$0xff] %vm6089, %v5388
        %6431 = vst [vmem:[%s233 + $0xaf0] sm:$0xff] %v1532
        %6432 = vst [vmem:[%s233 + $0xaf8] sm:$0xff] %v1534
        %6433 = vst [vmem:[%s233 + $0xb00] sm:$0xff] %v2497
        %6434 = vst [vmem:[%s233 + $0xb08] sm:$0xff] %v2499
        %6435 = vst [vmem:[%s233 + $0xb10] sm:$0xff] %v3462
        %6436 = vst [vmem:[%s233 + $0xb18] sm:$0xff] %v3464
        %6437 = vst [vmem:[%s233 + $0xb20] sm:$0xff] %v4427
        %6438 = vst [vmem:[%s233 + $0xb28] sm:$0xff] %v4429
        %6439 = vst [vmem:[%s233 + $0xb30] sm:$0xff] %v5392
        %6440 = vst.msk [vmem:[%s233 + $0xb38] sm:$0xff] %vm6089, %v5394
        %6441 = vst [vmem:[%s233 + $0xb40] sm:$0xff] %v1538
        %6442 = vst [vmem:[%s233 + $0xb48] sm:$0xff] %v1540
        %6443 = vst [vmem:[%s233 + $0xb50] sm:$0xff] %v2503
        %6444 = vst [vmem:[%s233 + $0xb58] sm:$0xff] %v2505
        %6445 = vst [vmem:[%s233 + $0xb60] sm:$0xff] %v3468
        %6446 = vst [vmem:[%s233 + $0xb68] sm:$0xff] %v3470
        %6447 = vst [vmem:[%s233 + $0xb70] sm:$0xff] %v4433
        %6448 = vst [vmem:[%s233 + $0xb78] sm:$0xff] %v4435
        %6449 = vst [vmem:[%s233 + $0xb80] sm:$0xff] %v5398
        %6450 = vst.msk [vmem:[%s233 + $0xb88] sm:$0xff] %vm6089, %v5400
        %6451 = vst [vmem:[%s233 + $0xb90] sm:$0xff] %v1544
        %6452 = vst [vmem:[%s233 + $0xb98] sm:$0xff] %v1546
        %6453 = vst [vmem:[%s233 + $0xba0] sm:$0xff] %v2509
        %6454 = vst [vmem:[%s233 + $0xba8] sm:$0xff] %v2511
        %6455 = vst [vmem:[%s233 + $0xbb0] sm:$0xff] %v3474
        %6456 = vst [vmem:[%s233 + $0xbb8] sm:$0xff] %v3476
        %6457 = vst [vmem:[%s233 + $0xbc0] sm:$0xff] %v4439
        %6458 = vst [vmem:[%s233 + $0xbc8] sm:$0xff] %v4441
        %6459 = vst [vmem:[%s233 + $0xbd0] sm:$0xff] %v5404
        %6460 = vst.msk [vmem:[%s233 + $0xbd8] sm:$0xff] %vm6089, %v5406
        %6461 = vst [vmem:[%s233 + $0xbe0] sm:$0xff] %v1550
        %6462 = vst [vmem:[%s233 + $0xbe8] sm:$0xff] %v1552
        %6463 = vst [vmem:[%s233 + $0xbf0] sm:$0xff] %v2515
        %6464 = vst [vmem:[%s233 + $0xbf8] sm:$0xff] %v2517
        %6465 = vst [vmem:[%s233 + $0xc00] sm:$0xff] %v3480
        %6466 = vst [vmem:[%s233 + $0xc08] sm:$0xff] %v3482
        %6467 = vst [vmem:[%s233 + $0xc10] sm:$0xff] %v4445
        %6468 = vst [vmem:[%s233 + $0xc18] sm:$0xff] %v4447
        %6469 = vst [vmem:[%s233 + $0xc20] sm:$0xff] %v5410
        %6470 = vst.msk [vmem:[%s233 + $0xc28] sm:$0xff] %vm6089, %v5412
        %6471 = vst [vmem:[%s233 + $0xc30] sm:$0xff] %v1556
        %6472 = vst [vmem:[%s233 + $0xc38] sm:$0xff] %v1558
        %6473 = vst [vmem:[%s233 + $0xc40] sm:$0xff] %v2521
        %6474 = vst [vmem:[%s233 + $0xc48] sm:$0xff] %v2523
        %6475 = vst [vmem:[%s233 + $0xc50] sm:$0xff] %v3486
        %6476 = vst [vmem:[%s233 + $0xc58] sm:$0xff] %v3488
        %6477 = vst [vmem:[%s233 + $0xc60] sm:$0xff] %v4451
        %6478 = vst [vmem:[%s233 + $0xc68] sm:$0xff] %v4453
        %6479 = vst [vmem:[%s233 + $0xc70] sm:$0xff] %v5416
        %6480 = vst.msk [vmem:[%s233 + $0xc78] sm:$0xff] %vm6089, %v5418
        %6481 = vst [vmem:[%s233 + $0xc80] sm:$0xff] %v1562
        %6482 = vst [vmem:[%s233 + $0xc88] sm:$0xff] %v1564
        %6483 = vst [vmem:[%s233 + $0xc90] sm:$0xff] %v2527
        %6484 = vst [vmem:[%s233 + $0xc98] sm:$0xff] %v2529
        %6485 = vst [vmem:[%s233 + $0xca0] sm:$0xff] %v3492
        %6486 = vst [vmem:[%s233 + $0xca8] sm:$0xff] %v3494
        %6487 = vst [vmem:[%s233 + $0xcb0] sm:$0xff] %v4457
        %6488 = vst [vmem:[%s233 + $0xcb8] sm:$0xff] %v4459
        %6489 = vst [vmem:[%s233 + $0xcc0] sm:$0xff] %v5422
        %6490 = vst.msk [vmem:[%s233 + $0xcc8] sm:$0xff] %vm6089, %v5424
        %6491 = vst [vmem:[%s233 + $0xcd0] sm:$0xff] %v1568
        %6492 = vst [vmem:[%s233 + $0xcd8] sm:$0xff] %v1570
        %6493 = vst [vmem:[%s233 + $0xce0] sm:$0xff] %v2533
        %6494 = vst [vmem:[%s233 + $0xce8] sm:$0xff] %v2535
        %6495 = vst [vmem:[%s233 + $0xcf0] sm:$0xff] %v3498
        %6496 = vst [vmem:[%s233 + $0xcf8] sm:$0xff] %v3500
        %6497 = vst [vmem:[%s233 + $0xd00] sm:$0xff] %v4463
        %6498 = vst [vmem:[%s233 + $0xd08] sm:$0xff] %v4465
        %6499 = vst [vmem:[%s233 + $0xd10] sm:$0xff] %v5428
        %6500 = vst.msk [vmem:[%s233 + $0xd18] sm:$0xff] %vm6089, %v5430
        %6501 = vst [vmem:[%s233 + $0xd20] sm:$0xff] %v1574
        %6502 = vst [vmem:[%s233 + $0xd28] sm:$0xff] %v1576
        %6503 = vst [vmem:[%s233 + $0xd30] sm:$0xff] %v2539
        %6504 = vst [vmem:[%s233 + $0xd38] sm:$0xff] %v2541
        %6505 = vst [vmem:[%s233 + $0xd40] sm:$0xff] %v3504
        %6506 = vst [vmem:[%s233 + $0xd48] sm:$0xff] %v3506
        %6507 = vst [vmem:[%s233 + $0xd50] sm:$0xff] %v4469
        %6508 = vst [vmem:[%s233 + $0xd58] sm:$0xff] %v4471
        %6509 = vst [vmem:[%s233 + $0xd60] sm:$0xff] %v5434
        %6510 = vst.msk [vmem:[%s233 + $0xd68] sm:$0xff] %vm6089, %v5436
        %6511 = vst [vmem:[%s233 + $0xd70] sm:$0xff] %v1580
        %6512 = vst [vmem:[%s233 + $0xd78] sm:$0xff] %v1582
        %6513 = vst [vmem:[%s233 + $0xd80] sm:$0xff] %v2545
        %6514 = vst [vmem:[%s233 + $0xd88] sm:$0xff] %v2547
        %6515 = vst [vmem:[%s233 + $0xd90] sm:$0xff] %v3510
        %6516 = vst [vmem:[%s233 + $0xd98] sm:$0xff] %v3512
        %6517 = vst [vmem:[%s233 + $0xda0] sm:$0xff] %v4475
        %6518 = vst [vmem:[%s233 + $0xda8] sm:$0xff] %v4477
        %6519 = vst [vmem:[%s233 + $0xdb0] sm:$0xff] %v5440
        %6520 = vst.msk [vmem:[%s233 + $0xdb8] sm:$0xff] %vm6089, %v5442
        %6521 = vst [vmem:[%s233 + $0xdc0] sm:$0xff] %v1586
        %6522 = vst [vmem:[%s233 + $0xdc8] sm:$0xff] %v1588
        %6523 = vst [vmem:[%s233 + $0xdd0] sm:$0xff] %v2551
        %6524 = vst [vmem:[%s233 + $0xdd8] sm:$0xff] %v2553
        %6525 = vst [vmem:[%s233 + $0xde0] sm:$0xff] %v3516
        %6526 = vst [vmem:[%s233 + $0xde8] sm:$0xff] %v3518
        %6527 = vst [vmem:[%s233 + $0xdf0] sm:$0xff] %v4481
        %6528 = vst [vmem:[%s233 + $0xdf8] sm:$0xff] %v4483
        %6529 = vst [vmem:[%s233 + $0xe00] sm:$0xff] %v5446
        %6530 = vst.msk [vmem:[%s233 + $0xe08] sm:$0xff] %vm6089, %v5448
        %6531 = vst [vmem:[%s233 + $0xe10] sm:$0xff] %v1592
        %6532 = vst [vmem:[%s233 + $0xe18] sm:$0xff] %v1594
        %6533 = vst [vmem:[%s233 + $0xe20] sm:$0xff] %v2557
        %6534 = vst [vmem:[%s233 + $0xe28] sm:$0xff] %v2559
        %6535 = vst [vmem:[%s233 + $0xe30] sm:$0xff] %v3522
        %6536 = vst [vmem:[%s233 + $0xe38] sm:$0xff] %v3524
        %6537 = vst [vmem:[%s233 + $0xe40] sm:$0xff] %v4487
        %6538 = vst [vmem:[%s233 + $0xe48] sm:$0xff] %v4489
        %6539 = vst [vmem:[%s233 + $0xe50] sm:$0xff] %v5452
        %6540 = vst.msk [vmem:[%s233 + $0xe58] sm:$0xff] %vm6089, %v5454
        %6541 = vst [vmem:[%s233 + $0xe60] sm:$0xff] %v1598
        %6542 = vst [vmem:[%s233 + $0xe68] sm:$0xff] %v1600
        %6543 = vst [vmem:[%s233 + $0xe70] sm:$0xff] %v2563
        %6544 = vst [vmem:[%s233 + $0xe78] sm:$0xff] %v2565
        %6545 = vst [vmem:[%s233 + $0xe80] sm:$0xff] %v3528
        %6546 = vst [vmem:[%s233 + $0xe88] sm:$0xff] %v3530
        %6547 = vst [vmem:[%s233 + $0xe90] sm:$0xff] %v4493
        %6548 = vst [vmem:[%s233 + $0xe98] sm:$0xff] %v4495
        %6549 = vst [vmem:[%s233 + $0xea0] sm:$0xff] %v5458
        %6550 = vst.msk [vmem:[%s233 + $0xea8] sm:$0xff] %vm6089, %v5460
        %6551 = vst [vmem:[%s233 + $0xeb0] sm:$0xff] %v1604
        %6552 = vst [vmem:[%s233 + $0xeb8] sm:$0xff] %v1606
        %6553 = vst [vmem:[%s233 + $0xec0] sm:$0xff] %v2569
        %6554 = vst [vmem:[%s233 + $0xec8] sm:$0xff] %v2571
        %6555 = vst [vmem:[%s233 + $0xed0] sm:$0xff] %v3534
        %6556 = vst [vmem:[%s233 + $0xed8] sm:$0xff] %v3536
        %6557 = vst [vmem:[%s233 + $0xee0] sm:$0xff] %v4499
        %6558 = vst [vmem:[%s233 + $0xee8] sm:$0xff] %v4501
        %6559 = vst [vmem:[%s233 + $0xef0] sm:$0xff] %v5464
        %6560 = vst.msk [vmem:[%s233 + $0xef8] sm:$0xff] %vm6089, %v5466
        %6561 = vst [vmem:[%s233 + $0xf00] sm:$0xff] %v1610
        %6562 = vst [vmem:[%s233 + $0xf08] sm:$0xff] %v1612
        %6563 = vst [vmem:[%s233 + $0xf10] sm:$0xff] %v2575
        %6564 = vst [vmem:[%s233 + $0xf18] sm:$0xff] %v2577
        %6565 = vst [vmem:[%s233 + $0xf20] sm:$0xff] %v3540
        %6566 = vst [vmem:[%s233 + $0xf28] sm:$0xff] %v3542
        %6567 = vst [vmem:[%s233 + $0xf30] sm:$0xff] %v4505
        %6568 = vst [vmem:[%s233 + $0xf38] sm:$0xff] %v4507
        %6569 = vst [vmem:[%s233 + $0xf40] sm:$0xff] %v5470
        %6570 = vst.msk [vmem:[%s233 + $0xf48] sm:$0xff] %vm6089, %v5472
        %6571 = vst [vmem:[%s233 + $0xf50] sm:$0xff] %v1616
        %6572 = vst [vmem:[%s233 + $0xf58] sm:$0xff] %v1618
        %6573 = vst [vmem:[%s233 + $0xf60] sm:$0xff] %v2581
        %6574 = vst [vmem:[%s233 + $0xf68] sm:$0xff] %v2583
        %6575 = vst [vmem:[%s233 + $0xf70] sm:$0xff] %v3546
        %6576 = vst [vmem:[%s233 + $0xf78] sm:$0xff] %v3548
        %6577 = vst [vmem:[%s233 + $0xf80] sm:$0xff] %v4511
        %6578 = vst [vmem:[%s233 + $0xf88] sm:$0xff] %v4513
        %6579 = vst [vmem:[%s233 + $0xf90] sm:$0xff] %v5476
        %6580 = vst.msk [vmem:[%s233 + $0xf98] sm:$0xff] %vm6089, %v5478
        %6581 = vst [vmem:[%s233 + $0xfa0] sm:$0xff] %v1622
        %6582 = vst [vmem:[%s233 + $0xfa8] sm:$0xff] %v1624
        %6583 = vst [vmem:[%s233 + $0xfb0] sm:$0xff] %v2587
        %6584 = vst [vmem:[%s233 + $0xfb8] sm:$0xff] %v2589
        %6585 = vst [vmem:[%s233 + $0xfc0] sm:$0xff] %v3552
        %6586 = vst [vmem:[%s233 + $0xfc8] sm:$0xff] %v3554
        %6587 = vst [vmem:[%s233 + $0xfd0] sm:$0xff] %v4517
        %6588 = vst [vmem:[%s233 + $0xfd8] sm:$0xff] %v4519
        %6589 = vst [vmem:[%s233 + $0xfe0] sm:$0xff] %v5482
        %6590 = vst.msk [vmem:[%s233 + $0xfe8] sm:$0xff] %vm6089, %v5484
        %6591 = vst [vmem:[%s233 + $0xff0] sm:$0xff] %v1628
        %6592 = vst [vmem:[%s233 + $0xff8] sm:$0xff] %v1630
        %6593 = vst [vmem:[%s233 + $0x1000] sm:$0xff] %v2593
        %6594 = vst [vmem:[%s233 + $0x1008] sm:$0xff] %v2595
        %6595 = vst [vmem:[%s233 + $0x1010] sm:$0xff] %v3558
        %6596 = vst [vmem:[%s233 + $0x1018] sm:$0xff] %v3560
        %6597 = vst [vmem:[%s233 + $0x1020] sm:$0xff] %v4523
        %6598 = vst [vmem:[%s233 + $0x1028] sm:$0xff] %v4525
        %6599 = vst [vmem:[%s233 + $0x1030] sm:$0xff] %v5488
        %6600 = vst.msk [vmem:[%s233 + $0x1038] sm:$0xff] %vm6089, %v5490
        %6601 = vst [vmem:[%s233 + $0x1040] sm:$0xff] %v1634
        %6602 = vst [vmem:[%s233 + $0x1048] sm:$0xff] %v1636
        %6603 = vst [vmem:[%s233 + $0x1050] sm:$0xff] %v2599
        %6604 = vst [vmem:[%s233 + $0x1058] sm:$0xff] %v2601
        %6605 = vst [vmem:[%s233 + $0x1060] sm:$0xff] %v3564
        %6606 = vst [vmem:[%s233 + $0x1068] sm:$0xff] %v3566
        %6607 = vst [vmem:[%s233 + $0x1070] sm:$0xff] %v4529
        %6608 = vst [vmem:[%s233 + $0x1078] sm:$0xff] %v4531
        %6609 = vst [vmem:[%s233 + $0x1080] sm:$0xff] %v5494
        %6610 = vst.msk [vmem:[%s233 + $0x1088] sm:$0xff] %vm6089, %v5496
        %6611 = vst [vmem:[%s233 + $0x1090] sm:$0xff] %v1640
        %6612 = vst [vmem:[%s233 + $0x1098] sm:$0xff] %v1642
        %6613 = vst [vmem:[%s233 + $0x10a0] sm:$0xff] %v2605
        %6614 = vst [vmem:[%s233 + $0x10a8] sm:$0xff] %v2607
        %6615 = vst [vmem:[%s233 + $0x10b0] sm:$0xff] %v3570
        %6616 = vst [vmem:[%s233 + $0x10b8] sm:$0xff] %v3572
        %6617 = vst [vmem:[%s233 + $0x10c0] sm:$0xff] %v4535
        %6618 = vst [vmem:[%s233 + $0x10c8] sm:$0xff] %v4537
        %6619 = vst [vmem:[%s233 + $0x10d0] sm:$0xff] %v5500
        %6620 = vst.msk [vmem:[%s233 + $0x10d8] sm:$0xff] %vm6089, %v5502
        %6621 = vst [vmem:[%s233 + $0x10e0] sm:$0xff] %v1646
        %6622 = vst [vmem:[%s233 + $0x10e8] sm:$0xff] %v1648
        %6623 = vst [vmem:[%s233 + $0x10f0] sm:$0xff] %v2611
        %6624 = vst [vmem:[%s233 + $0x10f8] sm:$0xff] %v2613
        %6625 = vst [vmem:[%s233 + $0x1100] sm:$0xff] %v3576
        %6626 = vst [vmem:[%s233 + $0x1108] sm:$0xff] %v3578
        %6627 = vst [vmem:[%s233 + $0x1110] sm:$0xff] %v4541
        %6628 = vst [vmem:[%s233 + $0x1118] sm:$0xff] %v4543
        %6629 = vst [vmem:[%s233 + $0x1120] sm:$0xff] %v5506
        %6630 = vst.msk [vmem:[%s233 + $0x1128] sm:$0xff] %vm6089, %v5508
        %6631 = vst [vmem:[%s233 + $0x1130] sm:$0xff] %v1652
        %6632 = vst [vmem:[%s233 + $0x1138] sm:$0xff] %v1654
        %6633 = vst [vmem:[%s233 + $0x1140] sm:$0xff] %v2617
        %6634 = vst [vmem:[%s233 + $0x1148] sm:$0xff] %v2619
        %6635 = vst [vmem:[%s233 + $0x1150] sm:$0xff] %v3582
        %6636 = vst [vmem:[%s233 + $0x1158] sm:$0xff] %v3584
        %6637 = vst [vmem:[%s233 + $0x1160] sm:$0xff] %v4547
        %6638 = vst [vmem:[%s233 + $0x1168] sm:$0xff] %v4549
        %6639 = vst [vmem:[%s233 + $0x1170] sm:$0xff] %v5512
        %6640 = vst.msk [vmem:[%s233 + $0x1178] sm:$0xff] %vm6089, %v5514
        %6641 = vst [vmem:[%s233 + $0x1180] sm:$0xff] %v1658
        %6642 = vst [vmem:[%s233 + $0x1188] sm:$0xff] %v1660
        %6643 = vst [vmem:[%s233 + $0x1190] sm:$0xff] %v2623
        %6644 = vst [vmem:[%s233 + $0x1198] sm:$0xff] %v2625
        %6645 = vst [vmem:[%s233 + $0x11a0] sm:$0xff] %v3588
        %6646 = vst [vmem:[%s233 + $0x11a8] sm:$0xff] %v3590
        %6647 = vst [vmem:[%s233 + $0x11b0] sm:$0xff] %v4553
        %6648 = vst [vmem:[%s233 + $0x11b8] sm:$0xff] %v4555
        %6649 = vst [vmem:[%s233 + $0x11c0] sm:$0xff] %v5518
        %6650 = vst.msk [vmem:[%s233 + $0x11c8] sm:$0xff] %vm6089, %v5520
        %6651 = vst [vmem:[%s233 + $0x11d0] sm:$0xff] %v1664
        %6652 = vst [vmem:[%s233 + $0x11d8] sm:$0xff] %v1666
        %6653 = vst [vmem:[%s233 + $0x11e0] sm:$0xff] %v2629
        %6654 = vst [vmem:[%s233 + $0x11e8] sm:$0xff] %v2631
        %6655 = vst [vmem:[%s233 + $0x11f0] sm:$0xff] %v3594
        %6656 = vst [vmem:[%s233 + $0x11f8] sm:$0xff] %v3596
        %6657 = vst [vmem:[%s233 + $0x1200] sm:$0xff] %v4559
        %6658 = vst [vmem:[%s233 + $0x1208] sm:$0xff] %v4561
        %6659 = vst [vmem:[%s233 + $0x1210] sm:$0xff] %v5524
        %6660 = vst.msk [vmem:[%s233 + $0x1218] sm:$0xff] %vm6089, %v5526
        %6661 = vst [vmem:[%s233 + $0x1220] sm:$0xff] %v1670
        %6662 = vst [vmem:[%s233 + $0x1228] sm:$0xff] %v1672
        %6663 = vst [vmem:[%s233 + $0x1230] sm:$0xff] %v2635
        %6664 = vst [vmem:[%s233 + $0x1238] sm:$0xff] %v2637
        %6665 = vst [vmem:[%s233 + $0x1240] sm:$0xff] %v3600
        %6666 = vst [vmem:[%s233 + $0x1248] sm:$0xff] %v3602
        %6667 = vst [vmem:[%s233 + $0x1250] sm:$0xff] %v4565
        %6668 = vst [vmem:[%s233 + $0x1258] sm:$0xff] %v4567
        %6669 = vst [vmem:[%s233 + $0x1260] sm:$0xff] %v5530
        %6670 = vst.msk [vmem:[%s233 + $0x1268] sm:$0xff] %vm6089, %v5532
        %6671 = vst [vmem:[%s233 + $0x1270] sm:$0xff] %v1676
        %6672 = vst [vmem:[%s233 + $0x1278] sm:$0xff] %v1678
        %6673 = vst [vmem:[%s233 + $0x1280] sm:$0xff] %v2641
        %6674 = vst [vmem:[%s233 + $0x1288] sm:$0xff] %v2643
        %6675 = vst [vmem:[%s233 + $0x1290] sm:$0xff] %v3606
        %6676 = vst [vmem:[%s233 + $0x1298] sm:$0xff] %v3608
        %6677 = vst [vmem:[%s233 + $0x12a0] sm:$0xff] %v4571
        %6678 = vst [vmem:[%s233 + $0x12a8] sm:$0xff] %v4573
        %6679 = vst [vmem:[%s233 + $0x12b0] sm:$0xff] %v5536
        %6680 = vst.msk [vmem:[%s233 + $0x12b8] sm:$0xff] %vm6089, %v5538
        %6681 = vst [vmem:[%s233 + $0x12c0] sm:$0xff] %v1682
        %6682 = vst [vmem:[%s233 + $0x12c8] sm:$0xff] %v1684
        %6683 = vst [vmem:[%s233 + $0x12d0] sm:$0xff] %v2647
        %6684 = vst [vmem:[%s233 + $0x12d8] sm:$0xff] %v2649
        %6685 = vst [vmem:[%s233 + $0x12e0] sm:$0xff] %v3612
        %6686 = vst [vmem:[%s233 + $0x12e8] sm:$0xff] %v3614
        %6687 = vst [vmem:[%s233 + $0x12f0] sm:$0xff] %v4577
        %6688 = vst [vmem:[%s233 + $0x12f8] sm:$0xff] %v4579
        %6689 = vst [vmem:[%s233 + $0x1300] sm:$0xff] %v5542
        %6690 = vst.msk [vmem:[%s233 + $0x1308] sm:$0xff] %vm6089, %v5544
        %6691 = vst [vmem:[%s233 + $0x1310] sm:$0xff] %v1688
        %6692 = vst [vmem:[%s233 + $0x1318] sm:$0xff] %v1690
        %6693 = vst [vmem:[%s233 + $0x1320] sm:$0xff] %v2653
        %6694 = vst [vmem:[%s233 + $0x1328] sm:$0xff] %v2655
        %6695 = vst [vmem:[%s233 + $0x1330] sm:$0xff] %v3618
        %6696 = vst [vmem:[%s233 + $0x1338] sm:$0xff] %v3620
        %6697 = vst [vmem:[%s233 + $0x1340] sm:$0xff] %v4583
        %6698 = vst [vmem:[%s233 + $0x1348] sm:$0xff] %v4585
        %6699 = vst [vmem:[%s233 + $0x1350] sm:$0xff] %v5548
        %6700 = vst.msk [vmem:[%s233 + $0x1358] sm:$0xff] %vm6089, %v5550
        %6701 = vst [vmem:[%s233 + $0x1360] sm:$0xff] %v1694
        %6702 = vst [vmem:[%s233 + $0x1368] sm:$0xff] %v1696
        %6703 = vst [vmem:[%s233 + $0x1370] sm:$0xff] %v2659
        %6704 = vst [vmem:[%s233 + $0x1378] sm:$0xff] %v2661
        %6705 = vst [vmem:[%s233 + $0x1380] sm:$0xff] %v3624
        %6706 = vst [vmem:[%s233 + $0x1388] sm:$0xff] %v3626
        %6707 = vst [vmem:[%s233 + $0x1390] sm:$0xff] %v4589
        %6708 = vst [vmem:[%s233 + $0x1398] sm:$0xff] %v4591
        %6709 = vst [vmem:[%s233 + $0x13a0] sm:$0xff] %v5554
        %6710 = vst.msk [vmem:[%s233 + $0x13a8] sm:$0xff] %vm6089, %v5556
        %6711 = vst [vmem:[%s233 + $0x13b0] sm:$0xff] %v1700
        %6712 = vst [vmem:[%s233 + $0x13b8] sm:$0xff] %v1702
        %6713 = vst [vmem:[%s233 + $0x13c0] sm:$0xff] %v2665
        %6714 = vst [vmem:[%s233 + $0x13c8] sm:$0xff] %v2667
        %6715 = vst [vmem:[%s233 + $0x13d0] sm:$0xff] %v3630
        %6716 = vst [vmem:[%s233 + $0x13d8] sm:$0xff] %v3632
        %6717 = vst [vmem:[%s233 + $0x13e0] sm:$0xff] %v4595
        %6718 = vst [vmem:[%s233 + $0x13e8] sm:$0xff] %v4597
        %6719 = vst [vmem:[%s233 + $0x13f0] sm:$0xff] %v5560
        %6720 = vst.msk [vmem:[%s233 + $0x13f8] sm:$0xff] %vm6089, %v5562
        %6721 = vst [vmem:[%s233 + $0x1400] sm:$0xff] %v1706
        %6722 = vst [vmem:[%s233 + $0x1408] sm:$0xff] %v1708
        %6723 = vst [vmem:[%s233 + $0x1410] sm:$0xff] %v2671
        %6724 = vst [vmem:[%s233 + $0x1418] sm:$0xff] %v2673
        %6725 = vst [vmem:[%s233 + $0x1420] sm:$0xff] %v3636
        %6726 = vst [vmem:[%s233 + $0x1428] sm:$0xff] %v3638
        %6727 = vst [vmem:[%s233 + $0x1430] sm:$0xff] %v4601
        %6728 = vst [vmem:[%s233 + $0x1438] sm:$0xff] %v4603
        %6729 = vst [vmem:[%s233 + $0x1440] sm:$0xff] %v5566
        %6730 = vst.msk [vmem:[%s233 + $0x1448] sm:$0xff] %vm6089, %v5568
        %6731 = vst [vmem:[%s233 + $0x1450] sm:$0xff] %v1712
        %6732 = vst [vmem:[%s233 + $0x1458] sm:$0xff] %v1714
        %6733 = vst [vmem:[%s233 + $0x1460] sm:$0xff] %v2677
        %6734 = vst [vmem:[%s233 + $0x1468] sm:$0xff] %v2679
        %6735 = vst [vmem:[%s233 + $0x1470] sm:$0xff] %v3642
        %6736 = vst [vmem:[%s233 + $0x1478] sm:$0xff] %v3644
        %6737 = vst [vmem:[%s233 + $0x1480] sm:$0xff] %v4607
        %6738 = vst [vmem:[%s233 + $0x1488] sm:$0xff] %v4609
        %6739 = vst [vmem:[%s233 + $0x1490] sm:$0xff] %v5572
        %6740 = vst.msk [vmem:[%s233 + $0x1498] sm:$0xff] %vm6089, %v5574
        %6741 = vst [vmem:[%s233 + $0x14a0] sm:$0xff] %v1718
        %6742 = vst [vmem:[%s233 + $0x14a8] sm:$0xff] %v1720
        %6743 = vst [vmem:[%s233 + $0x14b0] sm:$0xff] %v2683
        %6744 = vst [vmem:[%s233 + $0x14b8] sm:$0xff] %v2685
        %6745 = vst [vmem:[%s233 + $0x14c0] sm:$0xff] %v3648
        %6746 = vst [vmem:[%s233 + $0x14c8] sm:$0xff] %v3650
        %6747 = vst [vmem:[%s233 + $0x14d0] sm:$0xff] %v4613
        %6748 = vst [vmem:[%s233 + $0x14d8] sm:$0xff] %v4615
        %6749 = vst [vmem:[%s233 + $0x14e0] sm:$0xff] %v5578
        %6750 = vst.msk [vmem:[%s233 + $0x14e8] sm:$0xff] %vm6089, %v5580
        %6751 = vst [vmem:[%s233 + $0x14f0] sm:$0xff] %v1724
        %6752 = vst [vmem:[%s233 + $0x14f8] sm:$0xff] %v1726
        %6753 = vst [vmem:[%s233 + $0x1500] sm:$0xff] %v2689
        %6754 = vst [vmem:[%s233 + $0x1508] sm:$0xff] %v2691
        %6755 = vst [vmem:[%s233 + $0x1510] sm:$0xff] %v3654
        %6756 = vst [vmem:[%s233 + $0x1518] sm:$0xff] %v3656
        %6757 = vst [vmem:[%s233 + $0x1520] sm:$0xff] %v4619
        %6758 = vst [vmem:[%s233 + $0x1528] sm:$0xff] %v4621
        %6759 = vst [vmem:[%s233 + $0x1530] sm:$0xff] %v5584
        %6760 = vst.msk [vmem:[%s233 + $0x1538] sm:$0xff] %vm6089, %v5586
        %6761 = vst [vmem:[%s233 + $0x1540] sm:$0xff] %v1730
        %6762 = vst [vmem:[%s233 + $0x1548] sm:$0xff] %v1732
        %6763 = vst [vmem:[%s233 + $0x1550] sm:$0xff] %v2695
        %6764 = vst [vmem:[%s233 + $0x1558] sm:$0xff] %v2697
        %6765 = vst [vmem:[%s233 + $0x1560] sm:$0xff] %v3660
        %6766 = vst [vmem:[%s233 + $0x1568] sm:$0xff] %v3662
        %6767 = vst [vmem:[%s233 + $0x1570] sm:$0xff] %v4625
        %6768 = vst [vmem:[%s233 + $0x1578] sm:$0xff] %v4627
        %6769 = vst [vmem:[%s233 + $0x1580] sm:$0xff] %v5590
        %6770 = vst.msk [vmem:[%s233 + $0x1588] sm:$0xff] %vm6089, %v5592
        %6771 = vst [vmem:[%s233 + $0x1590] sm:$0xff] %v1736
        %6772 = vst [vmem:[%s233 + $0x1598] sm:$0xff] %v1738
        %6773 = vst [vmem:[%s233 + $0x15a0] sm:$0xff] %v2701
        %6774 = vst [vmem:[%s233 + $0x15a8] sm:$0xff] %v2703
        %6775 = vst [vmem:[%s233 + $0x15b0] sm:$0xff] %v3666
        %6776 = vst [vmem:[%s233 + $0x15b8] sm:$0xff] %v3668
        %6777 = vst [vmem:[%s233 + $0x15c0] sm:$0xff] %v4631
        %6778 = vst [vmem:[%s233 + $0x15c8] sm:$0xff] %v4633
        %6779 = vst [vmem:[%s233 + $0x15d0] sm:$0xff] %v5596
        %6780 = vst.msk [vmem:[%s233 + $0x15d8] sm:$0xff] %vm6089, %v5598
        %6781 = vst [vmem:[%s233 + $0x15e0] sm:$0xff] %v1742
        %6782 = vst [vmem:[%s233 + $0x15e8] sm:$0xff] %v1744
        %6783 = vst [vmem:[%s233 + $0x15f0] sm:$0xff] %v2707
        %6784 = vst [vmem:[%s233 + $0x15f8] sm:$0xff] %v2709
        %6785 = vst [vmem:[%s233 + $0x1600] sm:$0xff] %v3672
        %6786 = vst [vmem:[%s233 + $0x1608] sm:$0xff] %v3674
        %6787 = vst [vmem:[%s233 + $0x1610] sm:$0xff] %v4637
        %6788 = vst [vmem:[%s233 + $0x1618] sm:$0xff] %v4639
        %6789 = vst [vmem:[%s233 + $0x1620] sm:$0xff] %v5602
        %6790 = vst.msk [vmem:[%s233 + $0x1628] sm:$0xff] %vm6089, %v5604
        %6791 = vst [vmem:[%s233 + $0x1630] sm:$0xff] %v1748
        %6792 = vst [vmem:[%s233 + $0x1638] sm:$0xff] %v1750
        %6793 = vst [vmem:[%s233 + $0x1640] sm:$0xff] %v2713
        %6794 = vst [vmem:[%s233 + $0x1648] sm:$0xff] %v2715
        %6795 = vst [vmem:[%s233 + $0x1650] sm:$0xff] %v3678
        %6796 = vst [vmem:[%s233 + $0x1658] sm:$0xff] %v3680
        %6797 = vst [vmem:[%s233 + $0x1660] sm:$0xff] %v4643
        %6798 = vst [vmem:[%s233 + $0x1668] sm:$0xff] %v4645
        %6799 = vst [vmem:[%s233 + $0x1670] sm:$0xff] %v5608
        %6800 = vst.msk [vmem:[%s233 + $0x1678] sm:$0xff] %vm6089, %v5610
        %6801 = vst [vmem:[%s233 + $0x1680] sm:$0xff] %v1754
        %6802 = vst [vmem:[%s233 + $0x1688] sm:$0xff] %v1756
        %6803 = vst [vmem:[%s233 + $0x1690] sm:$0xff] %v2719
        %6804 = vst [vmem:[%s233 + $0x1698] sm:$0xff] %v2721
        %6805 = vst [vmem:[%s233 + $0x16a0] sm:$0xff] %v3684
        %6806 = vst [vmem:[%s233 + $0x16a8] sm:$0xff] %v3686
        %6807 = vst [vmem:[%s233 + $0x16b0] sm:$0xff] %v4649
        %6808 = vst [vmem:[%s233 + $0x16b8] sm:$0xff] %v4651
        %6809 = vst [vmem:[%s233 + $0x16c0] sm:$0xff] %v5614
        %6810 = vst.msk [vmem:[%s233 + $0x16c8] sm:$0xff] %vm6089, %v5616
        %6811 = vst [vmem:[%s233 + $0x16d0] sm:$0xff] %v1760
        %6812 = vst [vmem:[%s233 + $0x16d8] sm:$0xff] %v1762
        %6813 = vst [vmem:[%s233 + $0x16e0] sm:$0xff] %v2725
        %6814 = vst [vmem:[%s233 + $0x16e8] sm:$0xff] %v2727
        %6815 = vst [vmem:[%s233 + $0x16f0] sm:$0xff] %v3690
        %6816 = vst [vmem:[%s233 + $0x16f8] sm:$0xff] %v3692
        %6817 = vst [vmem:[%s233 + $0x1700] sm:$0xff] %v4655
        %6818 = vst [vmem:[%s233 + $0x1708] sm:$0xff] %v4657
        %6819 = vst [vmem:[%s233 + $0x1710] sm:$0xff] %v5620
        %6820 = vst.msk [vmem:[%s233 + $0x1718] sm:$0xff] %vm6089, %v5622
        %6821 = vst [vmem:[%s233 + $0x1720] sm:$0xff] %v1766
        %6822 = vst [vmem:[%s233 + $0x1728] sm:$0xff] %v1768
        %6823 = vst [vmem:[%s233 + $0x1730] sm:$0xff] %v2731
        %6824 = vst [vmem:[%s233 + $0x1738] sm:$0xff] %v2733
        %6825 = vst [vmem:[%s233 + $0x1740] sm:$0xff] %v3696
        %6826 = vst [vmem:[%s233 + $0x1748] sm:$0xff] %v3698
        %6827 = vst [vmem:[%s233 + $0x1750] sm:$0xff] %v4661
        %6828 = vst [vmem:[%s233 + $0x1758] sm:$0xff] %v4663
        %6829 = vst [vmem:[%s233 + $0x1760] sm:$0xff] %v5626
        %6830 = vst.msk [vmem:[%s233 + $0x1768] sm:$0xff] %vm6089, %v5628
        %6831 = vst [vmem:[%s233 + $0x1770] sm:$0xff] %v1772
        %6832 = vst [vmem:[%s233 + $0x1778] sm:$0xff] %v1774
        %6833 = vst [vmem:[%s233 + $0x1780] sm:$0xff] %v2737
        %6834 = vst [vmem:[%s233 + $0x1788] sm:$0xff] %v2739
        %6835 = vst [vmem:[%s233 + $0x1790] sm:$0xff] %v3702
        %6836 = vst [vmem:[%s233 + $0x1798] sm:$0xff] %v3704
        %6837 = vst [vmem:[%s233 + $0x17a0] sm:$0xff] %v4667
        %6838 = vst [vmem:[%s233 + $0x17a8] sm:$0xff] %v4669
        %6839 = vst [vmem:[%s233 + $0x17b0] sm:$0xff] %v5632
        %6840 = vst.msk [vmem:[%s233 + $0x17b8] sm:$0xff] %vm6089, %v5634
        %6841 = vst [vmem:[%s233 + $0x17c0] sm:$0xff] %v1778
        %6842 = vst [vmem:[%s233 + $0x17c8] sm:$0xff] %v1780
        %6843 = vst [vmem:[%s233 + $0x17d0] sm:$0xff] %v2743
        %6844 = vst [vmem:[%s233 + $0x17d8] sm:$0xff] %v2745
        %6845 = vst [vmem:[%s233 + $0x17e0] sm:$0xff] %v3708
        %6846 = vst [vmem:[%s233 + $0x17e8] sm:$0xff] %v3710
        %6847 = vst [vmem:[%s233 + $0x17f0] sm:$0xff] %v4673
        %6848 = vst [vmem:[%s233 + $0x17f8] sm:$0xff] %v4675
        %6849 = vst [vmem:[%s233 + $0x1800] sm:$0xff] %v5638
        %6850 = vst.msk [vmem:[%s233 + $0x1808] sm:$0xff] %vm6089, %v5640
        %6851 = vst [vmem:[%s233 + $0x1810] sm:$0xff] %v1784
        %6852 = vst [vmem:[%s233 + $0x1818] sm:$0xff] %v1786
        %6853 = vst [vmem:[%s233 + $0x1820] sm:$0xff] %v2749
        %6854 = vst [vmem:[%s233 + $0x1828] sm:$0xff] %v2751
        %6855 = vst [vmem:[%s233 + $0x1830] sm:$0xff] %v3714
        %6856 = vst [vmem:[%s233 + $0x1838] sm:$0xff] %v3716
        %6857 = vst [vmem:[%s233 + $0x1840] sm:$0xff] %v4679
        %6858 = vst [vmem:[%s233 + $0x1848] sm:$0xff] %v4681
        %6859 = vst [vmem:[%s233 + $0x1850] sm:$0xff] %v5644
        %6860 = vst.msk [vmem:[%s233 + $0x1858] sm:$0xff] %vm6089, %v5646
        %6861 = vst [vmem:[%s233 + $0x1860] sm:$0xff] %v1790
        %6862 = vst [vmem:[%s233 + $0x1868] sm:$0xff] %v1792
        %6863 = vst [vmem:[%s233 + $0x1870] sm:$0xff] %v2755
        %6864 = vst [vmem:[%s233 + $0x1878] sm:$0xff] %v2757
        %6865 = vst [vmem:[%s233 + $0x1880] sm:$0xff] %v3720
        %6866 = vst [vmem:[%s233 + $0x1888] sm:$0xff] %v3722
        %6867 = vst [vmem:[%s233 + $0x1890] sm:$0xff] %v4685
        %6868 = vst [vmem:[%s233 + $0x1898] sm:$0xff] %v4687
        %6869 = vst [vmem:[%s233 + $0x18a0] sm:$0xff] %v5650
        %6870 = vst.msk [vmem:[%s233 + $0x18a8] sm:$0xff] %vm6089, %v5652
        %6871 = vst [vmem:[%s233 + $0x18b0] sm:$0xff] %v1796
        %6872 = vst [vmem:[%s233 + $0x18b8] sm:$0xff] %v1798
        %6873 = vst [vmem:[%s233 + $0x18c0] sm:$0xff] %v2761
        %6874 = vst [vmem:[%s233 + $0x18c8] sm:$0xff] %v2763
        %6875 = vst [vmem:[%s233 + $0x18d0] sm:$0xff] %v3726
        %6876 = vst [vmem:[%s233 + $0x18d8] sm:$0xff] %v3728
        %6877 = vst [vmem:[%s233 + $0x18e0] sm:$0xff] %v4691
        %6878 = vst [vmem:[%s233 + $0x18e8] sm:$0xff] %v4693
        %6879 = vst [vmem:[%s233 + $0x18f0] sm:$0xff] %v5656
        %6880 = vst.msk [vmem:[%s233 + $0x18f8] sm:$0xff] %vm6089, %v5658
        %6881 = vst [vmem:[%s233 + $0x1900] sm:$0xff] %v1802
        %6882 = vst [vmem:[%s233 + $0x1908] sm:$0xff] %v1804
        %6883 = vst [vmem:[%s233 + $0x1910] sm:$0xff] %v2767
        %6884 = vst [vmem:[%s233 + $0x1918] sm:$0xff] %v2769
        %6885 = vst [vmem:[%s233 + $0x1920] sm:$0xff] %v3732
        %6886 = vst [vmem:[%s233 + $0x1928] sm:$0xff] %v3734
        %6887 = vst [vmem:[%s233 + $0x1930] sm:$0xff] %v4697
        %6888 = vst [vmem:[%s233 + $0x1938] sm:$0xff] %v4699
        %6889 = vst [vmem:[%s233 + $0x1940] sm:$0xff] %v5662
        %6890 = vst.msk [vmem:[%s233 + $0x1948] sm:$0xff] %vm6089, %v5664
        %6891 = vst [vmem:[%s233 + $0x1950] sm:$0xff] %v1808
        %6892 = vst [vmem:[%s233 + $0x1958] sm:$0xff] %v1810
        %6893 = vst [vmem:[%s233 + $0x1960] sm:$0xff] %v2773
        %6894 = vst [vmem:[%s233 + $0x1968] sm:$0xff] %v2775
        %6895 = vst [vmem:[%s233 + $0x1970] sm:$0xff] %v3738
        %6896 = vst [vmem:[%s233 + $0x1978] sm:$0xff] %v3740
        %6897 = vst [vmem:[%s233 + $0x1980] sm:$0xff] %v4703
        %6898 = vst [vmem:[%s233 + $0x1988] sm:$0xff] %v4705
        %6899 = vst [vmem:[%s233 + $0x1990] sm:$0xff] %v5668
        %6900 = vst.msk [vmem:[%s233 + $0x1998] sm:$0xff] %vm6089, %v5670
        %6901 = vst [vmem:[%s233 + $0x19a0] sm:$0xff] %v1814
        %6902 = vst [vmem:[%s233 + $0x19a8] sm:$0xff] %v1816
        %6903 = vst [vmem:[%s233 + $0x19b0] sm:$0xff] %v2779
        %6904 = vst [vmem:[%s233 + $0x19b8] sm:$0xff] %v2781
        %6905 = vst [vmem:[%s233 + $0x19c0] sm:$0xff] %v3744
        %6906 = vst [vmem:[%s233 + $0x19c8] sm:$0xff] %v3746
        %6907 = vst [vmem:[%s233 + $0x19d0] sm:$0xff] %v4709
        %6908 = vst [vmem:[%s233 + $0x19d8] sm:$0xff] %v4711
        %6909 = vst [vmem:[%s233 + $0x19e0] sm:$0xff] %v5674
        %6910 = vst.msk [vmem:[%s233 + $0x19e8] sm:$0xff] %vm6089, %v5676
        %6911 = vst [vmem:[%s233 + $0x19f0] sm:$0xff] %v1820
        %6912 = vst [vmem:[%s233 + $0x19f8] sm:$0xff] %v1822
        %6913 = vst [vmem:[%s233 + $0x1a00] sm:$0xff] %v2785
        %6914 = vst [vmem:[%s233 + $0x1a08] sm:$0xff] %v2787
        %6915 = vst [vmem:[%s233 + $0x1a10] sm:$0xff] %v3750
        %6916 = vst [vmem:[%s233 + $0x1a18] sm:$0xff] %v3752
        %6917 = vst [vmem:[%s233 + $0x1a20] sm:$0xff] %v4715
        %6918 = vst [vmem:[%s233 + $0x1a28] sm:$0xff] %v4717
        %6919 = vst [vmem:[%s233 + $0x1a30] sm:$0xff] %v5680
        %6920 = vst.msk [vmem:[%s233 + $0x1a38] sm:$0xff] %vm6089, %v5682
        %6921 = vst [vmem:[%s233 + $0x1a40] sm:$0xff] %v1826
        %6922 = vst [vmem:[%s233 + $0x1a48] sm:$0xff] %v1828
        %6923 = vst [vmem:[%s233 + $0x1a50] sm:$0xff] %v2791
        %6924 = vst [vmem:[%s233 + $0x1a58] sm:$0xff] %v2793
        %6925 = vst [vmem:[%s233 + $0x1a60] sm:$0xff] %v3756
        %6926 = vst [vmem:[%s233 + $0x1a68] sm:$0xff] %v3758
        %6927 = vst [vmem:[%s233 + $0x1a70] sm:$0xff] %v4721
        %6928 = vst [vmem:[%s233 + $0x1a78] sm:$0xff] %v4723
        %6929 = vst [vmem:[%s233 + $0x1a80] sm:$0xff] %v5686
        %6930 = vst.msk [vmem:[%s233 + $0x1a88] sm:$0xff] %vm6089, %v5688
        %6931 = vst [vmem:[%s233 + $0x1a90] sm:$0xff] %v1832
        %6932 = vst [vmem:[%s233 + $0x1a98] sm:$0xff] %v1834
        %6933 = vst [vmem:[%s233 + $0x1aa0] sm:$0xff] %v2797
        %6934 = vst [vmem:[%s233 + $0x1aa8] sm:$0xff] %v2799
        %6935 = vst [vmem:[%s233 + $0x1ab0] sm:$0xff] %v3762
        %6936 = vst [vmem:[%s233 + $0x1ab8] sm:$0xff] %v3764
        %6937 = vst [vmem:[%s233 + $0x1ac0] sm:$0xff] %v4727
        %6938 = vst [vmem:[%s233 + $0x1ac8] sm:$0xff] %v4729
        %6939 = vst [vmem:[%s233 + $0x1ad0] sm:$0xff] %v5692
        %6940 = vst.msk [vmem:[%s233 + $0x1ad8] sm:$0xff] %vm6089, %v5694
        %6941 = vst [vmem:[%s233 + $0x1ae0] sm:$0xff] %v1838
        %6942 = vst [vmem:[%s233 + $0x1ae8] sm:$0xff] %v1840
        %6943 = vst [vmem:[%s233 + $0x1af0] sm:$0xff] %v2803
        %6944 = vst [vmem:[%s233 + $0x1af8] sm:$0xff] %v2805
        %6945 = vst [vmem:[%s233 + $0x1b00] sm:$0xff] %v3768
        %6946 = vst [vmem:[%s233 + $0x1b08] sm:$0xff] %v3770
        %6947 = vst [vmem:[%s233 + $0x1b10] sm:$0xff] %v4733
        %6948 = vst [vmem:[%s233 + $0x1b18] sm:$0xff] %v4735
        %6949 = vst [vmem:[%s233 + $0x1b20] sm:$0xff] %v5698
        %6950 = vst.msk [vmem:[%s233 + $0x1b28] sm:$0xff] %vm6089, %v5700
        %6951 = vst [vmem:[%s233 + $0x1b30] sm:$0xff] %v1844
        %6952 = vst [vmem:[%s233 + $0x1b38] sm:$0xff] %v1846
        %6953 = vst [vmem:[%s233 + $0x1b40] sm:$0xff] %v2809
        %6954 = vst [vmem:[%s233 + $0x1b48] sm:$0xff] %v2811
        %6955 = vst [vmem:[%s233 + $0x1b50] sm:$0xff] %v3774
        %6956 = vst [vmem:[%s233 + $0x1b58] sm:$0xff] %v3776
        %6957 = vst [vmem:[%s233 + $0x1b60] sm:$0xff] %v4739
        %6958 = vst [vmem:[%s233 + $0x1b68] sm:$0xff] %v4741
        %6959 = vst [vmem:[%s233 + $0x1b70] sm:$0xff] %v5704
        %6960 = vst.msk [vmem:[%s233 + $0x1b78] sm:$0xff] %vm6089, %v5706
        %6961 = vst [vmem:[%s233 + $0x1b80] sm:$0xff] %v1850
        %6962 = vst [vmem:[%s233 + $0x1b88] sm:$0xff] %v1852
        %6963 = vst [vmem:[%s233 + $0x1b90] sm:$0xff] %v2815
        %6964 = vst [vmem:[%s233 + $0x1b98] sm:$0xff] %v2817
        %6965 = vst [vmem:[%s233 + $0x1ba0] sm:$0xff] %v3780
        %6966 = vst [vmem:[%s233 + $0x1ba8] sm:$0xff] %v3782
        %6967 = vst [vmem:[%s233 + $0x1bb0] sm:$0xff] %v4745
        %6968 = vst [vmem:[%s233 + $0x1bb8] sm:$0xff] %v4747
        %6969 = vst [vmem:[%s233 + $0x1bc0] sm:$0xff] %v5710
        %6970 = vst.msk [vmem:[%s233 + $0x1bc8] sm:$0xff] %vm6089, %v5712
        %6971 = vst [vmem:[%s233 + $0x1bd0] sm:$0xff] %v1856
        %6972 = vst [vmem:[%s233 + $0x1bd8] sm:$0xff] %v1858
        %6973 = vst [vmem:[%s233 + $0x1be0] sm:$0xff] %v2821
        %6974 = vst [vmem:[%s233 + $0x1be8] sm:$0xff] %v2823
        %6975 = vst [vmem:[%s233 + $0x1bf0] sm:$0xff] %v3786
        %6976 = vst [vmem:[%s233 + $0x1bf8] sm:$0xff] %v3788
        %6977 = vst [vmem:[%s233 + $0x1c00] sm:$0xff] %v4751
        %6978 = vst [vmem:[%s233 + $0x1c08] sm:$0xff] %v4753
        %6979 = vst [vmem:[%s233 + $0x1c10] sm:$0xff] %v5716
        %6980 = vst.msk [vmem:[%s233 + $0x1c18] sm:$0xff] %vm6089, %v5718
        %6981 = vst [vmem:[%s233 + $0x1c20] sm:$0xff] %v1862
        %6982 = vst [vmem:[%s233 + $0x1c28] sm:$0xff] %v1864
        %6983 = vst [vmem:[%s233 + $0x1c30] sm:$0xff] %v2827
        %6984 = vst [vmem:[%s233 + $0x1c38] sm:$0xff] %v2829
        %6985 = vst [vmem:[%s233 + $0x1c40] sm:$0xff] %v3792
        %6986 = vst [vmem:[%s233 + $0x1c48] sm:$0xff] %v3794
        %6987 = vst [vmem:[%s233 + $0x1c50] sm:$0xff] %v4757
        %6988 = vst [vmem:[%s233 + $0x1c58] sm:$0xff] %v4759
        %6989 = vst [vmem:[%s233 + $0x1c60] sm:$0xff] %v5722
        %6990 = vst.msk [vmem:[%s233 + $0x1c68] sm:$0xff] %vm6089, %v5724
        %6991 = vst [vmem:[%s233 + $0x1c70] sm:$0xff] %v1868
        %6992 = vst [vmem:[%s233 + $0x1c78] sm:$0xff] %v1870
        %6993 = vst [vmem:[%s233 + $0x1c80] sm:$0xff] %v2833
        %6994 = vst [vmem:[%s233 + $0x1c88] sm:$0xff] %v2835
        %6995 = vst [vmem:[%s233 + $0x1c90] sm:$0xff] %v3798
        %6996 = vst [vmem:[%s233 + $0x1c98] sm:$0xff] %v3800
        %6997 = vst [vmem:[%s233 + $0x1ca0] sm:$0xff] %v4763
        %6998 = vst [vmem:[%s233 + $0x1ca8] sm:$0xff] %v4765
        %6999 = vst [vmem:[%s233 + $0x1cb0] sm:$0xff] %v5728
        %7000 = vst.msk [vmem:[%s233 + $0x1cb8] sm:$0xff] %vm6089, %v5730
        %7001 = vst [vmem:[%s233 + $0x1cc0] sm:$0xff] %v1874
        %7002 = vst [vmem:[%s233 + $0x1cc8] sm:$0xff] %v1876
        %7003 = vst [vmem:[%s233 + $0x1cd0] sm:$0xff] %v2839
        %7004 = vst [vmem:[%s233 + $0x1cd8] sm:$0xff] %v2841
        %7005 = vst [vmem:[%s233 + $0x1ce0] sm:$0xff] %v3804
        %7006 = vst [vmem:[%s233 + $0x1ce8] sm:$0xff] %v3806
        %7007 = vst [vmem:[%s233 + $0x1cf0] sm:$0xff] %v4769
        %7008 = vst [vmem:[%s233 + $0x1cf8] sm:$0xff] %v4771
        %7009 = vst [vmem:[%s233 + $0x1d00] sm:$0xff] %v5734
        %7010 = vst.msk [vmem:[%s233 + $0x1d08] sm:$0xff] %vm6089, %v5736
        %7011 = vst [vmem:[%s233 + $0x1d10] sm:$0xff] %v1880
        %7012 = vst [vmem:[%s233 + $0x1d18] sm:$0xff] %v1882
        %7013 = vst [vmem:[%s233 + $0x1d20] sm:$0xff] %v2845
        %7014 = vst [vmem:[%s233 + $0x1d28] sm:$0xff] %v2847
        %7015 = vst [vmem:[%s233 + $0x1d30] sm:$0xff] %v3810
        %7016 = vst [vmem:[%s233 + $0x1d38] sm:$0xff] %v3812
        %7017 = vst [vmem:[%s233 + $0x1d40] sm:$0xff] %v4775
        %7018 = vst [vmem:[%s233 + $0x1d48] sm:$0xff] %v4777
        %7019 = vst [vmem:[%s233 + $0x1d50] sm:$0xff] %v5740
        %7020 = vst.msk [vmem:[%s233 + $0x1d58] sm:$0xff] %vm6089, %v5742
        %7021 = vst [vmem:[%s233 + $0x1d60] sm:$0xff] %v1886
        %7022 = vst [vmem:[%s233 + $0x1d68] sm:$0xff] %v1888
        %7023 = vst [vmem:[%s233 + $0x1d70] sm:$0xff] %v2851
        %7024 = vst [vmem:[%s233 + $0x1d78] sm:$0xff] %v2853
        %7025 = vst [vmem:[%s233 + $0x1d80] sm:$0xff] %v3816
        %7026 = vst [vmem:[%s233 + $0x1d88] sm:$0xff] %v3818
        %7027 = vst [vmem:[%s233 + $0x1d90] sm:$0xff] %v4781
        %7028 = vst [vmem:[%s233 + $0x1d98] sm:$0xff] %v4783
        %7029 = vst [vmem:[%s233 + $0x1da0] sm:$0xff] %v5746
        %7030 = vst.msk [vmem:[%s233 + $0x1da8] sm:$0xff] %vm6089, %v5748
        %7031 = vst [vmem:[%s233 + $0x1db0] sm:$0xff] %v1892
        %7032 = vst [vmem:[%s233 + $0x1db8] sm:$0xff] %v1894
        %7033 = vst [vmem:[%s233 + $0x1dc0] sm:$0xff] %v2857
        %7034 = vst [vmem:[%s233 + $0x1dc8] sm:$0xff] %v2859
        %7035 = vst [vmem:[%s233 + $0x1dd0] sm:$0xff] %v3822
        %7036 = vst [vmem:[%s233 + $0x1dd8] sm:$0xff] %v3824
        %7037 = vst [vmem:[%s233 + $0x1de0] sm:$0xff] %v4787
        %7038 = vst [vmem:[%s233 + $0x1de8] sm:$0xff] %v4789
        %7039 = vst [vmem:[%s233 + $0x1df0] sm:$0xff] %v5752
        %7040 = vst.msk [vmem:[%s233 + $0x1df8] sm:$0xff] %vm6089, %v5754
        %7041 = vst [vmem:[%s233 + $0x1e00] sm:$0xff] %v1898
        %7042 = vst [vmem:[%s233 + $0x1e08] sm:$0xff] %v1900
        %7043 = vst [vmem:[%s233 + $0x1e10] sm:$0xff] %v2863
        %7044 = vst [vmem:[%s233 + $0x1e18] sm:$0xff] %v2865
        %7045 = vst [vmem:[%s233 + $0x1e20] sm:$0xff] %v3828
        %7046 = vst [vmem:[%s233 + $0x1e28] sm:$0xff] %v3830
        %7047 = vst [vmem:[%s233 + $0x1e30] sm:$0xff] %v4793
        %7048 = vst [vmem:[%s233 + $0x1e38] sm:$0xff] %v4795
        %7049 = vst [vmem:[%s233 + $0x1e40] sm:$0xff] %v5758
        %7050 = vst.msk [vmem:[%s233 + $0x1e48] sm:$0xff] %vm6089, %v5760
        %7051 = vst [vmem:[%s233 + $0x1e50] sm:$0xff] %v1904
        %7052 = vst [vmem:[%s233 + $0x1e58] sm:$0xff] %v1906
        %7053 = vst [vmem:[%s233 + $0x1e60] sm:$0xff] %v2869
        %7054 = vst [vmem:[%s233 + $0x1e68] sm:$0xff] %v2871
        %7055 = vst [vmem:[%s233 + $0x1e70] sm:$0xff] %v3834
        %7056 = vst [vmem:[%s233 + $0x1e78] sm:$0xff] %v3836
        %7057 = vst [vmem:[%s233 + $0x1e80] sm:$0xff] %v4799
        %7058 = vst [vmem:[%s233 + $0x1e88] sm:$0xff] %v4801
        %7059 = vst [vmem:[%s233 + $0x1e90] sm:$0xff] %v5764
        %7060 = vst.msk [vmem:[%s233 + $0x1e98] sm:$0xff] %vm6089, %v5766
        %7061 = vst [vmem:[%s233 + $0x1ea0] sm:$0xff] %v1910
        %7062 = vst [vmem:[%s233 + $0x1ea8] sm:$0xff] %v1912
        %7063 = vst [vmem:[%s233 + $0x1eb0] sm:$0xff] %v2875
        %7064 = vst [vmem:[%s233 + $0x1eb8] sm:$0xff] %v2877
        %7065 = vst [vmem:[%s233 + $0x1ec0] sm:$0xff] %v3840
        %7066 = vst [vmem:[%s233 + $0x1ec8] sm:$0xff] %v3842
        %7067 = vst [vmem:[%s233 + $0x1ed0] sm:$0xff] %v4805
        %7068 = vst [vmem:[%s233 + $0x1ed8] sm:$0xff] %v4807
        %7069 = vst [vmem:[%s233 + $0x1ee0] sm:$0xff] %v5770
        %7070 = vst.msk [vmem:[%s233 + $0x1ee8] sm:$0xff] %vm6089, %v5772
        %7071 = vst [vmem:[%s233 + $0x1ef0] sm:$0xff] %v1916
        %7072 = vst [vmem:[%s233 + $0x1ef8] sm:$0xff] %v1918
        %7073 = vst [vmem:[%s233 + $0x1f00] sm:$0xff] %v2881
        %7074 = vst [vmem:[%s233 + $0x1f08] sm:$0xff] %v2883
        %7075 = vst [vmem:[%s233 + $0x1f10] sm:$0xff] %v3846
        %7076 = vst [vmem:[%s233 + $0x1f18] sm:$0xff] %v3848
        %7077 = vst [vmem:[%s233 + $0x1f20] sm:$0xff] %v4811
        %7078 = vst [vmem:[%s233 + $0x1f28] sm:$0xff] %v4813
        %7079 = vst [vmem:[%s233 + $0x1f30] sm:$0xff] %v5776
        %7080 = vst.msk [vmem:[%s233 + $0x1f38] sm:$0xff] %vm6089, %v5778
        %7081 = vst [vmem:[%s233 + $0x1f40] sm:$0xff] %v1922
        %7082 = vst [vmem:[%s233 + $0x1f48] sm:$0xff] %v1924
        %7083 = vst [vmem:[%s233 + $0x1f50] sm:$0xff] %v2887
        %7084 = vst [vmem:[%s233 + $0x1f58] sm:$0xff] %v2889
        %7085 = vst [vmem:[%s233 + $0x1f60] sm:$0xff] %v3852
        %7086 = vst [vmem:[%s233 + $0x1f68] sm:$0xff] %v3854
        %7087 = vst [vmem:[%s233 + $0x1f70] sm:$0xff] %v4817
        %7088 = vst [vmem:[%s233 + $0x1f78] sm:$0xff] %v4819
        %7089 = vst [vmem:[%s233 + $0x1f80] sm:$0xff] %v5782
        %7090 = vst.msk [vmem:[%s233 + $0x1f88] sm:$0xff] %vm6089, %v5784
        %7091 = vst [vmem:[%s233 + $0x1f90] sm:$0xff] %v1928
        %7092 = vst [vmem:[%s233 + $0x1f98] sm:$0xff] %v1930
        %7093 = vst [vmem:[%s233 + $0x1fa0] sm:$0xff] %v2893
        %7094 = vst [vmem:[%s233 + $0x1fa8] sm:$0xff] %v2895
        %7095 = vst [vmem:[%s233 + $0x1fb0] sm:$0xff] %v3858
        %7096 = vst [vmem:[%s233 + $0x1fb8] sm:$0xff] %v3860
        %7097 = vst [vmem:[%s233 + $0x1fc0] sm:$0xff] %v4823
        %7098 = vst [vmem:[%s233 + $0x1fc8] sm:$0xff] %v4825
        %7099 = vst [vmem:[%s233 + $0x1fd0] sm:$0xff] %v5788
        %7100 = vst.msk [vmem:[%s233 + $0x1fd8] sm:$0xff] %vm6089, %v5790
        %7101 = vst [vmem:[%s233 + $0x1fe0] sm:$0xff] %v1934
        %7102 = vst [vmem:[%s233 + $0x1fe8] sm:$0xff] %v1936
        %7103 = vst [vmem:[%s233 + $0x1ff0] sm:$0xff] %v2899
        %7104 = vst [vmem:[%s233 + $0x1ff8] sm:$0xff] %v2901
        %7105 = vst [vmem:[%s233 + $0x2000] sm:$0xff] %v3864
        %7106 = vst [vmem:[%s233 + $0x2008] sm:$0xff] %v3866
        %7107 = vst [vmem:[%s233 + $0x2010] sm:$0xff] %v4829
        %7108 = vst [vmem:[%s233 + $0x2018] sm:$0xff] %v4831
        %7109 = vst [vmem:[%s233 + $0x2020] sm:$0xff] %v5794
        %7110 = vst.msk [vmem:[%s233 + $0x2028] sm:$0xff] %vm6089, %v5796
        %7111 = vst [vmem:[%s233 + $0x2030] sm:$0xff] %v1940
        %7112 = vst [vmem:[%s233 + $0x2038] sm:$0xff] %v1942
        %7113 = vst [vmem:[%s233 + $0x2040] sm:$0xff] %v2905
        %7114 = vst [vmem:[%s233 + $0x2048] sm:$0xff] %v2907
        %7115 = vst [vmem:[%s233 + $0x2050] sm:$0xff] %v3870
        %7116 = vst [vmem:[%s233 + $0x2058] sm:$0xff] %v3872
        %7117 = vst [vmem:[%s233 + $0x2060] sm:$0xff] %v4835
        %7118 = vst [vmem:[%s233 + $0x2068] sm:$0xff] %v4837
        %7119 = vst [vmem:[%s233 + $0x2070] sm:$0xff] %v5800
        %7120 = vst.msk [vmem:[%s233 + $0x2078] sm:$0xff] %vm6089, %v5802
        %7121 = vst [vmem:[%s233 + $0x2080] sm:$0xff] %v1946
        %7122 = vst [vmem:[%s233 + $0x2088] sm:$0xff] %v1948
        %7123 = vst [vmem:[%s233 + $0x2090] sm:$0xff] %v2911
        %7124 = vst [vmem:[%s233 + $0x2098] sm:$0xff] %v2913
        %7125 = vst [vmem:[%s233 + $0x20a0] sm:$0xff] %v3876
        %7126 = vst [vmem:[%s233 + $0x20a8] sm:$0xff] %v3878
        %7127 = vst [vmem:[%s233 + $0x20b0] sm:$0xff] %v4841
        %7128 = vst [vmem:[%s233 + $0x20b8] sm:$0xff] %v4843
        %7129 = vst [vmem:[%s233 + $0x20c0] sm:$0xff] %v5806
        %7130 = vst.msk [vmem:[%s233 + $0x20c8] sm:$0xff] %vm6089, %v5808
        %7131 = vst [vmem:[%s233 + $0x20d0] sm:$0xff] %v1952
        %7132 = vst [vmem:[%s233 + $0x20d8] sm:$0xff] %v1954
        %7133 = vst [vmem:[%s233 + $0x20e0] sm:$0xff] %v2917
        %7134 = vst [vmem:[%s233 + $0x20e8] sm:$0xff] %v2919
        %7135 = vst [vmem:[%s233 + $0x20f0] sm:$0xff] %v3882
        %7136 = vst [vmem:[%s233 + $0x20f8] sm:$0xff] %v3884
        %7137 = vst [vmem:[%s233 + $0x2100] sm:$0xff] %v4847
        %7138 = vst [vmem:[%s233 + $0x2108] sm:$0xff] %v4849
        %7139 = vst [vmem:[%s233 + $0x2110] sm:$0xff] %v5812
        %7140 = vst.msk [vmem:[%s233 + $0x2118] sm:$0xff] %vm6089, %v5814
        %7141 = vst [vmem:[%s233 + $0x2120] sm:$0xff] %v1958
        %7142 = vst [vmem:[%s233 + $0x2128] sm:$0xff] %v1960
        %7143 = vst [vmem:[%s233 + $0x2130] sm:$0xff] %v2923
        %7144 = vst [vmem:[%s233 + $0x2138] sm:$0xff] %v2925
        %7145 = vst [vmem:[%s233 + $0x2140] sm:$0xff] %v3888
        %7146 = vst [vmem:[%s233 + $0x2148] sm:$0xff] %v3890
        %7147 = vst [vmem:[%s233 + $0x2150] sm:$0xff] %v4853
        %7148 = vst [vmem:[%s233 + $0x2158] sm:$0xff] %v4855
        %7149 = vst [vmem:[%s233 + $0x2160] sm:$0xff] %v5818
        %7150 = vst.msk [vmem:[%s233 + $0x2168] sm:$0xff] %vm6089, %v5820
        %7151 = vst [vmem:[%s233 + $0x2170] sm:$0xff] %v1964
        %7152 = vst [vmem:[%s233 + $0x2178] sm:$0xff] %v1966
        %7153 = vst [vmem:[%s233 + $0x2180] sm:$0xff] %v2929
        %7154 = vst [vmem:[%s233 + $0x2188] sm:$0xff] %v2931
        %7155 = vst [vmem:[%s233 + $0x2190] sm:$0xff] %v3894
        %7156 = vst [vmem:[%s233 + $0x2198] sm:$0xff] %v3896
        %7157 = vst [vmem:[%s233 + $0x21a0] sm:$0xff] %v4859
        %7158 = vst [vmem:[%s233 + $0x21a8] sm:$0xff] %v4861
        %7159 = vst [vmem:[%s233 + $0x21b0] sm:$0xff] %v5824
        %7160 = vst.msk [vmem:[%s233 + $0x21b8] sm:$0xff] %vm6089, %v5826
        %7161 = vst [vmem:[%s233 + $0x21c0] sm:$0xff] %v1970
        %7162 = vst [vmem:[%s233 + $0x21c8] sm:$0xff] %v1972
        %7163 = vst [vmem:[%s233 + $0x21d0] sm:$0xff] %v2935
        %7164 = vst [vmem:[%s233 + $0x21d8] sm:$0xff] %v2937
        %7165 = vst [vmem:[%s233 + $0x21e0] sm:$0xff] %v3900
        %7166 = vst [vmem:[%s233 + $0x21e8] sm:$0xff] %v3902
        %7167 = vst [vmem:[%s233 + $0x21f0] sm:$0xff] %v4865
        %7168 = vst [vmem:[%s233 + $0x21f8] sm:$0xff] %v4867
        %7169 = vst [vmem:[%s233 + $0x2200] sm:$0xff] %v5830
        %7170 = vst.msk [vmem:[%s233 + $0x2208] sm:$0xff] %vm6089, %v5832
        %7171 = vst [vmem:[%s233 + $0x2210] sm:$0xff] %v1976
        %7172 = vst [vmem:[%s233 + $0x2218] sm:$0xff] %v1978
        %7173 = vst [vmem:[%s233 + $0x2220] sm:$0xff] %v2941
        %7174 = vst [vmem:[%s233 + $0x2228] sm:$0xff] %v2943
        %7175 = vst [vmem:[%s233 + $0x2230] sm:$0xff] %v3906
        %7176 = vst [vmem:[%s233 + $0x2238] sm:$0xff] %v3908
        %7177 = vst [vmem:[%s233 + $0x2240] sm:$0xff] %v4871
        %7178 = vst [vmem:[%s233 + $0x2248] sm:$0xff] %v4873
        %7179 = vst [vmem:[%s233 + $0x2250] sm:$0xff] %v5836
        %7180 = vst.msk [vmem:[%s233 + $0x2258] sm:$0xff] %vm6089, %v5838
        %7181 = vst [vmem:[%s233 + $0x2260] sm:$0xff] %v1982
        %7182 = vst [vmem:[%s233 + $0x2268] sm:$0xff] %v1984
        %7183 = vst [vmem:[%s233 + $0x2270] sm:$0xff] %v2947
        %7184 = vst [vmem:[%s233 + $0x2278] sm:$0xff] %v2949
        %7185 = vst [vmem:[%s233 + $0x2280] sm:$0xff] %v3912
        %7186 = vst [vmem:[%s233 + $0x2288] sm:$0xff] %v3914
        %7187 = vst [vmem:[%s233 + $0x2290] sm:$0xff] %v4877
        %7188 = vst [vmem:[%s233 + $0x2298] sm:$0xff] %v4879
        %7189 = vst [vmem:[%s233 + $0x22a0] sm:$0xff] %v5842
        %7190 = vst.msk [vmem:[%s233 + $0x22a8] sm:$0xff] %vm6089, %v5844
        %7191 = vst [vmem:[%s233 + $0x22b0] sm:$0xff] %v1988
        %7192 = vst [vmem:[%s233 + $0x22b8] sm:$0xff] %v1990
        %7193 = vst [vmem:[%s233 + $0x22c0] sm:$0xff] %v2953
        %7194 = vst [vmem:[%s233 + $0x22c8] sm:$0xff] %v2955
        %7195 = vst [vmem:[%s233 + $0x22d0] sm:$0xff] %v3918
        %7196 = vst [vmem:[%s233 + $0x22d8] sm:$0xff] %v3920
        %7197 = vst [vmem:[%s233 + $0x22e0] sm:$0xff] %v4883
        %7198 = vst [vmem:[%s233 + $0x22e8] sm:$0xff] %v4885
        %7199 = vst [vmem:[%s233 + $0x22f0] sm:$0xff] %v5848
        %7200 = vst.msk [vmem:[%s233 + $0x22f8] sm:$0xff] %vm6089, %v5850
        %7201 = vst [vmem:[%s233 + $0x2300] sm:$0xff] %v1994
        %7202 = vst [vmem:[%s233 + $0x2308] sm:$0xff] %v1996
        %7203 = vst [vmem:[%s233 + $0x2310] sm:$0xff] %v2959
        %7204 = vst [vmem:[%s233 + $0x2318] sm:$0xff] %v2961
        %7205 = vst [vmem:[%s233 + $0x2320] sm:$0xff] %v3924
        %7206 = vst [vmem:[%s233 + $0x2328] sm:$0xff] %v3926
        %7207 = vst [vmem:[%s233 + $0x2330] sm:$0xff] %v4889
        %7208 = vst [vmem:[%s233 + $0x2338] sm:$0xff] %v4891
        %7209 = vst [vmem:[%s233 + $0x2340] sm:$0xff] %v5854
        %7210 = vst.msk [vmem:[%s233 + $0x2348] sm:$0xff] %vm6089, %v5856
        %7211 = vst [vmem:[%s233 + $0x2350] sm:$0xff] %v2000
        %7212 = vst [vmem:[%s233 + $0x2358] sm:$0xff] %v2002
        %7213 = vst [vmem:[%s233 + $0x2360] sm:$0xff] %v2965
        %7214 = vst [vmem:[%s233 + $0x2368] sm:$0xff] %v2967
        %7215 = vst [vmem:[%s233 + $0x2370] sm:$0xff] %v3930
        %7216 = vst [vmem:[%s233 + $0x2378] sm:$0xff] %v3932
        %7217 = vst [vmem:[%s233 + $0x2380] sm:$0xff] %v4895
        %7218 = vst [vmem:[%s233 + $0x2388] sm:$0xff] %v4897
        %7219 = vst [vmem:[%s233 + $0x2390] sm:$0xff] %v5860
        %7220 = vst.msk [vmem:[%s233 + $0x2398] sm:$0xff] %vm6089, %v5862
        %7221 = vst [vmem:[%s233 + $0x23a0] sm:$0xff] %v2006
        %7222 = vst [vmem:[%s233 + $0x23a8] sm:$0xff] %v2008
        %7223 = vst [vmem:[%s233 + $0x23b0] sm:$0xff] %v2971
        %7224 = vst [vmem:[%s233 + $0x23b8] sm:$0xff] %v2973
        %7225 = vst [vmem:[%s233 + $0x23c0] sm:$0xff] %v3936
        %7226 = vst [vmem:[%s233 + $0x23c8] sm:$0xff] %v3938
        %7227 = vst [vmem:[%s233 + $0x23d0] sm:$0xff] %v4901
        %7228 = vst [vmem:[%s233 + $0x23d8] sm:$0xff] %v4903
        %7229 = vst [vmem:[%s233 + $0x23e0] sm:$0xff] %v5866
        %7230 = vst.msk [vmem:[%s233 + $0x23e8] sm:$0xff] %vm6089, %v5868
        %7231 = vst [vmem:[%s233 + $0x23f0] sm:$0xff] %v2012
        %7232 = vst [vmem:[%s233 + $0x23f8] sm:$0xff] %v2014
        %7233 = vst [vmem:[%s233 + $0x2400] sm:$0xff] %v2977
        %7234 = vst [vmem:[%s233 + $0x2408] sm:$0xff] %v2979
        %7235 = vst [vmem:[%s233 + $0x2410] sm:$0xff] %v3942
        %7236 = vst [vmem:[%s233 + $0x2418] sm:$0xff] %v3944
        %7237 = vst [vmem:[%s233 + $0x2420] sm:$0xff] %v4907
        %7238 = vst [vmem:[%s233 + $0x2428] sm:$0xff] %v4909
        %7239 = vst [vmem:[%s233 + $0x2430] sm:$0xff] %v5872
        %7240 = vst.msk [vmem:[%s233 + $0x2438] sm:$0xff] %vm6089, %v5874
        %7241 = vst [vmem:[%s233 + $0x2440] sm:$0xff] %v2018
        %7242 = vst [vmem:[%s233 + $0x2448] sm:$0xff] %v2020
        %7243 = vst [vmem:[%s233 + $0x2450] sm:$0xff] %v2983
        %7244 = vst [vmem:[%s233 + $0x2458] sm:$0xff] %v2985
        %7245 = vst [vmem:[%s233 + $0x2460] sm:$0xff] %v3948
        %7246 = vst [vmem:[%s233 + $0x2468] sm:$0xff] %v3950
        %7247 = vst [vmem:[%s233 + $0x2470] sm:$0xff] %v4913
        %7248 = vst [vmem:[%s233 + $0x2478] sm:$0xff] %v4915
        %7249 = vst [vmem:[%s233 + $0x2480] sm:$0xff] %v5878
        %7250 = vst.msk [vmem:[%s233 + $0x2488] sm:$0xff] %vm6089, %v5880
        %7251 = vst [vmem:[%s233 + $0x2490] sm:$0xff] %v2024
        %7252 = vst [vmem:[%s233 + $0x2498] sm:$0xff] %v2026
        %7253 = vst [vmem:[%s233 + $0x24a0] sm:$0xff] %v2989
        %7254 = vst [vmem:[%s233 + $0x24a8] sm:$0xff] %v2991
        %7255 = vst [vmem:[%s233 + $0x24b0] sm:$0xff] %v3954
        %7256 = vst [vmem:[%s233 + $0x24b8] sm:$0xff] %v3956
        %7257 = vst [vmem:[%s233 + $0x24c0] sm:$0xff] %v4919
        %7258 = vst [vmem:[%s233 + $0x24c8] sm:$0xff] %v4921
        %7259 = vst [vmem:[%s233 + $0x24d0] sm:$0xff] %v5884
        %7260 = vst.msk [vmem:[%s233 + $0x24d8] sm:$0xff] %vm6089, %v5886
        %7261 = vst [vmem:[%s233 + $0x24e0] sm:$0xff] %v2030
        %7262 = vst [vmem:[%s233 + $0x24e8] sm:$0xff] %v2032
        %7263 = vst [vmem:[%s233 + $0x24f0] sm:$0xff] %v2995
        %7264 = vst [vmem:[%s233 + $0x24f8] sm:$0xff] %v2997
        %7265 = vst [vmem:[%s233 + $0x2500] sm:$0xff] %v3960
        %7266 = vst [vmem:[%s233 + $0x2508] sm:$0xff] %v3962
        %7267 = vst [vmem:[%s233 + $0x2510] sm:$0xff] %v4925
        %7268 = vst [vmem:[%s233 + $0x2518] sm:$0xff] %v4927
        %7269 = vst [vmem:[%s233 + $0x2520] sm:$0xff] %v5890
        %7270 = vst.msk [vmem:[%s233 + $0x2528] sm:$0xff] %vm6089, %v5892
        %7271 = vst [vmem:[%s233 + $0x2530] sm:$0xff] %v2036
        %7272 = vst [vmem:[%s233 + $0x2538] sm:$0xff] %v2038
        %7273 = vst [vmem:[%s233 + $0x2540] sm:$0xff] %v3001
        %7274 = vst [vmem:[%s233 + $0x2548] sm:$0xff] %v3003
        %7275 = vst [vmem:[%s233 + $0x2550] sm:$0xff] %v3966
        %7276 = vst [vmem:[%s233 + $0x2558] sm:$0xff] %v3968
        %7277 = vst [vmem:[%s233 + $0x2560] sm:$0xff] %v4931
        %7278 = vst [vmem:[%s233 + $0x2568] sm:$0xff] %v4933
        %7279 = vst [vmem:[%s233 + $0x2570] sm:$0xff] %v5896
        %7280 = vst.msk [vmem:[%s233 + $0x2578] sm:$0xff] %vm6089, %v5898
        %7281 = vst [vmem:[%s233 + $0x2580] sm:$0xff] %v2042
        %7282 = vst [vmem:[%s233 + $0x2588] sm:$0xff] %v2044
        %7283 = vst [vmem:[%s233 + $0x2590] sm:$0xff] %v3007
        %7284 = vst [vmem:[%s233 + $0x2598] sm:$0xff] %v3009
        %7285 = vst [vmem:[%s233 + $0x25a0] sm:$0xff] %v3972
        %7286 = vst [vmem:[%s233 + $0x25a8] sm:$0xff] %v3974
        %7287 = vst [vmem:[%s233 + $0x25b0] sm:$0xff] %v4937
        %7288 = vst [vmem:[%s233 + $0x25b8] sm:$0xff] %v4939
        %7289 = vst [vmem:[%s233 + $0x25c0] sm:$0xff] %v5902
        %7290 = vst.msk [vmem:[%s233 + $0x25c8] sm:$0xff] %vm6089, %v5904
        %7291 = vst [vmem:[%s233 + $0x25d0] sm:$0xff] %v2048
        %7292 = vst [vmem:[%s233 + $0x25d8] sm:$0xff] %v2050
        %7293 = vst [vmem:[%s233 + $0x25e0] sm:$0xff] %v3013
        %7294 = vst [vmem:[%s233 + $0x25e8] sm:$0xff] %v3015
        %7295 = vst [vmem:[%s233 + $0x25f0] sm:$0xff] %v3978
        %7296 = vst [vmem:[%s233 + $0x25f8] sm:$0xff] %v3980
        %7297 = vst [vmem:[%s233 + $0x2600] sm:$0xff] %v4943
        %7298 = vst [vmem:[%s233 + $0x2608] sm:$0xff] %v4945
        %7299 = vst [vmem:[%s233 + $0x2610] sm:$0xff] %v5908
        %7300 = vst.msk [vmem:[%s233 + $0x2618] sm:$0xff] %vm6089, %v5910
        %7301 = vst [vmem:[%s233 + $0x2620] sm:$0xff] %v2054
        %7302 = vst [vmem:[%s233 + $0x2628] sm:$0xff] %v2056
        %7303 = vst [vmem:[%s233 + $0x2630] sm:$0xff] %v3019
        %7304 = vst [vmem:[%s233 + $0x2638] sm:$0xff] %v3021
        %7305 = vst [vmem:[%s233 + $0x2640] sm:$0xff] %v3984
        %7306 = vst [vmem:[%s233 + $0x2648] sm:$0xff] %v3986
        %7307 = vst [vmem:[%s233 + $0x2650] sm:$0xff] %v4949
        %7308 = vst [vmem:[%s233 + $0x2658] sm:$0xff] %v4951
        %7309 = vst [vmem:[%s233 + $0x2660] sm:$0xff] %v5914
        %7310 = vst.msk [vmem:[%s233 + $0x2668] sm:$0xff] %vm6089, %v5916
        %7311 = vst [vmem:[%s233 + $0x2670] sm:$0xff] %v2060
        %7312 = vst [vmem:[%s233 + $0x2678] sm:$0xff] %v2062
        %7313 = vst [vmem:[%s233 + $0x2680] sm:$0xff] %v3025
        %7314 = vst [vmem:[%s233 + $0x2688] sm:$0xff] %v3027
        %7315 = vst [vmem:[%s233 + $0x2690] sm:$0xff] %v3990
        %7316 = vst [vmem:[%s233 + $0x2698] sm:$0xff] %v3992
        %7317 = vst [vmem:[%s233 + $0x26a0] sm:$0xff] %v4955
        %7318 = vst [vmem:[%s233 + $0x26a8] sm:$0xff] %v4957
        %7319 = vst [vmem:[%s233 + $0x26b0] sm:$0xff] %v5920
        %7320 = vst.msk [vmem:[%s233 + $0x26b8] sm:$0xff] %vm6089, %v5922
        %7321 = vst [vmem:[%s233 + $0x26c0] sm:$0xff] %v2066
        %7322 = vst [vmem:[%s233 + $0x26c8] sm:$0xff] %v2068
        %7323 = vst [vmem:[%s233 + $0x26d0] sm:$0xff] %v3031
        %7324 = vst [vmem:[%s233 + $0x26d8] sm:$0xff] %v3033
        %7325 = vst [vmem:[%s233 + $0x26e0] sm:$0xff] %v3996
        %7326 = vst [vmem:[%s233 + $0x26e8] sm:$0xff] %v3998
        %7327 = vst [vmem:[%s233 + $0x26f0] sm:$0xff] %v4961
        %7328 = vst [vmem:[%s233 + $0x26f8] sm:$0xff] %v4963
        %7329 = vst [vmem:[%s233 + $0x2700] sm:$0xff] %v5926
        %7330 = vst.msk [vmem:[%s233 + $0x2708] sm:$0xff] %vm6089, %v5928
        %7331 = vst [vmem:[%s233 + $0x2710] sm:$0xff] %v2072
        %7332 = vst [vmem:[%s233 + $0x2718] sm:$0xff] %v2074
        %7333 = vst [vmem:[%s233 + $0x2720] sm:$0xff] %v3037
        %7334 = vst [vmem:[%s233 + $0x2728] sm:$0xff] %v3039
        %7335 = vst [vmem:[%s233 + $0x2730] sm:$0xff] %v4002
        %7336 = vst [vmem:[%s233 + $0x2738] sm:$0xff] %v4004
        %7337 = vst [vmem:[%s233 + $0x2740] sm:$0xff] %v4967
        %7338 = vst [vmem:[%s233 + $0x2748] sm:$0xff] %v4969
        %7339 = vst [vmem:[%s233 + $0x2750] sm:$0xff] %v5932
        %7340 = vst.msk [vmem:[%s233 + $0x2758] sm:$0xff] %vm6089, %v5934
        %7341 = vst [vmem:[%s233 + $0x2760] sm:$0xff] %v2078
        %7342 = vst [vmem:[%s233 + $0x2768] sm:$0xff] %v2080
        %7343 = vst [vmem:[%s233 + $0x2770] sm:$0xff] %v3043
        %7344 = vst [vmem:[%s233 + $0x2778] sm:$0xff] %v3045
        %7345 = vst [vmem:[%s233 + $0x2780] sm:$0xff] %v4008
        %7346 = vst [vmem:[%s233 + $0x2788] sm:$0xff] %v4010
        %7347 = vst [vmem:[%s233 + $0x2790] sm:$0xff] %v4973
        %7348 = vst [vmem:[%s233 + $0x2798] sm:$0xff] %v4975
        %7349 = vst [vmem:[%s233 + $0x27a0] sm:$0xff] %v5938
        %7350 = vst.msk [vmem:[%s233 + $0x27a8] sm:$0xff] %vm6089, %v5940
        %7351 = vst [vmem:[%s233 + $0x27b0] sm:$0xff] %v2084
        %7352 = vst [vmem:[%s233 + $0x27b8] sm:$0xff] %v2086
        %7353 = vst [vmem:[%s233 + $0x27c0] sm:$0xff] %v3049
        %7354 = vst [vmem:[%s233 + $0x27c8] sm:$0xff] %v3051
        %7355 = vst [vmem:[%s233 + $0x27d0] sm:$0xff] %v4014
        %7356 = vst [vmem:[%s233 + $0x27d8] sm:$0xff] %v4016
        %7357 = vst [vmem:[%s233 + $0x27e0] sm:$0xff] %v4979
        %7358 = vst [vmem:[%s233 + $0x27e8] sm:$0xff] %v4981
        %7359 = vst [vmem:[%s233 + $0x27f0] sm:$0xff] %v5944
        %7360 = vst.msk [vmem:[%s233 + $0x27f8] sm:$0xff] %vm6089, %v5946
        %7361 = vst [vmem:[%s233 + $0x2800] sm:$0xff] %v2090
        %7362 = vst [vmem:[%s233 + $0x2808] sm:$0xff] %v2092
        %7363 = vst [vmem:[%s233 + $0x2810] sm:$0xff] %v3055
        %7364 = vst [vmem:[%s233 + $0x2818] sm:$0xff] %v3057
        %7365 = vst [vmem:[%s233 + $0x2820] sm:$0xff] %v4020
        %7366 = vst [vmem:[%s233 + $0x2828] sm:$0xff] %v4022
        %7367 = vst [vmem:[%s233 + $0x2830] sm:$0xff] %v4985
        %7368 = vst [vmem:[%s233 + $0x2838] sm:$0xff] %v4987
        %7369 = vst [vmem:[%s233 + $0x2840] sm:$0xff] %v5950
        %7370 = vst.msk [vmem:[%s233 + $0x2848] sm:$0xff] %vm6089, %v5952
        %7371 = vst [vmem:[%s233 + $0x2850] sm:$0xff] %v2096
        %7372 = vst [vmem:[%s233 + $0x2858] sm:$0xff] %v2098
        %7373 = vst [vmem:[%s233 + $0x2860] sm:$0xff] %v3061
        %7374 = vst [vmem:[%s233 + $0x2868] sm:$0xff] %v3063
        %7375 = vst [vmem:[%s233 + $0x2870] sm:$0xff] %v4026
        %7376 = vst [vmem:[%s233 + $0x2878] sm:$0xff] %v4028
        %7377 = vst [vmem:[%s233 + $0x2880] sm:$0xff] %v4991
        %7378 = vst [vmem:[%s233 + $0x2888] sm:$0xff] %v4993
        %7379 = vst [vmem:[%s233 + $0x2890] sm:$0xff] %v5956
        %7380 = vst.msk [vmem:[%s233 + $0x2898] sm:$0xff] %vm6089, %v5958
        %7381 = vst [vmem:[%s233 + $0x28a0] sm:$0xff] %v2102
        %7382 = vst [vmem:[%s233 + $0x28a8] sm:$0xff] %v2104
        %7383 = vst [vmem:[%s233 + $0x28b0] sm:$0xff] %v3067
        %7384 = vst [vmem:[%s233 + $0x28b8] sm:$0xff] %v3069
        %7385 = vst [vmem:[%s233 + $0x28c0] sm:$0xff] %v4032
        %7386 = vst [vmem:[%s233 + $0x28c8] sm:$0xff] %v4034
        %7387 = vst [vmem:[%s233 + $0x28d0] sm:$0xff] %v4997
        %7388 = vst [vmem:[%s233 + $0x28d8] sm:$0xff] %v4999
        %7389 = vst [vmem:[%s233 + $0x28e0] sm:$0xff] %v5962
        %7390 = vst.msk [vmem:[%s233 + $0x28e8] sm:$0xff] %vm6089, %v5964
        %7391 = vst [vmem:[%s233 + $0x28f0] sm:$0xff] %v2108
        %7392 = vst [vmem:[%s233 + $0x28f8] sm:$0xff] %v2110
        %7393 = vst [vmem:[%s233 + $0x2900] sm:$0xff] %v3073
        %7394 = vst [vmem:[%s233 + $0x2908] sm:$0xff] %v3075
        %7395 = vst [vmem:[%s233 + $0x2910] sm:$0xff] %v4038
        %7396 = vst [vmem:[%s233 + $0x2918] sm:$0xff] %v4040
        %7397 = vst [vmem:[%s233 + $0x2920] sm:$0xff] %v5003
        %7398 = vst [vmem:[%s233 + $0x2928] sm:$0xff] %v5005
        %7399 = vst [vmem:[%s233 + $0x2930] sm:$0xff] %v5968
        %7400 = vst.msk [vmem:[%s233 + $0x2938] sm:$0xff] %vm6089, %v5970
        %7401 = vst [vmem:[%s233 + $0x2940] sm:$0xff] %v2114
        %7402 = vst [vmem:[%s233 + $0x2948] sm:$0xff] %v2116
        %7403 = vst [vmem:[%s233 + $0x2950] sm:$0xff] %v3079
        %7404 = vst [vmem:[%s233 + $0x2958] sm:$0xff] %v3081
        %7405 = vst [vmem:[%s233 + $0x2960] sm:$0xff] %v4044
        %7406 = vst [vmem:[%s233 + $0x2968] sm:$0xff] %v4046
        %7407 = vst [vmem:[%s233 + $0x2970] sm:$0xff] %v5009
        %7408 = vst [vmem:[%s233 + $0x2978] sm:$0xff] %v5011
        %7409 = vst [vmem:[%s233 + $0x2980] sm:$0xff] %v5974
        %7410 = vst.msk [vmem:[%s233 + $0x2988] sm:$0xff] %vm6089, %v5976
        %7411 = vst [vmem:[%s233 + $0x2990] sm:$0xff] %v2120
        %7412 = vst [vmem:[%s233 + $0x2998] sm:$0xff] %v2122
        %7413 = vst [vmem:[%s233 + $0x29a0] sm:$0xff] %v3085
        %7414 = vst [vmem:[%s233 + $0x29a8] sm:$0xff] %v3087
        %7415 = vst [vmem:[%s233 + $0x29b0] sm:$0xff] %v4050
        %7416 = vst [vmem:[%s233 + $0x29b8] sm:$0xff] %v4052
        %7417 = vst [vmem:[%s233 + $0x29c0] sm:$0xff] %v5015
        %7418 = vst [vmem:[%s233 + $0x29c8] sm:$0xff] %v5017
        %7419 = vst [vmem:[%s233 + $0x29d0] sm:$0xff] %v5980
        %7420 = vst.msk [vmem:[%s233 + $0x29d8] sm:$0xff] %vm6089, %v5982
        %7421 = vst [vmem:[%s233 + $0x29e0] sm:$0xff] %v2126
        %7422 = vst [vmem:[%s233 + $0x29e8] sm:$0xff] %v2128
        %7423 = vst [vmem:[%s233 + $0x29f0] sm:$0xff] %v3091
        %7424 = vst [vmem:[%s233 + $0x29f8] sm:$0xff] %v3093
        %7425 = vst [vmem:[%s233 + $0x2a00] sm:$0xff] %v4056
        %7426 = vst [vmem:[%s233 + $0x2a08] sm:$0xff] %v4058
        %7427 = vst [vmem:[%s233 + $0x2a10] sm:$0xff] %v5021
        %7428 = vst [vmem:[%s233 + $0x2a18] sm:$0xff] %v5023
        %7429 = vst [vmem:[%s233 + $0x2a20] sm:$0xff] %v5986
        %7430 = vst.msk [vmem:[%s233 + $0x2a28] sm:$0xff] %vm6089, %v5988
        %7431 = vst [vmem:[%s233 + $0x2a30] sm:$0xff] %v2132
        %7432 = vst [vmem:[%s233 + $0x2a38] sm:$0xff] %v2134
        %7433 = vst [vmem:[%s233 + $0x2a40] sm:$0xff] %v3097
        %7434 = vst [vmem:[%s233 + $0x2a48] sm:$0xff] %v3099
        %7435 = vst [vmem:[%s233 + $0x2a50] sm:$0xff] %v4062
        %7436 = vst [vmem:[%s233 + $0x2a58] sm:$0xff] %v4064
        %7437 = vst [vmem:[%s233 + $0x2a60] sm:$0xff] %v5027
        %7438 = vst [vmem:[%s233 + $0x2a68] sm:$0xff] %v5029
        %7439 = vst [vmem:[%s233 + $0x2a70] sm:$0xff] %v5992
        %7440 = vst.msk [vmem:[%s233 + $0x2a78] sm:$0xff] %vm6089, %v5994
        %7441 = vst [vmem:[%s233 + $0x2a80] sm:$0xff] %v2138
        %7442 = vst [vmem:[%s233 + $0x2a88] sm:$0xff] %v2140
        %7443 = vst [vmem:[%s233 + $0x2a90] sm:$0xff] %v3103
        %7444 = vst [vmem:[%s233 + $0x2a98] sm:$0xff] %v3105
        %7445 = vst [vmem:[%s233 + $0x2aa0] sm:$0xff] %v4068
        %7446 = vst [vmem:[%s233 + $0x2aa8] sm:$0xff] %v4070
        %7447 = vst [vmem:[%s233 + $0x2ab0] sm:$0xff] %v5033
        %7448 = vst [vmem:[%s233 + $0x2ab8] sm:$0xff] %v5035
        %7449 = vst [vmem:[%s233 + $0x2ac0] sm:$0xff] %v5998
        %7450 = vst.msk [vmem:[%s233 + $0x2ac8] sm:$0xff] %vm6089, %v6000
        %7451 = vst [vmem:[%s233 + $0x2ad0] sm:$0xff] %v2144
        %7452 = vst [vmem:[%s233 + $0x2ad8] sm:$0xff] %v2146
        %7453 = vst [vmem:[%s233 + $0x2ae0] sm:$0xff] %v3109
        %7454 = vst [vmem:[%s233 + $0x2ae8] sm:$0xff] %v3111
        %7455 = vst [vmem:[%s233 + $0x2af0] sm:$0xff] %v4074
        %7456 = vst [vmem:[%s233 + $0x2af8] sm:$0xff] %v4076
        %7457 = vst [vmem:[%s233 + $0x2b00] sm:$0xff] %v5039
        %7458 = vst [vmem:[%s233 + $0x2b08] sm:$0xff] %v5041
        %7459 = vst [vmem:[%s233 + $0x2b10] sm:$0xff] %v6004
        %7460 = vst.msk [vmem:[%s233 + $0x2b18] sm:$0xff] %vm6089, %v6006
        %7461 = vst [vmem:[%s233 + $0x2b20] sm:$0xff] %v2150
        %7462 = vst [vmem:[%s233 + $0x2b28] sm:$0xff] %v2152
        %7463 = vst [vmem:[%s233 + $0x2b30] sm:$0xff] %v3115
        %7464 = vst [vmem:[%s233 + $0x2b38] sm:$0xff] %v3117
        %7465 = vst [vmem:[%s233 + $0x2b40] sm:$0xff] %v4080
        %7466 = vst [vmem:[%s233 + $0x2b48] sm:$0xff] %v4082
        %7467 = vst [vmem:[%s233 + $0x2b50] sm:$0xff] %v5045
        %7468 = vst [vmem:[%s233 + $0x2b58] sm:$0xff] %v5047
        %7469 = vst [vmem:[%s233 + $0x2b60] sm:$0xff] %v6010
        %7470 = vst.msk [vmem:[%s233 + $0x2b68] sm:$0xff] %vm6089, %v6012
        %7471 = vst [vmem:[%s233 + $0x2b70] sm:$0xff] %v2156
        %7472 = vst [vmem:[%s233 + $0x2b78] sm:$0xff] %v2158
        %7473 = vst [vmem:[%s233 + $0x2b80] sm:$0xff] %v3121
        %7474 = vst [vmem:[%s233 + $0x2b88] sm:$0xff] %v3123
        %7475 = vst [vmem:[%s233 + $0x2b90] sm:$0xff] %v4086
        %7476 = vst [vmem:[%s233 + $0x2b98] sm:$0xff] %v4088
        %7477 = vst [vmem:[%s233 + $0x2ba0] sm:$0xff] %v5051
        %7478 = vst [vmem:[%s233 + $0x2ba8] sm:$0xff] %v5053
        %7479 = vst [vmem:[%s233 + $0x2bb0] sm:$0xff] %v6016
        %7480 = vst.msk [vmem:[%s233 + $0x2bb8] sm:$0xff] %vm6089, %v6018
        %7481 = vst [vmem:[%s233 + $0x2bc0] sm:$0xff] %v2162
        %7482 = vst [vmem:[%s233 + $0x2bc8] sm:$0xff] %v2164
        %7483 = vst [vmem:[%s233 + $0x2bd0] sm:$0xff] %v3127
        %7484 = vst [vmem:[%s233 + $0x2bd8] sm:$0xff] %v3129
        %7485 = vst [vmem:[%s233 + $0x2be0] sm:$0xff] %v4092
        %7486 = vst [vmem:[%s233 + $0x2be8] sm:$0xff] %v4094
        %7487 = vst [vmem:[%s233 + $0x2bf0] sm:$0xff] %v5057
        %7488 = vst [vmem:[%s233 + $0x2bf8] sm:$0xff] %v5059
        %7489 = vst [vmem:[%s233 + $0x2c00] sm:$0xff] %v6022
        %7490 = vst.msk [vmem:[%s233 + $0x2c08] sm:$0xff] %vm6089, %v6024
        %7491 = vst [vmem:[%s233 + $0x2c10] sm:$0xff] %v2168
        %7492 = vst [vmem:[%s233 + $0x2c18] sm:$0xff] %v2170
        %7493 = vst [vmem:[%s233 + $0x2c20] sm:$0xff] %v3133
        %7494 = vst [vmem:[%s233 + $0x2c28] sm:$0xff] %v3135
        %7495 = vst [vmem:[%s233 + $0x2c30] sm:$0xff] %v4098
        %7496 = vst [vmem:[%s233 + $0x2c38] sm:$0xff] %v4100
        %7497 = vst [vmem:[%s233 + $0x2c40] sm:$0xff] %v5063
        %7498 = vst [vmem:[%s233 + $0x2c48] sm:$0xff] %v5065
        %7499 = vst [vmem:[%s233 + $0x2c50] sm:$0xff] %v6028
        %7500 = vst.msk [vmem:[%s233 + $0x2c58] sm:$0xff] %vm6089, %v6030
        %7501 = vst [vmem:[%s233 + $0x2c60] sm:$0xff] %v2174
        %7502 = vst [vmem:[%s233 + $0x2c68] sm:$0xff] %v2176
        %7503 = vst [vmem:[%s233 + $0x2c70] sm:$0xff] %v3139
        %7504 = vst [vmem:[%s233 + $0x2c78] sm:$0xff] %v3141
        %7505 = vst [vmem:[%s233 + $0x2c80] sm:$0xff] %v4104
        %7506 = vst [vmem:[%s233 + $0x2c88] sm:$0xff] %v4106
        %7507 = vst [vmem:[%s233 + $0x2c90] sm:$0xff] %v5069
        %7508 = vst [vmem:[%s233 + $0x2c98] sm:$0xff] %v5071
        %7509 = vst [vmem:[%s233 + $0x2ca0] sm:$0xff] %v6034
        %7510 = vst.msk [vmem:[%s233 + $0x2ca8] sm:$0xff] %vm6089, %v6036
        %7511 = vst [vmem:[%s233 + $0x2cb0] sm:$0xff] %v2180
        %7512 = vst [vmem:[%s233 + $0x2cb8] sm:$0xff] %v2182
        %7513 = vst [vmem:[%s233 + $0x2cc0] sm:$0xff] %v3145
        %7514 = vst [vmem:[%s233 + $0x2cc8] sm:$0xff] %v3147
        %7515 = vst [vmem:[%s233 + $0x2cd0] sm:$0xff] %v4110
        %7516 = vst [vmem:[%s233 + $0x2cd8] sm:$0xff] %v4112
        %7517 = vst [vmem:[%s233 + $0x2ce0] sm:$0xff] %v5075
        %7518 = vst [vmem:[%s233 + $0x2ce8] sm:$0xff] %v5077
        %7519 = vst [vmem:[%s233 + $0x2cf0] sm:$0xff] %v6040
        %7520 = vst.msk [vmem:[%s233 + $0x2cf8] sm:$0xff] %vm6089, %v6042
        %7521 = vst [vmem:[%s233 + $0x2d00] sm:$0xff] %v2186
        %7522 = vst [vmem:[%s233 + $0x2d08] sm:$0xff] %v2188
        %7523 = vst [vmem:[%s233 + $0x2d10] sm:$0xff] %v3151
        %7524 = vst [vmem:[%s233 + $0x2d18] sm:$0xff] %v3153
        %7525 = vst [vmem:[%s233 + $0x2d20] sm:$0xff] %v4116
        %7526 = vst [vmem:[%s233 + $0x2d28] sm:$0xff] %v4118
        %7527 = vst [vmem:[%s233 + $0x2d30] sm:$0xff] %v5081
        %7528 = vst [vmem:[%s233 + $0x2d38] sm:$0xff] %v5083
        %7529 = vst [vmem:[%s233 + $0x2d40] sm:$0xff] %v6046
        %7530 = vst.msk [vmem:[%s233 + $0x2d48] sm:$0xff] %vm6089, %v6048
        %7531 = vst [vmem:[%s233 + $0x2d50] sm:$0xff] %v2192
        %7532 = vst [vmem:[%s233 + $0x2d58] sm:$0xff] %v2194
        %7533 = vst [vmem:[%s233 + $0x2d60] sm:$0xff] %v3157
        %7534 = vst [vmem:[%s233 + $0x2d68] sm:$0xff] %v3159
        %7535 = vst [vmem:[%s233 + $0x2d70] sm:$0xff] %v4122
        %7536 = vst [vmem:[%s233 + $0x2d78] sm:$0xff] %v4124
        %7537 = vst [vmem:[%s233 + $0x2d80] sm:$0xff] %v5087
        %7538 = vst [vmem:[%s233 + $0x2d88] sm:$0xff] %v5089
        %7539 = vst [vmem:[%s233 + $0x2d90] sm:$0xff] %v6052
        %7540 = vst.msk [vmem:[%s233 + $0x2d98] sm:$0xff] %vm6089, %v6054
        %7541 = vst [vmem:[%s233 + $0x2da0] sm:$0xff] %v2198
        %7542 = vst [vmem:[%s233 + $0x2da8] sm:$0xff] %v2200
        %7543 = vst [vmem:[%s233 + $0x2db0] sm:$0xff] %v3163
        %7544 = vst [vmem:[%s233 + $0x2db8] sm:$0xff] %v3165
        %7545 = vst [vmem:[%s233 + $0x2dc0] sm:$0xff] %v4128
        %7546 = vst [vmem:[%s233 + $0x2dc8] sm:$0xff] %v4130
        %7547 = vst [vmem:[%s233 + $0x2dd0] sm:$0xff] %v5093
        %7548 = vst [vmem:[%s233 + $0x2dd8] sm:$0xff] %v5095
        %7549 = vst [vmem:[%s233 + $0x2de0] sm:$0xff] %v6058
        %7550 = vst.msk [vmem:[%s233 + $0x2de8] sm:$0xff] %vm6089, %v6060
        %7551 = vst [vmem:[%s233 + $0x2df0] sm:$0xff] %v2204
        %7552 = vst [vmem:[%s233 + $0x2df8] sm:$0xff] %v2206
        %7553 = vst [vmem:[%s233 + $0x2e00] sm:$0xff] %v3169
        %7554 = vst [vmem:[%s233 + $0x2e08] sm:$0xff] %v3171
        %7555 = vst [vmem:[%s233 + $0x2e10] sm:$0xff] %v4134
        %7556 = vst [vmem:[%s233 + $0x2e18] sm:$0xff] %v4136
        %7557 = vst [vmem:[%s233 + $0x2e20] sm:$0xff] %v5099
        %7558 = vst [vmem:[%s233 + $0x2e28] sm:$0xff] %v5101
        %7559 = vst [vmem:[%s233 + $0x2e30] sm:$0xff] %v6064
        %7560 = vst.msk [vmem:[%s233 + $0x2e38] sm:$0xff] %vm6089, %v6066
        %7561 = vst [vmem:[%s233 + $0x2e40] sm:$0xff] %v2210
        %7562 = vst [vmem:[%s233 + $0x2e48] sm:$0xff] %v2212
        %7563 = vst [vmem:[%s233 + $0x2e50] sm:$0xff] %v3175
        %7564 = vst [vmem:[%s233 + $0x2e58] sm:$0xff] %v3177
        %7565 = vst [vmem:[%s233 + $0x2e60] sm:$0xff] %v4140
        %7566 = vst [vmem:[%s233 + $0x2e68] sm:$0xff] %v4142
        %7567 = vst [vmem:[%s233 + $0x2e70] sm:$0xff] %v5105
        %7568 = vst [vmem:[%s233 + $0x2e78] sm:$0xff] %v5107
        %7569 = vst [vmem:[%s233 + $0x2e80] sm:$0xff] %v6070
        %7570 = vst.msk [vmem:[%s233 + $0x2e88] sm:$0xff] %vm6089, %v6072
        %7571 = vst [vmem:[%s233 + $0x2e90] sm:$0xff] %v2216
        %7572 = vst [vmem:[%s233 + $0x2e98] sm:$0xff] %v2218
        %7573 = vst [vmem:[%s233 + $0x2ea0] sm:$0xff] %v3181
        %7574 = vst [vmem:[%s233 + $0x2ea8] sm:$0xff] %v3183
        %7575 = vst [vmem:[%s233 + $0x2eb0] sm:$0xff] %v4146
        %7576 = vst [vmem:[%s233 + $0x2eb8] sm:$0xff] %v4148
        %7577 = vst [vmem:[%s233 + $0x2ec0] sm:$0xff] %v5111
        %7578 = vst [vmem:[%s233 + $0x2ec8] sm:$0xff] %v5113
        %7579 = vst [vmem:[%s233 + $0x2ed0] sm:$0xff] %v6076
        %7580 = vst.msk [vmem:[%s233 + $0x2ed8] sm:$0xff] %vm6089, %v6078
        %s7581 = sand.u32 %s116, 1
        %s7582 = scalar_lea.sflag [#allocation4], %s7581
        %s7583 = sand.u32 %s116, 1
        %s7584 = smul.addr %s7583, 12000
        %s7585 = scalar_lea.vmem [#allocation7], %s7584
        // Predicated region
        $region41: #{tpu_custom_call.1} parent=31 // pred_check
          %p7586 = pneg %p126
        $region42: #{tpu_custom_call.1} parent=31 // pred_check_branch
          %7588 = sbr.rel (%p7586) target = $region44
        $region43: #{tpu_custom_call.1} parent=31 // pred_region
          %s7589 = smul.u32 150, %s26
          %s7591 = ssub.s32 192000, 192000
          %7592 = vsyncadd %s7582, %s7591
          %s7593 = smul.addr %s7589, 10
          %s7594 = smul.addr %s25, 1500
          %s7595 = sadd.s32 %s7593, %s7594
          %s7596 = smul.addr %s7595, 128
          %s7597 = scalar_lea.hbm %s3, %s7596
          %s7598 = sshll.u32 %s7585, 4
          %s7599 = int_to_ptr.vmem [resolvable:$true] %s7598
          %7604 = dma.vmem_to_hbm [thread:$0]  %s7599, 192000, %s7597, %s7582, 1280, 1280, 80
        $region44: #{tpu_custom_call.1} parent=31 // pred_fallthru
          _
      $region32: #{tpu_custom_call.1} parent=5 // pred_fallthru
        _
      %p7605 = scmp.le.s32.totalorder 2, %s16
      // Predicated region
      $region45: #{tpu_custom_call.1} parent=5 // pred_check
        %p7606 = pneg %p7605
      $region46: #{tpu_custom_call.1} parent=5 // pred_check_branch
        %7608 = sbr.rel (%p7606) target = $region48
      $region47: #{tpu_custom_call.1} parent=5 // pred_region
        %s7609 = ssub.s32 %s16, 2
        // Predicated region
        $region49: #{tpu_custom_call.1} parent=47 // pred_check
          %p7610 = pneg %p132
        $region50: #{tpu_custom_call.1} parent=47 // pred_check_branch
          %7612 = sbr.rel (%p7610) target = $region52
        $region51: #{tpu_custom_call.1} parent=47 // pred_region
          %s7613 = sand.u32 %s117, 1
          %s7614 = scalar_lea.sflag [#allocation4], %s7613
          %s7615 = sand.u32 %s117, 1
          %s7616 = smul.addr %s7615, 12000
          %s7617 = scalar_lea.vmem [#allocation7], %s7616
          %7618 = dma.done %s7614, 192000
        $region52: #{tpu_custom_call.1} parent=47 // pred_fallthru
          _
      $region48: #{tpu_custom_call.1} parent=5 // pred_fallthru
        _
    $region6: #{tpu_custom_call.1} parent=1 // loop_footer
      %s20 = sadd.s32 1, %s16
    $region7: #{tpu_custom_call.1} parent=1 // loop_footer_branch
      %15 = sbr.rel target = $region3
    $region8: #{tpu_custom_call.1} parent=1 // loop_exit
      _
    %7619 = vsyncpa [#allocation3], 1
    %s7620 = scalar_lea.sflag [#allocation3], 1
    %7621 = vsyncpa %s7620, 1
    %7622 = vsyncpa [#allocation6], 1
    %s7623 = scalar_lea.sflag [#allocation6], 1
    %7624 = vsyncpa %s7623, 1
    %7625 = vsyncpa [#allocation4], 1
    %s7626 = scalar_lea.sflag [#allocation4], 1
    %7627 = vsyncpa %s7626, 1

</llo_original>
